<compile_context>
chip_gen: v7x
topology: tpu7x:2x2x1
jax: 0.10.0
libtpu: 0.0.40
codegen_flags: <defaults>
</compile_context>

<pallas_src>
import numpy as np
import jax
import jax.numpy as jnp
from jax.experimental import pallas as pl
from jax.experimental.pallas import tpu as pltpu

# ---------------------------------------------------------------------------
# Static geometry (LeNet on 1x28x28) and host-built constants
# ---------------------------------------------------------------------------
K, PAD = 5, 2
H1 = W1 = 28                    # conv1 spatial
C1_IN, C1_OUT = 1, 6
H2 = W2 = 14                    # conv2 spatial (after pool1)
C2_IN, C2_OUT = 6, 16
HP1 = H1 + 2 * PAD              # 32 (row-padded conv1 input height)
HP2 = H2 + 2 * PAD              # 18
PH1, PW1 = H1 // 2, W1 // 2     # 14, 14
PH2, PW2 = H2 // 2, W2 // 2     # 7, 7
C1W = C1_OUT * W1               # 168 (conv1 output lanes)
C2W = C2_OUT * W2               # 224 (conv2 output lanes)
F1N = C1_OUT * PW1              # 84  (== C2_IN * W2: pooled conv1 lanes)
F2N = C2_OUT * PW2              # 112 (pooled conv2 lanes)
N_FEAT = C2_OUT * PH2 * PW2     # 784
N_CLS = 10
LANES = 128


def _toeplitz_selector(cin, w):
    """D[ci, kw, ci*w + u, wo] = 1 iff u == wo + kw - PAD (horizontal same-pad)."""
    d = np.zeros((cin, K, cin * w, w), np.float32)
    for ci in range(cin):
        for kw in range(K):
            for wo in range(w):
                u = wo + kw - PAD
                if 0 <= u < w:
                    d[ci, kw, ci * w + u, wo] = 1.0
    return d


def _col_pool_selector(c, w):
    """Block-diagonal even/odd column selectors over (channel, width) lanes."""
    f = np.zeros((2, c * w, c * (w // 2)), np.float32)
    for s in range(2):
        for ci in range(c):
            for wo in range(w // 2):
                f[s, ci * w + 2 * wo + s, ci * (w // 2) + wo] = 1.0
    return f


_D1 = _toeplitz_selector(C1_IN, W1)     # [1, 5, 28, 28]
_D2 = _toeplitz_selector(C2_IN, W2)     # [6, 5, 84, 14]
_F1 = _col_pool_selector(C1_OUT, W1)    # [2, 168, 84]
_F2 = _col_pool_selector(C2_OUT, W2)    # [2, 224, 112]

# Kernel feature layout is (h-block, lanes=(c, w)); torch's .view flatten is
# (c, h, w).  Fold that permutation into fc1's weight rows:
# W1p[h, c*PW2 + w, :] = fc1_w.T[c*(PH2*PW2) + h*PW2 + w, :]
_FC1_PERM_HW = np.zeros((PH2, C2_OUT * PW2), np.int32)
for _h in range(PH2):
    for _c in range(C2_OUT):
        for _w in range(PW2):
            _FC1_PERM_HW[_h, _c * PW2 + _w] = _c * (PH2 * PW2) + _h * PW2 + _w


# ---------------------------------------------------------------------------
# Fused kernel: conv1 -> pool -> conv2 -> pool -> fc1 -> fc2 -> fc3 -> logsoftmax
# ---------------------------------------------------------------------------
def _lenet_kernel(x_ref, t1_ref, cb1_ref, f1_ref, t2_ref, cb2_ref, f2_ref,
                  w1_ref, fb1_ref, w2_ref, fb2_ref, w3_ref, fb3_ref,
                  o_ref, xs1_ref, xs2_ref):
    f32, bf16 = jnp.float32, jnp.bfloat16
    TB = x_ref.shape[1]                 # images per grid step (multiple of 16)
    M1, M1P = H1 * TB, PH1 * TB         # 28*TB, 14*TB
    M2, M2P = H2 * TB, PH2 * TB         # 14*TB, 7*TB

    # Zero only the vertical-padding row-blocks (interior is overwritten below).
    zpad1 = jnp.zeros((PAD * TB, C1_IN * W1), bf16)
    xs1_ref[0:PAD * TB, :] = zpad1
    xs1_ref[(PAD + H1) * TB:HP1 * TB, :] = zpad1
    zpad2 = jnp.zeros((PAD * TB, C2_IN * W2), bf16)
    xs2_ref[0:PAD * TB, :] = zpad2
    xs2_ref[(PAD + H2) * TB:HP2 * TB, :] = zpad2

    # ---- conv1 + bias + ReLU: 5 row-shifted banded-Toeplitz GEMMs, M = 28*TB
    xs1_ref[PAD * TB:(PAD + H1) * TB, :] = x_ref[...].reshape(M1, C1_IN * W1)
    acc1 = jnp.dot(xs1_ref[0:M1, :], t1_ref[0], preferred_element_type=f32)
    for kh in range(1, K):
        acc1 = acc1 + jnp.dot(xs1_ref[kh * TB:kh * TB + M1, :], t1_ref[kh],
                              preferred_element_type=f32)
    a1 = jnp.maximum(acc1 + cb1_ref[...], 0.0)                 # [28*TB, 168] f32

    # ---- 2x2 max-pool: rows via h-block max (reshape is layout-preserving),
    #      columns via exact 0/1 selector matmuls in bf16.
    a1 = a1.reshape(PH1, 2 * TB, C1W)
    r1 = jnp.maximum(a1[:, :TB, :], a1[:, TB:, :]).reshape(M1P, C1W).astype(bf16)
    p1 = jnp.maximum(jnp.dot(r1, f1_ref[0], preferred_element_type=f32),
                     jnp.dot(r1, f1_ref[1], preferred_element_type=f32))
    # p1: [14*TB, 84] -- already in conv2's (ci, w) lane layout.

    # ---- conv2 + bias + ReLU
    xs2_ref[PAD * TB:(PAD + H2) * TB, :] = p1.astype(bf16)
    acc2 = jnp.dot(xs2_ref[0:M2, :], t2_ref[0], preferred_element_type=f32)
    for kh in range(1, K):
        acc2 = acc2 + jnp.dot(xs2_ref[kh * TB:kh * TB + M2, :], t2_ref[kh],
                              preferred_element_type=f32)
    a2 = jnp.maximum(acc2 + cb2_ref[...], 0.0)                 # [14*TB, 224] f32

    a2 = a2.reshape(PH2, 2 * TB, C2W)
    r2 = jnp.maximum(a2[:, :TB, :], a2[:, TB:, :]).reshape(M2P, C2W).astype(bf16)
    p2 = jnp.maximum(jnp.dot(r2, f2_ref[0], preferred_element_type=f32),
                     jnp.dot(r2, f2_ref[1], preferred_element_type=f32))
    feats = p2.astype(bf16).reshape(PH2, TB, F2N)              # [7, TB, 112]

    # ---- fc1 (+ReLU) as 7 partial GEMMs over the h blocks (no flatten needed),
    #      then fc2 (+ReLU), fc3, log-softmax.  Lanes padded to 128 throughout.
    h = jnp.dot(feats[0], w1_ref[0], preferred_element_type=f32)
    for hh in range(1, PH2):
        h = h + jnp.dot(feats[hh], w1_ref[hh], preferred_element_type=f32)
    h = jnp.maximum(h + fb1_ref[...], 0.0)                     # [TB, 128]
    h = jnp.dot(h.astype(bf16), w2_ref[...], preferred_element_type=f32) + fb2_ref[...]
    h = jnp.maximum(h, 0.0)
    logits = (jnp.dot(h.astype(bf16), w3_ref[...], preferred_element_type=f32)
              + fb3_ref[...])                                  # [TB, 128]
    lane = jax.lax.broadcasted_iota(jnp.int32, logits.shape, 1)
    logits = jnp.where(lane < N_CLS, logits, -1e30)            # mask pad lanes (f32)
    m = jnp.max(logits, axis=-1, keepdims=True)
    s = logits - m
    lse = jnp.log(jnp.sum(jnp.exp(s), axis=-1, keepdims=True))
    o_ref[...] = (s - lse).astype(o_ref.dtype)


def _lenet_pallas_call(xh, c, tb):
    """xh: [28, B_pad, 28] bf16 (h-major).  c: prepared constant dict."""
    b_pad = xh.shape[1]
    nb = b_pad // tb

    def _const(arr):
        shape = arr.shape
        zeros = (0,) * len(shape)
        return pl.BlockSpec(shape, lambda i: zeros)

    consts = [c["t1"], c["cb1"], c["f1"], c["t2"], c["cb2"], c["f2"],
              c["w1"], c["fb1"], c["w2"], c["fb2"], c["w3"], c["fb3"]]

    macs = b_pad * (K * H1 * (C1_IN * W1) * C1W        # conv1
                    + 2 * PH1 * C1W * F1N              # pool1 column select
                    + K * H2 * (C2_IN * W2) * C2W      # conv2
                    + 2 * PH2 * C2W * F2N              # pool2 column select
                    + N_FEAT * LANES                   # fc1 (padded)
                    + 2 * LANES * LANES)               # fc2 + fc3 (padded)
    bytes_acc = (b_pad * H1 * W1 * 2 + b_pad * LANES * 4
                 + sum(int(np.prod(v.shape)) * v.dtype.itemsize for v in consts))

    return pl.pallas_call(
        _lenet_kernel,
        out_shape=jax.ShapeDtypeStruct((b_pad, LANES), jnp.float32),
        grid=(nb,),
        in_specs=[pl.BlockSpec((H1, tb, W1), lambda i: (0, i, 0))]
                 + [_const(a) for a in consts],
        out_specs=pl.BlockSpec((tb, LANES), lambda i: (i, 0)),
        scratch_shapes=[pltpu.VMEM((HP1 * tb, C1_IN * W1), jnp.bfloat16),
                        pltpu.VMEM((HP2 * tb, C2_IN * W2), jnp.bfloat16)],
        compiler_params=pltpu.CompilerParams(
            dimension_semantics=("parallel",),
            vmem_limit_bytes=32 * 1024 * 1024),
        cost_estimate=pl.CostEstimate(flops=int(2 * macs),
                                      transcendentals=int(b_pad * (LANES + 1)),
                                      bytes_accessed=int(bytes_acc)),
    )(xh, *consts)


# ---------------------------------------------------------------------------
# One-time weight preparation (hoisted out of the per-call forward)
# ---------------------------------------------------------------------------
def prepare_lenet_params(params):
    f32, bf16 = jnp.float32, jnp.bfloat16
    t1 = jnp.einsum('oipq,iquv->puov', params["conv1_w"], jnp.asarray(_D1))
    t1 = t1.reshape(K, C1_IN * W1, C1W).astype(bf16)
    t2 = jnp.einsum('oipq,iquv->puov', params["conv2_w"], jnp.asarray(_D2))
    t2 = t2.reshape(K, C2_IN * W2, C2W).astype(bf16)
    cb1 = jnp.repeat(params["conv1_b"], W1).reshape(1, C1W).astype(f32)
    cb2 = jnp.repeat(params["conv2_b"], W2).reshape(1, C2W).astype(f32)
    f1 = jnp.asarray(_F1).astype(bf16)      # 0/1 selectors exact in bf16
    f2 = jnp.asarray(_F2).astype(bf16)

    w1 = jnp.take(params["fc1_w"].T, jnp.asarray(_FC1_PERM_HW).reshape(-1), axis=0)
    w1 = jnp.pad(w1, ((0, 0), (0, LANES - 120)))
    w1 = w1.reshape(PH2, F2N, LANES).astype(bf16)                   # [7, 112, 128]
    fb1 = jnp.pad(params["fc1_b"], (0, LANES - 120)).reshape(1, LANES).astype(f32)
    w2 = jnp.pad(params["fc2_w"].T, ((0, LANES - 120), (0, LANES - 84))).astype(bf16)
    fb2 = jnp.pad(params["fc2_b"], (0, LANES - 84)).reshape(1, LANES).astype(f32)
    w3 = jnp.pad(params["fc3_w"].T, ((0, LANES - 84), (0, LANES - N_CLS))).astype(bf16)
    fb3 = jnp.pad(params["fc3_b"], (0, LANES - N_CLS)).reshape(1, LANES).astype(f32)
    return {"t1": t1, "cb1": cb1, "f1": f1, "t2": t2, "cb2": cb2, "f2": f2,
            "w1": w1, "fb1": fb1, "w2": w2, "fb2": fb2, "w3": w3, "fb3": fb3}


# ---------------------------------------------------------------------------
# Parameters (deterministic, PyTorch-default-style uniform init)
# ---------------------------------------------------------------------------
def init_lenet_params(key):
    def uniform(k, shape, fan_in):
        bound = 1.0 / jnp.sqrt(fan_in)
        return jax.random.uniform(k, shape, jnp.float32, -bound, bound)

    ks = jax.random.split(key, 10)
    p = {}
    p["conv1_w"] = uniform(ks[0], (6, 1, 5, 5), 1 * 5 * 5)
    p["conv1_b"] = uniform(ks[1], (6,), 1 * 5 * 5)
    p["conv2_w"] = uniform(ks[2], (16, 6, 5, 5), 6 * 5 * 5)
    p["conv2_b"] = uniform(ks[3], (16,), 6 * 5 * 5)
    p["fc1_w"] = uniform(ks[4], (120, 784), 784)
    p["fc1_b"] = uniform(ks[5], (120,), 784)
    p["fc2_w"] = uniform(ks[6], (84, 120), 120)
    p["fc2_b"] = uniform(ks[7], (84,), 120)
    p["fc3_w"] = uniform(ks[8], (10, 84), 84)
    p["fc3_b"] = uniform(ks[9], (10,), 84)
    return p


# ---------------------------------------------------------------------------
# Forward (mirrors LeNet.forward); `prepared` = prepare_lenet_params(params)
# ---------------------------------------------------------------------------
@jax.jit
def lenet_forward(prepared, x):
    B = x.shape[0]
    tb = 128 if B >= 128 else -((-B) // 16) * 16   # per-step batch tile (mult of 16)
    b_pad = -((-B) // tb) * tb
    xh = jnp.transpose(x.reshape(B, H1, W1), (1, 0, 2))          # [28, B, 28] h-major
    if b_pad != B:
        xh = jnp.pad(xh, ((0, 0), (0, b_pad - B), (0, 0)))
    xh = xh.astype(jnp.bfloat16)
    logp = _lenet_pallas_call(xh, prepared, tb)                  # [b_pad, 128]
    return logp[:B, :N_CLS]                                      # [B, 10] log-probs


# ---------------------------------------------------------------------------
# Pure-JAX reference (for a loose correctness check)
# ---------------------------------------------------------------------------
def lenet_reference(params, x):
    dn = ('NCHW', 'OIHW', 'NCHW')
    y = jax.lax.conv_general_dilated(x, params["conv1_w"], (1, 1), 'SAME',
                                     dimension_numbers=dn)
    y = jax.nn.relu(y + params["conv1_b"][None, :, None, None])
    y = jax.lax.reduce_window(y, -jnp.inf, jax.lax.max, (1, 1, 2, 2), (1, 1, 2, 2),
                              'VALID')
    y = jax.lax.conv_general_dilated(y, params["conv2_w"], (1, 1), 'SAME',
                                     dimension_numbers=dn)
    y = jax.nn.relu(y + params["conv2_b"][None, :, None, None])
    y = jax.lax.reduce_window(y, -jnp.inf, jax.lax.max, (1, 1, 2, 2), (1, 1, 2, 2),
                              'VALID')
    y = y.reshape(y.shape[0], -1)
    y = jax.nn.relu(y @ params["fc1_w"].T + params["fc1_b"])
    y = jax.nn.relu(y @ params["fc2_w"].T + params["fc2_b"])
    y = y @ params["fc3_w"].T + params["fc3_b"]
    return jax.nn.log_softmax(y, axis=-1)


if __name__ == "__main__":
    key = jax.random.PRNGKey(0)
    k_params, k_x = jax.random.split(key)
    params = init_lenet_params(k_params)
    prepared = prepare_lenet_params(params)          # one-time weight prep

    # fc1 expects 784 = 16*7*7 features, so the module implies 1x28x28 inputs.
    x = jax.random.normal(k_x, (2, 1, 28, 28), dtype=jnp.float32)
    out = lenet_forward(prepared, x)
    out = jax.block_until_ready(out)

    assert out.shape == (2, 10)
    # log_softmax rows must exponentiate-sum to 1
    assert bool(jnp.allclose(jnp.sum(jnp.exp(out), axis=-1), 1.0, atol=1e-3))
    # loose check against a pure-JAX reference (bf16 MXU operands in the kernel)
    ref = lenet_reference(params, x)
    max_err = float(jnp.max(jnp.abs(out - ref)))
    assert max_err < 0.15, f"max |log-prob diff| vs reference = {max_err}"
    print("KERNEL_OK")
</pallas_src>

<mosaic_0001>
module attributes {stable_mosaic.version = 11 : i64} {
  func.func @_lenet_kernel(%arg0: i32, %arg1: memref<28x16x28xbf16, #tpu.memory_space<vmem>>, %arg2: memref<5x28x168xbf16, #tpu.memory_space<vmem>>, %arg3: memref<1x168xf32, #tpu.memory_space<vmem>>, %arg4: memref<2x168x84xbf16, #tpu.memory_space<vmem>>, %arg5: memref<5x84x224xbf16, #tpu.memory_space<vmem>>, %arg6: memref<1x224xf32, #tpu.memory_space<vmem>>, %arg7: memref<2x224x112xbf16, #tpu.memory_space<vmem>>, %arg8: memref<7x112x128xbf16, #tpu.memory_space<vmem>>, %arg9: memref<1x128xf32, #tpu.memory_space<vmem>>, %arg10: memref<128x128xbf16, #tpu.memory_space<vmem>>, %arg11: memref<1x128xf32, #tpu.memory_space<vmem>>, %arg12: memref<128x128xbf16, #tpu.memory_space<vmem>>, %arg13: memref<1x128xf32, #tpu.memory_space<vmem>>, %arg14: memref<16x128xf32, #tpu.memory_space<vmem>>, %arg15: memref<512x28xbf16, #tpu.memory_space<vmem>>, %arg16: memref<288x84xbf16, #tpu.memory_space<vmem>>) attributes {dimension_semantics = [#tpu.dimension_semantics<parallel>], iteration_bounds = array<i64: 1>, scalar_prefetch = 0 : i64, scratch_operands = 2 : i64, tpu.core_type = #tpu.core_type<tc>, window_params = [{transform_indices = @transform_0, window_bounds = array<i64: 28, 16, 28>}, {pipeline_mode = #tpu.pipeline_mode<synchronous>, transform_indices = @transform_1, window_bounds = array<i64: 5, 28, 168>}, {pipeline_mode = #tpu.pipeline_mode<synchronous>, transform_indices = @transform_2, window_bounds = array<i64: 1, 168>}, {pipeline_mode = #tpu.pipeline_mode<synchronous>, transform_indices = @transform_3, window_bounds = array<i64: 2, 168, 84>}, {pipeline_mode = #tpu.pipeline_mode<synchronous>, transform_indices = @transform_4, window_bounds = array<i64: 5, 84, 224>}, {pipeline_mode = #tpu.pipeline_mode<synchronous>, transform_indices = @transform_5, window_bounds = array<i64: 1, 224>}, {pipeline_mode = #tpu.pipeline_mode<synchronous>, transform_indices = @transform_6, window_bounds = array<i64: 2, 224, 112>}, {pipeline_mode = #tpu.pipeline_mode<synchronous>, transform_indices = @transform_7, window_bounds = array<i64: 7, 112, 128>}, {pipeline_mode = #tpu.pipeline_mode<synchronous>, transform_indices = @transform_8, window_bounds = array<i64: 1, 128>}, {pipeline_mode = #tpu.pipeline_mode<synchronous>, transform_indices = @transform_9, window_bounds = array<i64: 128, 128>}, {pipeline_mode = #tpu.pipeline_mode<synchronous>, transform_indices = @transform_10, window_bounds = array<i64: 1, 128>}, {pipeline_mode = #tpu.pipeline_mode<synchronous>, transform_indices = @transform_11, window_bounds = array<i64: 128, 128>}, {pipeline_mode = #tpu.pipeline_mode<synchronous>, transform_indices = @transform_12, window_bounds = array<i64: 1, 128>}, {transform_indices = @transform_13, window_bounds = array<i64: 16, 128>}]} {
    %cst = arith.constant 0.000000e+00 : bf16
    %0 = vector.broadcast %cst : bf16 to vector<32x28xbf16>
    %c0 = arith.constant 0 : index
    %c0_0 = arith.constant 0 : index
    %1 = vector.load %arg15[%c0, %c0_0] : memref<512x28xbf16, #tpu.memory_space<vmem>>, vector<32x28xbf16>
    tpu.vector_store %arg15[%c0, %c0_0], %0 {strides = array<i32>} : memref<512x28xbf16, #tpu.memory_space<vmem>>, vector<32x28xbf16>,
    %c480 = arith.constant 480 : index
    %c0_1 = arith.constant 0 : index
    %2 = vector.load %arg15[%c480, %c0_1] : memref<512x28xbf16, #tpu.memory_space<vmem>>, vector<32x28xbf16>
    tpu.vector_store %arg15[%c480, %c0_1], %0 {strides = array<i32>} : memref<512x28xbf16, #tpu.memory_space<vmem>>, vector<32x28xbf16>,
    %cst_2 = arith.constant 0.000000e+00 : bf16
    %3 = vector.broadcast %cst_2 : bf16 to vector<32x84xbf16>
    %c0_3 = arith.constant 0 : index
    %c0_4 = arith.constant 0 : index
    %4 = vector.load %arg16[%c0_3, %c0_4] : memref<288x84xbf16, #tpu.memory_space<vmem>>, vector<32x84xbf16>
    tpu.vector_store %arg16[%c0_3, %c0_4], %3 {strides = array<i32>} : memref<288x84xbf16, #tpu.memory_space<vmem>>, vector<32x84xbf16>,
    %c256 = arith.constant 256 : index
    %c0_5 = arith.constant 0 : index
    %5 = vector.load %arg16[%c256, %c0_5] : memref<288x84xbf16, #tpu.memory_space<vmem>>, vector<32x84xbf16>
    tpu.vector_store %arg16[%c256, %c0_5], %3 {strides = array<i32>} : memref<288x84xbf16, #tpu.memory_space<vmem>>, vector<32x84xbf16>,
    %c0_6 = arith.constant 0 : index
    %c0_7 = arith.constant 0 : index
    %c0_8 = arith.constant 0 : index
    %6 = vector.load %arg1[%c0_6, %c0_7, %c0_8] : memref<28x16x28xbf16, #tpu.memory_space<vmem>>, vector<28x16x28xbf16>
    %7 = vector.shape_cast %6 : vector<28x16x28xbf16> to vector<448x28xbf16>
    %c32 = arith.constant 32 : index
    %c0_9 = arith.constant 0 : index
    %8 = vector.load %arg15[%c32, %c0_9] : memref<512x28xbf16, #tpu.memory_space<vmem>>, vector<448x28xbf16>
    tpu.vector_store %arg15[%c32, %c0_9], %7 {strides = array<i32>} : memref<512x28xbf16, #tpu.memory_space<vmem>>, vector<448x28xbf16>,
    %c0_10 = arith.constant 0 : index
    %c0_11 = arith.constant 0 : index
    %9 = vector.load %arg15[%c0_10, %c0_11] : memref<512x28xbf16, #tpu.memory_space<vmem>>, vector<448x28xbf16>
    %c0_12 = arith.constant 0 : index
    %c0_13 = arith.constant 0 : index
    %c0_14 = arith.constant 0 : index
    %10 = vector.load %arg2[%c0_12, %c0_13, %c0_14] : memref<5x28x168xbf16, #tpu.memory_space<vmem>>, vector<1x28x168xbf16>
    %11 = vector.shape_cast %10 : vector<1x28x168xbf16> to vector<28x168xbf16>
    %cst_15 = arith.constant dense<0.000000e+00> : vector<448x168xf32>
    %12 = tpu.matmul %9, %11, %cst_15 {dimension_numbers = #tpu.dot_dimension_numbers<[1], [0], [0], [1], [0, 0, 1, 1], [], []>} : vector<448x28xbf16>, vector<28x168xbf16>, vector<448x168xf32> -> vector<448x168xf32>
    %c16 = arith.constant 16 : index
    %c0_16 = arith.constant 0 : index
    %13 = vector.load %arg15[%c16, %c0_16] : memref<512x28xbf16, #tpu.memory_space<vmem>>, vector<448x28xbf16>
    %c1 = arith.constant 1 : index
    %c0_17 = arith.constant 0 : index
    %c0_18 = arith.constant 0 : index
    %14 = vector.load %arg2[%c1, %c0_17, %c0_18] : memref<5x28x168xbf16, #tpu.memory_space<vmem>>, vector<1x28x168xbf16>
    %15 = vector.shape_cast %14 : vector<1x28x168xbf16> to vector<28x168xbf16>
    %cst_19 = arith.constant dense<0.000000e+00> : vector<448x168xf32>
    %16 = tpu.matmul %13, %15, %cst_19 {dimension_numbers = #tpu.dot_dimension_numbers<[1], [0], [0], [1], [0, 0, 1, 1], [], []>} : vector<448x28xbf16>, vector<28x168xbf16>, vector<448x168xf32> -> vector<448x168xf32>
    %17 = arith.addf %12, %16 : vector<448x168xf32>
    %c32_20 = arith.constant 32 : index
    %c0_21 = arith.constant 0 : index
    %18 = vector.load %arg15[%c32_20, %c0_21] : memref<512x28xbf16, #tpu.memory_space<vmem>>, vector<448x28xbf16>
    %c2 = arith.constant 2 : index
    %c0_22 = arith.constant 0 : index
    %c0_23 = arith.constant 0 : index
    %19 = vector.load %arg2[%c2, %c0_22, %c0_23] : memref<5x28x168xbf16, #tpu.memory_space<vmem>>, vector<1x28x168xbf16>
    %20 = vector.shape_cast %19 : vector<1x28x168xbf16> to vector<28x168xbf16>
    %cst_24 = arith.constant dense<0.000000e+00> : vector<448x168xf32>
    %21 = tpu.matmul %18, %20, %cst_24 {dimension_numbers = #tpu.dot_dimension_numbers<[1], [0], [0], [1], [0, 0, 1, 1], [], []>} : vector<448x28xbf16>, vector<28x168xbf16>, vector<448x168xf32> -> vector<448x168xf32>
    %22 = arith.addf %17, %21 : vector<448x168xf32>
    %c48 = arith.constant 48 : index
    %c0_25 = arith.constant 0 : index
    %23 = vector.load %arg15[%c48, %c0_25] : memref<512x28xbf16, #tpu.memory_space<vmem>>, vector<448x28xbf16>
    %c3 = arith.constant 3 : index
    %c0_26 = arith.constant 0 : index
    %c0_27 = arith.constant 0 : index
    %24 = vector.load %arg2[%c3, %c0_26, %c0_27] : memref<5x28x168xbf16, #tpu.memory_space<vmem>>, vector<1x28x168xbf16>
    %25 = vector.shape_cast %24 : vector<1x28x168xbf16> to vector<28x168xbf16>
    %cst_28 = arith.constant dense<0.000000e+00> : vector<448x168xf32>
    %26 = tpu.matmul %23, %25, %cst_28 {dimension_numbers = #tpu.dot_dimension_numbers<[1], [0], [0], [1], [0, 0, 1, 1], [], []>} : vector<448x28xbf16>, vector<28x168xbf16>, vector<448x168xf32> -> vector<448x168xf32>
    %27 = arith.addf %22, %26 : vector<448x168xf32>
    %c64 = arith.constant 64 : index
    %c0_29 = arith.constant 0 : index
    %28 = vector.load %arg15[%c64, %c0_29] : memref<512x28xbf16, #tpu.memory_space<vmem>>, vector<448x28xbf16>
    %c4 = arith.constant 4 : index
    %c0_30 = arith.constant 0 : index
    %c0_31 = arith.constant 0 : index
    %29 = vector.load %arg2[%c4, %c0_30, %c0_31] : memref<5x28x168xbf16, #tpu.memory_space<vmem>>, vector<1x28x168xbf16>
    %30 = vector.shape_cast %29 : vector<1x28x168xbf16> to vector<28x168xbf16>
    %cst_32 = arith.constant dense<0.000000e+00> : vector<448x168xf32>
    %31 = tpu.matmul %28, %30, %cst_32 {dimension_numbers = #tpu.dot_dimension_numbers<[1], [0], [0], [1], [0, 0, 1, 1], [], []>} : vector<448x28xbf16>, vector<28x168xbf16>, vector<448x168xf32> -> vector<448x168xf32>
    %32 = arith.addf %27, %31 : vector<448x168xf32>
    %c0_33 = arith.constant 0 : index
    %c0_34 = arith.constant 0 : index
    %33 = vector.load %arg3[%c0_33, %c0_34] : memref<1x168xf32, #tpu.memory_space<vmem>>, vector<1x168xf32>
    %34 = vector.broadcast %33 : vector<1x168xf32> to vector<448x168xf32>
    %35 = arith.addf %32, %34 : vector<448x168xf32>
    %cst_35 = arith.constant 0.000000e+00 : f32
    %36 = vector.broadcast %cst_35 : f32 to vector<448x168xf32>
    %37 = arith.maximumf %35, %36 : vector<448x168xf32>
    %38 = vector.shape_cast %37 : vector<448x168xf32> to vector<14x32x168xf32>
    %39 = vector.extract_strided_slice %38 {offsets = [0, 0, 0], sizes = [14, 16, 168], strides = [1, 1, 1]} : vector<14x32x168xf32> to vector<14x16x168xf32>
    %40 = vector.extract_strided_slice %38 {offsets = [0, 16, 0], sizes = [14, 16, 168], strides = [1, 1, 1]} : vector<14x32x168xf32> to vector<14x16x168xf32>
    %41 = arith.maximumf %39, %40 : vector<14x16x168xf32>
    %42 = vector.shape_cast %41 : vector<14x16x168xf32> to vector<224x168xf32>
    %43 = arith.truncf %42 : vector<224x168xf32> to vector<224x168xbf16>
    %c0_36 = arith.constant 0 : index
    %c0_37 = arith.constant 0 : index
    %c0_38 = arith.constant 0 : index
    %44 = vector.load %arg4[%c0_36, %c0_37, %c0_38] : memref<2x168x84xbf16, #tpu.memory_space<vmem>>, vector<1x168x84xbf16>
    %45 = vector.shape_cast %44 : vector<1x168x84xbf16> to vector<168x84xbf16>
    %cst_39 = arith.constant dense<0.000000e+00> : vector<224x84xf32>
    %46 = tpu.matmul %43, %45, %cst_39 {dimension_numbers = #tpu.dot_dimension_numbers<[1], [0], [0], [1], [0, 0, 1, 1], [], []>} : vector<224x168xbf16>, vector<168x84xbf16>, vector<224x84xf32> -> vector<224x84xf32>
    %c1_40 = arith.constant 1 : index
    %c0_41 = arith.constant 0 : index
    %c0_42 = arith.constant 0 : index
    %47 = vector.load %arg4[%c1_40, %c0_41, %c0_42] : memref<2x168x84xbf16, #tpu.memory_space<vmem>>, vector<1x168x84xbf16>
    %48 = vector.shape_cast %47 : vector<1x168x84xbf16> to vector<168x84xbf16>
    %cst_43 = arith.constant dense<0.000000e+00> : vector<224x84xf32>
    %49 = tpu.matmul %43, %48, %cst_43 {dimension_numbers = #tpu.dot_dimension_numbers<[1], [0], [0], [1], [0, 0, 1, 1], [], []>} : vector<224x168xbf16>, vector<168x84xbf16>, vector<224x84xf32> -> vector<224x84xf32>
    %50 = arith.maximumf %46, %49 : vector<224x84xf32>
    %51 = arith.truncf %50 : vector<224x84xf32> to vector<224x84xbf16>
    %c32_44 = arith.constant 32 : index
    %c0_45 = arith.constant 0 : index
    %52 = vector.load %arg16[%c32_44, %c0_45] : memref<288x84xbf16, #tpu.memory_space<vmem>>, vector<224x84xbf16>
    tpu.vector_store %arg16[%c32_44, %c0_45], %51 {strides = array<i32>} : memref<288x84xbf16, #tpu.memory_space<vmem>>, vector<224x84xbf16>,
    %c0_46 = arith.constant 0 : index
    %c0_47 = arith.constant 0 : index
    %53 = vector.load %arg16[%c0_46, %c0_47] : memref<288x84xbf16, #tpu.memory_space<vmem>>, vector<224x84xbf16>
    %c0_48 = arith.constant 0 : index
    %c0_49 = arith.constant 0 : index
    %c0_50 = arith.constant 0 : index
    %54 = vector.load %arg5[%c0_48, %c0_49, %c0_50] : memref<5x84x224xbf16, #tpu.memory_space<vmem>>, vector<1x84x224xbf16>
    %55 = vector.shape_cast %54 : vector<1x84x224xbf16> to vector<84x224xbf16>
    %cst_51 = arith.constant dense<0.000000e+00> : vector<224x224xf32>
    %56 = tpu.matmul %53, %55, %cst_51 {dimension_numbers = #tpu.dot_dimension_numbers<[1], [0], [0], [1], [0, 0, 1, 1], [], []>} : vector<224x84xbf16>, vector<84x224xbf16>, vector<224x224xf32> -> vector<224x224xf32>
    %c16_52 = arith.constant 16 : index
    %c0_53 = arith.constant 0 : index
    %57 = vector.load %arg16[%c16_52, %c0_53] : memref<288x84xbf16, #tpu.memory_space<vmem>>, vector<224x84xbf16>
    %c1_54 = arith.constant 1 : index
    %c0_55 = arith.constant 0 : index
    %c0_56 = arith.constant 0 : index
    %58 = vector.load %arg5[%c1_54, %c0_55, %c0_56] : memref<5x84x224xbf16, #tpu.memory_space<vmem>>, vector<1x84x224xbf16>
    %59 = vector.shape_cast %58 : vector<1x84x224xbf16> to vector<84x224xbf16>
    %cst_57 = arith.constant dense<0.000000e+00> : vector<224x224xf32>
    %60 = tpu.matmul %57, %59, %cst_57 {dimension_numbers = #tpu.dot_dimension_numbers<[1], [0], [0], [1], [0, 0, 1, 1], [], []>} : vector<224x84xbf16>, vector<84x224xbf16>, vector<224x224xf32> -> vector<224x224xf32>
    %61 = arith.addf %56, %60 : vector<224x224xf32>
    %c32_58 = arith.constant 32 : index
    %c0_59 = arith.constant 0 : index
    %62 = vector.load %arg16[%c32_58, %c0_59] : memref<288x84xbf16, #tpu.memory_space<vmem>>, vector<224x84xbf16>
    %c2_60 = arith.constant 2 : index
    %c0_61 = arith.constant 0 : index
    %c0_62 = arith.constant 0 : index
    %63 = vector.load %arg5[%c2_60, %c0_61, %c0_62] : memref<5x84x224xbf16, #tpu.memory_space<vmem>>, vector<1x84x224xbf16>
    %64 = vector.shape_cast %63 : vector<1x84x224xbf16> to vector<84x224xbf16>
    %cst_63 = arith.constant dense<0.000000e+00> : vector<224x224xf32>
    %65 = tpu.matmul %62, %64, %cst_63 {dimension_numbers = #tpu.dot_dimension_numbers<[1], [0], [0], [1], [0, 0, 1, 1], [], []>} : vector<224x84xbf16>, vector<84x224xbf16>, vector<224x224xf32> -> vector<224x224xf32>
    %66 = arith.addf %61, %65 : vector<224x224xf32>
    %c48_64 = arith.constant 48 : index
    %c0_65 = arith.constant 0 : index
    %67 = vector.load %arg16[%c48_64, %c0_65] : memref<288x84xbf16, #tpu.memory_space<vmem>>, vector<224x84xbf16>
    %c3_66 = arith.constant 3 : index
    %c0_67 = arith.constant 0 : index
    %c0_68 = arith.constant 0 : index
    %68 = vector.load %arg5[%c3_66, %c0_67, %c0_68] : memref<5x84x224xbf16, #tpu.memory_space<vmem>>, vector<1x84x224xbf16>
    %69 = vector.shape_cast %68 : vector<1x84x224xbf16> to vector<84x224xbf16>
    %cst_69 = arith.constant dense<0.000000e+00> : vector<224x224xf32>
    %70 = tpu.matmul %67, %69, %cst_69 {dimension_numbers = #tpu.dot_dimension_numbers<[1], [0], [0], [1], [0, 0, 1, 1], [], []>} : vector<224x84xbf16>, vector<84x224xbf16>, vector<224x224xf32> -> vector<224x224xf32>
    %71 = arith.addf %66, %70 : vector<224x224xf32>
    %c64_70 = arith.constant 64 : index
    %c0_71 = arith.constant 0 : index
    %72 = vector.load %arg16[%c64_70, %c0_71] : memref<288x84xbf16, #tpu.memory_space<vmem>>, vector<224x84xbf16>
    %c4_72 = arith.constant 4 : index
    %c0_73 = arith.constant 0 : index
    %c0_74 = arith.constant 0 : index
    %73 = vector.load %arg5[%c4_72, %c0_73, %c0_74] : memref<5x84x224xbf16, #tpu.memory_space<vmem>>, vector<1x84x224xbf16>
    %74 = vector.shape_cast %73 : vector<1x84x224xbf16> to vector<84x224xbf16>
    %cst_75 = arith.constant dense<0.000000e+00> : vector<224x224xf32>
    %75 = tpu.matmul %72, %74, %cst_75 {dimension_numbers = #tpu.dot_dimension_numbers<[1], [0], [0], [1], [0, 0, 1, 1], [], []>} : vector<224x84xbf16>, vector<84x224xbf16>, vector<224x224xf32> -> vector<224x224xf32>
    %76 = arith.addf %71, %75 : vector<224x224xf32>
    %c0_76 = arith.constant 0 : index
    %c0_77 = arith.constant 0 : index
    %77 = vector.load %arg6[%c0_76, %c0_77] : memref<1x224xf32, #tpu.memory_space<vmem>>, vector<1x224xf32>
    %78 = vector.broadcast %77 : vector<1x224xf32> to vector<224x224xf32>
    %79 = arith.addf %76, %78 : vector<224x224xf32>
    %cst_78 = arith.constant 0.000000e+00 : f32
    %80 = vector.broadcast %cst_78 : f32 to vector<224x224xf32>
    %81 = arith.maximumf %79, %80 : vector<224x224xf32>
    %82 = vector.shape_cast %81 : vector<224x224xf32> to vector<7x32x224xf32>
    %83 = vector.extract_strided_slice %82 {offsets = [0, 0, 0], sizes = [7, 16, 224], strides = [1, 1, 1]} : vector<7x32x224xf32> to vector<7x16x224xf32>
    %84 = vector.extract_strided_slice %82 {offsets = [0, 16, 0], sizes = [7, 16, 224], strides = [1, 1, 1]} : vector<7x32x224xf32> to vector<7x16x224xf32>
    %85 = arith.maximumf %83, %84 : vector<7x16x224xf32>
    %86 = vector.shape_cast %85 : vector<7x16x224xf32> to vector<112x224xf32>
    %87 = arith.truncf %86 : vector<112x224xf32> to vector<112x224xbf16>
    %c0_79 = arith.constant 0 : index
    %c0_80 = arith.constant 0 : index
    %c0_81 = arith.constant 0 : index
    %88 = vector.load %arg7[%c0_79, %c0_80, %c0_81] : memref<2x224x112xbf16, #tpu.memory_space<vmem>>, vector<1x224x112xbf16>
    %89 = vector.shape_cast %88 : vector<1x224x112xbf16> to vector<224x112xbf16>
    %cst_82 = arith.constant dense<0.000000e+00> : vector<112x112xf32>
    %90 = tpu.matmul %87, %89, %cst_82 {dimension_numbers = #tpu.dot_dimension_numbers<[1], [0], [0], [1], [0, 0, 1, 1], [], []>} : vector<112x224xbf16>, vector<224x112xbf16>, vector<112x112xf32> -> vector<112x112xf32>
    %c1_83 = arith.constant 1 : index
    %c0_84 = arith.constant 0 : index
    %c0_85 = arith.constant 0 : index
    %91 = vector.load %arg7[%c1_83, %c0_84, %c0_85] : memref<2x224x112xbf16, #tpu.memory_space<vmem>>, vector<1x224x112xbf16>
    %92 = vector.shape_cast %91 : vector<1x224x112xbf16> to vector<224x112xbf16>
    %cst_86 = arith.constant dense<0.000000e+00> : vector<112x112xf32>
    %93 = tpu.matmul %87, %92, %cst_86 {dimension_numbers = #tpu.dot_dimension_numbers<[1], [0], [0], [1], [0, 0, 1, 1], [], []>} : vector<112x224xbf16>, vector<224x112xbf16>, vector<112x112xf32> -> vector<112x112xf32>
    %94 = arith.maximumf %90, %93 : vector<112x112xf32>
    %95 = arith.truncf %94 : vector<112x112xf32> to vector<112x112xbf16>
    %96 = vector.shape_cast %95 : vector<112x112xbf16> to vector<7x16x112xbf16>
    %97 = vector.extract_strided_slice %96 {offsets = [0, 0, 0], sizes = [1, 16, 112], strides = [1, 1, 1]} : vector<7x16x112xbf16> to vector<1x16x112xbf16>
    %98 = vector.shape_cast %97 : vector<1x16x112xbf16> to vector<16x112xbf16>
    %c0_87 = arith.constant 0 : index
    %c0_88 = arith.constant 0 : index
    %c0_89 = arith.constant 0 : index
    %99 = vector.load %arg8[%c0_87, %c0_88, %c0_89] : memref<7x112x128xbf16, #tpu.memory_space<vmem>>, vector<1x112x128xbf16>
    %100 = vector.shape_cast %99 : vector<1x112x128xbf16> to vector<112x128xbf16>
    %cst_90 = arith.constant dense<0.000000e+00> : vector<16x128xf32>
    %101 = tpu.matmul %98, %100, %cst_90 {dimension_numbers = #tpu.dot_dimension_numbers<[1], [0], [0], [1], [0, 0, 1, 1], [], []>} : vector<16x112xbf16>, vector<112x128xbf16>, vector<16x128xf32> -> vector<16x128xf32>
    %102 = vector.extract_strided_slice %96 {offsets = [1, 0, 0], sizes = [1, 16, 112], strides = [1, 1, 1]} : vector<7x16x112xbf16> to vector<1x16x112xbf16>
    %103 = vector.shape_cast %102 : vector<1x16x112xbf16> to vector<16x112xbf16>
    %c1_91 = arith.constant 1 : index
    %c0_92 = arith.constant 0 : index
    %c0_93 = arith.constant 0 : index
    %104 = vector.load %arg8[%c1_91, %c0_92, %c0_93] : memref<7x112x128xbf16, #tpu.memory_space<vmem>>, vector<1x112x128xbf16>
    %105 = vector.shape_cast %104 : vector<1x112x128xbf16> to vector<112x128xbf16>
    %cst_94 = arith.constant dense<0.000000e+00> : vector<16x128xf32>
    %106 = tpu.matmul %103, %105, %cst_94 {dimension_numbers = #tpu.dot_dimension_numbers<[1], [0], [0], [1], [0, 0, 1, 1], [], []>} : vector<16x112xbf16>, vector<112x128xbf16>, vector<16x128xf32> -> vector<16x128xf32>
    %107 = arith.addf %101, %106 : vector<16x128xf32>
    %108 = vector.extract_strided_slice %96 {offsets = [2, 0, 0], sizes = [1, 16, 112], strides = [1, 1, 1]} : vector<7x16x112xbf16> to vector<1x16x112xbf16>
    %109 = vector.shape_cast %108 : vector<1x16x112xbf16> to vector<16x112xbf16>
    %c2_95 = arith.constant 2 : index
    %c0_96 = arith.constant 0 : index
    %c0_97 = arith.constant 0 : index
    %110 = vector.load %arg8[%c2_95, %c0_96, %c0_97] : memref<7x112x128xbf16, #tpu.memory_space<vmem>>, vector<1x112x128xbf16>
    %111 = vector.shape_cast %110 : vector<1x112x128xbf16> to vector<112x128xbf16>
    %cst_98 = arith.constant dense<0.000000e+00> : vector<16x128xf32>
    %112 = tpu.matmul %109, %111, %cst_98 {dimension_numbers = #tpu.dot_dimension_numbers<[1], [0], [0], [1], [0, 0, 1, 1], [], []>} : vector<16x112xbf16>, vector<112x128xbf16>, vector<16x128xf32> -> vector<16x128xf32>
    %113 = arith.addf %107, %112 : vector<16x128xf32>
    %114 = vector.extract_strided_slice %96 {offsets = [3, 0, 0], sizes = [1, 16, 112], strides = [1, 1, 1]} : vector<7x16x112xbf16> to vector<1x16x112xbf16>
    %115 = vector.shape_cast %114 : vector<1x16x112xbf16> to vector<16x112xbf16>
    %c3_99 = arith.constant 3 : index
    %c0_100 = arith.constant 0 : index
    %c0_101 = arith.constant 0 : index
    %116 = vector.load %arg8[%c3_99, %c0_100, %c0_101] : memref<7x112x128xbf16, #tpu.memory_space<vmem>>, vector<1x112x128xbf16>
    %117 = vector.shape_cast %116 : vector<1x112x128xbf16> to vector<112x128xbf16>
    %cst_102 = arith.constant dense<0.000000e+00> : vector<16x128xf32>
    %118 = tpu.matmul %115, %117, %cst_102 {dimension_numbers = #tpu.dot_dimension_numbers<[1], [0], [0], [1], [0, 0, 1, 1], [], []>} : vector<16x112xbf16>, vector<112x128xbf16>, vector<16x128xf32> -> vector<16x128xf32>
    %119 = arith.addf %113, %118 : vector<16x128xf32>
    %120 = vector.extract_strided_slice %96 {offsets = [4, 0, 0], sizes = [1, 16, 112], strides = [1, 1, 1]} : vector<7x16x112xbf16> to vector<1x16x112xbf16>
    %121 = vector.shape_cast %120 : vector<1x16x112xbf16> to vector<16x112xbf16>
    %c4_103 = arith.constant 4 : index
    %c0_104 = arith.constant 0 : index
    %c0_105 = arith.constant 0 : index
    %122 = vector.load %arg8[%c4_103, %c0_104, %c0_105] : memref<7x112x128xbf16, #tpu.memory_space<vmem>>, vector<1x112x128xbf16>
    %123 = vector.shape_cast %122 : vector<1x112x128xbf16> to vector<112x128xbf16>
    %cst_106 = arith.constant dense<0.000000e+00> : vector<16x128xf32>
    %124 = tpu.matmul %121, %123, %cst_106 {dimension_numbers = #tpu.dot_dimension_numbers<[1], [0], [0], [1], [0, 0, 1, 1], [], []>} : vector<16x112xbf16>, vector<112x128xbf16>, vector<16x128xf32> -> vector<16x128xf32>
    %125 = arith.addf %119, %124 : vector<16x128xf32>
    %126 = vector.extract_strided_slice %96 {offsets = [5, 0, 0], sizes = [1, 16, 112], strides = [1, 1, 1]} : vector<7x16x112xbf16> to vector<1x16x112xbf16>
    %127 = vector.shape_cast %126 : vector<1x16x112xbf16> to vector<16x112xbf16>
    %c5 = arith.constant 5 : index
    %c0_107 = arith.constant 0 : index
    %c0_108 = arith.constant 0 : index
    %128 = vector.load %arg8[%c5, %c0_107, %c0_108] : memref<7x112x128xbf16, #tpu.memory_space<vmem>>, vector<1x112x128xbf16>
    %129 = vector.shape_cast %128 : vector<1x112x128xbf16> to vector<112x128xbf16>
    %cst_109 = arith.constant dense<0.000000e+00> : vector<16x128xf32>
    %130 = tpu.matmul %127, %129, %cst_109 {dimension_numbers = #tpu.dot_dimension_numbers<[1], [0], [0], [1], [0, 0, 1, 1], [], []>} : vector<16x112xbf16>, vector<112x128xbf16>, vector<16x128xf32> -> vector<16x128xf32>
    %131 = arith.addf %125, %130 : vector<16x128xf32>
    %132 = vector.extract_strided_slice %96 {offsets = [6, 0, 0], sizes = [1, 16, 112], strides = [1, 1, 1]} : vector<7x16x112xbf16> to vector<1x16x112xbf16>
    %133 = vector.shape_cast %132 : vector<1x16x112xbf16> to vector<16x112xbf16>
    %c6 = arith.constant 6 : index
    %c0_110 = arith.constant 0 : index
    %c0_111 = arith.constant 0 : index
    %134 = vector.load %arg8[%c6, %c0_110, %c0_111] : memref<7x112x128xbf16, #tpu.memory_space<vmem>>, vector<1x112x128xbf16>
    %135 = vector.shape_cast %134 : vector<1x112x128xbf16> to vector<112x128xbf16>
    %cst_112 = arith.constant dense<0.000000e+00> : vector<16x128xf32>
    %136 = tpu.matmul %133, %135, %cst_112 {dimension_numbers = #tpu.dot_dimension_numbers<[1], [0], [0], [1], [0, 0, 1, 1], [], []>} : vector<16x112xbf16>, vector<112x128xbf16>, vector<16x128xf32> -> vector<16x128xf32>
    %137 = arith.addf %131, %136 : vector<16x128xf32>
    %c0_113 = arith.constant 0 : index
    %c0_114 = arith.constant 0 : index
    %138 = vector.load %arg9[%c0_113, %c0_114] : memref<1x128xf32, #tpu.memory_space<vmem>>, vector<1x128xf32>
    %139 = vector.broadcast %138 : vector<1x128xf32> to vector<16x128xf32>
    %140 = arith.addf %137, %139 : vector<16x128xf32>
    %cst_115 = arith.constant 0.000000e+00 : f32
    %141 = vector.broadcast %cst_115 : f32 to vector<16x128xf32>
    %142 = arith.maximumf %140, %141 : vector<16x128xf32>
    %143 = arith.truncf %142 : vector<16x128xf32> to vector<16x128xbf16>
    %c0_116 = arith.constant 0 : index
    %c0_117 = arith.constant 0 : index
    %144 = vector.load %arg10[%c0_116, %c0_117] : memref<128x128xbf16, #tpu.memory_space<vmem>>, vector<128x128xbf16>
    %cst_118 = arith.constant dense<0.000000e+00> : vector<16x128xf32>
    %145 = tpu.matmul %143, %144, %cst_118 {dimension_numbers = #tpu.dot_dimension_numbers<[1], [0], [0], [1], [0, 0, 1, 1], [], []>} : vector<16x128xbf16>, vector<128x128xbf16>, vector<16x128xf32> -> vector<16x128xf32>
    %c0_119 = arith.constant 0 : index
    %c0_120 = arith.constant 0 : index
    %146 = vector.load %arg11[%c0_119, %c0_120] : memref<1x128xf32, #tpu.memory_space<vmem>>, vector<1x128xf32>
    %147 = vector.broadcast %146 : vector<1x128xf32> to vector<16x128xf32>
    %148 = arith.addf %145, %147 : vector<16x128xf32>
    %cst_121 = arith.constant 0.000000e+00 : f32
    %149 = vector.broadcast %cst_121 : f32 to vector<16x128xf32>
    %150 = arith.maximumf %148, %149 : vector<16x128xf32>
    %151 = arith.truncf %150 : vector<16x128xf32> to vector<16x128xbf16>
    %c0_122 = arith.constant 0 : index
    %c0_123 = arith.constant 0 : index
    %152 = vector.load %arg12[%c0_122, %c0_123] : memref<128x128xbf16, #tpu.memory_space<vmem>>, vector<128x128xbf16>
    %cst_124 = arith.constant dense<0.000000e+00> : vector<16x128xf32>
    %153 = tpu.matmul %151, %152, %cst_124 {dimension_numbers = #tpu.dot_dimension_numbers<[1], [0], [0], [1], [0, 0, 1, 1], [], []>} : vector<16x128xbf16>, vector<128x128xbf16>, vector<16x128xf32> -> vector<16x128xf32>
    %c0_125 = arith.constant 0 : index
    %c0_126 = arith.constant 0 : index
    %154 = vector.load %arg13[%c0_125, %c0_126] : memref<1x128xf32, #tpu.memory_space<vmem>>, vector<1x128xf32>
    %155 = vector.broadcast %154 : vector<1x128xf32> to vector<16x128xf32>
    %156 = arith.addf %153, %155 : vector<16x128xf32>
    %157 = tpu.iota {dimensions = array<i32: 1>} : vector<16x128xi32>
    %c10_i32 = arith.constant 10 : i32
    %158 = vector.broadcast %c10_i32 : i32 to vector<16x128xi32>
    %159 = arith.cmpi slt, %157, %158 : vector<16x128xi32>
    %cst_127 = arith.constant -1.000000e+30 : f32
    %160 = vector.broadcast %cst_127 : f32 to vector<16x128xf32>
    %161 = arith.select %159, %156, %160 : vector<16x128xi1>, vector<16x128xf32>
    %cst_128 = arith.constant dense<0xFF800000> : vector<16xf32>
    %162 = vector.multi_reduction <maximumf>, %161, %cst_128 [1] : vector<16x128xf32> to vector<16xf32>
    %163 = vector.shape_cast %162 : vector<16xf32> to vector<16x1xf32>
    %164 = vector.broadcast %163 : vector<16x1xf32> to vector<16x128xf32>
    %165 = arith.subf %161, %164 : vector<16x128xf32>
    %166 = math.exp %165 : vector<16x128xf32>
    %cst_129 = arith.constant dense<0.000000e+00> : vector<16xf32>
    %167 = vector.multi_reduction <add>, %166, %cst_129 [1] : vector<16x128xf32> to vector<16xf32>
    %168 = vector.shape_cast %167 : vector<16xf32> to vector<16x1xf32>
    %169 = math.log %168 : vector<16x1xf32>
    %170 = vector.broadcast %169 : vector<16x1xf32> to vector<16x128xf32>
    %171 = arith.subf %165, %170 : vector<16x128xf32>
    %c0_130 = arith.constant 0 : index
    %c0_131 = arith.constant 0 : index
    %172 = vector.load %arg14[%c0_130, %c0_131] : memref<16x128xf32, #tpu.memory_space<vmem>>, vector<16x128xf32>
    tpu.vector_store %arg14[%c0_130, %c0_131], %171 {strides = array<i32>} : memref<16x128xf32, #tpu.memory_space<vmem>>, vector<16x128xf32>,
    return
  }
  func.func @transform_0(%arg0: i32) -> (i32, i32, i32) {
    %c0_i32 = arith.constant 0 : i32
    %c0_i32_0 = arith.constant 0 : i32
    %c0_i32_1 = arith.constant 0 : i32
    return %c0_i32, %arg0, %c0_i32_0 : i32, i32, i32
  }
  func.func @transform_1(%arg0: i32) -> (i32, i32, i32) {
    %c0_i32 = arith.constant 0 : i32
    %c0_i32_0 = arith.constant 0 : i32
    %c0_i32_1 = arith.constant 0 : i32
    %c0_i32_2 = arith.constant 0 : i32
    return %c0_i32, %c0_i32_0, %c0_i32_1 : i32, i32, i32
  }
  func.func @transform_2(%arg0: i32) -> (i32, i32) {
    %c0_i32 = arith.constant 0 : i32
    %c0_i32_0 = arith.constant 0 : i32
    %c0_i32_1 = arith.constant 0 : i32
    return %c0_i32, %c0_i32_0 : i32, i32
  }
  func.func @transform_3(%arg0: i32) -> (i32, i32, i32) {
    %c0_i32 = arith.constant 0 : i32
    %c0_i32_0 = arith.constant 0 : i32
    %c0_i32_1 = arith.constant 0 : i32
    %c0_i32_2 = arith.constant 0 : i32
    return %c0_i32, %c0_i32_0, %c0_i32_1 : i32, i32, i32
  }
  func.func @transform_4(%arg0: i32) -> (i32, i32, i32) {
    %c0_i32 = arith.constant 0 : i32
    %c0_i32_0 = arith.constant 0 : i32
    %c0_i32_1 = arith.constant 0 : i32
    %c0_i32_2 = arith.constant 0 : i32
    return %c0_i32, %c0_i32_0, %c0_i32_1 : i32, i32, i32
  }
  func.func @transform_5(%arg0: i32) -> (i32, i32) {
    %c0_i32 = arith.constant 0 : i32
    %c0_i32_0 = arith.constant 0 : i32
    %c0_i32_1 = arith.constant 0 : i32
    return %c0_i32, %c0_i32_0 : i32, i32
  }
  func.func @transform_6(%arg0: i32) -> (i32, i32, i32) {
    %c0_i32 = arith.constant 0 : i32
    %c0_i32_0 = arith.constant 0 : i32
    %c0_i32_1 = arith.constant 0 : i32
    %c0_i32_2 = arith.constant 0 : i32
    return %c0_i32, %c0_i32_0, %c0_i32_1 : i32, i32, i32
  }
  func.func @transform_7(%arg0: i32) -> (i32, i32, i32) {
    %c0_i32 = arith.constant 0 : i32
    %c0_i32_0 = arith.constant 0 : i32
    %c0_i32_1 = arith.constant 0 : i32
    %c0_i32_2 = arith.constant 0 : i32
    return %c0_i32, %c0_i32_0, %c0_i32_1 : i32, i32, i32
  }
  func.func @transform_8(%arg0: i32) -> (i32, i32) {
    %c0_i32 = arith.constant 0 : i32
    %c0_i32_0 = arith.constant 0 : i32
    %c0_i32_1 = arith.constant 0 : i32
    return %c0_i32, %c0_i32_0 : i32, i32
  }
  func.func @transform_9(%arg0: i32) -> (i32, i32) {
    %c0_i32 = arith.constant 0 : i32
    %c0_i32_0 = arith.constant 0 : i32
    %c0_i32_1 = arith.constant 0 : i32
    return %c0_i32, %c0_i32_0 : i32, i32
  }
  func.func @transform_10(%arg0: i32) -> (i32, i32) {
    %c0_i32 = arith.constant 0 : i32
    %c0_i32_0 = arith.constant 0 : i32
    %c0_i32_1 = arith.constant 0 : i32
    return %c0_i32, %c0_i32_0 : i32, i32
  }
  func.func @transform_11(%arg0: i32) -> (i32, i32) {
    %c0_i32 = arith.constant 0 : i32
    %c0_i32_0 = arith.constant 0 : i32
    %c0_i32_1 = arith.constant 0 : i32
    return %c0_i32, %c0_i32_0 : i32, i32
  }
  func.func @transform_12(%arg0: i32) -> (i32, i32) {
    %c0_i32 = arith.constant 0 : i32
    %c0_i32_0 = arith.constant 0 : i32
    %c0_i32_1 = arith.constant 0 : i32
    return %c0_i32, %c0_i32_0 : i32, i32
  }
  func.func @transform_13(%arg0: i32) -> (i32, i32) {
    %c0_i32 = arith.constant 0 : i32
    %c0_i32_0 = arith.constant 0 : i32
    return %arg0, %c0_i32 : i32, i32
  }
}

</mosaic_0001>

<llo_original>
// kernel: lenet_forward.1
$region0: #{lenet_forward.1}
  #allocation0 [shape = 'u32[]', space=smem, size = 0x4, offset = 0x4, fixed_abs, tag = 'smem constant byte address 0x4 - core index']
  #allocation1 [shape = 'u32[144,128]{1,0:T(1,128)}', space=vmem, size = 0x12000, scoped, tag = 'internal scratch']
  #allocation2 [shape = 'bf16[512,28]{1,0:T(16,128)(2,1)}', space=vmem, size = 0x20000, scoped, tag = 'scratch operand']
  #allocation3 [shape = 'bf16[288,84]{1,0:T(16,128)(2,1)}', space=vmem, size = 0x12000, scoped, tag = 'scratch operand']
  %s0 = inlined_call_operand.vmem [shape: bf16[28,16,28], index: 0, kind: input, shape index: {}]
  %s1 = inlined_call_operand.hbm [shape: bf16[5,28,168], index: 1, kind: input, shape index: {}]
  %s2 = inlined_call_operand.hbm [shape: f32[1,168], index: 2, kind: input, shape index: {}]
  %s3 = inlined_call_operand.hbm [shape: bf16[2,168,84], index: 3, kind: input, shape index: {}]
  %s4 = inlined_call_operand.hbm [shape: bf16[5,84,224], index: 4, kind: input, shape index: {}]
  %s5 = inlined_call_operand.hbm [shape: f32[1,224], index: 5, kind: input, shape index: {}]
  %s6 = inlined_call_operand.vmem [shape: bf16[2,224,112], index: 6, kind: input, shape index: {}]
  %s7 = inlined_call_operand.hbm [shape: bf16[7,112,128], index: 7, kind: input, shape index: {}]
  %s8 = inlined_call_operand.hbm [shape: f32[1,128], index: 8, kind: input, shape index: {}]
  %s9 = inlined_call_operand.vmem [shape: bf16[128,128], index: 9, kind: input, shape index: {}]
  %s10 = inlined_call_operand.vmem [shape: f32[1,128], index: 10, kind: input, shape index: {}]
  %s11 = inlined_call_operand.vmem [shape: bf16[128,128], index: 11, kind: input, shape index: {}]
  %s12 = inlined_call_operand.vmem [shape: f32[1,128], index: 12, kind: input, shape index: {}]
  %s13 = inlined_call_operand.vmem [shape: f32[16,128], index: 13, kind: output, shape index: {}]
  %s14 = sld [smem:[#allocation0]]
  $region90: #{lenet_forward.1} parent=0
    _
  %s16 = ssub.s32 1, %s14
  %s17 = scalar_select 0, %s16, %s14
  $region1: #{lenet_forward.1} parent=0
    #allocation4 [shape = 'u8[81920]{0}', space=vmem, size = 0x14000, scoped, tag = 'input window, operand 1, single buffered']
    #allocation5 [shape = 's32[1]{0}', space=sflag, size = 0x4, scoped, tag = 'scoped memory for lenet_forward.1']
    #allocation6 [shape = 'u8[1024]{0}', space=vmem, size = 0x400, scoped, tag = 'input window, operand 2, single buffered']
    #allocation7 [shape = 's32[1]{0}', space=sflag, size = 0x4, scoped, tag = 'scoped memory for lenet_forward.1']
    #allocation8 [shape = 'u8[86016]{0}', space=vmem, size = 0x15000, scoped, tag = 'input window, operand 3, single buffered']
    #allocation9 [shape = 'u8[225280]{0}', space=vmem, size = 0x37000, scoped, tag = 'input window, operand 4, single buffered']
    #allocation10 [shape = 's32[1]{0}', space=sflag, size = 0x4, scoped, tag = 'scoped memory for lenet_forward.1']
    #allocation11 [shape = 'u8[1024]{0}', space=vmem, size = 0x400, scoped, tag = 'input window, operand 5, single buffered']
    #allocation12 [shape = 'u8[200704]{0}', space=vmem, size = 0x31000, scoped, tag = 'input window, operand 7, single buffered']
    #allocation13 [shape = 's32[1]{0}', space=sflag, size = 0x4, scoped, tag = 'scoped memory for lenet_forward.1']
    #allocation14 [shape = 'u8[512]{0}', space=vmem, size = 0x400, scoped, tag = 'input window, operand 8, single buffered']
    %18 = vsyncpa [#allocation5], 0
    %19 = vsyncpa [#allocation7], 0
    %20 = vsyncpa [#allocation10], 0
    %21 = vsyncpa [#allocation13], 0
    // Predicated region
    $region2: #{lenet_forward.1} parent=1 // pred_check
      _
    $region3: #{lenet_forward.1} parent=1 // pred_check_branch
      %23 = sbr.rel (0) target = $region5
    $region4: #{lenet_forward.1} parent=1 // pred_region
      _
    $region5: #{lenet_forward.1} parent=1 // pred_fallthru
      _
    // Predicated region
    $region6: #{lenet_forward.1} parent=1 // pred_check
      _
    $region7: #{lenet_forward.1} parent=1 // pred_check_branch
      %25 = sbr.rel (0) target = $region9
    $region8: #{lenet_forward.1} parent=1 // pred_region
      %s27 = ssub.s32 2560, 2560
      %28 = vsyncadd [#allocation5], %s27
      %s29 = sshll.u32 [#allocation4], 4
      %s30 = int_to_ptr.vmem [resolvable:$true] %s29
      %35 = dma.hbm_to_vmem [thread:$0]  %s1, 2560, %s30, [#allocation5], 128, 128, 8
    $region9: #{lenet_forward.1} parent=1 // pred_fallthru
      _
    // Predicated region
    $region10: #{lenet_forward.1} parent=1 // pred_check
      _
    $region11: #{lenet_forward.1} parent=1 // pred_check_branch
      %37 = sbr.rel (0) target = $region13
    $region12: #{lenet_forward.1} parent=1 // pred_region
      %s39 = ssub.s32 32, 32
      %40 = vsyncadd [#allocation7], %s39
      %s42 = sshll.u32 [#allocation6], 4
      %s43 = int_to_ptr.vmem [resolvable:$true] %s42
      %45 = dma.hbm_to_vmem [thread:$0]  %s2, 32, %s43, [#allocation7]
    $region13: #{lenet_forward.1} parent=1 // pred_fallthru
      _
    // Predicated region
    $region14: #{lenet_forward.1} parent=1 // pred_check
      _
    $region15: #{lenet_forward.1} parent=1 // pred_check_branch
      %47 = sbr.rel (0) target = $region17
    $region16: #{lenet_forward.1} parent=1 // pred_region
      %s49 = ssub.s32 2688, 2688
      %50 = vsyncadd [#allocation7], %s49
      %s51 = sshll.u32 [#allocation8], 4
      %s52 = int_to_ptr.vmem [resolvable:$true] %s51
      %57 = dma.hbm_to_vmem [thread:$0]  %s3, 2688, %s52, [#allocation7], 64, 64, 4
    $region17: #{lenet_forward.1} parent=1 // pred_fallthru
      _
    // Predicated region
    $region18: #{lenet_forward.1} parent=1 // pred_check
      _
    $region19: #{lenet_forward.1} parent=1 // pred_check_branch
      %59 = sbr.rel (0) target = $region21
    $region20: #{lenet_forward.1} parent=1 // pred_region
      %s61 = ssub.s32 7040, 7040
      %62 = vsyncadd [#allocation10], %s61
      %s63 = sshll.u32 [#allocation9], 4
      %s64 = int_to_ptr.vmem [resolvable:$true] %s63
      %69 = dma.hbm_to_vmem [thread:$0]  %s4, 7040, %s64, [#allocation10], 128, 128, 8
    $region21: #{lenet_forward.1} parent=1 // pred_fallthru
      _
    // Predicated region
    $region22: #{lenet_forward.1} parent=1 // pred_check
      _
    $region23: #{lenet_forward.1} parent=1 // pred_check_branch
      %71 = sbr.rel (0) target = $region25
    $region24: #{lenet_forward.1} parent=1 // pred_region
      %s73 = ssub.s32 32, 32
      %74 = vsyncadd [#allocation10], %s73
      %s76 = sshll.u32 [#allocation11], 4
      %s77 = int_to_ptr.vmem [resolvable:$true] %s76
      %79 = dma.hbm_to_vmem [thread:$0]  %s5, 32, %s77, [#allocation10]
    $region25: #{lenet_forward.1} parent=1 // pred_fallthru
      _
    // Predicated region
    $region26: #{lenet_forward.1} parent=1 // pred_check
      _
    $region27: #{lenet_forward.1} parent=1 // pred_check_branch
      %81 = sbr.rel (0) target = $region29
    $region28: #{lenet_forward.1} parent=1 // pred_region
      _
    $region29: #{lenet_forward.1} parent=1 // pred_fallthru
      _
    // Predicated region
    $region30: #{lenet_forward.1} parent=1 // pred_check
      _
    $region31: #{lenet_forward.1} parent=1 // pred_check_branch
      %83 = sbr.rel (0) target = $region33
    $region32: #{lenet_forward.1} parent=1 // pred_region
      %s85 = ssub.s32 6272, 6272
      %86 = vsyncadd [#allocation13], %s85
      %s87 = sshll.u32 [#allocation12], 4
      %s88 = int_to_ptr.vmem [resolvable:$true] %s87
      %93 = dma.hbm_to_vmem [thread:$0]  %s7, 6272, %s88, [#allocation13], 64, 64, 4
    $region33: #{lenet_forward.1} parent=1 // pred_fallthru
      _
    // Predicated region
    $region34: #{lenet_forward.1} parent=1 // pred_check
      _
    $region35: #{lenet_forward.1} parent=1 // pred_check_branch
      %95 = sbr.rel (0) target = $region37
    $region36: #{lenet_forward.1} parent=1 // pred_region
      %s97 = ssub.s32 16, 16
      %98 = vsyncadd [#allocation13], %s97
      %s100 = sshll.u32 [#allocation14], 4
      %s101 = int_to_ptr.vmem [resolvable:$true] %s100
      %103 = dma.hbm_to_vmem [thread:$0]  %s8, 16, %s101, [#allocation13]
    $region37: #{lenet_forward.1} parent=1 // pred_fallthru
      _
    // Predicated region
    $region38: #{lenet_forward.1} parent=1 // pred_check
      _
    $region39: #{lenet_forward.1} parent=1 // pred_check_branch
      %105 = sbr.rel (0) target = $region41
    $region40: #{lenet_forward.1} parent=1 // pred_region
      _
    $region41: #{lenet_forward.1} parent=1 // pred_fallthru
      _
    // Predicated region
    $region42: #{lenet_forward.1} parent=1 // pred_check
      _
    $region43: #{lenet_forward.1} parent=1 // pred_check_branch
      %107 = sbr.rel (0) target = $region45
    $region44: #{lenet_forward.1} parent=1 // pred_region
      _
    $region45: #{lenet_forward.1} parent=1 // pred_fallthru
      _
    // Predicated region
    $region46: #{lenet_forward.1} parent=1 // pred_check
      _
    $region47: #{lenet_forward.1} parent=1 // pred_check_branch
      %109 = sbr.rel (0) target = $region49
    $region48: #{lenet_forward.1} parent=1 // pred_region
      _
    $region49: #{lenet_forward.1} parent=1 // pred_fallthru
      _
    // Predicated region
    $region50: #{lenet_forward.1} parent=1 // pred_check
      _
    $region51: #{lenet_forward.1} parent=1 // pred_check_branch
      %111 = sbr.rel (0) target = $region53
    $region52: #{lenet_forward.1} parent=1 // pred_region
      _
    $region53: #{lenet_forward.1} parent=1 // pred_fallthru
      _
    // Predicated region
    $region54: #{lenet_forward.1} parent=1 // pred_check
      _
    $region55: #{lenet_forward.1} parent=1 // pred_check_branch
      %113 = sbr.rel (0) target = $region57
    $region56: #{lenet_forward.1} parent=1 // pred_region
      %114 = dma.done [#allocation5], 2560
    $region57: #{lenet_forward.1} parent=1 // pred_fallthru
      _
    // Predicated region
    $region58: #{lenet_forward.1} parent=1 // pred_check
      _
    $region59: #{lenet_forward.1} parent=1 // pred_check_branch
      %116 = sbr.rel (0) target = $region61
    $region60: #{lenet_forward.1} parent=1 // pred_region
      %117 = dma.done [#allocation7], 32
    $region61: #{lenet_forward.1} parent=1 // pred_fallthru
      _
    // Predicated region
    $region62: #{lenet_forward.1} parent=1 // pred_check
      _
    $region63: #{lenet_forward.1} parent=1 // pred_check_branch
      %119 = sbr.rel (0) target = $region65
    $region64: #{lenet_forward.1} parent=1 // pred_region
      %120 = dma.done [#allocation7], 2688
    $region65: #{lenet_forward.1} parent=1 // pred_fallthru
      _
    // Predicated region
    $region66: #{lenet_forward.1} parent=1 // pred_check
      _
    $region67: #{lenet_forward.1} parent=1 // pred_check_branch
      %122 = sbr.rel (0) target = $region69
    $region68: #{lenet_forward.1} parent=1 // pred_region
      %123 = dma.done [#allocation10], 7040
    $region69: #{lenet_forward.1} parent=1 // pred_fallthru
      _
    // Predicated region
    $region70: #{lenet_forward.1} parent=1 // pred_check
      _
    $region71: #{lenet_forward.1} parent=1 // pred_check_branch
      %125 = sbr.rel (0) target = $region73
    $region72: #{lenet_forward.1} parent=1 // pred_region
      %126 = dma.done [#allocation10], 32
    $region73: #{lenet_forward.1} parent=1 // pred_fallthru
      _
    // Predicated region
    $region74: #{lenet_forward.1} parent=1 // pred_check
      _
    $region75: #{lenet_forward.1} parent=1 // pred_check_branch
      %128 = sbr.rel (0) target = $region77
    $region76: #{lenet_forward.1} parent=1 // pred_region
      %129 = dma.done [#allocation13], 6272
    $region77: #{lenet_forward.1} parent=1 // pred_fallthru
      _
    // Predicated region
    $region78: #{lenet_forward.1} parent=1 // pred_check
      _
    $region79: #{lenet_forward.1} parent=1 // pred_check_branch
      %131 = sbr.rel (0) target = $region81
    $region80: #{lenet_forward.1} parent=1 // pred_region
      %132 = dma.done [#allocation13], 16
    $region81: #{lenet_forward.1} parent=1 // pred_fallthru
      _
    %vm134 = vcmask 228352
    %135 = vst.msk [vmem:[#allocation2] sm:$0xff] %vm134, 0
    %136 = vst.msk [vmem:[#allocation2 + $0x8] sm:$0xff] %vm134, 0
    %137 = vst.msk [vmem:[#allocation2 + $0xf0] sm:$0xff] %vm134, 0
    %138 = vst.msk [vmem:[#allocation2 + $0xf8] sm:$0xff] %vm134, 0
    %vm139 = vcmask 687104
    %140 = vst.msk [vmem:[#allocation3] sm:$0xff] %vm139, 0
    %141 = vst.msk [vmem:[#allocation3 + $0x8] sm:$0xff] %vm139, 0
    %142 = vst.msk [vmem:[#allocation3 + $0x80] sm:$0xff] %vm139, 0
    %143 = vst.msk [vmem:[#allocation3 + $0x88] sm:$0xff] %vm139, 0
    %v144 = vld [vmem:[%s0] sm:$0xf]
    %v145 = vld [vmem:[%s0 + $0x4] sm:$0xf]
    %v146 = vld [vmem:[%s0 + $0x8] sm:$0xf]
    %v147 = vld [vmem:[%s0 + $0xc] sm:$0xf]
    %v148 = vld [vmem:[%s0 + $0x10] sm:$0xf]
    %v149 = vld [vmem:[%s0 + $0x14] sm:$0xf]
    %v150 = vld [vmem:[%s0 + $0x18] sm:$0xf]
    %v151 = vld [vmem:[%s0 + $0x1c] sm:$0xf]
    %v152 = vld [vmem:[%s0 + $0x20] sm:$0xf]
    %v153 = vld [vmem:[%s0 + $0x24] sm:$0xf]
    %v154 = vld [vmem:[%s0 + $0x28] sm:$0xf]
    %v155 = vld [vmem:[%s0 + $0x2c] sm:$0xf]
    %v156 = vld [vmem:[%s0 + $0x30] sm:$0xf]
    %v157 = vld [vmem:[%s0 + $0x34] sm:$0xf]
    %v158 = vld [vmem:[%s0 + $0x38] sm:$0xf]
    %v159 = vld [vmem:[%s0 + $0x3c] sm:$0xf]
    %v160 = vld [vmem:[%s0 + $0x40] sm:$0xf]
    %v161 = vld [vmem:[%s0 + $0x44] sm:$0xf]
    %v162 = vld [vmem:[%s0 + $0x48] sm:$0xf]
    %v163 = vld [vmem:[%s0 + $0x4c] sm:$0xf]
    %v164 = vld [vmem:[%s0 + $0x50] sm:$0xf]
    %v165 = vld [vmem:[%s0 + $0x54] sm:$0xf]
    %v166 = vld [vmem:[%s0 + $0x58] sm:$0xf]
    %v167 = vld [vmem:[%s0 + $0x5c] sm:$0xf]
    %v168 = vld [vmem:[%s0 + $0x60] sm:$0xf]
    %v169 = vld [vmem:[%s0 + $0x64] sm:$0xf]
    %v170 = vld [vmem:[%s0 + $0x68] sm:$0xf]
    %v171 = vld [vmem:[%s0 + $0x6c] sm:$0xf]
    %v172 = vld [vmem:[%s0 + $0x70] sm:$0xf]
    %v173 = vld [vmem:[%s0 + $0x74] sm:$0xf]
    %v174 = vld [vmem:[%s0 + $0x78] sm:$0xf]
    %v175 = vld [vmem:[%s0 + $0x7c] sm:$0xf]
    %v176 = vld [vmem:[%s0 + $0x80] sm:$0xf]
    %v177 = vld [vmem:[%s0 + $0x84] sm:$0xf]
    %v178 = vld [vmem:[%s0 + $0x88] sm:$0xf]
    %v179 = vld [vmem:[%s0 + $0x8c] sm:$0xf]
    %v180 = vld [vmem:[%s0 + $0x90] sm:$0xf]
    %v181 = vld [vmem:[%s0 + $0x94] sm:$0xf]
    %v182 = vld [vmem:[%s0 + $0x98] sm:$0xf]
    %v183 = vld [vmem:[%s0 + $0x9c] sm:$0xf]
    %v184 = vld [vmem:[%s0 + $0xa0] sm:$0xf]
    %v185 = vld [vmem:[%s0 + $0xa4] sm:$0xf]
    %v186 = vld [vmem:[%s0 + $0xa8] sm:$0xf]
    %v187 = vld [vmem:[%s0 + $0xac] sm:$0xf]
    %v188 = vld [vmem:[%s0 + $0xb0] sm:$0xf]
    %v189 = vld [vmem:[%s0 + $0xb4] sm:$0xf]
    %v190 = vld [vmem:[%s0 + $0xb8] sm:$0xf]
    %v191 = vld [vmem:[%s0 + $0xbc] sm:$0xf]
    %v192 = vld [vmem:[%s0 + $0xc0] sm:$0xf]
    %v193 = vld [vmem:[%s0 + $0xc4] sm:$0xf]
    %v194 = vld [vmem:[%s0 + $0xc8] sm:$0xf]
    %v195 = vld [vmem:[%s0 + $0xcc] sm:$0xf]
    %v196 = vld [vmem:[%s0 + $0xd0] sm:$0xf]
    %v197 = vld [vmem:[%s0 + $0xd4] sm:$0xf]
    %v198 = vld [vmem:[%s0 + $0xd8] sm:$0xf]
    %v199 = vld [vmem:[%s0 + $0xdc] sm:$0xf]
    %v256 = vunpack.c.l.b16 %v144
    %v257 = vunpack.c.l.b16 %v145
    %v258 = vunpack.c.l.b16 %v146
    %v259 = vunpack.c.l.b16 %v147
    %v260 = vunpack.c.l.b16 %v148
    %v261 = vunpack.c.l.b16 %v149
    %v262 = vunpack.c.l.b16 %v150
    %v263 = vunpack.c.l.b16 %v151
    %v264 = vunpack.c.l.b16 %v152
    %v265 = vunpack.c.l.b16 %v153
    %v266 = vunpack.c.l.b16 %v154
    %v267 = vunpack.c.l.b16 %v155
    %v268 = vunpack.c.l.b16 %v156
    %v269 = vunpack.c.l.b16 %v157
    %v270 = vunpack.c.l.b16 %v158
    %v271 = vunpack.c.l.b16 %v159
    %v272 = vunpack.c.l.b16 %v160
    %v273 = vunpack.c.l.b16 %v161
    %v274 = vunpack.c.l.b16 %v162
    %v275 = vunpack.c.l.b16 %v163
    %v276 = vunpack.c.l.b16 %v164
    %v277 = vunpack.c.l.b16 %v165
    %v278 = vunpack.c.l.b16 %v166
    %v279 = vunpack.c.l.b16 %v167
    %v280 = vunpack.c.l.b16 %v168
    %v281 = vunpack.c.l.b16 %v169
    %v282 = vunpack.c.l.b16 %v170
    %v283 = vunpack.c.l.b16 %v171
    %v284 = vunpack.c.l.b16 %v172
    %v285 = vunpack.c.l.b16 %v173
    %v286 = vunpack.c.l.b16 %v174
    %v287 = vunpack.c.l.b16 %v175
    %v288 = vunpack.c.l.b16 %v176
    %v289 = vunpack.c.l.b16 %v177
    %v290 = vunpack.c.l.b16 %v178
    %v291 = vunpack.c.l.b16 %v179
    %v292 = vunpack.c.l.b16 %v180
    %v293 = vunpack.c.l.b16 %v181
    %v294 = vunpack.c.l.b16 %v182
    %v295 = vunpack.c.l.b16 %v183
    %v296 = vunpack.c.l.b16 %v184
    %v297 = vunpack.c.l.b16 %v185
    %v298 = vunpack.c.l.b16 %v186
    %v299 = vunpack.c.l.b16 %v187
    %v300 = vunpack.c.l.b16 %v188
    %v301 = vunpack.c.l.b16 %v189
    %v302 = vunpack.c.l.b16 %v190
    %v303 = vunpack.c.l.b16 %v191
    %v304 = vunpack.c.l.b16 %v192
    %v305 = vunpack.c.l.b16 %v193
    %v306 = vunpack.c.l.b16 %v194
    %v307 = vunpack.c.l.b16 %v195
    %v308 = vunpack.c.l.b16 %v196
    %v309 = vunpack.c.l.b16 %v197
    %v310 = vunpack.c.l.b16 %v198
    %v311 = vunpack.c.l.b16 %v199
    %v312 = vpack.c.b16 %v257, %v256
    %v313 = vpack.c.b16 %v259, %v258
    %v314 = vpack.c.b16 %v261, %v260
    %v315 = vpack.c.b16 %v263, %v262
    %v316 = vpack.c.b16 %v265, %v264
    %v317 = vpack.c.b16 %v267, %v266
    %v318 = vpack.c.b16 %v269, %v268
    %v319 = vpack.c.b16 %v271, %v270
    %v320 = vpack.c.b16 %v273, %v272
    %v321 = vpack.c.b16 %v275, %v274
    %v322 = vpack.c.b16 %v277, %v276
    %v323 = vpack.c.b16 %v279, %v278
    %v324 = vpack.c.b16 %v281, %v280
    %v325 = vpack.c.b16 %v283, %v282
    %v326 = vpack.c.b16 %v285, %v284
    %v327 = vpack.c.b16 %v287, %v286
    %v328 = vpack.c.b16 %v289, %v288
    %v329 = vpack.c.b16 %v291, %v290
    %v330 = vpack.c.b16 %v293, %v292
    %v331 = vpack.c.b16 %v295, %v294
    %v332 = vpack.c.b16 %v297, %v296
    %v333 = vpack.c.b16 %v299, %v298
    %v334 = vpack.c.b16 %v301, %v300
    %v335 = vpack.c.b16 %v303, %v302
    %v336 = vpack.c.b16 %v305, %v304
    %v337 = vpack.c.b16 %v307, %v306
    %v338 = vpack.c.b16 %v309, %v308
    %v339 = vpack.c.b16 %v311, %v310
    %368 = vst.msk [vmem:[#allocation2 + $0x10] sm:$0xff] %vm134, %v312
    %369 = vst.msk [vmem:[#allocation2 + $0x18] sm:$0xff] %vm134, %v313
    %370 = vst.msk [vmem:[#allocation2 + $0x20] sm:$0xff] %vm134, %v314
    %371 = vst.msk [vmem:[#allocation2 + $0x28] sm:$0xff] %vm134, %v315
    %372 = vst.msk [vmem:[#allocation2 + $0x30] sm:$0xff] %vm134, %v316
    %373 = vst.msk [vmem:[#allocation2 + $0x38] sm:$0xff] %vm134, %v317
    %374 = vst.msk [vmem:[#allocation2 + $0x40] sm:$0xff] %vm134, %v318
    %375 = vst.msk [vmem:[#allocation2 + $0x48] sm:$0xff] %vm134, %v319
    %376 = vst.msk [vmem:[#allocation2 + $0x50] sm:$0xff] %vm134, %v320
    %377 = vst.msk [vmem:[#allocation2 + $0x58] sm:$0xff] %vm134, %v321
    %378 = vst.msk [vmem:[#allocation2 + $0x60] sm:$0xff] %vm134, %v322
    %379 = vst.msk [vmem:[#allocation2 + $0x68] sm:$0xff] %vm134, %v323
    %380 = vst.msk [vmem:[#allocation2 + $0x70] sm:$0xff] %vm134, %v324
    %381 = vst.msk [vmem:[#allocation2 + $0x78] sm:$0xff] %vm134, %v325
    %382 = vst.msk [vmem:[#allocation2 + $0x80] sm:$0xff] %vm134, %v326
    %383 = vst.msk [vmem:[#allocation2 + $0x88] sm:$0xff] %vm134, %v327
    %384 = vst.msk [vmem:[#allocation2 + $0x90] sm:$0xff] %vm134, %v328
    %385 = vst.msk [vmem:[#allocation2 + $0x98] sm:$0xff] %vm134, %v329
    %386 = vst.msk [vmem:[#allocation2 + $0xa0] sm:$0xff] %vm134, %v330
    %387 = vst.msk [vmem:[#allocation2 + $0xa8] sm:$0xff] %vm134, %v331
    %388 = vst.msk [vmem:[#allocation2 + $0xb0] sm:$0xff] %vm134, %v332
    %389 = vst.msk [vmem:[#allocation2 + $0xb8] sm:$0xff] %vm134, %v333
    %390 = vst.msk [vmem:[#allocation2 + $0xc0] sm:$0xff] %vm134, %v334
    %391 = vst.msk [vmem:[#allocation2 + $0xc8] sm:$0xff] %vm134, %v335
    %392 = vst.msk [vmem:[#allocation2 + $0xd0] sm:$0xff] %vm134, %v336
    %393 = vst.msk [vmem:[#allocation2 + $0xd8] sm:$0xff] %vm134, %v337
    %394 = vst.msk [vmem:[#allocation2 + $0xe0] sm:$0xff] %vm134, %v338
    %395 = vst.msk [vmem:[#allocation2 + $0xe8] sm:$0xff] %vm134, %v339
    %v396 = vld [vmem:[#allocation2] sm:$0xff]
    %v397 = vld [vmem:[#allocation2 + $0x8] sm:$0xff]
    %v398 = vld [vmem:[#allocation2 + $0x10] sm:$0xff]
    %v399 = vld [vmem:[#allocation2 + $0x18] sm:$0xff]
    %v400 = vld [vmem:[#allocation2 + $0x20] sm:$0xff]
    %v401 = vld [vmem:[#allocation2 + $0x28] sm:$0xff]
    %v402 = vld [vmem:[#allocation2 + $0x30] sm:$0xff]
    %v403 = vld [vmem:[#allocation2 + $0x38] sm:$0xff]
    %v404 = vld [vmem:[#allocation2 + $0x40] sm:$0xff]
    %v405 = vld [vmem:[#allocation2 + $0x48] sm:$0xff]
    %v406 = vld [vmem:[#allocation2 + $0x50] sm:$0xff]
    %v407 = vld [vmem:[#allocation2 + $0x58] sm:$0xff]
    %v408 = vld [vmem:[#allocation2 + $0x60] sm:$0xff]
    %v409 = vld [vmem:[#allocation2 + $0x68] sm:$0xff]
    %v410 = vld [vmem:[#allocation2 + $0x70] sm:$0xff]
    %v411 = vld [vmem:[#allocation2 + $0x78] sm:$0xff]
    %v412 = vld [vmem:[#allocation2 + $0x80] sm:$0xff]
    %v413 = vld [vmem:[#allocation2 + $0x88] sm:$0xff]
    %v414 = vld [vmem:[#allocation2 + $0x90] sm:$0xff]
    %v415 = vld [vmem:[#allocation2 + $0x98] sm:$0xff]
    %v416 = vld [vmem:[#allocation2 + $0xa0] sm:$0xff]
    %v417 = vld [vmem:[#allocation2 + $0xa8] sm:$0xff]
    %v418 = vld [vmem:[#allocation2 + $0xb0] sm:$0xff]
    %v419 = vld [vmem:[#allocation2 + $0xb8] sm:$0xff]
    %v420 = vld [vmem:[#allocation2 + $0xc0] sm:$0xff]
    %v421 = vld [vmem:[#allocation2 + $0xc8] sm:$0xff]
    %v422 = vld [vmem:[#allocation2 + $0xd0] sm:$0xff]
    %v423 = vld [vmem:[#allocation2 + $0xd8] sm:$0xff]
    %v424 = vld [vmem:[#allocation4] sm:$0xff]
    %v425 = vld [vmem:[#allocation4 + $0x8] sm:$0xff]
    %v426 = vld [vmem:[#allocation4 + $0x10] sm:$0xff]
    %v427 = vld [vmem:[#allocation4 + $0x18] sm:$0x33]
    %v428 = vld [vmem:[#allocation2 + $0xe0] sm:$0xff]
    %s429 = scalar_lea.vmem [#allocation4], 32
    %v430 = vld [vmem:[%s429] sm:$0xff]
    %v431 = vld [vmem:[%s429 + $0x8] sm:$0xff]
    %v432 = vld [vmem:[%s429 + $0x10] sm:$0xff]
    %v433 = vld [vmem:[%s429 + $0x18] sm:$0x33]
    %v438 = vunpack.c.l.b16 %v430
    %v439 = vunpack.c.h.b16 %v430
    %v440 = vunpack.c.l.b16 %v431
    %v441 = vunpack.c.h.b16 %v431
    %v442 = vunpack.c.l.b16 %v432
    %v443 = vunpack.c.h.b16 %v432
    %v444 = vunpack.c.l.b16 %v433
    %v445 = vunpack.c.h.b16 %v433
    %v446 = vpack.c.b16 %v440, %v438
    %v447 = vpack.c.b16 %v441, %v439
    %v448 = vpack.c.b16 %v444, %v442
    %v449 = vpack.c.b16 %v445, %v443
    %v453 = vsel %vm134, %v397, 0
    %v456 = vsel %vm134, %v398, 0
    %v459 = vsel %vm134, %v399, 0
    %v462 = vsel %vm134, %v400, 0
    %v465 = vsel %vm134, %v401, 0
    %v468 = vsel %vm134, %v402, 0
    %v471 = vsel %vm134, %v403, 0
    %v474 = vsel %vm134, %v404, 0
    %v477 = vsel %vm134, %v405, 0
    %v480 = vsel %vm134, %v406, 0
    %v483 = vsel %vm134, %v407, 0
    %v486 = vsel %vm134, %v408, 0
    %v489 = vsel %vm134, %v409, 0
    %v492 = vsel %vm134, %v410, 0
    %v495 = vsel %vm134, %v411, 0
    %v498 = vsel %vm134, %v412, 0
    %v501 = vsel %vm134, %v413, 0
    %v504 = vsel %vm134, %v414, 0
    %v507 = vsel %vm134, %v415, 0
    %v510 = vsel %vm134, %v416, 0
    %v513 = vsel %vm134, %v417, 0
    %v516 = vsel %vm134, %v418, 0
    %v519 = vsel %vm134, %v419, 0
    %v522 = vsel %vm134, %v420, 0
    %v525 = vsel %vm134, %v421, 0
    %v528 = vsel %vm134, %v422, 0
    %v531 = vsel %vm134, %v423, 0
    %v534 = vsel %vm134, %v428, 0
    %vm536 = vcmask 1045504
    %v538 = vsel %vm536, %v448, 0
    %v541 = vsel %vm536, %v449, 0
    %543 = vmatprep.subr.bf16.mxu0 %v447
    %544 = vmatpush1.bf16.msra.mxu0 %v446
    %545 = vmatprep.subr.bf16.mxu0 %v541
    %546 = vmatpush1.bf16.msra.mxu0 %v538
    %547 = vmatprep.subr.bf16.mxu0 0
    %548 = vmatpush1.bf16.msra.mxu0 0
    %549 = vmatprep.subr.bf16.mxu0 0
    %550 = vmatpush1.bf16.msra.mxu0 0
    %551 = vmatprep.subr.bf16.mxu0 0
    %552 = vmatpush1.bf16.msra.mxu0 0
    %553 = vmatprep.subr.bf16.mxu0 0
    %554 = vmatpush1.bf16.msra.mxu0 0
    %555 = vmatprep.subr.bf16.mxu0 0
    %556 = vmatpush1.bf16.msra.mxu0 0
    %557 = vmatprep.subr.bf16.mxu0 0
    %558 = vmatpush1.bf16.msra.mxu0 0
    %559 = vmatprep.subr.bf16.mxu0 0
    %560 = vmatpush1.bf16.msra.mxu0 0
    %561 = vmatprep.subr.bf16.mxu0 0
    %562 = vmatpush1.bf16.msra.mxu0 0
    %563 = vmatprep.subr.bf16.mxu0 0
    %564 = vmatpush1.bf16.msra.mxu0 0
    %565 = vmatprep.subr.bf16.mxu0 0
    %566 = vmatpush1.bf16.msra.mxu0 0
    %567 = vmatprep.subr.bf16.mxu0 0
    %568 = vmatpush1.bf16.msra.mxu0 0
    %569 = vmatprep.subr.bf16.mxu0 0
    %570 = vmatpush1.bf16.msra.mxu0 0
    %571 = vmatprep.subr.bf16.mxu0 0
    %572 = vmatpush1.bf16.msra.mxu0 0
    %573 = vmatprep.subr.bf16.mxu0 0
    %574 = vmatpush1.bf16.msra.mxu0 0
    %575 = vmatprep.mubr.bf16.mxu0 0
    %576 = vmatmul.mubr.bf16.gmra.mrb[0].mxu0 %v453
    %v577 = vpop.f32.mrb[0].mxu0
    %v578 = vadd.f32 0.0, %v577
    %v579 = vpop.f32.mrb[0].mxu0
    %v580 = vadd.f32 0.0, %v579
    %v581 = vpop.f32.mrb[0].mxu0
    %v582 = vadd.f32 0.0, %v581
    %v583 = vpop.f32.mrb[0].mxu0
    %v584 = vadd.f32 0.0, %v583
    %585 = vmatprep.mubr.bf16.mxu0 0
    %586 = vmatmul.mubr.bf16.gmra.mrb[0].mxu0 %v456
    %v587 = vpop.f32.mrb[0].mxu0
    %v588 = vadd.f32 0.0, %v587
    %v589 = vpop.f32.mrb[0].mxu0
    %v590 = vadd.f32 0.0, %v589
    %v591 = vpop.f32.mrb[0].mxu0
    %v592 = vadd.f32 0.0, %v591
    %v593 = vpop.f32.mrb[0].mxu0
    %v594 = vadd.f32 0.0, %v593
    %595 = vmatprep.mubr.bf16.mxu0 0
    %596 = vmatmul.mubr.bf16.gmra.mrb[0].mxu0 %v459
    %v597 = vpop.f32.mrb[0].mxu0
    %v598 = vadd.f32 0.0, %v597
    %v599 = vpop.f32.mrb[0].mxu0
    %v600 = vadd.f32 0.0, %v599
    %v601 = vpop.f32.mrb[0].mxu0
    %v602 = vadd.f32 0.0, %v601
    %v603 = vpop.f32.mrb[0].mxu0
    %v604 = vadd.f32 0.0, %v603
    %605 = vmatprep.mubr.bf16.mxu0 0
    %606 = vmatmul.mubr.bf16.gmra.mrb[0].mxu0 %v462
    %v607 = vpop.f32.mrb[0].mxu0
    %v608 = vadd.f32 0.0, %v607
    %v609 = vpop.f32.mrb[0].mxu0
    %v610 = vadd.f32 0.0, %v609
    %v611 = vpop.f32.mrb[0].mxu0
    %v612 = vadd.f32 0.0, %v611
    %v613 = vpop.f32.mrb[0].mxu0
    %v614 = vadd.f32 0.0, %v613
    %615 = vmatprep.mubr.bf16.mxu0 0
    %616 = vmatmul.mubr.bf16.gmra.mrb[0].mxu0 %v465
    %v617 = vpop.f32.mrb[0].mxu0
    %v618 = vadd.f32 0.0, %v617
    %v619 = vpop.f32.mrb[0].mxu0
    %v620 = vadd.f32 0.0, %v619
    %v621 = vpop.f32.mrb[0].mxu0
    %v622 = vadd.f32 0.0, %v621
    %v623 = vpop.f32.mrb[0].mxu0
    %v624 = vadd.f32 0.0, %v623
    %625 = vmatprep.mubr.bf16.mxu0 0
    %626 = vmatmul.mubr.bf16.gmra.mrb[0].mxu0 %v468
    %v627 = vpop.f32.mrb[0].mxu0
    %v628 = vadd.f32 0.0, %v627
    %v629 = vpop.f32.mrb[0].mxu0
    %v630 = vadd.f32 0.0, %v629
    %v631 = vpop.f32.mrb[0].mxu0
    %v632 = vadd.f32 0.0, %v631
    %v633 = vpop.f32.mrb[0].mxu0
    %v634 = vadd.f32 0.0, %v633
    %635 = vmatprep.mubr.bf16.mxu0 0
    %636 = vmatmul.mubr.bf16.gmra.mrb[0].mxu0 %v471
    %v637 = vpop.f32.mrb[0].mxu0
    %v638 = vadd.f32 0.0, %v637
    %v639 = vpop.f32.mrb[0].mxu0
    %v640 = vadd.f32 0.0, %v639
    %v641 = vpop.f32.mrb[0].mxu0
    %v642 = vadd.f32 0.0, %v641
    %v643 = vpop.f32.mrb[0].mxu0
    %v644 = vadd.f32 0.0, %v643
    %645 = vmatprep.mubr.bf16.mxu0 0
    %646 = vmatmul.mubr.bf16.gmra.mrb[0].mxu0 %v474
    %v647 = vpop.f32.mrb[0].mxu0
    %v648 = vadd.f32 0.0, %v647
    %v649 = vpop.f32.mrb[0].mxu0
    %v650 = vadd.f32 0.0, %v649
    %v651 = vpop.f32.mrb[0].mxu0
    %v652 = vadd.f32 0.0, %v651
    %v653 = vpop.f32.mrb[0].mxu0
    %v654 = vadd.f32 0.0, %v653
    %655 = vmatprep.mubr.bf16.mxu0 0
    %656 = vmatmul.mubr.bf16.gmra.mrb[0].mxu0 %v477
    %v657 = vpop.f32.mrb[0].mxu0
    %v658 = vadd.f32 0.0, %v657
    %v659 = vpop.f32.mrb[0].mxu0
    %v660 = vadd.f32 0.0, %v659
    %v661 = vpop.f32.mrb[0].mxu0
    %v662 = vadd.f32 0.0, %v661
    %v663 = vpop.f32.mrb[0].mxu0
    %v664 = vadd.f32 0.0, %v663
    %665 = vmatprep.mubr.bf16.mxu0 0
    %666 = vmatmul.mubr.bf16.gmra.mrb[0].mxu0 %v480
    %v667 = vpop.f32.mrb[0].mxu0
    %v668 = vadd.f32 0.0, %v667
    %v669 = vpop.f32.mrb[0].mxu0
    %v670 = vadd.f32 0.0, %v669
    %v671 = vpop.f32.mrb[0].mxu0
    %v672 = vadd.f32 0.0, %v671
    %v673 = vpop.f32.mrb[0].mxu0
    %v674 = vadd.f32 0.0, %v673
    %675 = vmatprep.mubr.bf16.mxu0 0
    %676 = vmatmul.mubr.bf16.gmra.mrb[0].mxu0 %v483
    %v677 = vpop.f32.mrb[0].mxu0
    %v678 = vadd.f32 0.0, %v677
    %v679 = vpop.f32.mrb[0].mxu0
    %v680 = vadd.f32 0.0, %v679
    %v681 = vpop.f32.mrb[0].mxu0
    %v682 = vadd.f32 0.0, %v681
    %v683 = vpop.f32.mrb[0].mxu0
    %v684 = vadd.f32 0.0, %v683
    %685 = vmatprep.mubr.bf16.mxu0 0
    %686 = vmatmul.mubr.bf16.gmra.mrb[0].mxu0 %v486
    %v687 = vpop.f32.mrb[0].mxu0
    %v688 = vadd.f32 0.0, %v687
    %v689 = vpop.f32.mrb[0].mxu0
    %v690 = vadd.f32 0.0, %v689
    %v691 = vpop.f32.mrb[0].mxu0
    %v692 = vadd.f32 0.0, %v691
    %v693 = vpop.f32.mrb[0].mxu0
    %v694 = vadd.f32 0.0, %v693
    %695 = vmatprep.mubr.bf16.mxu0 0
    %696 = vmatmul.mubr.bf16.gmra.mrb[0].mxu0 %v489
    %v697 = vpop.f32.mrb[0].mxu0
    %v698 = vadd.f32 0.0, %v697
    %v699 = vpop.f32.mrb[0].mxu0
    %v700 = vadd.f32 0.0, %v699
    %v701 = vpop.f32.mrb[0].mxu0
    %v702 = vadd.f32 0.0, %v701
    %v703 = vpop.f32.mrb[0].mxu0
    %v704 = vadd.f32 0.0, %v703
    %705 = vmatprep.mubr.bf16.mxu0 0
    %706 = vmatmul.mubr.bf16.gmra.mrb[0].mxu0 %v492
    %v707 = vpop.f32.mrb[0].mxu0
    %v708 = vadd.f32 0.0, %v707
    %v709 = vpop.f32.mrb[0].mxu0
    %v710 = vadd.f32 0.0, %v709
    %v711 = vpop.f32.mrb[0].mxu0
    %v712 = vadd.f32 0.0, %v711
    %v713 = vpop.f32.mrb[0].mxu0
    %v714 = vadd.f32 0.0, %v713
    %715 = vmatprep.mubr.bf16.mxu0 0
    %716 = vmatmul.mubr.bf16.gmra.mrb[0].mxu0 %v495
    %v717 = vpop.f32.mrb[0].mxu0
    %v718 = vadd.f32 0.0, %v717
    %v719 = vpop.f32.mrb[0].mxu0
    %v720 = vadd.f32 0.0, %v719
    %v721 = vpop.f32.mrb[0].mxu0
    %v722 = vadd.f32 0.0, %v721
    %v723 = vpop.f32.mrb[0].mxu0
    %v724 = vadd.f32 0.0, %v723
    %725 = vmatprep.mubr.bf16.mxu0 0
    %726 = vmatmul.mubr.bf16.gmra.mrb[0].mxu0 %v498
    %v727 = vpop.f32.mrb[0].mxu0
    %v728 = vadd.f32 0.0, %v727
    %v729 = vpop.f32.mrb[0].mxu0
    %v730 = vadd.f32 0.0, %v729
    %v731 = vpop.f32.mrb[0].mxu0
    %v732 = vadd.f32 0.0, %v731
    %v733 = vpop.f32.mrb[0].mxu0
    %v734 = vadd.f32 0.0, %v733
    %735 = vmatprep.mubr.bf16.mxu0 0
    %736 = vmatmul.mubr.bf16.gmra.mrb[0].mxu0 %v501
    %v737 = vpop.f32.mrb[0].mxu0
    %v738 = vadd.f32 0.0, %v737
    %v739 = vpop.f32.mrb[0].mxu0
    %v740 = vadd.f32 0.0, %v739
    %v741 = vpop.f32.mrb[0].mxu0
    %v742 = vadd.f32 0.0, %v741
    %v743 = vpop.f32.mrb[0].mxu0
    %v744 = vadd.f32 0.0, %v743
    %745 = vmatprep.mubr.bf16.mxu0 0
    %746 = vmatmul.mubr.bf16.gmra.mrb[0].mxu0 %v504
    %v747 = vpop.f32.mrb[0].mxu0
    %v748 = vadd.f32 0.0, %v747
    %v749 = vpop.f32.mrb[0].mxu0
    %v750 = vadd.f32 0.0, %v749
    %v751 = vpop.f32.mrb[0].mxu0
    %v752 = vadd.f32 0.0, %v751
    %v753 = vpop.f32.mrb[0].mxu0
    %v754 = vadd.f32 0.0, %v753
    %755 = vmatprep.mubr.bf16.mxu0 0
    %756 = vmatmul.mubr.bf16.gmra.mrb[0].mxu0 %v507
    %v757 = vpop.f32.mrb[0].mxu0
    %v758 = vadd.f32 0.0, %v757
    %v759 = vpop.f32.mrb[0].mxu0
    %v760 = vadd.f32 0.0, %v759
    %v761 = vpop.f32.mrb[0].mxu0
    %v762 = vadd.f32 0.0, %v761
    %v763 = vpop.f32.mrb[0].mxu0
    %v764 = vadd.f32 0.0, %v763
    %765 = vmatprep.mubr.bf16.mxu0 0
    %766 = vmatmul.mubr.bf16.gmra.mrb[0].mxu0 %v510
    %v767 = vpop.f32.mrb[0].mxu0
    %v768 = vadd.f32 0.0, %v767
    %v769 = vpop.f32.mrb[0].mxu0
    %v770 = vadd.f32 0.0, %v769
    %v771 = vpop.f32.mrb[0].mxu0
    %v772 = vadd.f32 0.0, %v771
    %v773 = vpop.f32.mrb[0].mxu0
    %v774 = vadd.f32 0.0, %v773
    %775 = vmatprep.mubr.bf16.mxu0 0
    %776 = vmatmul.mubr.bf16.gmra.mrb[0].mxu0 %v513
    %v777 = vpop.f32.mrb[0].mxu0
    %v778 = vadd.f32 0.0, %v777
    %v779 = vpop.f32.mrb[0].mxu0
    %v780 = vadd.f32 0.0, %v779
    %v781 = vpop.f32.mrb[0].mxu0
    %v782 = vadd.f32 0.0, %v781
    %v783 = vpop.f32.mrb[0].mxu0
    %v784 = vadd.f32 0.0, %v783
    %785 = vmatprep.mubr.bf16.mxu0 0
    %786 = vmatmul.mubr.bf16.gmra.mrb[0].mxu0 %v516
    %v787 = vpop.f32.mrb[0].mxu0
    %v788 = vadd.f32 0.0, %v787
    %v789 = vpop.f32.mrb[0].mxu0
    %v790 = vadd.f32 0.0, %v789
    %v791 = vpop.f32.mrb[0].mxu0
    %v792 = vadd.f32 0.0, %v791
    %v793 = vpop.f32.mrb[0].mxu0
    %v794 = vadd.f32 0.0, %v793
    %795 = vmatprep.mubr.bf16.mxu0 0
    %796 = vmatmul.mubr.bf16.gmra.mrb[0].mxu0 %v519
    %v797 = vpop.f32.mrb[0].mxu0
    %v798 = vadd.f32 0.0, %v797
    %v799 = vpop.f32.mrb[0].mxu0
    %v800 = vadd.f32 0.0, %v799
    %v801 = vpop.f32.mrb[0].mxu0
    %v802 = vadd.f32 0.0, %v801
    %v803 = vpop.f32.mrb[0].mxu0
    %v804 = vadd.f32 0.0, %v803
    %805 = vmatprep.mubr.bf16.mxu0 0
    %806 = vmatmul.mubr.bf16.gmra.mrb[0].mxu0 %v522
    %v807 = vpop.f32.mrb[0].mxu0
    %v808 = vadd.f32 0.0, %v807
    %v809 = vpop.f32.mrb[0].mxu0
    %v810 = vadd.f32 0.0, %v809
    %v811 = vpop.f32.mrb[0].mxu0
    %v812 = vadd.f32 0.0, %v811
    %v813 = vpop.f32.mrb[0].mxu0
    %v814 = vadd.f32 0.0, %v813
    %815 = vmatprep.mubr.bf16.mxu0 0
    %816 = vmatmul.mubr.bf16.gmra.mrb[0].mxu0 %v525
    %v817 = vpop.f32.mrb[0].mxu0
    %v818 = vadd.f32 0.0, %v817
    %v819 = vpop.f32.mrb[0].mxu0
    %v820 = vadd.f32 0.0, %v819
    %v821 = vpop.f32.mrb[0].mxu0
    %v822 = vadd.f32 0.0, %v821
    %v823 = vpop.f32.mrb[0].mxu0
    %v824 = vadd.f32 0.0, %v823
    %825 = vmatprep.mubr.bf16.mxu0 0
    %826 = vmatmul.mubr.bf16.gmra.mrb[0].mxu0 %v528
    %v827 = vpop.f32.mrb[0].mxu0
    %v828 = vadd.f32 0.0, %v827
    %v829 = vpop.f32.mrb[0].mxu0
    %v830 = vadd.f32 0.0, %v829
    %v831 = vpop.f32.mrb[0].mxu0
    %v832 = vadd.f32 0.0, %v831
    %v833 = vpop.f32.mrb[0].mxu0
    %v834 = vadd.f32 0.0, %v833
    %835 = vmatprep.mubr.bf16.mxu0 0
    %836 = vmatmul.mubr.bf16.gmra.mrb[0].mxu0 %v531
    %v837 = vpop.f32.mrb[0].mxu0
    %v838 = vadd.f32 0.0, %v837
    %v839 = vpop.f32.mrb[0].mxu0
    %v840 = vadd.f32 0.0, %v839
    %v841 = vpop.f32.mrb[0].mxu0
    %v842 = vadd.f32 0.0, %v841
    %v843 = vpop.f32.mrb[0].mxu0
    %v844 = vadd.f32 0.0, %v843
    %845 = vmatprep.mubr.bf16.mxu0 0
    %846 = vmatmul.mubr.bf16.gmra.mrb[0].mxu0 %v534
    %v847 = vpop.f32.mrb[0].mxu0
    %v848 = vadd.f32 0.0, %v847
    %v849 = vpop.f32.mrb[0].mxu0
    %v850 = vadd.f32 0.0, %v849
    %v851 = vpop.f32.mrb[0].mxu0
    %v852 = vadd.f32 0.0, %v851
    %v853 = vpop.f32.mrb[0].mxu0
    %v854 = vadd.f32 0.0, %v853
    %855 = vdwg.mxu0
    %v860 = vunpack.c.l.b16 %v424
    %v861 = vunpack.c.h.b16 %v424
    %v862 = vunpack.c.l.b16 %v425
    %v863 = vunpack.c.h.b16 %v425
    %v864 = vunpack.c.l.b16 %v426
    %v865 = vunpack.c.h.b16 %v426
    %v866 = vunpack.c.l.b16 %v427
    %v867 = vunpack.c.h.b16 %v427
    %v868 = vpack.c.b16 %v862, %v860
    %v869 = vpack.c.b16 %v863, %v861
    %v870 = vpack.c.b16 %v866, %v864
    %v871 = vpack.c.b16 %v867, %v865
    %v875 = vsel %vm134, %v396, 0
    %v878 = vsel %vm536, %v870, 0
    %v881 = vsel %vm536, %v871, 0
    %883 = vmatprep.subr.bf16.mxu0 %v869
    %884 = vmatpush1.bf16.msra.mxu0 %v868
    %885 = vmatprep.subr.bf16.mxu0 %v881
    %886 = vmatpush1.bf16.msra.mxu0 %v878
    %887 = vmatprep.subr.bf16.mxu0 0
    %888 = vmatpush1.bf16.msra.mxu0 0
    %889 = vmatprep.subr.bf16.mxu0 0
    %890 = vmatpush1.bf16.msra.mxu0 0
    %891 = vmatprep.subr.bf16.mxu0 0
    %892 = vmatpush1.bf16.msra.mxu0 0
    %893 = vmatprep.subr.bf16.mxu0 0
    %894 = vmatpush1.bf16.msra.mxu0 0
    %895 = vmatprep.subr.bf16.mxu0 0
    %896 = vmatpush1.bf16.msra.mxu0 0
    %897 = vmatprep.subr.bf16.mxu0 0
    %898 = vmatpush1.bf16.msra.mxu0 0
    %899 = vmatprep.subr.bf16.mxu0 0
    %900 = vmatpush1.bf16.msra.mxu0 0
    %901 = vmatprep.subr.bf16.mxu0 0
    %902 = vmatpush1.bf16.msra.mxu0 0
    %903 = vmatprep.subr.bf16.mxu0 0
    %904 = vmatpush1.bf16.msra.mxu0 0
    %905 = vmatprep.subr.bf16.mxu0 0
    %906 = vmatpush1.bf16.msra.mxu0 0
    %907 = vmatprep.subr.bf16.mxu0 0
    %908 = vmatpush1.bf16.msra.mxu0 0
    %909 = vmatprep.subr.bf16.mxu0 0
    %910 = vmatpush1.bf16.msra.mxu0 0
    %911 = vmatprep.subr.bf16.mxu0 0
    %912 = vmatpush1.bf16.msra.mxu0 0
    %913 = vmatprep.subr.bf16.mxu0 0
    %914 = vmatpush1.bf16.msra.mxu0 0
    %915 = vmatprep.mubr.bf16.mxu0 0
    %916 = vmatmul.mubr.bf16.gmra.mrb[0].mxu0 %v875
    %v917 = vpop.f32.mrb[0].mxu0
    %v918 = vadd.f32 %v578, %v917
    %v919 = vpop.f32.mrb[0].mxu0
    %v920 = vadd.f32 %v580, %v919
    %v921 = vpop.f32.mrb[0].mxu0
    %v922 = vadd.f32 %v582, %v921
    %v923 = vpop.f32.mrb[0].mxu0
    %v924 = vadd.f32 %v584, %v923
    %925 = vmatprep.mubr.bf16.mxu0 0
    %926 = vmatmul.mubr.bf16.gmra.mrb[0].mxu0 %v453
    %v927 = vpop.f32.mrb[0].mxu0
    %v928 = vadd.f32 %v588, %v927
    %v929 = vpop.f32.mrb[0].mxu0
    %v930 = vadd.f32 %v590, %v929
    %v931 = vpop.f32.mrb[0].mxu0
    %v932 = vadd.f32 %v592, %v931
    %v933 = vpop.f32.mrb[0].mxu0
    %v934 = vadd.f32 %v594, %v933
    %935 = vmatprep.mubr.bf16.mxu0 0
    %936 = vmatmul.mubr.bf16.gmra.mrb[0].mxu0 %v456
    %v937 = vpop.f32.mrb[0].mxu0
    %v938 = vadd.f32 %v598, %v937
    %v939 = vpop.f32.mrb[0].mxu0
    %v940 = vadd.f32 %v600, %v939
    %v941 = vpop.f32.mrb[0].mxu0
    %v942 = vadd.f32 %v602, %v941
    %v943 = vpop.f32.mrb[0].mxu0
    %v944 = vadd.f32 %v604, %v943
    %945 = vmatprep.mubr.bf16.mxu0 0
    %946 = vmatmul.mubr.bf16.gmra.mrb[0].mxu0 %v459
    %v947 = vpop.f32.mrb[0].mxu0
    %v948 = vadd.f32 %v608, %v947
    %v949 = vpop.f32.mrb[0].mxu0
    %v950 = vadd.f32 %v610, %v949
    %v951 = vpop.f32.mrb[0].mxu0
    %v952 = vadd.f32 %v612, %v951
    %v953 = vpop.f32.mrb[0].mxu0
    %v954 = vadd.f32 %v614, %v953
    %955 = vmatprep.mubr.bf16.mxu0 0
    %956 = vmatmul.mubr.bf16.gmra.mrb[0].mxu0 %v462
    %v957 = vpop.f32.mrb[0].mxu0
    %v958 = vadd.f32 %v618, %v957
    %v959 = vpop.f32.mrb[0].mxu0
    %v960 = vadd.f32 %v620, %v959
    %v961 = vpop.f32.mrb[0].mxu0
    %v962 = vadd.f32 %v622, %v961
    %v963 = vpop.f32.mrb[0].mxu0
    %v964 = vadd.f32 %v624, %v963
    %965 = vmatprep.mubr.bf16.mxu0 0
    %966 = vmatmul.mubr.bf16.gmra.mrb[0].mxu0 %v465
    %v967 = vpop.f32.mrb[0].mxu0
    %v968 = vadd.f32 %v628, %v967
    %v969 = vpop.f32.mrb[0].mxu0
    %v970 = vadd.f32 %v630, %v969
    %v971 = vpop.f32.mrb[0].mxu0
    %v972 = vadd.f32 %v632, %v971
    %v973 = vpop.f32.mrb[0].mxu0
    %v974 = vadd.f32 %v634, %v973
    %975 = vmatprep.mubr.bf16.mxu0 0
    %976 = vmatmul.mubr.bf16.gmra.mrb[0].mxu0 %v468
    %v977 = vpop.f32.mrb[0].mxu0
    %v978 = vadd.f32 %v638, %v977
    %v979 = vpop.f32.mrb[0].mxu0
    %v980 = vadd.f32 %v640, %v979
    %v981 = vpop.f32.mrb[0].mxu0
    %v982 = vadd.f32 %v642, %v981
    %v983 = vpop.f32.mrb[0].mxu0
    %v984 = vadd.f32 %v644, %v983
    %985 = vmatprep.mubr.bf16.mxu0 0
    %986 = vmatmul.mubr.bf16.gmra.mrb[0].mxu0 %v471
    %v987 = vpop.f32.mrb[0].mxu0
    %v988 = vadd.f32 %v648, %v987
    %v989 = vpop.f32.mrb[0].mxu0
    %v990 = vadd.f32 %v650, %v989
    %v991 = vpop.f32.mrb[0].mxu0
    %v992 = vadd.f32 %v652, %v991
    %v993 = vpop.f32.mrb[0].mxu0
    %v994 = vadd.f32 %v654, %v993
    %995 = vmatprep.mubr.bf16.mxu0 0
    %996 = vmatmul.mubr.bf16.gmra.mrb[0].mxu0 %v474
    %v997 = vpop.f32.mrb[0].mxu0
    %v998 = vadd.f32 %v658, %v997
    %v999 = vpop.f32.mrb[0].mxu0
    %v1000 = vadd.f32 %v660, %v999
    %v1001 = vpop.f32.mrb[0].mxu0
    %v1002 = vadd.f32 %v662, %v1001
    %v1003 = vpop.f32.mrb[0].mxu0
    %v1004 = vadd.f32 %v664, %v1003
    %1005 = vmatprep.mubr.bf16.mxu0 0
    %1006 = vmatmul.mubr.bf16.gmra.mrb[0].mxu0 %v477
    %v1007 = vpop.f32.mrb[0].mxu0
    %v1008 = vadd.f32 %v668, %v1007
    %v1009 = vpop.f32.mrb[0].mxu0
    %v1010 = vadd.f32 %v670, %v1009
    %v1011 = vpop.f32.mrb[0].mxu0
    %v1012 = vadd.f32 %v672, %v1011
    %v1013 = vpop.f32.mrb[0].mxu0
    %v1014 = vadd.f32 %v674, %v1013
    %1015 = vmatprep.mubr.bf16.mxu0 0
    %1016 = vmatmul.mubr.bf16.gmra.mrb[0].mxu0 %v480
    %v1017 = vpop.f32.mrb[0].mxu0
    %v1018 = vadd.f32 %v678, %v1017
    %v1019 = vpop.f32.mrb[0].mxu0
    %v1020 = vadd.f32 %v680, %v1019
    %v1021 = vpop.f32.mrb[0].mxu0
    %v1022 = vadd.f32 %v682, %v1021
    %v1023 = vpop.f32.mrb[0].mxu0
    %v1024 = vadd.f32 %v684, %v1023
    %1025 = vmatprep.mubr.bf16.mxu0 0
    %1026 = vmatmul.mubr.bf16.gmra.mrb[0].mxu0 %v483
    %v1027 = vpop.f32.mrb[0].mxu0
    %v1028 = vadd.f32 %v688, %v1027
    %v1029 = vpop.f32.mrb[0].mxu0
    %v1030 = vadd.f32 %v690, %v1029
    %v1031 = vpop.f32.mrb[0].mxu0
    %v1032 = vadd.f32 %v692, %v1031
    %v1033 = vpop.f32.mrb[0].mxu0
    %v1034 = vadd.f32 %v694, %v1033
    %1035 = vmatprep.mubr.bf16.mxu0 0
    %1036 = vmatmul.mubr.bf16.gmra.mrb[0].mxu0 %v486
    %v1037 = vpop.f32.mrb[0].mxu0
    %v1038 = vadd.f32 %v698, %v1037
    %v1039 = vpop.f32.mrb[0].mxu0
    %v1040 = vadd.f32 %v700, %v1039
    %v1041 = vpop.f32.mrb[0].mxu0
    %v1042 = vadd.f32 %v702, %v1041
    %v1043 = vpop.f32.mrb[0].mxu0
    %v1044 = vadd.f32 %v704, %v1043
    %1045 = vmatprep.mubr.bf16.mxu0 0
    %1046 = vmatmul.mubr.bf16.gmra.mrb[0].mxu0 %v489
    %v1047 = vpop.f32.mrb[0].mxu0
    %v1048 = vadd.f32 %v708, %v1047
    %v1049 = vpop.f32.mrb[0].mxu0
    %v1050 = vadd.f32 %v710, %v1049
    %v1051 = vpop.f32.mrb[0].mxu0
    %v1052 = vadd.f32 %v712, %v1051
    %v1053 = vpop.f32.mrb[0].mxu0
    %v1054 = vadd.f32 %v714, %v1053
    %1055 = vmatprep.mubr.bf16.mxu0 0
    %1056 = vmatmul.mubr.bf16.gmra.mrb[0].mxu0 %v492
    %v1057 = vpop.f32.mrb[0].mxu0
    %v1058 = vadd.f32 %v718, %v1057
    %v1059 = vpop.f32.mrb[0].mxu0
    %v1060 = vadd.f32 %v720, %v1059
    %v1061 = vpop.f32.mrb[0].mxu0
    %v1062 = vadd.f32 %v722, %v1061
    %v1063 = vpop.f32.mrb[0].mxu0
    %v1064 = vadd.f32 %v724, %v1063
    %1065 = vmatprep.mubr.bf16.mxu0 0
    %1066 = vmatmul.mubr.bf16.gmra.mrb[0].mxu0 %v495
    %v1067 = vpop.f32.mrb[0].mxu0
    %v1068 = vadd.f32 %v728, %v1067
    %v1069 = vpop.f32.mrb[0].mxu0
    %v1070 = vadd.f32 %v730, %v1069
    %v1071 = vpop.f32.mrb[0].mxu0
    %v1072 = vadd.f32 %v732, %v1071
    %v1073 = vpop.f32.mrb[0].mxu0
    %v1074 = vadd.f32 %v734, %v1073
    %1075 = vmatprep.mubr.bf16.mxu0 0
    %1076 = vmatmul.mubr.bf16.gmra.mrb[0].mxu0 %v498
    %v1077 = vpop.f32.mrb[0].mxu0
    %v1078 = vadd.f32 %v738, %v1077
    %v1079 = vpop.f32.mrb[0].mxu0
    %v1080 = vadd.f32 %v740, %v1079
    %v1081 = vpop.f32.mrb[0].mxu0
    %v1082 = vadd.f32 %v742, %v1081
    %v1083 = vpop.f32.mrb[0].mxu0
    %v1084 = vadd.f32 %v744, %v1083
    %1085 = vmatprep.mubr.bf16.mxu0 0
    %1086 = vmatmul.mubr.bf16.gmra.mrb[0].mxu0 %v501
    %v1087 = vpop.f32.mrb[0].mxu0
    %v1088 = vadd.f32 %v748, %v1087
    %v1089 = vpop.f32.mrb[0].mxu0
    %v1090 = vadd.f32 %v750, %v1089
    %v1091 = vpop.f32.mrb[0].mxu0
    %v1092 = vadd.f32 %v752, %v1091
    %v1093 = vpop.f32.mrb[0].mxu0
    %v1094 = vadd.f32 %v754, %v1093
    %1095 = vmatprep.mubr.bf16.mxu0 0
    %1096 = vmatmul.mubr.bf16.gmra.mrb[0].mxu0 %v504
    %v1097 = vpop.f32.mrb[0].mxu0
    %v1098 = vadd.f32 %v758, %v1097
    %v1099 = vpop.f32.mrb[0].mxu0
    %v1100 = vadd.f32 %v760, %v1099
    %v1101 = vpop.f32.mrb[0].mxu0
    %v1102 = vadd.f32 %v762, %v1101
    %v1103 = vpop.f32.mrb[0].mxu0
    %v1104 = vadd.f32 %v764, %v1103
    %1105 = vmatprep.mubr.bf16.mxu0 0
    %1106 = vmatmul.mubr.bf16.gmra.mrb[0].mxu0 %v507
    %v1107 = vpop.f32.mrb[0].mxu0
    %v1108 = vadd.f32 %v768, %v1107
    %v1109 = vpop.f32.mrb[0].mxu0
    %v1110 = vadd.f32 %v770, %v1109
    %v1111 = vpop.f32.mrb[0].mxu0
    %v1112 = vadd.f32 %v772, %v1111
    %v1113 = vpop.f32.mrb[0].mxu0
    %v1114 = vadd.f32 %v774, %v1113
    %1115 = vmatprep.mubr.bf16.mxu0 0
    %1116 = vmatmul.mubr.bf16.gmra.mrb[0].mxu0 %v510
    %v1117 = vpop.f32.mrb[0].mxu0
    %v1118 = vadd.f32 %v778, %v1117
    %v1119 = vpop.f32.mrb[0].mxu0
    %v1120 = vadd.f32 %v780, %v1119
    %v1121 = vpop.f32.mrb[0].mxu0
    %v1122 = vadd.f32 %v782, %v1121
    %v1123 = vpop.f32.mrb[0].mxu0
    %v1124 = vadd.f32 %v784, %v1123
    %1125 = vmatprep.mubr.bf16.mxu0 0
    %1126 = vmatmul.mubr.bf16.gmra.mrb[0].mxu0 %v513
    %v1127 = vpop.f32.mrb[0].mxu0
    %v1128 = vadd.f32 %v788, %v1127
    %v1129 = vpop.f32.mrb[0].mxu0
    %v1130 = vadd.f32 %v790, %v1129
    %v1131 = vpop.f32.mrb[0].mxu0
    %v1132 = vadd.f32 %v792, %v1131
    %v1133 = vpop.f32.mrb[0].mxu0
    %v1134 = vadd.f32 %v794, %v1133
    %1135 = vmatprep.mubr.bf16.mxu0 0
    %1136 = vmatmul.mubr.bf16.gmra.mrb[0].mxu0 %v516
    %v1137 = vpop.f32.mrb[0].mxu0
    %v1138 = vadd.f32 %v798, %v1137
    %v1139 = vpop.f32.mrb[0].mxu0
    %v1140 = vadd.f32 %v800, %v1139
    %v1141 = vpop.f32.mrb[0].mxu0
    %v1142 = vadd.f32 %v802, %v1141
    %v1143 = vpop.f32.mrb[0].mxu0
    %v1144 = vadd.f32 %v804, %v1143
    %1145 = vmatprep.mubr.bf16.mxu0 0
    %1146 = vmatmul.mubr.bf16.gmra.mrb[0].mxu0 %v519
    %v1147 = vpop.f32.mrb[0].mxu0
    %v1148 = vadd.f32 %v808, %v1147
    %v1149 = vpop.f32.mrb[0].mxu0
    %v1150 = vadd.f32 %v810, %v1149
    %v1151 = vpop.f32.mrb[0].mxu0
    %v1152 = vadd.f32 %v812, %v1151
    %v1153 = vpop.f32.mrb[0].mxu0
    %v1154 = vadd.f32 %v814, %v1153
    %1155 = vmatprep.mubr.bf16.mxu0 0
    %1156 = vmatmul.mubr.bf16.gmra.mrb[0].mxu0 %v522
    %v1157 = vpop.f32.mrb[0].mxu0
    %v1158 = vadd.f32 %v818, %v1157
    %v1159 = vpop.f32.mrb[0].mxu0
    %v1160 = vadd.f32 %v820, %v1159
    %v1161 = vpop.f32.mrb[0].mxu0
    %v1162 = vadd.f32 %v822, %v1161
    %v1163 = vpop.f32.mrb[0].mxu0
    %v1164 = vadd.f32 %v824, %v1163
    %1165 = vmatprep.mubr.bf16.mxu0 0
    %1166 = vmatmul.mubr.bf16.gmra.mrb[0].mxu0 %v525
    %v1167 = vpop.f32.mrb[0].mxu0
    %v1168 = vadd.f32 %v828, %v1167
    %v1169 = vpop.f32.mrb[0].mxu0
    %v1170 = vadd.f32 %v830, %v1169
    %v1171 = vpop.f32.mrb[0].mxu0
    %v1172 = vadd.f32 %v832, %v1171
    %v1173 = vpop.f32.mrb[0].mxu0
    %v1174 = vadd.f32 %v834, %v1173
    %1175 = vmatprep.mubr.bf16.mxu0 0
    %1176 = vmatmul.mubr.bf16.gmra.mrb[0].mxu0 %v528
    %v1177 = vpop.f32.mrb[0].mxu0
    %v1178 = vadd.f32 %v838, %v1177
    %v1179 = vpop.f32.mrb[0].mxu0
    %v1180 = vadd.f32 %v840, %v1179
    %v1181 = vpop.f32.mrb[0].mxu0
    %v1182 = vadd.f32 %v842, %v1181
    %v1183 = vpop.f32.mrb[0].mxu0
    %v1184 = vadd.f32 %v844, %v1183
    %1185 = vmatprep.mubr.bf16.mxu0 0
    %1186 = vmatmul.mubr.bf16.gmra.mrb[0].mxu0 %v531
    %v1187 = vpop.f32.mrb[0].mxu0
    %v1188 = vadd.f32 %v848, %v1187
    %v1189 = vpop.f32.mrb[0].mxu0
    %v1190 = vadd.f32 %v850, %v1189
    %v1191 = vpop.f32.mrb[0].mxu0
    %v1192 = vadd.f32 %v852, %v1191
    %v1193 = vpop.f32.mrb[0].mxu0
    %v1194 = vadd.f32 %v854, %v1193
    %1195 = vdwg.mxu0
    %v1196 = vld [vmem:[#allocation2 + $0x10] sm:$0xff]
    %v1197 = vld [vmem:[#allocation2 + $0x18] sm:$0xff]
    %v1198 = vld [vmem:[#allocation2 + $0x20] sm:$0xff]
    %v1199 = vld [vmem:[#allocation2 + $0x28] sm:$0xff]
    %v1200 = vld [vmem:[#allocation2 + $0x30] sm:$0xff]
    %v1201 = vld [vmem:[#allocation2 + $0x38] sm:$0xff]
    %v1202 = vld [vmem:[#allocation2 + $0x40] sm:$0xff]
    %v1203 = vld [vmem:[#allocation2 + $0x48] sm:$0xff]
    %v1204 = vld [vmem:[#allocation2 + $0x50] sm:$0xff]
    %v1205 = vld [vmem:[#allocation2 + $0x58] sm:$0xff]
    %v1206 = vld [vmem:[#allocation2 + $0x60] sm:$0xff]
    %v1207 = vld [vmem:[#allocation2 + $0x68] sm:$0xff]
    %v1208 = vld [vmem:[#allocation2 + $0x70] sm:$0xff]
    %v1209 = vld [vmem:[#allocation2 + $0x78] sm:$0xff]
    %v1210 = vld [vmem:[#allocation2 + $0x80] sm:$0xff]
    %v1211 = vld [vmem:[#allocation2 + $0x88] sm:$0xff]
    %v1212 = vld [vmem:[#allocation2 + $0x90] sm:$0xff]
    %v1213 = vld [vmem:[#allocation2 + $0x98] sm:$0xff]
    %v1214 = vld [vmem:[#allocation2 + $0xa0] sm:$0xff]
    %v1215 = vld [vmem:[#allocation2 + $0xa8] sm:$0xff]
    %v1216 = vld [vmem:[#allocation2 + $0xb0] sm:$0xff]
    %v1217 = vld [vmem:[#allocation2 + $0xb8] sm:$0xff]
    %v1218 = vld [vmem:[#allocation2 + $0xc0] sm:$0xff]
    %v1219 = vld [vmem:[#allocation2 + $0xc8] sm:$0xff]
    %v1220 = vld [vmem:[#allocation2 + $0xd0] sm:$0xff]
    %v1221 = vld [vmem:[#allocation2 + $0xd8] sm:$0xff]
    %v1222 = vld [vmem:[#allocation2 + $0xe0] sm:$0xff]
    %v1223 = vld [vmem:[#allocation2 + $0xe8] sm:$0xff]
    %s1224 = scalar_lea.vmem [#allocation4], 64
    %v1225 = vld [vmem:[%s1224] sm:$0xff]
    %v1226 = vld [vmem:[%s1224 + $0x8] sm:$0xff]
    %v1227 = vld [vmem:[%s1224 + $0x10] sm:$0xff]
    %v1228 = vld [vmem:[%s1224 + $0x18] sm:$0x33]
    %v1233 = vunpack.c.l.b16 %v1225
    %v1234 = vunpack.c.h.b16 %v1225
    %v1235 = vunpack.c.l.b16 %v1226
    %v1236 = vunpack.c.h.b16 %v1226
    %v1237 = vunpack.c.l.b16 %v1227
    %v1238 = vunpack.c.h.b16 %v1227
    %v1239 = vunpack.c.l.b16 %v1228
    %v1240 = vunpack.c.h.b16 %v1228
    %v1241 = vpack.c.b16 %v1235, %v1233
    %v1242 = vpack.c.b16 %v1236, %v1234
    %v1243 = vpack.c.b16 %v1239, %v1237
    %v1244 = vpack.c.b16 %v1240, %v1238
    %v1248 = vsel %vm134, %v1196, 0
    %v1251 = vsel %vm134, %v1197, 0
    %v1254 = vsel %vm134, %v1198, 0
    %v1257 = vsel %vm134, %v1199, 0
    %v1260 = vsel %vm134, %v1200, 0
    %v1263 = vsel %vm134, %v1201, 0
    %v1266 = vsel %vm134, %v1202, 0
    %v1269 = vsel %vm134, %v1203, 0
    %v1272 = vsel %vm134, %v1204, 0
    %v1275 = vsel %vm134, %v1205, 0
    %v1278 = vsel %vm134, %v1206, 0
    %v1281 = vsel %vm134, %v1207, 0
    %v1284 = vsel %vm134, %v1208, 0
    %v1287 = vsel %vm134, %v1209, 0
    %v1290 = vsel %vm134, %v1210, 0
    %v1293 = vsel %vm134, %v1211, 0
    %v1296 = vsel %vm134, %v1212, 0
    %v1299 = vsel %vm134, %v1213, 0
    %v1302 = vsel %vm134, %v1214, 0
    %v1305 = vsel %vm134, %v1215, 0
    %v1308 = vsel %vm134, %v1216, 0
    %v1311 = vsel %vm134, %v1217, 0
    %v1314 = vsel %vm134, %v1218, 0
    %v1317 = vsel %vm134, %v1219, 0
    %v1320 = vsel %vm134, %v1220, 0
    %v1323 = vsel %vm134, %v1221, 0
    %v1326 = vsel %vm134, %v1222, 0
    %v1329 = vsel %vm134, %v1223, 0
    %v1332 = vsel %vm536, %v1243, 0
    %v1335 = vsel %vm536, %v1244, 0
    %1337 = vmatprep.subr.bf16.mxu0 %v1242
    %1338 = vmatpush1.bf16.msra.mxu0 %v1241
    %1339 = vmatprep.subr.bf16.mxu0 %v1335
    %1340 = vmatpush1.bf16.msra.mxu0 %v1332
    %1341 = vmatprep.subr.bf16.mxu0 0
    %1342 = vmatpush1.bf16.msra.mxu0 0
    %1343 = vmatprep.subr.bf16.mxu0 0
    %1344 = vmatpush1.bf16.msra.mxu0 0
    %1345 = vmatprep.subr.bf16.mxu0 0
    %1346 = vmatpush1.bf16.msra.mxu0 0
    %1347 = vmatprep.subr.bf16.mxu0 0
    %1348 = vmatpush1.bf16.msra.mxu0 0
    %1349 = vmatprep.subr.bf16.mxu0 0
    %1350 = vmatpush1.bf16.msra.mxu0 0
    %1351 = vmatprep.subr.bf16.mxu0 0
    %1352 = vmatpush1.bf16.msra.mxu0 0
    %1353 = vmatprep.subr.bf16.mxu0 0
    %1354 = vmatpush1.bf16.msra.mxu0 0
    %1355 = vmatprep.subr.bf16.mxu0 0
    %1356 = vmatpush1.bf16.msra.mxu0 0
    %1357 = vmatprep.subr.bf16.mxu0 0
    %1358 = vmatpush1.bf16.msra.mxu0 0
    %1359 = vmatprep.subr.bf16.mxu0 0
    %1360 = vmatpush1.bf16.msra.mxu0 0
    %1361 = vmatprep.subr.bf16.mxu0 0
    %1362 = vmatpush1.bf16.msra.mxu0 0
    %1363 = vmatprep.subr.bf16.mxu0 0
    %1364 = vmatpush1.bf16.msra.mxu0 0
    %1365 = vmatprep.subr.bf16.mxu0 0
    %1366 = vmatpush1.bf16.msra.mxu0 0
    %1367 = vmatprep.subr.bf16.mxu0 0
    %1368 = vmatpush1.bf16.msra.mxu0 0
    %1369 = vmatprep.mubr.bf16.mxu0 0
    %1370 = vmatmul.mubr.bf16.gmra.mrb[0].mxu0 %v1248
    %v1371 = vpop.f32.mrb[0].mxu0
    %v1372 = vadd.f32 0.0, %v1371
    %v1373 = vpop.f32.mrb[0].mxu0
    %v1374 = vadd.f32 0.0, %v1373
    %v1375 = vpop.f32.mrb[0].mxu0
    %v1376 = vadd.f32 0.0, %v1375
    %v1377 = vpop.f32.mrb[0].mxu0
    %v1378 = vadd.f32 0.0, %v1377
    %1379 = vmatprep.mubr.bf16.mxu0 0
    %1380 = vmatmul.mubr.bf16.gmra.mrb[0].mxu0 %v1251
    %v1381 = vpop.f32.mrb[0].mxu0
    %v1382 = vadd.f32 0.0, %v1381
    %v1383 = vpop.f32.mrb[0].mxu0
    %v1384 = vadd.f32 0.0, %v1383
    %v1385 = vpop.f32.mrb[0].mxu0
    %v1386 = vadd.f32 0.0, %v1385
    %v1387 = vpop.f32.mrb[0].mxu0
    %v1388 = vadd.f32 0.0, %v1387
    %1389 = vmatprep.mubr.bf16.mxu0 0
    %1390 = vmatmul.mubr.bf16.gmra.mrb[0].mxu0 %v1254
    %v1391 = vpop.f32.mrb[0].mxu0
    %v1392 = vadd.f32 0.0, %v1391
    %v1393 = vpop.f32.mrb[0].mxu0
    %v1394 = vadd.f32 0.0, %v1393
    %v1395 = vpop.f32.mrb[0].mxu0
    %v1396 = vadd.f32 0.0, %v1395
    %v1397 = vpop.f32.mrb[0].mxu0
    %v1398 = vadd.f32 0.0, %v1397
    %1399 = vmatprep.mubr.bf16.mxu0 0
    %1400 = vmatmul.mubr.bf16.gmra.mrb[0].mxu0 %v1257
    %v1401 = vpop.f32.mrb[0].mxu0
    %v1402 = vadd.f32 0.0, %v1401
    %v1403 = vpop.f32.mrb[0].mxu0
    %v1404 = vadd.f32 0.0, %v1403
    %v1405 = vpop.f32.mrb[0].mxu0
    %v1406 = vadd.f32 0.0, %v1405
    %v1407 = vpop.f32.mrb[0].mxu0
    %v1408 = vadd.f32 0.0, %v1407
    %1409 = vmatprep.mubr.bf16.mxu0 0
    %1410 = vmatmul.mubr.bf16.gmra.mrb[0].mxu0 %v1260
    %v1411 = vpop.f32.mrb[0].mxu0
    %v1412 = vadd.f32 0.0, %v1411
    %v1413 = vpop.f32.mrb[0].mxu0
    %v1414 = vadd.f32 0.0, %v1413
    %v1415 = vpop.f32.mrb[0].mxu0
    %v1416 = vadd.f32 0.0, %v1415
    %v1417 = vpop.f32.mrb[0].mxu0
    %v1418 = vadd.f32 0.0, %v1417
    %1419 = vmatprep.mubr.bf16.mxu0 0
    %1420 = vmatmul.mubr.bf16.gmra.mrb[0].mxu0 %v1263
    %v1421 = vpop.f32.mrb[0].mxu0
    %v1422 = vadd.f32 0.0, %v1421
    %v1423 = vpop.f32.mrb[0].mxu0
    %v1424 = vadd.f32 0.0, %v1423
    %v1425 = vpop.f32.mrb[0].mxu0
    %v1426 = vadd.f32 0.0, %v1425
    %v1427 = vpop.f32.mrb[0].mxu0
    %v1428 = vadd.f32 0.0, %v1427
    %1429 = vmatprep.mubr.bf16.mxu0 0
    %1430 = vmatmul.mubr.bf16.gmra.mrb[0].mxu0 %v1266
    %v1431 = vpop.f32.mrb[0].mxu0
    %v1432 = vadd.f32 0.0, %v1431
    %v1433 = vpop.f32.mrb[0].mxu0
    %v1434 = vadd.f32 0.0, %v1433
    %v1435 = vpop.f32.mrb[0].mxu0
    %v1436 = vadd.f32 0.0, %v1435
    %v1437 = vpop.f32.mrb[0].mxu0
    %v1438 = vadd.f32 0.0, %v1437
    %1439 = vmatprep.mubr.bf16.mxu0 0
    %1440 = vmatmul.mubr.bf16.gmra.mrb[0].mxu0 %v1269
    %v1441 = vpop.f32.mrb[0].mxu0
    %v1442 = vadd.f32 0.0, %v1441
    %v1443 = vpop.f32.mrb[0].mxu0
    %v1444 = vadd.f32 0.0, %v1443
    %v1445 = vpop.f32.mrb[0].mxu0
    %v1446 = vadd.f32 0.0, %v1445
    %v1447 = vpop.f32.mrb[0].mxu0
    %v1448 = vadd.f32 0.0, %v1447
    %1449 = vmatprep.mubr.bf16.mxu0 0
    %1450 = vmatmul.mubr.bf16.gmra.mrb[0].mxu0 %v1272
    %v1451 = vpop.f32.mrb[0].mxu0
    %v1452 = vadd.f32 0.0, %v1451
    %v1453 = vpop.f32.mrb[0].mxu0
    %v1454 = vadd.f32 0.0, %v1453
    %v1455 = vpop.f32.mrb[0].mxu0
    %v1456 = vadd.f32 0.0, %v1455
    %v1457 = vpop.f32.mrb[0].mxu0
    %v1458 = vadd.f32 0.0, %v1457
    %1459 = vmatprep.mubr.bf16.mxu0 0
    %1460 = vmatmul.mubr.bf16.gmra.mrb[0].mxu0 %v1275
    %v1461 = vpop.f32.mrb[0].mxu0
    %v1462 = vadd.f32 0.0, %v1461
    %v1463 = vpop.f32.mrb[0].mxu0
    %v1464 = vadd.f32 0.0, %v1463
    %v1465 = vpop.f32.mrb[0].mxu0
    %v1466 = vadd.f32 0.0, %v1465
    %v1467 = vpop.f32.mrb[0].mxu0
    %v1468 = vadd.f32 0.0, %v1467
    %1469 = vmatprep.mubr.bf16.mxu0 0
    %1470 = vmatmul.mubr.bf16.gmra.mrb[0].mxu0 %v1278
    %v1471 = vpop.f32.mrb[0].mxu0
    %v1472 = vadd.f32 0.0, %v1471
    %v1473 = vpop.f32.mrb[0].mxu0
    %v1474 = vadd.f32 0.0, %v1473
    %v1475 = vpop.f32.mrb[0].mxu0
    %v1476 = vadd.f32 0.0, %v1475
    %v1477 = vpop.f32.mrb[0].mxu0
    %v1478 = vadd.f32 0.0, %v1477
    %1479 = vmatprep.mubr.bf16.mxu0 0
    %1480 = vmatmul.mubr.bf16.gmra.mrb[0].mxu0 %v1281
    %v1481 = vpop.f32.mrb[0].mxu0
    %v1482 = vadd.f32 0.0, %v1481
    %v1483 = vpop.f32.mrb[0].mxu0
    %v1484 = vadd.f32 0.0, %v1483
    %v1485 = vpop.f32.mrb[0].mxu0
    %v1486 = vadd.f32 0.0, %v1485
    %v1487 = vpop.f32.mrb[0].mxu0
    %v1488 = vadd.f32 0.0, %v1487
    %1489 = vmatprep.mubr.bf16.mxu0 0
    %1490 = vmatmul.mubr.bf16.gmra.mrb[0].mxu0 %v1284
    %v1491 = vpop.f32.mrb[0].mxu0
    %v1492 = vadd.f32 0.0, %v1491
    %v1493 = vpop.f32.mrb[0].mxu0
    %v1494 = vadd.f32 0.0, %v1493
    %v1495 = vpop.f32.mrb[0].mxu0
    %v1496 = vadd.f32 0.0, %v1495
    %v1497 = vpop.f32.mrb[0].mxu0
    %v1498 = vadd.f32 0.0, %v1497
    %1499 = vmatprep.mubr.bf16.mxu0 0
    %1500 = vmatmul.mubr.bf16.gmra.mrb[0].mxu0 %v1287
    %v1501 = vpop.f32.mrb[0].mxu0
    %v1502 = vadd.f32 0.0, %v1501
    %v1503 = vpop.f32.mrb[0].mxu0
    %v1504 = vadd.f32 0.0, %v1503
    %v1505 = vpop.f32.mrb[0].mxu0
    %v1506 = vadd.f32 0.0, %v1505
    %v1507 = vpop.f32.mrb[0].mxu0
    %v1508 = vadd.f32 0.0, %v1507
    %1509 = vmatprep.mubr.bf16.mxu0 0
    %1510 = vmatmul.mubr.bf16.gmra.mrb[0].mxu0 %v1290
    %v1511 = vpop.f32.mrb[0].mxu0
    %v1512 = vadd.f32 0.0, %v1511
    %v1513 = vpop.f32.mrb[0].mxu0
    %v1514 = vadd.f32 0.0, %v1513
    %v1515 = vpop.f32.mrb[0].mxu0
    %v1516 = vadd.f32 0.0, %v1515
    %v1517 = vpop.f32.mrb[0].mxu0
    %v1518 = vadd.f32 0.0, %v1517
    %1519 = vmatprep.mubr.bf16.mxu0 0
    %1520 = vmatmul.mubr.bf16.gmra.mrb[0].mxu0 %v1293
    %v1521 = vpop.f32.mrb[0].mxu0
    %v1522 = vadd.f32 0.0, %v1521
    %v1523 = vpop.f32.mrb[0].mxu0
    %v1524 = vadd.f32 0.0, %v1523
    %v1525 = vpop.f32.mrb[0].mxu0
    %v1526 = vadd.f32 0.0, %v1525
    %v1527 = vpop.f32.mrb[0].mxu0
    %v1528 = vadd.f32 0.0, %v1527
    %1529 = vmatprep.mubr.bf16.mxu0 0
    %1530 = vmatmul.mubr.bf16.gmra.mrb[0].mxu0 %v1296
    %v1531 = vpop.f32.mrb[0].mxu0
    %v1532 = vadd.f32 0.0, %v1531
    %v1533 = vpop.f32.mrb[0].mxu0
    %v1534 = vadd.f32 0.0, %v1533
    %v1535 = vpop.f32.mrb[0].mxu0
    %v1536 = vadd.f32 0.0, %v1535
    %v1537 = vpop.f32.mrb[0].mxu0
    %v1538 = vadd.f32 0.0, %v1537
    %1539 = vmatprep.mubr.bf16.mxu0 0
    %1540 = vmatmul.mubr.bf16.gmra.mrb[0].mxu0 %v1299
    %v1541 = vpop.f32.mrb[0].mxu0
    %v1542 = vadd.f32 0.0, %v1541
    %v1543 = vpop.f32.mrb[0].mxu0
    %v1544 = vadd.f32 0.0, %v1543
    %v1545 = vpop.f32.mrb[0].mxu0
    %v1546 = vadd.f32 0.0, %v1545
    %v1547 = vpop.f32.mrb[0].mxu0
    %v1548 = vadd.f32 0.0, %v1547
    %1549 = vmatprep.mubr.bf16.mxu0 0
    %1550 = vmatmul.mubr.bf16.gmra.mrb[0].mxu0 %v1302
    %v1551 = vpop.f32.mrb[0].mxu0
    %v1552 = vadd.f32 0.0, %v1551
    %v1553 = vpop.f32.mrb[0].mxu0
    %v1554 = vadd.f32 0.0, %v1553
    %v1555 = vpop.f32.mrb[0].mxu0
    %v1556 = vadd.f32 0.0, %v1555
    %v1557 = vpop.f32.mrb[0].mxu0
    %v1558 = vadd.f32 0.0, %v1557
    %1559 = vmatprep.mubr.bf16.mxu0 0
    %1560 = vmatmul.mubr.bf16.gmra.mrb[0].mxu0 %v1305
    %v1561 = vpop.f32.mrb[0].mxu0
    %v1562 = vadd.f32 0.0, %v1561
    %v1563 = vpop.f32.mrb[0].mxu0
    %v1564 = vadd.f32 0.0, %v1563
    %v1565 = vpop.f32.mrb[0].mxu0
    %v1566 = vadd.f32 0.0, %v1565
    %v1567 = vpop.f32.mrb[0].mxu0
    %v1568 = vadd.f32 0.0, %v1567
    %1569 = vmatprep.mubr.bf16.mxu0 0
    %1570 = vmatmul.mubr.bf16.gmra.mrb[0].mxu0 %v1308
    %v1571 = vpop.f32.mrb[0].mxu0
    %v1572 = vadd.f32 0.0, %v1571
    %v1573 = vpop.f32.mrb[0].mxu0
    %v1574 = vadd.f32 0.0, %v1573
    %v1575 = vpop.f32.mrb[0].mxu0
    %v1576 = vadd.f32 0.0, %v1575
    %v1577 = vpop.f32.mrb[0].mxu0
    %v1578 = vadd.f32 0.0, %v1577
    %1579 = vmatprep.mubr.bf16.mxu0 0
    %1580 = vmatmul.mubr.bf16.gmra.mrb[0].mxu0 %v1311
    %v1581 = vpop.f32.mrb[0].mxu0
    %v1582 = vadd.f32 0.0, %v1581
    %v1583 = vpop.f32.mrb[0].mxu0
    %v1584 = vadd.f32 0.0, %v1583
    %v1585 = vpop.f32.mrb[0].mxu0
    %v1586 = vadd.f32 0.0, %v1585
    %v1587 = vpop.f32.mrb[0].mxu0
    %v1588 = vadd.f32 0.0, %v1587
    %1589 = vmatprep.mubr.bf16.mxu0 0
    %1590 = vmatmul.mubr.bf16.gmra.mrb[0].mxu0 %v1314
    %v1591 = vpop.f32.mrb[0].mxu0
    %v1592 = vadd.f32 0.0, %v1591
    %v1593 = vpop.f32.mrb[0].mxu0
    %v1594 = vadd.f32 0.0, %v1593
    %v1595 = vpop.f32.mrb[0].mxu0
    %v1596 = vadd.f32 0.0, %v1595
    %v1597 = vpop.f32.mrb[0].mxu0
    %v1598 = vadd.f32 0.0, %v1597
    %1599 = vmatprep.mubr.bf16.mxu0 0
    %1600 = vmatmul.mubr.bf16.gmra.mrb[0].mxu0 %v1317
    %v1601 = vpop.f32.mrb[0].mxu0
    %v1602 = vadd.f32 0.0, %v1601
    %v1603 = vpop.f32.mrb[0].mxu0
    %v1604 = vadd.f32 0.0, %v1603
    %v1605 = vpop.f32.mrb[0].mxu0
    %v1606 = vadd.f32 0.0, %v1605
    %v1607 = vpop.f32.mrb[0].mxu0
    %v1608 = vadd.f32 0.0, %v1607
    %1609 = vmatprep.mubr.bf16.mxu0 0
    %1610 = vmatmul.mubr.bf16.gmra.mrb[0].mxu0 %v1320
    %v1611 = vpop.f32.mrb[0].mxu0
    %v1612 = vadd.f32 0.0, %v1611
    %v1613 = vpop.f32.mrb[0].mxu0
    %v1614 = vadd.f32 0.0, %v1613
    %v1615 = vpop.f32.mrb[0].mxu0
    %v1616 = vadd.f32 0.0, %v1615
    %v1617 = vpop.f32.mrb[0].mxu0
    %v1618 = vadd.f32 0.0, %v1617
    %1619 = vmatprep.mubr.bf16.mxu0 0
    %1620 = vmatmul.mubr.bf16.gmra.mrb[0].mxu0 %v1323
    %v1621 = vpop.f32.mrb[0].mxu0
    %v1622 = vadd.f32 0.0, %v1621
    %v1623 = vpop.f32.mrb[0].mxu0
    %v1624 = vadd.f32 0.0, %v1623
    %v1625 = vpop.f32.mrb[0].mxu0
    %v1626 = vadd.f32 0.0, %v1625
    %v1627 = vpop.f32.mrb[0].mxu0
    %v1628 = vadd.f32 0.0, %v1627
    %1629 = vmatprep.mubr.bf16.mxu0 0
    %1630 = vmatmul.mubr.bf16.gmra.mrb[0].mxu0 %v1326
    %v1631 = vpop.f32.mrb[0].mxu0
    %v1632 = vadd.f32 0.0, %v1631
    %v1633 = vpop.f32.mrb[0].mxu0
    %v1634 = vadd.f32 0.0, %v1633
    %v1635 = vpop.f32.mrb[0].mxu0
    %v1636 = vadd.f32 0.0, %v1635
    %v1637 = vpop.f32.mrb[0].mxu0
    %v1638 = vadd.f32 0.0, %v1637
    %1639 = vmatprep.mubr.bf16.mxu0 0
    %1640 = vmatmul.mubr.bf16.gmra.mrb[0].mxu0 %v1329
    %v1641 = vpop.f32.mrb[0].mxu0
    %v1642 = vadd.f32 0.0, %v1641
    %v1643 = vpop.f32.mrb[0].mxu0
    %v1644 = vadd.f32 0.0, %v1643
    %v1645 = vpop.f32.mrb[0].mxu0
    %v1646 = vadd.f32 0.0, %v1645
    %v1647 = vpop.f32.mrb[0].mxu0
    %v1648 = vadd.f32 0.0, %v1647
    %1649 = vdwg.mxu0
    %v1650 = vadd.f32 %v918, %v1372
    %v1651 = vadd.f32 %v920, %v1374
    %v1652 = vadd.f32 %v922, %v1376
    %v1653 = vadd.f32 %v924, %v1378
    %v1654 = vadd.f32 %v928, %v1382
    %v1655 = vadd.f32 %v930, %v1384
    %v1656 = vadd.f32 %v932, %v1386
    %v1657 = vadd.f32 %v934, %v1388
    %v1658 = vadd.f32 %v938, %v1392
    %v1659 = vadd.f32 %v940, %v1394
    %v1660 = vadd.f32 %v942, %v1396
    %v1661 = vadd.f32 %v944, %v1398
    %v1662 = vadd.f32 %v948, %v1402
    %v1663 = vadd.f32 %v950, %v1404
    %v1664 = vadd.f32 %v952, %v1406
    %v1665 = vadd.f32 %v954, %v1408
    %v1666 = vadd.f32 %v958, %v1412
    %v1667 = vadd.f32 %v960, %v1414
    %v1668 = vadd.f32 %v962, %v1416
    %v1669 = vadd.f32 %v964, %v1418
    %v1670 = vadd.f32 %v968, %v1422
    %v1671 = vadd.f32 %v970, %v1424
    %v1672 = vadd.f32 %v972, %v1426
    %v1673 = vadd.f32 %v974, %v1428
    %v1674 = vadd.f32 %v978, %v1432
    %v1675 = vadd.f32 %v980, %v1434
    %v1676 = vadd.f32 %v982, %v1436
    %v1677 = vadd.f32 %v984, %v1438
    %v1678 = vadd.f32 %v988, %v1442
    %v1679 = vadd.f32 %v990, %v1444
    %v1680 = vadd.f32 %v992, %v1446
    %v1681 = vadd.f32 %v994, %v1448
    %v1682 = vadd.f32 %v998, %v1452
    %v1683 = vadd.f32 %v1000, %v1454
    %v1684 = vadd.f32 %v1002, %v1456
    %v1685 = vadd.f32 %v1004, %v1458
    %v1686 = vadd.f32 %v1008, %v1462
    %v1687 = vadd.f32 %v1010, %v1464
    %v1688 = vadd.f32 %v1012, %v1466
    %v1689 = vadd.f32 %v1014, %v1468
    %v1690 = vadd.f32 %v1018, %v1472
    %v1691 = vadd.f32 %v1020, %v1474
    %v1692 = vadd.f32 %v1022, %v1476
    %v1693 = vadd.f32 %v1024, %v1478
    %v1694 = vadd.f32 %v1028, %v1482
    %v1695 = vadd.f32 %v1030, %v1484
    %v1696 = vadd.f32 %v1032, %v1486
    %v1697 = vadd.f32 %v1034, %v1488
    %v1698 = vadd.f32 %v1038, %v1492
    %v1699 = vadd.f32 %v1040, %v1494
    %v1700 = vadd.f32 %v1042, %v1496
    %v1701 = vadd.f32 %v1044, %v1498
    %v1702 = vadd.f32 %v1048, %v1502
    %v1703 = vadd.f32 %v1050, %v1504
    %v1704 = vadd.f32 %v1052, %v1506
    %v1705 = vadd.f32 %v1054, %v1508
    %v1706 = vadd.f32 %v1058, %v1512
    %v1707 = vadd.f32 %v1060, %v1514
    %v1708 = vadd.f32 %v1062, %v1516
    %v1709 = vadd.f32 %v1064, %v1518
    %v1710 = vadd.f32 %v1068, %v1522
    %v1711 = vadd.f32 %v1070, %v1524
    %v1712 = vadd.f32 %v1072, %v1526
    %v1713 = vadd.f32 %v1074, %v1528
    %v1714 = vadd.f32 %v1078, %v1532
    %v1715 = vadd.f32 %v1080, %v1534
    %v1716 = vadd.f32 %v1082, %v1536
    %v1717 = vadd.f32 %v1084, %v1538
    %v1718 = vadd.f32 %v1088, %v1542
    %v1719 = vadd.f32 %v1090, %v1544
    %v1720 = vadd.f32 %v1092, %v1546
    %v1721 = vadd.f32 %v1094, %v1548
    %v1722 = vadd.f32 %v1098, %v1552
    %v1723 = vadd.f32 %v1100, %v1554
    %v1724 = vadd.f32 %v1102, %v1556
    %v1725 = vadd.f32 %v1104, %v1558
    %v1726 = vadd.f32 %v1108, %v1562
    %v1727 = vadd.f32 %v1110, %v1564
    %v1728 = vadd.f32 %v1112, %v1566
    %v1729 = vadd.f32 %v1114, %v1568
    %v1730 = vadd.f32 %v1118, %v1572
    %v1731 = vadd.f32 %v1120, %v1574
    %v1732 = vadd.f32 %v1122, %v1576
    %v1733 = vadd.f32 %v1124, %v1578
    %v1734 = vadd.f32 %v1128, %v1582
    %v1735 = vadd.f32 %v1130, %v1584
    %v1736 = vadd.f32 %v1132, %v1586
    %v1737 = vadd.f32 %v1134, %v1588
    %v1738 = vadd.f32 %v1138, %v1592
    %v1739 = vadd.f32 %v1140, %v1594
    %v1740 = vadd.f32 %v1142, %v1596
    %v1741 = vadd.f32 %v1144, %v1598
    %v1742 = vadd.f32 %v1148, %v1602
    %v1743 = vadd.f32 %v1150, %v1604
    %v1744 = vadd.f32 %v1152, %v1606
    %v1745 = vadd.f32 %v1154, %v1608
    %v1746 = vadd.f32 %v1158, %v1612
    %v1747 = vadd.f32 %v1160, %v1614
    %v1748 = vadd.f32 %v1162, %v1616
    %v1749 = vadd.f32 %v1164, %v1618
    %v1750 = vadd.f32 %v1168, %v1622
    %v1751 = vadd.f32 %v1170, %v1624
    %v1752 = vadd.f32 %v1172, %v1626
    %v1753 = vadd.f32 %v1174, %v1628
    %v1754 = vadd.f32 %v1178, %v1632
    %v1755 = vadd.f32 %v1180, %v1634
    %v1756 = vadd.f32 %v1182, %v1636
    %v1757 = vadd.f32 %v1184, %v1638
    %v1758 = vadd.f32 %v1188, %v1642
    %v1759 = vadd.f32 %v1190, %v1644
    %v1760 = vadd.f32 %v1192, %v1646
    %v1761 = vadd.f32 %v1194, %v1648
    %v1762 = vld [vmem:[#allocation2 + $0x18] sm:$0xff]
    %v1763 = vld [vmem:[#allocation2 + $0x20] sm:$0xff]
    %v1764 = vld [vmem:[#allocation2 + $0x28] sm:$0xff]
    %v1765 = vld [vmem:[#allocation2 + $0x30] sm:$0xff]
    %v1766 = vld [vmem:[#allocation2 + $0x38] sm:$0xff]
    %v1767 = vld [vmem:[#allocation2 + $0x40] sm:$0xff]
    %v1768 = vld [vmem:[#allocation2 + $0x48] sm:$0xff]
    %v1769 = vld [vmem:[#allocation2 + $0x50] sm:$0xff]
    %v1770 = vld [vmem:[#allocation2 + $0x58] sm:$0xff]
    %v1771 = vld [vmem:[#allocation2 + $0x60] sm:$0xff]
    %v1772 = vld [vmem:[#allocation2 + $0x68] sm:$0xff]
    %v1773 = vld [vmem:[#allocation2 + $0x70] sm:$0xff]
    %v1774 = vld [vmem:[#allocation2 + $0x78] sm:$0xff]
    %v1775 = vld [vmem:[#allocation2 + $0x80] sm:$0xff]
    %v1776 = vld [vmem:[#allocation2 + $0x88] sm:$0xff]
    %v1777 = vld [vmem:[#allocation2 + $0x90] sm:$0xff]
    %v1778 = vld [vmem:[#allocation2 + $0x98] sm:$0xff]
    %v1779 = vld [vmem:[#allocation2 + $0xa0] sm:$0xff]
    %v1780 = vld [vmem:[#allocation2 + $0xa8] sm:$0xff]
    %v1781 = vld [vmem:[#allocation2 + $0xb0] sm:$0xff]
    %v1782 = vld [vmem:[#allocation2 + $0xb8] sm:$0xff]
    %v1783 = vld [vmem:[#allocation2 + $0xc0] sm:$0xff]
    %v1784 = vld [vmem:[#allocation2 + $0xc8] sm:$0xff]
    %v1785 = vld [vmem:[#allocation2 + $0xd0] sm:$0xff]
    %v1786 = vld [vmem:[#allocation2 + $0xd8] sm:$0xff]
    %v1787 = vld [vmem:[#allocation2 + $0xe0] sm:$0xff]
    %v1788 = vld [vmem:[#allocation2 + $0xe8] sm:$0xff]
    %v1789 = vld [vmem:[#allocation2 + $0xf0] sm:$0xff]
    %s1790 = scalar_lea.vmem [#allocation4], 96
    %v1791 = vld [vmem:[%s1790] sm:$0xff]
    %v1792 = vld [vmem:[%s1790 + $0x8] sm:$0xff]
    %v1793 = vld [vmem:[%s1790 + $0x10] sm:$0xff]
    %v1794 = vld [vmem:[%s1790 + $0x18] sm:$0x33]
    %v1799 = vunpack.c.l.b16 %v1791
    %v1800 = vunpack.c.h.b16 %v1791
    %v1801 = vunpack.c.l.b16 %v1792
    %v1802 = vunpack.c.h.b16 %v1792
    %v1803 = vunpack.c.l.b16 %v1793
    %v1804 = vunpack.c.h.b16 %v1793
    %v1805 = vunpack.c.l.b16 %v1794
    %v1806 = vunpack.c.h.b16 %v1794
    %v1807 = vpack.c.b16 %v1801, %v1799
    %v1808 = vpack.c.b16 %v1802, %v1800
    %v1809 = vpack.c.b16 %v1805, %v1803
    %v1810 = vpack.c.b16 %v1806, %v1804
    %v1814 = vsel %vm134, %v1762, 0
    %v1817 = vsel %vm134, %v1763, 0
    %v1820 = vsel %vm134, %v1764, 0
    %v1823 = vsel %vm134, %v1765, 0
    %v1826 = vsel %vm134, %v1766, 0
    %v1829 = vsel %vm134, %v1767, 0
    %v1832 = vsel %vm134, %v1768, 0
    %v1835 = vsel %vm134, %v1769, 0
    %v1838 = vsel %vm134, %v1770, 0
    %v1841 = vsel %vm134, %v1771, 0
    %v1844 = vsel %vm134, %v1772, 0
    %v1847 = vsel %vm134, %v1773, 0
    %v1850 = vsel %vm134, %v1774, 0
    %v1853 = vsel %vm134, %v1775, 0
    %v1856 = vsel %vm134, %v1776, 0
    %v1859 = vsel %vm134, %v1777, 0
    %v1862 = vsel %vm134, %v1778, 0
    %v1865 = vsel %vm134, %v1779, 0
    %v1868 = vsel %vm134, %v1780, 0
    %v1871 = vsel %vm134, %v1781, 0
    %v1874 = vsel %vm134, %v1782, 0
    %v1877 = vsel %vm134, %v1783, 0
    %v1880 = vsel %vm134, %v1784, 0
    %v1883 = vsel %vm134, %v1785, 0
    %v1886 = vsel %vm134, %v1786, 0
    %v1889 = vsel %vm134, %v1787, 0
    %v1892 = vsel %vm134, %v1788, 0
    %v1895 = vsel %vm134, %v1789, 0
    %v1898 = vsel %vm536, %v1809, 0
    %v1901 = vsel %vm536, %v1810, 0
    %1903 = vmatprep.subr.bf16.mxu0 %v1808
    %1904 = vmatpush1.bf16.msra.mxu0 %v1807
    %1905 = vmatprep.subr.bf16.mxu0 %v1901
    %1906 = vmatpush1.bf16.msra.mxu0 %v1898
    %1907 = vmatprep.subr.bf16.mxu0 0
    %1908 = vmatpush1.bf16.msra.mxu0 0
    %1909 = vmatprep.subr.bf16.mxu0 0
    %1910 = vmatpush1.bf16.msra.mxu0 0
    %1911 = vmatprep.subr.bf16.mxu0 0
    %1912 = vmatpush1.bf16.msra.mxu0 0
    %1913 = vmatprep.subr.bf16.mxu0 0
    %1914 = vmatpush1.bf16.msra.mxu0 0
    %1915 = vmatprep.subr.bf16.mxu0 0
    %1916 = vmatpush1.bf16.msra.mxu0 0
    %1917 = vmatprep.subr.bf16.mxu0 0
    %1918 = vmatpush1.bf16.msra.mxu0 0
    %1919 = vmatprep.subr.bf16.mxu0 0
    %1920 = vmatpush1.bf16.msra.mxu0 0
    %1921 = vmatprep.subr.bf16.mxu0 0
    %1922 = vmatpush1.bf16.msra.mxu0 0
    %1923 = vmatprep.subr.bf16.mxu0 0
    %1924 = vmatpush1.bf16.msra.mxu0 0
    %1925 = vmatprep.subr.bf16.mxu0 0
    %1926 = vmatpush1.bf16.msra.mxu0 0
    %1927 = vmatprep.subr.bf16.mxu0 0
    %1928 = vmatpush1.bf16.msra.mxu0 0
    %1929 = vmatprep.subr.bf16.mxu0 0
    %1930 = vmatpush1.bf16.msra.mxu0 0
    %1931 = vmatprep.subr.bf16.mxu0 0
    %1932 = vmatpush1.bf16.msra.mxu0 0
    %1933 = vmatprep.subr.bf16.mxu0 0
    %1934 = vmatpush1.bf16.msra.mxu0 0
    %1935 = vmatprep.mubr.bf16.mxu0 0
    %1936 = vmatmul.mubr.bf16.gmra.mrb[0].mxu0 %v1814
    %v1937 = vpop.f32.mrb[0].mxu0
    %v1938 = vadd.f32 0.0, %v1937
    %v1939 = vpop.f32.mrb[0].mxu0
    %v1940 = vadd.f32 0.0, %v1939
    %v1941 = vpop.f32.mrb[0].mxu0
    %v1942 = vadd.f32 0.0, %v1941
    %v1943 = vpop.f32.mrb[0].mxu0
    %v1944 = vadd.f32 0.0, %v1943
    %1945 = vmatprep.mubr.bf16.mxu0 0
    %1946 = vmatmul.mubr.bf16.gmra.mrb[0].mxu0 %v1817
    %v1947 = vpop.f32.mrb[0].mxu0
    %v1948 = vadd.f32 0.0, %v1947
    %v1949 = vpop.f32.mrb[0].mxu0
    %v1950 = vadd.f32 0.0, %v1949
    %v1951 = vpop.f32.mrb[0].mxu0
    %v1952 = vadd.f32 0.0, %v1951
    %v1953 = vpop.f32.mrb[0].mxu0
    %v1954 = vadd.f32 0.0, %v1953
    %1955 = vmatprep.mubr.bf16.mxu0 0
    %1956 = vmatmul.mubr.bf16.gmra.mrb[0].mxu0 %v1820
    %v1957 = vpop.f32.mrb[0].mxu0
    %v1958 = vadd.f32 0.0, %v1957
    %v1959 = vpop.f32.mrb[0].mxu0
    %v1960 = vadd.f32 0.0, %v1959
    %v1961 = vpop.f32.mrb[0].mxu0
    %v1962 = vadd.f32 0.0, %v1961
    %v1963 = vpop.f32.mrb[0].mxu0
    %v1964 = vadd.f32 0.0, %v1963
    %1965 = vmatprep.mubr.bf16.mxu0 0
    %1966 = vmatmul.mubr.bf16.gmra.mrb[0].mxu0 %v1823
    %v1967 = vpop.f32.mrb[0].mxu0
    %v1968 = vadd.f32 0.0, %v1967
    %v1969 = vpop.f32.mrb[0].mxu0
    %v1970 = vadd.f32 0.0, %v1969
    %v1971 = vpop.f32.mrb[0].mxu0
    %v1972 = vadd.f32 0.0, %v1971
    %v1973 = vpop.f32.mrb[0].mxu0
    %v1974 = vadd.f32 0.0, %v1973
    %1975 = vmatprep.mubr.bf16.mxu0 0
    %1976 = vmatmul.mubr.bf16.gmra.mrb[0].mxu0 %v1826
    %v1977 = vpop.f32.mrb[0].mxu0
    %v1978 = vadd.f32 0.0, %v1977
    %v1979 = vpop.f32.mrb[0].mxu0
    %v1980 = vadd.f32 0.0, %v1979
    %v1981 = vpop.f32.mrb[0].mxu0
    %v1982 = vadd.f32 0.0, %v1981
    %v1983 = vpop.f32.mrb[0].mxu0
    %v1984 = vadd.f32 0.0, %v1983
    %1985 = vmatprep.mubr.bf16.mxu0 0
    %1986 = vmatmul.mubr.bf16.gmra.mrb[0].mxu0 %v1829
    %v1987 = vpop.f32.mrb[0].mxu0
    %v1988 = vadd.f32 0.0, %v1987
    %v1989 = vpop.f32.mrb[0].mxu0
    %v1990 = vadd.f32 0.0, %v1989
    %v1991 = vpop.f32.mrb[0].mxu0
    %v1992 = vadd.f32 0.0, %v1991
    %v1993 = vpop.f32.mrb[0].mxu0
    %v1994 = vadd.f32 0.0, %v1993
    %1995 = vmatprep.mubr.bf16.mxu0 0
    %1996 = vmatmul.mubr.bf16.gmra.mrb[0].mxu0 %v1832
    %v1997 = vpop.f32.mrb[0].mxu0
    %v1998 = vadd.f32 0.0, %v1997
    %v1999 = vpop.f32.mrb[0].mxu0
    %v2000 = vadd.f32 0.0, %v1999
    %v2001 = vpop.f32.mrb[0].mxu0
    %v2002 = vadd.f32 0.0, %v2001
    %v2003 = vpop.f32.mrb[0].mxu0
    %v2004 = vadd.f32 0.0, %v2003
    %2005 = vmatprep.mubr.bf16.mxu0 0
    %2006 = vmatmul.mubr.bf16.gmra.mrb[0].mxu0 %v1835
    %v2007 = vpop.f32.mrb[0].mxu0
    %v2008 = vadd.f32 0.0, %v2007
    %v2009 = vpop.f32.mrb[0].mxu0
    %v2010 = vadd.f32 0.0, %v2009
    %v2011 = vpop.f32.mrb[0].mxu0
    %v2012 = vadd.f32 0.0, %v2011
    %v2013 = vpop.f32.mrb[0].mxu0
    %v2014 = vadd.f32 0.0, %v2013
    %2015 = vmatprep.mubr.bf16.mxu0 0
    %2016 = vmatmul.mubr.bf16.gmra.mrb[0].mxu0 %v1838
    %v2017 = vpop.f32.mrb[0].mxu0
    %v2018 = vadd.f32 0.0, %v2017
    %v2019 = vpop.f32.mrb[0].mxu0
    %v2020 = vadd.f32 0.0, %v2019
    %v2021 = vpop.f32.mrb[0].mxu0
    %v2022 = vadd.f32 0.0, %v2021
    %v2023 = vpop.f32.mrb[0].mxu0
    %v2024 = vadd.f32 0.0, %v2023
    %2025 = vmatprep.mubr.bf16.mxu0 0
    %2026 = vmatmul.mubr.bf16.gmra.mrb[0].mxu0 %v1841
    %v2027 = vpop.f32.mrb[0].mxu0
    %v2028 = vadd.f32 0.0, %v2027
    %v2029 = vpop.f32.mrb[0].mxu0
    %v2030 = vadd.f32 0.0, %v2029
    %v2031 = vpop.f32.mrb[0].mxu0
    %v2032 = vadd.f32 0.0, %v2031
    %v2033 = vpop.f32.mrb[0].mxu0
    %v2034 = vadd.f32 0.0, %v2033
    %2035 = vmatprep.mubr.bf16.mxu0 0
    %2036 = vmatmul.mubr.bf16.gmra.mrb[0].mxu0 %v1844
    %v2037 = vpop.f32.mrb[0].mxu0
    %v2038 = vadd.f32 0.0, %v2037
    %v2039 = vpop.f32.mrb[0].mxu0
    %v2040 = vadd.f32 0.0, %v2039
    %v2041 = vpop.f32.mrb[0].mxu0
    %v2042 = vadd.f32 0.0, %v2041
    %v2043 = vpop.f32.mrb[0].mxu0
    %v2044 = vadd.f32 0.0, %v2043
    %2045 = vmatprep.mubr.bf16.mxu0 0
    %2046 = vmatmul.mubr.bf16.gmra.mrb[0].mxu0 %v1847
    %v2047 = vpop.f32.mrb[0].mxu0
    %v2048 = vadd.f32 0.0, %v2047
    %v2049 = vpop.f32.mrb[0].mxu0
    %v2050 = vadd.f32 0.0, %v2049
    %v2051 = vpop.f32.mrb[0].mxu0
    %v2052 = vadd.f32 0.0, %v2051
    %v2053 = vpop.f32.mrb[0].mxu0
    %v2054 = vadd.f32 0.0, %v2053
    %2055 = vmatprep.mubr.bf16.mxu0 0
    %2056 = vmatmul.mubr.bf16.gmra.mrb[0].mxu0 %v1850
    %v2057 = vpop.f32.mrb[0].mxu0
    %v2058 = vadd.f32 0.0, %v2057
    %v2059 = vpop.f32.mrb[0].mxu0
    %v2060 = vadd.f32 0.0, %v2059
    %v2061 = vpop.f32.mrb[0].mxu0
    %v2062 = vadd.f32 0.0, %v2061
    %v2063 = vpop.f32.mrb[0].mxu0
    %v2064 = vadd.f32 0.0, %v2063
    %2065 = vmatprep.mubr.bf16.mxu0 0
    %2066 = vmatmul.mubr.bf16.gmra.mrb[0].mxu0 %v1853
    %v2067 = vpop.f32.mrb[0].mxu0
    %v2068 = vadd.f32 0.0, %v2067
    %v2069 = vpop.f32.mrb[0].mxu0
    %v2070 = vadd.f32 0.0, %v2069
    %v2071 = vpop.f32.mrb[0].mxu0
    %v2072 = vadd.f32 0.0, %v2071
    %v2073 = vpop.f32.mrb[0].mxu0
    %v2074 = vadd.f32 0.0, %v2073
    %2075 = vmatprep.mubr.bf16.mxu0 0
    %2076 = vmatmul.mubr.bf16.gmra.mrb[0].mxu0 %v1856
    %v2077 = vpop.f32.mrb[0].mxu0
    %v2078 = vadd.f32 0.0, %v2077
    %v2079 = vpop.f32.mrb[0].mxu0
    %v2080 = vadd.f32 0.0, %v2079
    %v2081 = vpop.f32.mrb[0].mxu0
    %v2082 = vadd.f32 0.0, %v2081
    %v2083 = vpop.f32.mrb[0].mxu0
    %v2084 = vadd.f32 0.0, %v2083
    %2085 = vmatprep.mubr.bf16.mxu0 0
    %2086 = vmatmul.mubr.bf16.gmra.mrb[0].mxu0 %v1859
    %v2087 = vpop.f32.mrb[0].mxu0
    %v2088 = vadd.f32 0.0, %v2087
    %v2089 = vpop.f32.mrb[0].mxu0
    %v2090 = vadd.f32 0.0, %v2089
    %v2091 = vpop.f32.mrb[0].mxu0
    %v2092 = vadd.f32 0.0, %v2091
    %v2093 = vpop.f32.mrb[0].mxu0
    %v2094 = vadd.f32 0.0, %v2093
    %2095 = vmatprep.mubr.bf16.mxu0 0
    %2096 = vmatmul.mubr.bf16.gmra.mrb[0].mxu0 %v1862
    %v2097 = vpop.f32.mrb[0].mxu0
    %v2098 = vadd.f32 0.0, %v2097
    %v2099 = vpop.f32.mrb[0].mxu0
    %v2100 = vadd.f32 0.0, %v2099
    %v2101 = vpop.f32.mrb[0].mxu0
    %v2102 = vadd.f32 0.0, %v2101
    %v2103 = vpop.f32.mrb[0].mxu0
    %v2104 = vadd.f32 0.0, %v2103
    %2105 = vmatprep.mubr.bf16.mxu0 0
    %2106 = vmatmul.mubr.bf16.gmra.mrb[0].mxu0 %v1865
    %v2107 = vpop.f32.mrb[0].mxu0
    %v2108 = vadd.f32 0.0, %v2107
    %v2109 = vpop.f32.mrb[0].mxu0
    %v2110 = vadd.f32 0.0, %v2109
    %v2111 = vpop.f32.mrb[0].mxu0
    %v2112 = vadd.f32 0.0, %v2111
    %v2113 = vpop.f32.mrb[0].mxu0
    %v2114 = vadd.f32 0.0, %v2113
    %2115 = vmatprep.mubr.bf16.mxu0 0
    %2116 = vmatmul.mubr.bf16.gmra.mrb[0].mxu0 %v1868
    %v2117 = vpop.f32.mrb[0].mxu0
    %v2118 = vadd.f32 0.0, %v2117
    %v2119 = vpop.f32.mrb[0].mxu0
    %v2120 = vadd.f32 0.0, %v2119
    %v2121 = vpop.f32.mrb[0].mxu0
    %v2122 = vadd.f32 0.0, %v2121
    %v2123 = vpop.f32.mrb[0].mxu0
    %v2124 = vadd.f32 0.0, %v2123
    %2125 = vmatprep.mubr.bf16.mxu0 0
    %2126 = vmatmul.mubr.bf16.gmra.mrb[0].mxu0 %v1871
    %v2127 = vpop.f32.mrb[0].mxu0
    %v2128 = vadd.f32 0.0, %v2127
    %v2129 = vpop.f32.mrb[0].mxu0
    %v2130 = vadd.f32 0.0, %v2129
    %v2131 = vpop.f32.mrb[0].mxu0
    %v2132 = vadd.f32 0.0, %v2131
    %v2133 = vpop.f32.mrb[0].mxu0
    %v2134 = vadd.f32 0.0, %v2133
    %2135 = vmatprep.mubr.bf16.mxu0 0
    %2136 = vmatmul.mubr.bf16.gmra.mrb[0].mxu0 %v1874
    %v2137 = vpop.f32.mrb[0].mxu0
    %v2138 = vadd.f32 0.0, %v2137
    %v2139 = vpop.f32.mrb[0].mxu0
    %v2140 = vadd.f32 0.0, %v2139
    %v2141 = vpop.f32.mrb[0].mxu0
    %v2142 = vadd.f32 0.0, %v2141
    %v2143 = vpop.f32.mrb[0].mxu0
    %v2144 = vadd.f32 0.0, %v2143
    %2145 = vmatprep.mubr.bf16.mxu0 0
    %2146 = vmatmul.mubr.bf16.gmra.mrb[0].mxu0 %v1877
    %v2147 = vpop.f32.mrb[0].mxu0
    %v2148 = vadd.f32 0.0, %v2147
    %v2149 = vpop.f32.mrb[0].mxu0
    %v2150 = vadd.f32 0.0, %v2149
    %v2151 = vpop.f32.mrb[0].mxu0
    %v2152 = vadd.f32 0.0, %v2151
    %v2153 = vpop.f32.mrb[0].mxu0
    %v2154 = vadd.f32 0.0, %v2153
    %2155 = vmatprep.mubr.bf16.mxu0 0
    %2156 = vmatmul.mubr.bf16.gmra.mrb[0].mxu0 %v1880
    %v2157 = vpop.f32.mrb[0].mxu0
    %v2158 = vadd.f32 0.0, %v2157
    %v2159 = vpop.f32.mrb[0].mxu0
    %v2160 = vadd.f32 0.0, %v2159
    %v2161 = vpop.f32.mrb[0].mxu0
    %v2162 = vadd.f32 0.0, %v2161
    %v2163 = vpop.f32.mrb[0].mxu0
    %v2164 = vadd.f32 0.0, %v2163
    %2165 = vmatprep.mubr.bf16.mxu0 0
    %2166 = vmatmul.mubr.bf16.gmra.mrb[0].mxu0 %v1883
    %v2167 = vpop.f32.mrb[0].mxu0
    %v2168 = vadd.f32 0.0, %v2167
    %v2169 = vpop.f32.mrb[0].mxu0
    %v2170 = vadd.f32 0.0, %v2169
    %v2171 = vpop.f32.mrb[0].mxu0
    %v2172 = vadd.f32 0.0, %v2171
    %v2173 = vpop.f32.mrb[0].mxu0
    %v2174 = vadd.f32 0.0, %v2173
    %2175 = vmatprep.mubr.bf16.mxu0 0
    %2176 = vmatmul.mubr.bf16.gmra.mrb[0].mxu0 %v1886
    %v2177 = vpop.f32.mrb[0].mxu0
    %v2178 = vadd.f32 0.0, %v2177
    %v2179 = vpop.f32.mrb[0].mxu0
    %v2180 = vadd.f32 0.0, %v2179
    %v2181 = vpop.f32.mrb[0].mxu0
    %v2182 = vadd.f32 0.0, %v2181
    %v2183 = vpop.f32.mrb[0].mxu0
    %v2184 = vadd.f32 0.0, %v2183
    %2185 = vmatprep.mubr.bf16.mxu0 0
    %2186 = vmatmul.mubr.bf16.gmra.mrb[0].mxu0 %v1889
    %v2187 = vpop.f32.mrb[0].mxu0
    %v2188 = vadd.f32 0.0, %v2187
    %v2189 = vpop.f32.mrb[0].mxu0
    %v2190 = vadd.f32 0.0, %v2189
    %v2191 = vpop.f32.mrb[0].mxu0
    %v2192 = vadd.f32 0.0, %v2191
    %v2193 = vpop.f32.mrb[0].mxu0
    %v2194 = vadd.f32 0.0, %v2193
    %2195 = vmatprep.mubr.bf16.mxu0 0
    %2196 = vmatmul.mubr.bf16.gmra.mrb[0].mxu0 %v1892
    %v2197 = vpop.f32.mrb[0].mxu0
    %v2198 = vadd.f32 0.0, %v2197
    %v2199 = vpop.f32.mrb[0].mxu0
    %v2200 = vadd.f32 0.0, %v2199
    %v2201 = vpop.f32.mrb[0].mxu0
    %v2202 = vadd.f32 0.0, %v2201
    %v2203 = vpop.f32.mrb[0].mxu0
    %v2204 = vadd.f32 0.0, %v2203
    %2205 = vmatprep.mubr.bf16.mxu0 0
    %2206 = vmatmul.mubr.bf16.gmra.mrb[0].mxu0 %v1895
    %v2207 = vpop.f32.mrb[0].mxu0
    %v2208 = vadd.f32 0.0, %v2207
    %v2209 = vpop.f32.mrb[0].mxu0
    %v2210 = vadd.f32 0.0, %v2209
    %v2211 = vpop.f32.mrb[0].mxu0
    %v2212 = vadd.f32 0.0, %v2211
    %v2213 = vpop.f32.mrb[0].mxu0
    %v2214 = vadd.f32 0.0, %v2213
    %2215 = vdwg.mxu0
    %v2216 = vadd.f32 %v1650, %v1938
    %v2217 = vadd.f32 %v1651, %v1940
    %v2218 = vadd.f32 %v1652, %v1942
    %v2219 = vadd.f32 %v1653, %v1944
    %v2220 = vadd.f32 %v1654, %v1948
    %v2221 = vadd.f32 %v1655, %v1950
    %v2222 = vadd.f32 %v1656, %v1952
    %v2223 = vadd.f32 %v1657, %v1954
    %v2224 = vadd.f32 %v1658, %v1958
    %v2225 = vadd.f32 %v1659, %v1960
    %v2226 = vadd.f32 %v1660, %v1962
    %v2227 = vadd.f32 %v1661, %v1964
    %v2228 = vadd.f32 %v1662, %v1968
    %v2229 = vadd.f32 %v1663, %v1970
    %v2230 = vadd.f32 %v1664, %v1972
    %v2231 = vadd.f32 %v1665, %v1974
    %v2232 = vadd.f32 %v1666, %v1978
    %v2233 = vadd.f32 %v1667, %v1980
    %v2234 = vadd.f32 %v1668, %v1982
    %v2235 = vadd.f32 %v1669, %v1984
    %v2236 = vadd.f32 %v1670, %v1988
    %v2237 = vadd.f32 %v1671, %v1990
    %v2238 = vadd.f32 %v1672, %v1992
    %v2239 = vadd.f32 %v1673, %v1994
    %v2240 = vadd.f32 %v1674, %v1998
    %v2241 = vadd.f32 %v1675, %v2000
    %v2242 = vadd.f32 %v1676, %v2002
    %v2243 = vadd.f32 %v1677, %v2004
    %v2244 = vadd.f32 %v1678, %v2008
    %v2245 = vadd.f32 %v1679, %v2010
    %v2246 = vadd.f32 %v1680, %v2012
    %v2247 = vadd.f32 %v1681, %v2014
    %v2248 = vadd.f32 %v1682, %v2018
    %v2249 = vadd.f32 %v1683, %v2020
    %v2250 = vadd.f32 %v1684, %v2022
    %v2251 = vadd.f32 %v1685, %v2024
    %v2252 = vadd.f32 %v1686, %v2028
    %v2253 = vadd.f32 %v1687, %v2030
    %v2254 = vadd.f32 %v1688, %v2032
    %v2255 = vadd.f32 %v1689, %v2034
    %v2256 = vadd.f32 %v1690, %v2038
    %v2257 = vadd.f32 %v1691, %v2040
    %v2258 = vadd.f32 %v1692, %v2042
    %v2259 = vadd.f32 %v1693, %v2044
    %v2260 = vadd.f32 %v1694, %v2048
    %v2261 = vadd.f32 %v1695, %v2050
    %v2262 = vadd.f32 %v1696, %v2052
    %v2263 = vadd.f32 %v1697, %v2054
    %v2264 = vadd.f32 %v1698, %v2058
    %v2265 = vadd.f32 %v1699, %v2060
    %v2266 = vadd.f32 %v1700, %v2062
    %v2267 = vadd.f32 %v1701, %v2064
    %v2268 = vadd.f32 %v1702, %v2068
    %v2269 = vadd.f32 %v1703, %v2070
    %v2270 = vadd.f32 %v1704, %v2072
    %v2271 = vadd.f32 %v1705, %v2074
    %v2272 = vadd.f32 %v1706, %v2078
    %v2273 = vadd.f32 %v1707, %v2080
    %v2274 = vadd.f32 %v1708, %v2082
    %v2275 = vadd.f32 %v1709, %v2084
    %v2276 = vadd.f32 %v1710, %v2088
    %v2277 = vadd.f32 %v1711, %v2090
    %v2278 = vadd.f32 %v1712, %v2092
    %v2279 = vadd.f32 %v1713, %v2094
    %v2280 = vadd.f32 %v1714, %v2098
    %v2281 = vadd.f32 %v1715, %v2100
    %v2282 = vadd.f32 %v1716, %v2102
    %v2283 = vadd.f32 %v1717, %v2104
    %v2284 = vadd.f32 %v1718, %v2108
    %v2285 = vadd.f32 %v1719, %v2110
    %v2286 = vadd.f32 %v1720, %v2112
    %v2287 = vadd.f32 %v1721, %v2114
    %v2288 = vadd.f32 %v1722, %v2118
    %v2289 = vadd.f32 %v1723, %v2120
    %v2290 = vadd.f32 %v1724, %v2122
    %v2291 = vadd.f32 %v1725, %v2124
    %v2292 = vadd.f32 %v1726, %v2128
    %v2293 = vadd.f32 %v1727, %v2130
    %v2294 = vadd.f32 %v1728, %v2132
    %v2295 = vadd.f32 %v1729, %v2134
    %v2296 = vadd.f32 %v1730, %v2138
    %v2297 = vadd.f32 %v1731, %v2140
    %v2298 = vadd.f32 %v1732, %v2142
    %v2299 = vadd.f32 %v1733, %v2144
    %v2300 = vadd.f32 %v1734, %v2148
    %v2301 = vadd.f32 %v1735, %v2150
    %v2302 = vadd.f32 %v1736, %v2152
    %v2303 = vadd.f32 %v1737, %v2154
    %v2304 = vadd.f32 %v1738, %v2158
    %v2305 = vadd.f32 %v1739, %v2160
    %v2306 = vadd.f32 %v1740, %v2162
    %v2307 = vadd.f32 %v1741, %v2164
    %v2308 = vadd.f32 %v1742, %v2168
    %v2309 = vadd.f32 %v1743, %v2170
    %v2310 = vadd.f32 %v1744, %v2172
    %v2311 = vadd.f32 %v1745, %v2174
    %v2312 = vadd.f32 %v1746, %v2178
    %v2313 = vadd.f32 %v1747, %v2180
    %v2314 = vadd.f32 %v1748, %v2182
    %v2315 = vadd.f32 %v1749, %v2184
    %v2316 = vadd.f32 %v1750, %v2188
    %v2317 = vadd.f32 %v1751, %v2190
    %v2318 = vadd.f32 %v1752, %v2192
    %v2319 = vadd.f32 %v1753, %v2194
    %v2320 = vadd.f32 %v1754, %v2198
    %v2321 = vadd.f32 %v1755, %v2200
    %v2322 = vadd.f32 %v1756, %v2202
    %v2323 = vadd.f32 %v1757, %v2204
    %v2324 = vadd.f32 %v1758, %v2208
    %v2325 = vadd.f32 %v1759, %v2210
    %v2326 = vadd.f32 %v1760, %v2212
    %v2327 = vadd.f32 %v1761, %v2214
    %v2328 = vld [vmem:[#allocation2 + $0x20] sm:$0xff]
    %v2329 = vld [vmem:[#allocation2 + $0x28] sm:$0xff]
    %v2330 = vld [vmem:[#allocation2 + $0x30] sm:$0xff]
    %v2331 = vld [vmem:[#allocation2 + $0x38] sm:$0xff]
    %v2332 = vld [vmem:[#allocation2 + $0x40] sm:$0xff]
    %v2333 = vld [vmem:[#allocation2 + $0x48] sm:$0xff]
    %v2334 = vld [vmem:[#allocation2 + $0x50] sm:$0xff]
    %v2335 = vld [vmem:[#allocation2 + $0x58] sm:$0xff]
    %v2336 = vld [vmem:[#allocation2 + $0x60] sm:$0xff]
    %v2337 = vld [vmem:[#allocation2 + $0x68] sm:$0xff]
    %v2338 = vld [vmem:[#allocation2 + $0x70] sm:$0xff]
    %v2339 = vld [vmem:[#allocation2 + $0x78] sm:$0xff]
    %v2340 = vld [vmem:[#allocation2 + $0x80] sm:$0xff]
    %v2341 = vld [vmem:[#allocation2 + $0x88] sm:$0xff]
    %v2342 = vld [vmem:[#allocation2 + $0x90] sm:$0xff]
    %v2343 = vld [vmem:[#allocation2 + $0x98] sm:$0xff]
    %v2344 = vld [vmem:[#allocation2 + $0xa0] sm:$0xff]
    %v2345 = vld [vmem:[#allocation2 + $0xa8] sm:$0xff]
    %v2346 = vld [vmem:[#allocation2 + $0xb0] sm:$0xff]
    %v2347 = vld [vmem:[#allocation2 + $0xb8] sm:$0xff]
    %v2348 = vld [vmem:[#allocation2 + $0xc0] sm:$0xff]
    %v2349 = vld [vmem:[#allocation2 + $0xc8] sm:$0xff]
    %v2350 = vld [vmem:[#allocation2 + $0xd0] sm:$0xff]
    %v2351 = vld [vmem:[#allocation2 + $0xd8] sm:$0xff]
    %v2352 = vld [vmem:[#allocation2 + $0xe0] sm:$0xff]
    %v2353 = vld [vmem:[#allocation2 + $0xe8] sm:$0xff]
    %v2354 = vld [vmem:[#allocation2 + $0xf0] sm:$0xff]
    %v2355 = vld [vmem:[#allocation2 + $0xf8] sm:$0xff]
    %s2356 = scalar_lea.vmem [#allocation4], 128
    %v2357 = vld [vmem:[%s2356] sm:$0xff]
    %v2358 = vld [vmem:[%s2356 + $0x8] sm:$0xff]
    %v2359 = vld [vmem:[%s2356 + $0x10] sm:$0xff]
    %v2360 = vld [vmem:[%s2356 + $0x18] sm:$0x33]
    %v2365 = vunpack.c.l.b16 %v2357
    %v2366 = vunpack.c.h.b16 %v2357
    %v2367 = vunpack.c.l.b16 %v2358
    %v2368 = vunpack.c.h.b16 %v2358
    %v2369 = vunpack.c.l.b16 %v2359
    %v2370 = vunpack.c.h.b16 %v2359
    %v2371 = vunpack.c.l.b16 %v2360
    %v2372 = vunpack.c.h.b16 %v2360
    %v2373 = vpack.c.b16 %v2367, %v2365
    %v2374 = vpack.c.b16 %v2368, %v2366
    %v2375 = vpack.c.b16 %v2371, %v2369
    %v2376 = vpack.c.b16 %v2372, %v2370
    %v2380 = vsel %vm134, %v2328, 0
    %v2383 = vsel %vm134, %v2329, 0
    %v2386 = vsel %vm134, %v2330, 0
    %v2389 = vsel %vm134, %v2331, 0
    %v2392 = vsel %vm134, %v2332, 0
    %v2395 = vsel %vm134, %v2333, 0
    %v2398 = vsel %vm134, %v2334, 0
    %v2401 = vsel %vm134, %v2335, 0
    %v2404 = vsel %vm134, %v2336, 0
    %v2407 = vsel %vm134, %v2337, 0
    %v2410 = vsel %vm134, %v2338, 0
    %v2413 = vsel %vm134, %v2339, 0
    %v2416 = vsel %vm134, %v2340, 0
    %v2419 = vsel %vm134, %v2341, 0
    %v2422 = vsel %vm134, %v2342, 0
    %v2425 = vsel %vm134, %v2343, 0
    %v2428 = vsel %vm134, %v2344, 0
    %v2431 = vsel %vm134, %v2345, 0
    %v2434 = vsel %vm134, %v2346, 0
    %v2437 = vsel %vm134, %v2347, 0
    %v2440 = vsel %vm134, %v2348, 0
    %v2443 = vsel %vm134, %v2349, 0
    %v2446 = vsel %vm134, %v2350, 0
    %v2449 = vsel %vm134, %v2351, 0
    %v2452 = vsel %vm134, %v2352, 0
    %v2455 = vsel %vm134, %v2353, 0
    %v2458 = vsel %vm134, %v2354, 0
    %v2461 = vsel %vm134, %v2355, 0
    %v2464 = vsel %vm536, %v2375, 0
    %v2467 = vsel %vm536, %v2376, 0
    %2469 = vmatprep.subr.bf16.mxu0 %v2374
    %2470 = vmatpush1.bf16.msra.mxu0 %v2373
    %2471 = vmatprep.subr.bf16.mxu0 %v2467
    %2472 = vmatpush1.bf16.msra.mxu0 %v2464
    %2473 = vmatprep.subr.bf16.mxu0 0
    %2474 = vmatpush1.bf16.msra.mxu0 0
    %2475 = vmatprep.subr.bf16.mxu0 0
    %2476 = vmatpush1.bf16.msra.mxu0 0
    %2477 = vmatprep.subr.bf16.mxu0 0
    %2478 = vmatpush1.bf16.msra.mxu0 0
    %2479 = vmatprep.subr.bf16.mxu0 0
    %2480 = vmatpush1.bf16.msra.mxu0 0
    %2481 = vmatprep.subr.bf16.mxu0 0
    %2482 = vmatpush1.bf16.msra.mxu0 0
    %2483 = vmatprep.subr.bf16.mxu0 0
    %2484 = vmatpush1.bf16.msra.mxu0 0
    %2485 = vmatprep.subr.bf16.mxu0 0
    %2486 = vmatpush1.bf16.msra.mxu0 0
    %2487 = vmatprep.subr.bf16.mxu0 0
    %2488 = vmatpush1.bf16.msra.mxu0 0
    %2489 = vmatprep.subr.bf16.mxu0 0
    %2490 = vmatpush1.bf16.msra.mxu0 0
    %2491 = vmatprep.subr.bf16.mxu0 0
    %2492 = vmatpush1.bf16.msra.mxu0 0
    %2493 = vmatprep.subr.bf16.mxu0 0
    %2494 = vmatpush1.bf16.msra.mxu0 0
    %2495 = vmatprep.subr.bf16.mxu0 0
    %2496 = vmatpush1.bf16.msra.mxu0 0
    %2497 = vmatprep.subr.bf16.mxu0 0
    %2498 = vmatpush1.bf16.msra.mxu0 0
    %2499 = vmatprep.subr.bf16.mxu0 0
    %2500 = vmatpush1.bf16.msra.mxu0 0
    %2501 = vmatprep.mubr.bf16.mxu0 0
    %2502 = vmatmul.mubr.bf16.gmra.mrb[0].mxu0 %v2380
    %v2503 = vpop.f32.mrb[0].mxu0
    %v2504 = vadd.f32 0.0, %v2503
    %v2505 = vpop.f32.mrb[0].mxu0
    %v2506 = vadd.f32 0.0, %v2505
    %v2507 = vpop.f32.mrb[0].mxu0
    %v2508 = vadd.f32 0.0, %v2507
    %v2509 = vpop.f32.mrb[0].mxu0
    %v2510 = vadd.f32 0.0, %v2509
    %2511 = vmatprep.mubr.bf16.mxu0 0
    %2512 = vmatmul.mubr.bf16.gmra.mrb[0].mxu0 %v2383
    %v2513 = vpop.f32.mrb[0].mxu0
    %v2514 = vadd.f32 0.0, %v2513
    %v2515 = vpop.f32.mrb[0].mxu0
    %v2516 = vadd.f32 0.0, %v2515
    %v2517 = vpop.f32.mrb[0].mxu0
    %v2518 = vadd.f32 0.0, %v2517
    %v2519 = vpop.f32.mrb[0].mxu0
    %v2520 = vadd.f32 0.0, %v2519
    %2521 = vmatprep.mubr.bf16.mxu0 0
    %2522 = vmatmul.mubr.bf16.gmra.mrb[0].mxu0 %v2386
    %v2523 = vpop.f32.mrb[0].mxu0
    %v2524 = vadd.f32 0.0, %v2523
    %v2525 = vpop.f32.mrb[0].mxu0
    %v2526 = vadd.f32 0.0, %v2525
    %v2527 = vpop.f32.mrb[0].mxu0
    %v2528 = vadd.f32 0.0, %v2527
    %v2529 = vpop.f32.mrb[0].mxu0
    %v2530 = vadd.f32 0.0, %v2529
    %2531 = vmatprep.mubr.bf16.mxu0 0
    %2532 = vmatmul.mubr.bf16.gmra.mrb[0].mxu0 %v2389
    %v2533 = vpop.f32.mrb[0].mxu0
    %v2534 = vadd.f32 0.0, %v2533
    %v2535 = vpop.f32.mrb[0].mxu0
    %v2536 = vadd.f32 0.0, %v2535
    %v2537 = vpop.f32.mrb[0].mxu0
    %v2538 = vadd.f32 0.0, %v2537
    %v2539 = vpop.f32.mrb[0].mxu0
    %v2540 = vadd.f32 0.0, %v2539
    %2541 = vmatprep.mubr.bf16.mxu0 0
    %2542 = vmatmul.mubr.bf16.gmra.mrb[0].mxu0 %v2392
    %v2543 = vpop.f32.mrb[0].mxu0
    %v2544 = vadd.f32 0.0, %v2543
    %v2545 = vpop.f32.mrb[0].mxu0
    %v2546 = vadd.f32 0.0, %v2545
    %v2547 = vpop.f32.mrb[0].mxu0
    %v2548 = vadd.f32 0.0, %v2547
    %v2549 = vpop.f32.mrb[0].mxu0
    %v2550 = vadd.f32 0.0, %v2549
    %2551 = vmatprep.mubr.bf16.mxu0 0
    %2552 = vmatmul.mubr.bf16.gmra.mrb[0].mxu0 %v2395
    %v2553 = vpop.f32.mrb[0].mxu0
    %v2554 = vadd.f32 0.0, %v2553
    %v2555 = vpop.f32.mrb[0].mxu0
    %v2556 = vadd.f32 0.0, %v2555
    %v2557 = vpop.f32.mrb[0].mxu0
    %v2558 = vadd.f32 0.0, %v2557
    %v2559 = vpop.f32.mrb[0].mxu0
    %v2560 = vadd.f32 0.0, %v2559
    %2561 = vmatprep.mubr.bf16.mxu0 0
    %2562 = vmatmul.mubr.bf16.gmra.mrb[0].mxu0 %v2398
    %v2563 = vpop.f32.mrb[0].mxu0
    %v2564 = vadd.f32 0.0, %v2563
    %v2565 = vpop.f32.mrb[0].mxu0
    %v2566 = vadd.f32 0.0, %v2565
    %v2567 = vpop.f32.mrb[0].mxu0
    %v2568 = vadd.f32 0.0, %v2567
    %v2569 = vpop.f32.mrb[0].mxu0
    %v2570 = vadd.f32 0.0, %v2569
    %2571 = vmatprep.mubr.bf16.mxu0 0
    %2572 = vmatmul.mubr.bf16.gmra.mrb[0].mxu0 %v2401
    %v2573 = vpop.f32.mrb[0].mxu0
    %v2574 = vadd.f32 0.0, %v2573
    %v2575 = vpop.f32.mrb[0].mxu0
    %v2576 = vadd.f32 0.0, %v2575
    %v2577 = vpop.f32.mrb[0].mxu0
    %v2578 = vadd.f32 0.0, %v2577
    %v2579 = vpop.f32.mrb[0].mxu0
    %v2580 = vadd.f32 0.0, %v2579
    %2581 = vmatprep.mubr.bf16.mxu0 0
    %2582 = vmatmul.mubr.bf16.gmra.mrb[0].mxu0 %v2404
    %v2583 = vpop.f32.mrb[0].mxu0
    %v2584 = vadd.f32 0.0, %v2583
    %v2585 = vpop.f32.mrb[0].mxu0
    %v2586 = vadd.f32 0.0, %v2585
    %v2587 = vpop.f32.mrb[0].mxu0
    %v2588 = vadd.f32 0.0, %v2587
    %v2589 = vpop.f32.mrb[0].mxu0
    %v2590 = vadd.f32 0.0, %v2589
    %2591 = vmatprep.mubr.bf16.mxu0 0
    %2592 = vmatmul.mubr.bf16.gmra.mrb[0].mxu0 %v2407
    %v2593 = vpop.f32.mrb[0].mxu0
    %v2594 = vadd.f32 0.0, %v2593
    %v2595 = vpop.f32.mrb[0].mxu0
    %v2596 = vadd.f32 0.0, %v2595
    %v2597 = vpop.f32.mrb[0].mxu0
    %v2598 = vadd.f32 0.0, %v2597
    %v2599 = vpop.f32.mrb[0].mxu0
    %v2600 = vadd.f32 0.0, %v2599
    %2601 = vmatprep.mubr.bf16.mxu0 0
    %2602 = vmatmul.mubr.bf16.gmra.mrb[0].mxu0 %v2410
    %v2603 = vpop.f32.mrb[0].mxu0
    %v2604 = vadd.f32 0.0, %v2603
    %v2605 = vpop.f32.mrb[0].mxu0
    %v2606 = vadd.f32 0.0, %v2605
    %v2607 = vpop.f32.mrb[0].mxu0
    %v2608 = vadd.f32 0.0, %v2607
    %v2609 = vpop.f32.mrb[0].mxu0
    %v2610 = vadd.f32 0.0, %v2609
    %2611 = vmatprep.mubr.bf16.mxu0 0
    %2612 = vmatmul.mubr.bf16.gmra.mrb[0].mxu0 %v2413
    %v2613 = vpop.f32.mrb[0].mxu0
    %v2614 = vadd.f32 0.0, %v2613
    %v2615 = vpop.f32.mrb[0].mxu0
    %v2616 = vadd.f32 0.0, %v2615
    %v2617 = vpop.f32.mrb[0].mxu0
    %v2618 = vadd.f32 0.0, %v2617
    %v2619 = vpop.f32.mrb[0].mxu0
    %v2620 = vadd.f32 0.0, %v2619
    %2621 = vmatprep.mubr.bf16.mxu0 0
    %2622 = vmatmul.mubr.bf16.gmra.mrb[0].mxu0 %v2416
    %v2623 = vpop.f32.mrb[0].mxu0
    %v2624 = vadd.f32 0.0, %v2623
    %v2625 = vpop.f32.mrb[0].mxu0
    %v2626 = vadd.f32 0.0, %v2625
    %v2627 = vpop.f32.mrb[0].mxu0
    %v2628 = vadd.f32 0.0, %v2627
    %v2629 = vpop.f32.mrb[0].mxu0
    %v2630 = vadd.f32 0.0, %v2629
    %2631 = vmatprep.mubr.bf16.mxu0 0
    %2632 = vmatmul.mubr.bf16.gmra.mrb[0].mxu0 %v2419
    %v2633 = vpop.f32.mrb[0].mxu0
    %v2634 = vadd.f32 0.0, %v2633
    %v2635 = vpop.f32.mrb[0].mxu0
    %v2636 = vadd.f32 0.0, %v2635
    %v2637 = vpop.f32.mrb[0].mxu0
    %v2638 = vadd.f32 0.0, %v2637
    %v2639 = vpop.f32.mrb[0].mxu0
    %v2640 = vadd.f32 0.0, %v2639
    %2641 = vmatprep.mubr.bf16.mxu0 0
    %2642 = vmatmul.mubr.bf16.gmra.mrb[0].mxu0 %v2422
    %v2643 = vpop.f32.mrb[0].mxu0
    %v2644 = vadd.f32 0.0, %v2643
    %v2645 = vpop.f32.mrb[0].mxu0
    %v2646 = vadd.f32 0.0, %v2645
    %v2647 = vpop.f32.mrb[0].mxu0
    %v2648 = vadd.f32 0.0, %v2647
    %v2649 = vpop.f32.mrb[0].mxu0
    %v2650 = vadd.f32 0.0, %v2649
    %2651 = vmatprep.mubr.bf16.mxu0 0
    %2652 = vmatmul.mubr.bf16.gmra.mrb[0].mxu0 %v2425
    %v2653 = vpop.f32.mrb[0].mxu0
    %v2654 = vadd.f32 0.0, %v2653
    %v2655 = vpop.f32.mrb[0].mxu0
    %v2656 = vadd.f32 0.0, %v2655
    %v2657 = vpop.f32.mrb[0].mxu0
    %v2658 = vadd.f32 0.0, %v2657
    %v2659 = vpop.f32.mrb[0].mxu0
    %v2660 = vadd.f32 0.0, %v2659
    %2661 = vmatprep.mubr.bf16.mxu0 0
    %2662 = vmatmul.mubr.bf16.gmra.mrb[0].mxu0 %v2428
    %v2663 = vpop.f32.mrb[0].mxu0
    %v2664 = vadd.f32 0.0, %v2663
    %v2665 = vpop.f32.mrb[0].mxu0
    %v2666 = vadd.f32 0.0, %v2665
    %v2667 = vpop.f32.mrb[0].mxu0
    %v2668 = vadd.f32 0.0, %v2667
    %v2669 = vpop.f32.mrb[0].mxu0
    %v2670 = vadd.f32 0.0, %v2669
    %2671 = vmatprep.mubr.bf16.mxu0 0
    %2672 = vmatmul.mubr.bf16.gmra.mrb[0].mxu0 %v2431
    %v2673 = vpop.f32.mrb[0].mxu0
    %v2674 = vadd.f32 0.0, %v2673
    %v2675 = vpop.f32.mrb[0].mxu0
    %v2676 = vadd.f32 0.0, %v2675
    %v2677 = vpop.f32.mrb[0].mxu0
    %v2678 = vadd.f32 0.0, %v2677
    %v2679 = vpop.f32.mrb[0].mxu0
    %v2680 = vadd.f32 0.0, %v2679
    %2681 = vmatprep.mubr.bf16.mxu0 0
    %2682 = vmatmul.mubr.bf16.gmra.mrb[0].mxu0 %v2434
    %v2683 = vpop.f32.mrb[0].mxu0
    %v2684 = vadd.f32 0.0, %v2683
    %v2685 = vpop.f32.mrb[0].mxu0
    %v2686 = vadd.f32 0.0, %v2685
    %v2687 = vpop.f32.mrb[0].mxu0
    %v2688 = vadd.f32 0.0, %v2687
    %v2689 = vpop.f32.mrb[0].mxu0
    %v2690 = vadd.f32 0.0, %v2689
    %2691 = vmatprep.mubr.bf16.mxu0 0
    %2692 = vmatmul.mubr.bf16.gmra.mrb[0].mxu0 %v2437
    %v2693 = vpop.f32.mrb[0].mxu0
    %v2694 = vadd.f32 0.0, %v2693
    %v2695 = vpop.f32.mrb[0].mxu0
    %v2696 = vadd.f32 0.0, %v2695
    %v2697 = vpop.f32.mrb[0].mxu0
    %v2698 = vadd.f32 0.0, %v2697
    %v2699 = vpop.f32.mrb[0].mxu0
    %v2700 = vadd.f32 0.0, %v2699
    %2701 = vmatprep.mubr.bf16.mxu0 0
    %2702 = vmatmul.mubr.bf16.gmra.mrb[0].mxu0 %v2440
    %v2703 = vpop.f32.mrb[0].mxu0
    %v2704 = vadd.f32 0.0, %v2703
    %v2705 = vpop.f32.mrb[0].mxu0
    %v2706 = vadd.f32 0.0, %v2705
    %v2707 = vpop.f32.mrb[0].mxu0
    %v2708 = vadd.f32 0.0, %v2707
    %v2709 = vpop.f32.mrb[0].mxu0
    %v2710 = vadd.f32 0.0, %v2709
    %2711 = vmatprep.mubr.bf16.mxu0 0
    %2712 = vmatmul.mubr.bf16.gmra.mrb[0].mxu0 %v2443
    %v2713 = vpop.f32.mrb[0].mxu0
    %v2714 = vadd.f32 0.0, %v2713
    %v2715 = vpop.f32.mrb[0].mxu0
    %v2716 = vadd.f32 0.0, %v2715
    %v2717 = vpop.f32.mrb[0].mxu0
    %v2718 = vadd.f32 0.0, %v2717
    %v2719 = vpop.f32.mrb[0].mxu0
    %v2720 = vadd.f32 0.0, %v2719
    %2721 = vmatprep.mubr.bf16.mxu0 0
    %2722 = vmatmul.mubr.bf16.gmra.mrb[0].mxu0 %v2446
    %v2723 = vpop.f32.mrb[0].mxu0
    %v2724 = vadd.f32 0.0, %v2723
    %v2725 = vpop.f32.mrb[0].mxu0
    %v2726 = vadd.f32 0.0, %v2725
    %v2727 = vpop.f32.mrb[0].mxu0
    %v2728 = vadd.f32 0.0, %v2727
    %v2729 = vpop.f32.mrb[0].mxu0
    %v2730 = vadd.f32 0.0, %v2729
    %2731 = vmatprep.mubr.bf16.mxu0 0
    %2732 = vmatmul.mubr.bf16.gmra.mrb[0].mxu0 %v2449
    %v2733 = vpop.f32.mrb[0].mxu0
    %v2734 = vadd.f32 0.0, %v2733
    %v2735 = vpop.f32.mrb[0].mxu0
    %v2736 = vadd.f32 0.0, %v2735
    %v2737 = vpop.f32.mrb[0].mxu0
    %v2738 = vadd.f32 0.0, %v2737
    %v2739 = vpop.f32.mrb[0].mxu0
    %v2740 = vadd.f32 0.0, %v2739
    %2741 = vmatprep.mubr.bf16.mxu0 0
    %2742 = vmatmul.mubr.bf16.gmra.mrb[0].mxu0 %v2452
    %v2743 = vpop.f32.mrb[0].mxu0
    %v2744 = vadd.f32 0.0, %v2743
    %v2745 = vpop.f32.mrb[0].mxu0
    %v2746 = vadd.f32 0.0, %v2745
    %v2747 = vpop.f32.mrb[0].mxu0
    %v2748 = vadd.f32 0.0, %v2747
    %v2749 = vpop.f32.mrb[0].mxu0
    %v2750 = vadd.f32 0.0, %v2749
    %2751 = vmatprep.mubr.bf16.mxu0 0
    %2752 = vmatmul.mubr.bf16.gmra.mrb[0].mxu0 %v2455
    %v2753 = vpop.f32.mrb[0].mxu0
    %v2754 = vadd.f32 0.0, %v2753
    %v2755 = vpop.f32.mrb[0].mxu0
    %v2756 = vadd.f32 0.0, %v2755
    %v2757 = vpop.f32.mrb[0].mxu0
    %v2758 = vadd.f32 0.0, %v2757
    %v2759 = vpop.f32.mrb[0].mxu0
    %v2760 = vadd.f32 0.0, %v2759
    %2761 = vmatprep.mubr.bf16.mxu0 0
    %2762 = vmatmul.mubr.bf16.gmra.mrb[0].mxu0 %v2458
    %v2763 = vpop.f32.mrb[0].mxu0
    %v2764 = vadd.f32 0.0, %v2763
    %v2765 = vpop.f32.mrb[0].mxu0
    %v2766 = vadd.f32 0.0, %v2765
    %v2767 = vpop.f32.mrb[0].mxu0
    %v2768 = vadd.f32 0.0, %v2767
    %v2769 = vpop.f32.mrb[0].mxu0
    %v2770 = vadd.f32 0.0, %v2769
    %2771 = vmatprep.mubr.bf16.mxu0 0
    %2772 = vmatmul.mubr.bf16.gmra.mrb[0].mxu0 %v2461
    %v2773 = vpop.f32.mrb[0].mxu0
    %v2774 = vadd.f32 0.0, %v2773
    %v2775 = vpop.f32.mrb[0].mxu0
    %v2776 = vadd.f32 0.0, %v2775
    %v2777 = vpop.f32.mrb[0].mxu0
    %v2778 = vadd.f32 0.0, %v2777
    %v2779 = vpop.f32.mrb[0].mxu0
    %v2780 = vadd.f32 0.0, %v2779
    %2781 = vdwg.mxu0
    %v2782 = vadd.f32 %v2216, %v2504
    %v2783 = vadd.f32 %v2217, %v2506
    %v2784 = vadd.f32 %v2218, %v2508
    %v2785 = vadd.f32 %v2219, %v2510
    %v2786 = vadd.f32 %v2220, %v2514
    %v2787 = vadd.f32 %v2221, %v2516
    %v2788 = vadd.f32 %v2222, %v2518
    %v2789 = vadd.f32 %v2223, %v2520
    %v2790 = vadd.f32 %v2224, %v2524
    %v2791 = vadd.f32 %v2225, %v2526
    %v2792 = vadd.f32 %v2226, %v2528
    %v2793 = vadd.f32 %v2227, %v2530
    %v2794 = vadd.f32 %v2228, %v2534
    %v2795 = vadd.f32 %v2229, %v2536
    %v2796 = vadd.f32 %v2230, %v2538
    %v2797 = vadd.f32 %v2231, %v2540
    %v2798 = vadd.f32 %v2232, %v2544
    %v2799 = vadd.f32 %v2233, %v2546
    %v2800 = vadd.f32 %v2234, %v2548
    %v2801 = vadd.f32 %v2235, %v2550
    %v2802 = vadd.f32 %v2236, %v2554
    %v2803 = vadd.f32 %v2237, %v2556
    %v2804 = vadd.f32 %v2238, %v2558
    %v2805 = vadd.f32 %v2239, %v2560
    %v2806 = vadd.f32 %v2240, %v2564
    %v2807 = vadd.f32 %v2241, %v2566
    %v2808 = vadd.f32 %v2242, %v2568
    %v2809 = vadd.f32 %v2243, %v2570
    %v2810 = vadd.f32 %v2244, %v2574
    %v2811 = vadd.f32 %v2245, %v2576
    %v2812 = vadd.f32 %v2246, %v2578
    %v2813 = vadd.f32 %v2247, %v2580
    %v2814 = vadd.f32 %v2248, %v2584
    %v2815 = vadd.f32 %v2249, %v2586
    %v2816 = vadd.f32 %v2250, %v2588
    %v2817 = vadd.f32 %v2251, %v2590
    %v2818 = vadd.f32 %v2252, %v2594
    %v2819 = vadd.f32 %v2253, %v2596
    %v2820 = vadd.f32 %v2254, %v2598
    %v2821 = vadd.f32 %v2255, %v2600
    %v2822 = vadd.f32 %v2256, %v2604
    %v2823 = vadd.f32 %v2257, %v2606
    %v2824 = vadd.f32 %v2258, %v2608
    %v2825 = vadd.f32 %v2259, %v2610
    %v2826 = vadd.f32 %v2260, %v2614
    %v2827 = vadd.f32 %v2261, %v2616
    %v2828 = vadd.f32 %v2262, %v2618
    %v2829 = vadd.f32 %v2263, %v2620
    %v2830 = vadd.f32 %v2264, %v2624
    %v2831 = vadd.f32 %v2265, %v2626
    %v2832 = vadd.f32 %v2266, %v2628
    %v2833 = vadd.f32 %v2267, %v2630
    %v2834 = vadd.f32 %v2268, %v2634
    %v2835 = vadd.f32 %v2269, %v2636
    %v2836 = vadd.f32 %v2270, %v2638
    %v2837 = vadd.f32 %v2271, %v2640
    %v2838 = vadd.f32 %v2272, %v2644
    %v2839 = vadd.f32 %v2273, %v2646
    %v2840 = vadd.f32 %v2274, %v2648
    %v2841 = vadd.f32 %v2275, %v2650
    %v2842 = vadd.f32 %v2276, %v2654
    %v2843 = vadd.f32 %v2277, %v2656
    %v2844 = vadd.f32 %v2278, %v2658
    %v2845 = vadd.f32 %v2279, %v2660
    %v2846 = vadd.f32 %v2280, %v2664
    %v2847 = vadd.f32 %v2281, %v2666
    %v2848 = vadd.f32 %v2282, %v2668
    %v2849 = vadd.f32 %v2283, %v2670
    %v2850 = vadd.f32 %v2284, %v2674
    %v2851 = vadd.f32 %v2285, %v2676
    %v2852 = vadd.f32 %v2286, %v2678
    %v2853 = vadd.f32 %v2287, %v2680
    %v2854 = vadd.f32 %v2288, %v2684
    %v2855 = vadd.f32 %v2289, %v2686
    %v2856 = vadd.f32 %v2290, %v2688
    %v2857 = vadd.f32 %v2291, %v2690
    %v2858 = vadd.f32 %v2292, %v2694
    %v2859 = vadd.f32 %v2293, %v2696
    %v2860 = vadd.f32 %v2294, %v2698
    %v2861 = vadd.f32 %v2295, %v2700
    %v2862 = vadd.f32 %v2296, %v2704
    %v2863 = vadd.f32 %v2297, %v2706
    %v2864 = vadd.f32 %v2298, %v2708
    %v2865 = vadd.f32 %v2299, %v2710
    %v2866 = vadd.f32 %v2300, %v2714
    %v2867 = vadd.f32 %v2301, %v2716
    %v2868 = vadd.f32 %v2302, %v2718
    %v2869 = vadd.f32 %v2303, %v2720
    %v2870 = vadd.f32 %v2304, %v2724
    %v2871 = vadd.f32 %v2305, %v2726
    %v2872 = vadd.f32 %v2306, %v2728
    %v2873 = vadd.f32 %v2307, %v2730
    %v2874 = vadd.f32 %v2308, %v2734
    %v2875 = vadd.f32 %v2309, %v2736
    %v2876 = vadd.f32 %v2310, %v2738
    %v2877 = vadd.f32 %v2311, %v2740
    %v2878 = vadd.f32 %v2312, %v2744
    %v2879 = vadd.f32 %v2313, %v2746
    %v2880 = vadd.f32 %v2314, %v2748
    %v2881 = vadd.f32 %v2315, %v2750
    %v2882 = vadd.f32 %v2316, %v2754
    %v2883 = vadd.f32 %v2317, %v2756
    %v2884 = vadd.f32 %v2318, %v2758
    %v2885 = vadd.f32 %v2319, %v2760
    %v2886 = vadd.f32 %v2320, %v2764
    %v2887 = vadd.f32 %v2321, %v2766
    %v2888 = vadd.f32 %v2322, %v2768
    %v2889 = vadd.f32 %v2323, %v2770
    %v2890 = vadd.f32 %v2324, %v2774
    %v2891 = vadd.f32 %v2325, %v2776
    %v2892 = vadd.f32 %v2326, %v2778
    %v2893 = vadd.f32 %v2327, %v2780
    %v2894 = vld [vmem:[#allocation6] sm:$0x3]
    %v2896 = vlaneseq
    %v2897 = vshrl.u32 %v2896, 7
    %v2898 = vsub.s32 0, %v2897
    %v2899 = vrot.slane %v2894, %v2898
    %v2900 = vlaneseq
    %v2901 = vshrl.u32 %v2900, 7
    %v2902 = vsub.s32 1, %v2901
    %v2903 = vrot.slane %v2894, %v2902
    %v2906 = vadd.f32 %v2782, %v2899
    %v2907 = vadd.f32 %v2783, %v2903
    %v2908 = vadd.f32 %v2784, %v2899
    %v2909 = vadd.f32 %v2785, %v2903
    %v2910 = vadd.f32 %v2786, %v2899
    %v2911 = vadd.f32 %v2787, %v2903
    %v2912 = vadd.f32 %v2788, %v2899
    %v2913 = vadd.f32 %v2789, %v2903
    %v2914 = vadd.f32 %v2790, %v2899
    %v2915 = vadd.f32 %v2791, %v2903
    %v2916 = vadd.f32 %v2792, %v2899
    %v2917 = vadd.f32 %v2793, %v2903
    %v2918 = vadd.f32 %v2794, %v2899
    %v2919 = vadd.f32 %v2795, %v2903
    %v2920 = vadd.f32 %v2796, %v2899
    %v2921 = vadd.f32 %v2797, %v2903
    %v2922 = vadd.f32 %v2798, %v2899
    %v2923 = vadd.f32 %v2799, %v2903
    %v2924 = vadd.f32 %v2800, %v2899
    %v2925 = vadd.f32 %v2801, %v2903
    %v2926 = vadd.f32 %v2802, %v2899
    %v2927 = vadd.f32 %v2803, %v2903
    %v2928 = vadd.f32 %v2804, %v2899
    %v2929 = vadd.f32 %v2805, %v2903
    %v2930 = vadd.f32 %v2806, %v2899
    %v2931 = vadd.f32 %v2807, %v2903
    %v2932 = vadd.f32 %v2808, %v2899
    %v2933 = vadd.f32 %v2809, %v2903
    %v2934 = vadd.f32 %v2810, %v2899
    %v2935 = vadd.f32 %v2811, %v2903
    %v2936 = vadd.f32 %v2812, %v2899
    %v2937 = vadd.f32 %v2813, %v2903
    %v2938 = vadd.f32 %v2814, %v2899
    %v2939 = vadd.f32 %v2815, %v2903
    %v2940 = vadd.f32 %v2816, %v2899
    %v2941 = vadd.f32 %v2817, %v2903
    %v2942 = vadd.f32 %v2818, %v2899
    %v2943 = vadd.f32 %v2819, %v2903
    %v2944 = vadd.f32 %v2820, %v2899
    %v2945 = vadd.f32 %v2821, %v2903
    %v2946 = vadd.f32 %v2822, %v2899
    %v2947 = vadd.f32 %v2823, %v2903
    %v2948 = vadd.f32 %v2824, %v2899
    %v2949 = vadd.f32 %v2825, %v2903
    %v2950 = vadd.f32 %v2826, %v2899
    %v2951 = vadd.f32 %v2827, %v2903
    %v2952 = vadd.f32 %v2828, %v2899
    %v2953 = vadd.f32 %v2829, %v2903
    %v2954 = vadd.f32 %v2830, %v2899
    %v2955 = vadd.f32 %v2831, %v2903
    %v2956 = vadd.f32 %v2832, %v2899
    %v2957 = vadd.f32 %v2833, %v2903
    %v2958 = vadd.f32 %v2834, %v2899
    %v2959 = vadd.f32 %v2835, %v2903
    %v2960 = vadd.f32 %v2836, %v2899
    %v2961 = vadd.f32 %v2837, %v2903
    %v2962 = vadd.f32 %v2838, %v2899
    %v2963 = vadd.f32 %v2839, %v2903
    %v2964 = vadd.f32 %v2840, %v2899
    %v2965 = vadd.f32 %v2841, %v2903
    %v2966 = vadd.f32 %v2842, %v2899
    %v2967 = vadd.f32 %v2843, %v2903
    %v2968 = vadd.f32 %v2844, %v2899
    %v2969 = vadd.f32 %v2845, %v2903
    %v2970 = vadd.f32 %v2846, %v2899
    %v2971 = vadd.f32 %v2847, %v2903
    %v2972 = vadd.f32 %v2848, %v2899
    %v2973 = vadd.f32 %v2849, %v2903
    %v2974 = vadd.f32 %v2850, %v2899
    %v2975 = vadd.f32 %v2851, %v2903
    %v2976 = vadd.f32 %v2852, %v2899
    %v2977 = vadd.f32 %v2853, %v2903
    %v2978 = vadd.f32 %v2854, %v2899
    %v2979 = vadd.f32 %v2855, %v2903
    %v2980 = vadd.f32 %v2856, %v2899
    %v2981 = vadd.f32 %v2857, %v2903
    %v2982 = vadd.f32 %v2858, %v2899
    %v2983 = vadd.f32 %v2859, %v2903
    %v2984 = vadd.f32 %v2860, %v2899
    %v2985 = vadd.f32 %v2861, %v2903
    %v2986 = vadd.f32 %v2862, %v2899
    %v2987 = vadd.f32 %v2863, %v2903
    %v2988 = vadd.f32 %v2864, %v2899
    %v2989 = vadd.f32 %v2865, %v2903
    %v2990 = vadd.f32 %v2866, %v2899
    %v2991 = vadd.f32 %v2867, %v2903
    %v2992 = vadd.f32 %v2868, %v2899
    %v2993 = vadd.f32 %v2869, %v2903
    %v2994 = vadd.f32 %v2870, %v2899
    %v2995 = vadd.f32 %v2871, %v2903
    %v2996 = vadd.f32 %v2872, %v2899
    %v2997 = vadd.f32 %v2873, %v2903
    %v2998 = vadd.f32 %v2874, %v2899
    %v2999 = vadd.f32 %v2875, %v2903
    %v3000 = vadd.f32 %v2876, %v2899
    %v3001 = vadd.f32 %v2877, %v2903
    %v3002 = vadd.f32 %v2878, %v2899
    %v3003 = vadd.f32 %v2879, %v2903
    %v3004 = vadd.f32 %v2880, %v2899
    %v3005 = vadd.f32 %v2881, %v2903
    %v3006 = vadd.f32 %v2882, %v2899
    %v3007 = vadd.f32 %v2883, %v2903
    %v3008 = vadd.f32 %v2884, %v2899
    %v3009 = vadd.f32 %v2885, %v2903
    %v3010 = vadd.f32 %v2886, %v2899
    %v3011 = vadd.f32 %v2887, %v2903
    %v3012 = vadd.f32 %v2888, %v2899
    %v3013 = vadd.f32 %v2889, %v2903
    %v3014 = vadd.f32 %v2890, %v2899
    %v3015 = vadd.f32 %v2891, %v2903
    %v3016 = vadd.f32 %v2892, %v2899
    %v3017 = vadd.f32 %v2893, %v2903
    %v3018 = vmax.f32 %v2906, 0.0
    %v3019 = vmax.f32 %v2907, 0.0
    %v3020 = vmax.f32 %v2908, 0.0
    %v3021 = vmax.f32 %v2909, 0.0
    %v3022 = vmax.f32 %v2910, 0.0
    %v3023 = vmax.f32 %v2911, 0.0
    %v3024 = vmax.f32 %v2912, 0.0
    %v3025 = vmax.f32 %v2913, 0.0
    %v3026 = vmax.f32 %v2914, 0.0
    %v3027 = vmax.f32 %v2915, 0.0
    %v3028 = vmax.f32 %v2916, 0.0
    %v3029 = vmax.f32 %v2917, 0.0
    %v3030 = vmax.f32 %v2918, 0.0
    %v3031 = vmax.f32 %v2919, 0.0
    %v3032 = vmax.f32 %v2920, 0.0
    %v3033 = vmax.f32 %v2921, 0.0
    %v3034 = vmax.f32 %v2922, 0.0
    %v3035 = vmax.f32 %v2923, 0.0
    %v3036 = vmax.f32 %v2924, 0.0
    %v3037 = vmax.f32 %v2925, 0.0
    %v3038 = vmax.f32 %v2926, 0.0
    %v3039 = vmax.f32 %v2927, 0.0
    %v3040 = vmax.f32 %v2928, 0.0
    %v3041 = vmax.f32 %v2929, 0.0
    %v3042 = vmax.f32 %v2930, 0.0
    %v3043 = vmax.f32 %v2931, 0.0
    %v3044 = vmax.f32 %v2932, 0.0
    %v3045 = vmax.f32 %v2933, 0.0
    %v3046 = vmax.f32 %v2934, 0.0
    %v3047 = vmax.f32 %v2935, 0.0
    %v3048 = vmax.f32 %v2936, 0.0
    %v3049 = vmax.f32 %v2937, 0.0
    %v3050 = vmax.f32 %v2938, 0.0
    %v3051 = vmax.f32 %v2939, 0.0
    %v3052 = vmax.f32 %v2940, 0.0
    %v3053 = vmax.f32 %v2941, 0.0
    %v3054 = vmax.f32 %v2942, 0.0
    %v3055 = vmax.f32 %v2943, 0.0
    %v3056 = vmax.f32 %v2944, 0.0
    %v3057 = vmax.f32 %v2945, 0.0
    %v3058 = vmax.f32 %v2946, 0.0
    %v3059 = vmax.f32 %v2947, 0.0
    %v3060 = vmax.f32 %v2948, 0.0
    %v3061 = vmax.f32 %v2949, 0.0
    %v3062 = vmax.f32 %v2950, 0.0
    %v3063 = vmax.f32 %v2951, 0.0
    %v3064 = vmax.f32 %v2952, 0.0
    %v3065 = vmax.f32 %v2953, 0.0
    %v3066 = vmax.f32 %v2954, 0.0
    %v3067 = vmax.f32 %v2955, 0.0
    %v3068 = vmax.f32 %v2956, 0.0
    %v3069 = vmax.f32 %v2957, 0.0
    %v3070 = vmax.f32 %v2958, 0.0
    %v3071 = vmax.f32 %v2959, 0.0
    %v3072 = vmax.f32 %v2960, 0.0
    %v3073 = vmax.f32 %v2961, 0.0
    %v3074 = vmax.f32 %v2962, 0.0
    %v3075 = vmax.f32 %v2963, 0.0
    %v3076 = vmax.f32 %v2964, 0.0
    %v3077 = vmax.f32 %v2965, 0.0
    %v3078 = vmax.f32 %v2966, 0.0
    %v3079 = vmax.f32 %v2967, 0.0
    %v3080 = vmax.f32 %v2968, 0.0
    %v3081 = vmax.f32 %v2969, 0.0
    %v3082 = vmax.f32 %v2970, 0.0
    %v3083 = vmax.f32 %v2971, 0.0
    %v3084 = vmax.f32 %v2972, 0.0
    %v3085 = vmax.f32 %v2973, 0.0
    %v3086 = vmax.f32 %v2974, 0.0
    %v3087 = vmax.f32 %v2975, 0.0
    %v3088 = vmax.f32 %v2976, 0.0
    %v3089 = vmax.f32 %v2977, 0.0
    %v3090 = vmax.f32 %v2978, 0.0
    %v3091 = vmax.f32 %v2979, 0.0
    %v3092 = vmax.f32 %v2980, 0.0
    %v3093 = vmax.f32 %v2981, 0.0
    %v3094 = vmax.f32 %v2982, 0.0
    %v3095 = vmax.f32 %v2983, 0.0
    %v3096 = vmax.f32 %v2984, 0.0
    %v3097 = vmax.f32 %v2985, 0.0
    %v3098 = vmax.f32 %v2986, 0.0
    %v3099 = vmax.f32 %v2987, 0.0
    %v3100 = vmax.f32 %v2988, 0.0
    %v3101 = vmax.f32 %v2989, 0.0
    %v3102 = vmax.f32 %v2990, 0.0
    %v3103 = vmax.f32 %v2991, 0.0
    %v3104 = vmax.f32 %v2992, 0.0
    %v3105 = vmax.f32 %v2993, 0.0
    %v3106 = vmax.f32 %v2994, 0.0
    %v3107 = vmax.f32 %v2995, 0.0
    %v3108 = vmax.f32 %v2996, 0.0
    %v3109 = vmax.f32 %v2997, 0.0
    %v3110 = vmax.f32 %v2998, 0.0
    %v3111 = vmax.f32 %v2999, 0.0
    %v3112 = vmax.f32 %v3000, 0.0
    %v3113 = vmax.f32 %v3001, 0.0
    %v3114 = vmax.f32 %v3002, 0.0
    %v3115 = vmax.f32 %v3003, 0.0
    %v3116 = vmax.f32 %v3004, 0.0
    %v3117 = vmax.f32 %v3005, 0.0
    %v3118 = vmax.f32 %v3006, 0.0
    %v3119 = vmax.f32 %v3007, 0.0
    %v3120 = vmax.f32 %v3008, 0.0
    %v3121 = vmax.f32 %v3009, 0.0
    %v3122 = vmax.f32 %v3010, 0.0
    %v3123 = vmax.f32 %v3011, 0.0
    %v3124 = vmax.f32 %v3012, 0.0
    %v3125 = vmax.f32 %v3013, 0.0
    %v3126 = vmax.f32 %v3014, 0.0
    %v3127 = vmax.f32 %v3015, 0.0
    %v3128 = vmax.f32 %v3016, 0.0
    %v3129 = vmax.f32 %v3017, 0.0
    %v3130 = vmax.f32 %v3018, %v3022
    %v3131 = vmax.f32 %v3019, %v3023
    %v3132 = vmax.f32 %v3020, %v3024
    %v3133 = vmax.f32 %v3021, %v3025
    %v3134 = vmax.f32 %v3026, %v3030
    %v3135 = vmax.f32 %v3027, %v3031
    %v3136 = vmax.f32 %v3028, %v3032
    %v3137 = vmax.f32 %v3029, %v3033
    %v3138 = vmax.f32 %v3034, %v3038
    %v3139 = vmax.f32 %v3035, %v3039
    %v3140 = vmax.f32 %v3036, %v3040
    %v3141 = vmax.f32 %v3037, %v3041
    %v3142 = vmax.f32 %v3042, %v3046
    %v3143 = vmax.f32 %v3043, %v3047
    %v3144 = vmax.f32 %v3044, %v3048
    %v3145 = vmax.f32 %v3045, %v3049
    %v3146 = vmax.f32 %v3050, %v3054
    %v3147 = vmax.f32 %v3051, %v3055
    %v3148 = vmax.f32 %v3052, %v3056
    %v3149 = vmax.f32 %v3053, %v3057
    %v3150 = vmax.f32 %v3058, %v3062
    %v3151 = vmax.f32 %v3059, %v3063
    %v3152 = vmax.f32 %v3060, %v3064
    %v3153 = vmax.f32 %v3061, %v3065
    %v3154 = vmax.f32 %v3066, %v3070
    %v3155 = vmax.f32 %v3067, %v3071
    %v3156 = vmax.f32 %v3068, %v3072
    %v3157 = vmax.f32 %v3069, %v3073
    %v3158 = vmax.f32 %v3074, %v3078
    %v3159 = vmax.f32 %v3075, %v3079
    %v3160 = vmax.f32 %v3076, %v3080
    %v3161 = vmax.f32 %v3077, %v3081
    %v3162 = vmax.f32 %v3082, %v3086
    %v3163 = vmax.f32 %v3083, %v3087
    %v3164 = vmax.f32 %v3084, %v3088
    %v3165 = vmax.f32 %v3085, %v3089
    %v3166 = vmax.f32 %v3090, %v3094
    %v3167 = vmax.f32 %v3091, %v3095
    %v3168 = vmax.f32 %v3092, %v3096
    %v3169 = vmax.f32 %v3093, %v3097
    %v3170 = vmax.f32 %v3098, %v3102
    %v3171 = vmax.f32 %v3099, %v3103
    %v3172 = vmax.f32 %v3100, %v3104
    %v3173 = vmax.f32 %v3101, %v3105
    %v3174 = vmax.f32 %v3106, %v3110
    %v3175 = vmax.f32 %v3107, %v3111
    %v3176 = vmax.f32 %v3108, %v3112
    %v3177 = vmax.f32 %v3109, %v3113
    %v3178 = vmax.f32 %v3114, %v3118
    %v3179 = vmax.f32 %v3115, %v3119
    %v3180 = vmax.f32 %v3116, %v3120
    %v3181 = vmax.f32 %v3117, %v3121
    %v3182 = vmax.f32 %v3122, %v3126
    %v3183 = vmax.f32 %v3123, %v3127
    %v3184 = vmax.f32 %v3124, %v3128
    %v3185 = vmax.f32 %v3125, %v3129
    %v3186 = vpack.c.bf16 %v3132, %v3130
    %v3187 = vpack.c.bf16 %v3133, %v3131
    %v3188 = vpack.c.bf16 %v3136, %v3134
    %v3189 = vpack.c.bf16 %v3137, %v3135
    %v3190 = vpack.c.bf16 %v3140, %v3138
    %v3191 = vpack.c.bf16 %v3141, %v3139
    %v3192 = vpack.c.bf16 %v3144, %v3142
    %v3193 = vpack.c.bf16 %v3145, %v3143
    %v3194 = vpack.c.bf16 %v3148, %v3146
    %v3195 = vpack.c.bf16 %v3149, %v3147
    %v3196 = vpack.c.bf16 %v3152, %v3150
    %v3197 = vpack.c.bf16 %v3153, %v3151
    %v3198 = vpack.c.bf16 %v3156, %v3154
    %v3199 = vpack.c.bf16 %v3157, %v3155
    %v3200 = vpack.c.bf16 %v3160, %v3158
    %v3201 = vpack.c.bf16 %v3161, %v3159
    %v3202 = vpack.c.bf16 %v3164, %v3162
    %v3203 = vpack.c.bf16 %v3165, %v3163
    %v3204 = vpack.c.bf16 %v3168, %v3166
    %v3205 = vpack.c.bf16 %v3169, %v3167
    %v3206 = vpack.c.bf16 %v3172, %v3170
    %v3207 = vpack.c.bf16 %v3173, %v3171
    %v3208 = vpack.c.bf16 %v3176, %v3174
    %v3209 = vpack.c.bf16 %v3177, %v3175
    %v3210 = vpack.c.bf16 %v3180, %v3178
    %v3211 = vpack.c.bf16 %v3181, %v3179
    %v3212 = vpack.c.bf16 %v3184, %v3182
    %v3213 = vpack.c.bf16 %v3185, %v3183
    %v3214 = vld [vmem:[#allocation8] sm:$0xf]
    %v3215 = vld [vmem:[#allocation8 + $0x4] sm:$0xf]
    %v3216 = vld [vmem:[#allocation8 + $0x8] sm:$0xf]
    %v3217 = vld [vmem:[#allocation8 + $0xc] sm:$0xf]
    %v3218 = vld [vmem:[#allocation8 + $0x10] sm:$0xf]
    %v3219 = vld [vmem:[#allocation8 + $0x14] sm:$0xf]
    %v3220 = vld [vmem:[#allocation8 + $0x18] sm:$0xf]
    %v3221 = vld [vmem:[#allocation8 + $0x1c] sm:$0xf]
    %v3222 = vld [vmem:[#allocation8 + $0x20] sm:$0xf]
    %v3223 = vld [vmem:[#allocation8 + $0x24] sm:$0xf]
    %v3224 = vld [vmem:[#allocation8 + $0x28] sm:$0xf]
    %v3225 = vld [vmem:[#allocation8 + $0x2c] sm:$0xf]
    %v3226 = vld [vmem:[#allocation8 + $0x30] sm:$0xf]
    %v3227 = vld [vmem:[#allocation8 + $0x34] sm:$0xf]
    %v3228 = vld [vmem:[#allocation8 + $0x38] sm:$0xf]
    %v3229 = vld [vmem:[#allocation8 + $0x3c] sm:$0xf]
    %v3230 = vld [vmem:[#allocation8 + $0x40] sm:$0xf]
    %v3231 = vld [vmem:[#allocation8 + $0x44] sm:$0xf]
    %v3232 = vld [vmem:[#allocation8 + $0x48] sm:$0xf]
    %v3233 = vld [vmem:[#allocation8 + $0x4c] sm:$0xf]
    %v3234 = vld [vmem:[#allocation8 + $0x50] sm:$0xf]
    %v3256 = vunpack.c.l.b16 %v3214
    %v3257 = vunpack.c.l.b16 %v3215
    %v3258 = vunpack.c.l.b16 %v3216
    %v3259 = vunpack.c.l.b16 %v3217
    %v3260 = vunpack.c.l.b16 %v3218
    %v3261 = vunpack.c.l.b16 %v3219
    %v3262 = vunpack.c.l.b16 %v3220
    %v3263 = vunpack.c.l.b16 %v3221
    %v3264 = vunpack.c.l.b16 %v3222
    %v3265 = vunpack.c.l.b16 %v3223
    %v3266 = vunpack.c.l.b16 %v3224
    %v3267 = vunpack.c.l.b16 %v3225
    %v3268 = vunpack.c.l.b16 %v3226
    %v3269 = vunpack.c.l.b16 %v3227
    %v3270 = vunpack.c.l.b16 %v3228
    %v3271 = vunpack.c.l.b16 %v3229
    %v3272 = vunpack.c.l.b16 %v3230
    %v3273 = vunpack.c.l.b16 %v3231
    %v3274 = vunpack.c.l.b16 %v3232
    %v3275 = vunpack.c.l.b16 %v3233
    %v3276 = vunpack.c.l.b16 %v3234
    %v3277 = vpack.c.b16 %v3257, %v3256
    %v3278 = vpack.c.b16 %v3259, %v3258
    %v3279 = vpack.c.b16 %v3261, %v3260
    %v3280 = vpack.c.b16 %v3263, %v3262
    %v3281 = vpack.c.b16 %v3265, %v3264
    %v3282 = vpack.c.b16 %v3267, %v3266
    %v3283 = vpack.c.b16 %v3269, %v3268
    %v3284 = vpack.c.b16 %v3271, %v3270
    %v3285 = vpack.c.b16 %v3273, %v3272
    %v3286 = vpack.c.b16 %v3275, %v3274
    %v3287 = vpack.c.b16 %v3276, %v3276
    %vm3298 = vcmask 326656
    %v3300 = vsel %vm3298, %v3187, 0
    %v3303 = vsel %vm3298, %v3189, 0
    %v3306 = vsel %vm3298, %v3191, 0
    %v3309 = vsel %vm3298, %v3193, 0
    %v3312 = vsel %vm3298, %v3195, 0
    %v3315 = vsel %vm3298, %v3197, 0
    %v3318 = vsel %vm3298, %v3199, 0
    %v3321 = vsel %vm3298, %v3201, 0
    %v3324 = vsel %vm3298, %v3203, 0
    %v3327 = vsel %vm3298, %v3205, 0
    %v3330 = vsel %vm3298, %v3207, 0
    %v3333 = vsel %vm3298, %v3209, 0
    %v3336 = vsel %vm3298, %v3211, 0
    %v3339 = vsel %vm3298, %v3213, 0
    %vm3341 = vcmask 1043456
    %v3343 = vsel %vm3341, %v3287, 0
    %3345 = vmatprep.subr.bf16.mxu0 0
    %3346 = vmatpush1.bf16.msra.mxu0 %v3277
    %3347 = vmatprep.subr.bf16.mxu0 0
    %3348 = vmatpush1.bf16.msra.mxu0 %v3278
    %3349 = vmatprep.subr.bf16.mxu0 0
    %3350 = vmatpush1.bf16.msra.mxu0 %v3279
    %3351 = vmatprep.subr.bf16.mxu0 0
    %3352 = vmatpush1.bf16.msra.mxu0 %v3280
    %3353 = vmatprep.subr.bf16.mxu0 0
    %3354 = vmatpush1.bf16.msra.mxu0 %v3281
    %3355 = vmatprep.subr.bf16.mxu0 0
    %3356 = vmatpush1.bf16.msra.mxu0 %v3282
    %3357 = vmatprep.subr.bf16.mxu0 0
    %3358 = vmatpush1.bf16.msra.mxu0 %v3283
    %3359 = vmatprep.subr.bf16.mxu0 0
    %3360 = vmatpush1.bf16.msra.mxu0 %v3284
    %3361 = vmatprep.subr.bf16.mxu0 0
    %3362 = vmatpush1.bf16.msra.mxu0 %v3285
    %3363 = vmatprep.subr.bf16.mxu0 0
    %3364 = vmatpush1.bf16.msra.mxu0 %v3286
    %3365 = vmatprep.subr.bf16.mxu0 0
    %3366 = vmatpush1.bf16.msra.mxu0 %v3343
    %3367 = vmatprep.subr.bf16.mxu0 0
    %3368 = vmatpush1.bf16.msra.mxu0 0
    %3369 = vmatprep.subr.bf16.mxu0 0
    %3370 = vmatpush1.bf16.msra.mxu0 0
    %3371 = vmatprep.subr.bf16.mxu0 0
    %3372 = vmatpush1.bf16.msra.mxu0 0
    %3373 = vmatprep.subr.bf16.mxu0 0
    %3374 = vmatpush1.bf16.msra.mxu0 0
    %3375 = vmatprep.subr.bf16.mxu0 0
    %3376 = vmatpush1.bf16.msra.mxu0 0
    %3377 = vmatprep.mubr.bf16.mxu0 %v3300
    %3378 = vmatmul.mubr.bf16.gmra.mrb[0].mxu0 %v3186
    %v3379 = vpop.f32.mrb[0].mxu0
    %v3380 = vadd.f32 0.0, %v3379
    %v3381 = vpop.f32.mrb[0].mxu0
    %v3382 = vpop.f32.mrb[0].mxu0
    %v3383 = vadd.f32 0.0, %v3382
    %v3384 = vpop.f32.mrb[0].mxu0
    %3385 = vmatprep.mubr.bf16.mxu0 %v3303
    %3386 = vmatmul.mubr.bf16.gmra.mrb[0].mxu0 %v3188
    %v3387 = vpop.f32.mrb[0].mxu0
    %v3388 = vadd.f32 0.0, %v3387
    %v3389 = vpop.f32.mrb[0].mxu0
    %v3390 = vpop.f32.mrb[0].mxu0
    %v3391 = vadd.f32 0.0, %v3390
    %v3392 = vpop.f32.mrb[0].mxu0
    %3393 = vmatprep.mubr.bf16.mxu0 %v3306
    %3394 = vmatmul.mubr.bf16.gmra.mrb[0].mxu0 %v3190
    %v3395 = vpop.f32.mrb[0].mxu0
    %v3396 = vadd.f32 0.0, %v3395
    %v3397 = vpop.f32.mrb[0].mxu0
    %v3398 = vpop.f32.mrb[0].mxu0
    %v3399 = vadd.f32 0.0, %v3398
    %v3400 = vpop.f32.mrb[0].mxu0
    %3401 = vmatprep.mubr.bf16.mxu0 %v3309
    %3402 = vmatmul.mubr.bf16.gmra.mrb[0].mxu0 %v3192
    %v3403 = vpop.f32.mrb[0].mxu0
    %v3404 = vadd.f32 0.0, %v3403
    %v3405 = vpop.f32.mrb[0].mxu0
    %v3406 = vpop.f32.mrb[0].mxu0
    %v3407 = vadd.f32 0.0, %v3406
    %v3408 = vpop.f32.mrb[0].mxu0
    %3409 = vmatprep.mubr.bf16.mxu0 %v3312
    %3410 = vmatmul.mubr.bf16.gmra.mrb[0].mxu0 %v3194
    %v3411 = vpop.f32.mrb[0].mxu0
    %v3412 = vadd.f32 0.0, %v3411
    %v3413 = vpop.f32.mrb[0].mxu0
    %v3414 = vpop.f32.mrb[0].mxu0
    %v3415 = vadd.f32 0.0, %v3414
    %v3416 = vpop.f32.mrb[0].mxu0
    %3417 = vmatprep.mubr.bf16.mxu0 %v3315
    %3418 = vmatmul.mubr.bf16.gmra.mrb[0].mxu0 %v3196
    %v3419 = vpop.f32.mrb[0].mxu0
    %v3420 = vadd.f32 0.0, %v3419
    %v3421 = vpop.f32.mrb[0].mxu0
    %v3422 = vpop.f32.mrb[0].mxu0
    %v3423 = vadd.f32 0.0, %v3422
    %v3424 = vpop.f32.mrb[0].mxu0
    %3425 = vmatprep.mubr.bf16.mxu0 %v3318
    %3426 = vmatmul.mubr.bf16.gmra.mrb[0].mxu0 %v3198
    %v3427 = vpop.f32.mrb[0].mxu0
    %v3428 = vadd.f32 0.0, %v3427
    %v3429 = vpop.f32.mrb[0].mxu0
    %v3430 = vpop.f32.mrb[0].mxu0
    %v3431 = vadd.f32 0.0, %v3430
    %v3432 = vpop.f32.mrb[0].mxu0
    %3433 = vmatprep.mubr.bf16.mxu0 %v3321
    %3434 = vmatmul.mubr.bf16.gmra.mrb[0].mxu0 %v3200
    %v3435 = vpop.f32.mrb[0].mxu0
    %v3436 = vadd.f32 0.0, %v3435
    %v3437 = vpop.f32.mrb[0].mxu0
    %v3438 = vpop.f32.mrb[0].mxu0
    %v3439 = vadd.f32 0.0, %v3438
    %v3440 = vpop.f32.mrb[0].mxu0
    %3441 = vmatprep.mubr.bf16.mxu0 %v3324
    %3442 = vmatmul.mubr.bf16.gmra.mrb[0].mxu0 %v3202
    %v3443 = vpop.f32.mrb[0].mxu0
    %v3444 = vadd.f32 0.0, %v3443
    %v3445 = vpop.f32.mrb[0].mxu0
    %v3446 = vpop.f32.mrb[0].mxu0
    %v3447 = vadd.f32 0.0, %v3446
    %v3448 = vpop.f32.mrb[0].mxu0
    %3449 = vmatprep.mubr.bf16.mxu0 %v3327
    %3450 = vmatmul.mubr.bf16.gmra.mrb[0].mxu0 %v3204
    %v3451 = vpop.f32.mrb[0].mxu0
    %v3452 = vadd.f32 0.0, %v3451
    %v3453 = vpop.f32.mrb[0].mxu0
    %v3454 = vpop.f32.mrb[0].mxu0
    %v3455 = vadd.f32 0.0, %v3454
    %v3456 = vpop.f32.mrb[0].mxu0
    %3457 = vmatprep.mubr.bf16.mxu0 %v3330
    %3458 = vmatmul.mubr.bf16.gmra.mrb[0].mxu0 %v3206
    %v3459 = vpop.f32.mrb[0].mxu0
    %v3460 = vadd.f32 0.0, %v3459
    %v3461 = vpop.f32.mrb[0].mxu0
    %v3462 = vpop.f32.mrb[0].mxu0
    %v3463 = vadd.f32 0.0, %v3462
    %v3464 = vpop.f32.mrb[0].mxu0
    %3465 = vmatprep.mubr.bf16.mxu0 %v3333
    %3466 = vmatmul.mubr.bf16.gmra.mrb[0].mxu0 %v3208
    %v3467 = vpop.f32.mrb[0].mxu0
    %v3468 = vadd.f32 0.0, %v3467
    %v3469 = vpop.f32.mrb[0].mxu0
    %v3470 = vpop.f32.mrb[0].mxu0
    %v3471 = vadd.f32 0.0, %v3470
    %v3472 = vpop.f32.mrb[0].mxu0
    %3473 = vmatprep.mubr.bf16.mxu0 %v3336
    %3474 = vmatmul.mubr.bf16.gmra.mrb[0].mxu0 %v3210
    %v3475 = vpop.f32.mrb[0].mxu0
    %v3476 = vadd.f32 0.0, %v3475
    %v3477 = vpop.f32.mrb[0].mxu0
    %v3478 = vpop.f32.mrb[0].mxu0
    %v3479 = vadd.f32 0.0, %v3478
    %v3480 = vpop.f32.mrb[0].mxu0
    %3481 = vmatprep.mubr.bf16.mxu0 %v3339
    %3482 = vmatmul.mubr.bf16.gmra.mrb[0].mxu0 %v3212
    %v3483 = vpop.f32.mrb[0].mxu0
    %v3484 = vadd.f32 0.0, %v3483
    %v3485 = vpop.f32.mrb[0].mxu0
    %v3486 = vpop.f32.mrb[0].mxu0
    %v3487 = vadd.f32 0.0, %v3486
    %v3488 = vpop.f32.mrb[0].mxu0
    %3489 = vdwg.mxu0
    %s3490 = scalar_lea.vmem [#allocation8], 84
    %v3491 = vld [vmem:[%s3490] sm:$0xf]
    %v3492 = vld [vmem:[%s3490 + $0x4] sm:$0xf]
    %v3493 = vld [vmem:[%s3490 + $0x8] sm:$0xf]
    %v3494 = vld [vmem:[%s3490 + $0xc] sm:$0xf]
    %v3495 = vld [vmem:[%s3490 + $0x10] sm:$0xf]
    %v3496 = vld [vmem:[%s3490 + $0x14] sm:$0xf]
    %v3497 = vld [vmem:[%s3490 + $0x18] sm:$0xf]
    %v3498 = vld [vmem:[%s3490 + $0x1c] sm:$0xf]
    %v3499 = vld [vmem:[%s3490 + $0x20] sm:$0xf]
    %v3500 = vld [vmem:[%s3490 + $0x24] sm:$0xf]
    %v3501 = vld [vmem:[%s3490 + $0x28] sm:$0xf]
    %v3502 = vld [vmem:[%s3490 + $0x2c] sm:$0xf]
    %v3503 = vld [vmem:[%s3490 + $0x30] sm:$0xf]
    %v3504 = vld [vmem:[%s3490 + $0x34] sm:$0xf]
    %v3505 = vld [vmem:[%s3490 + $0x38] sm:$0xf]
    %v3506 = vld [vmem:[%s3490 + $0x3c] sm:$0xf]
    %v3507 = vld [vmem:[%s3490 + $0x40] sm:$0xf]
    %v3508 = vld [vmem:[%s3490 + $0x44] sm:$0xf]
    %v3509 = vld [vmem:[%s3490 + $0x48] sm:$0xf]
    %v3510 = vld [vmem:[%s3490 + $0x4c] sm:$0xf]
    %v3511 = vld [vmem:[%s3490 + $0x50] sm:$0xf]
    %v3533 = vunpack.c.l.b16 %v3491
    %v3534 = vunpack.c.l.b16 %v3492
    %v3535 = vunpack.c.l.b16 %v3493
    %v3536 = vunpack.c.l.b16 %v3494
    %v3537 = vunpack.c.l.b16 %v3495
    %v3538 = vunpack.c.l.b16 %v3496
    %v3539 = vunpack.c.l.b16 %v3497
    %v3540 = vunpack.c.l.b16 %v3498
    %v3541 = vunpack.c.l.b16 %v3499
    %v3542 = vunpack.c.l.b16 %v3500
    %v3543 = vunpack.c.l.b16 %v3501
    %v3544 = vunpack.c.l.b16 %v3502
    %v3545 = vunpack.c.l.b16 %v3503
    %v3546 = vunpack.c.l.b16 %v3504
    %v3547 = vunpack.c.l.b16 %v3505
    %v3548 = vunpack.c.l.b16 %v3506
    %v3549 = vunpack.c.l.b16 %v3507
    %v3550 = vunpack.c.l.b16 %v3508
    %v3551 = vunpack.c.l.b16 %v3509
    %v3552 = vunpack.c.l.b16 %v3510
    %v3553 = vunpack.c.l.b16 %v3511
    %v3554 = vpack.c.b16 %v3534, %v3533
    %v3555 = vpack.c.b16 %v3536, %v3535
    %v3556 = vpack.c.b16 %v3538, %v3537
    %v3557 = vpack.c.b16 %v3540, %v3539
    %v3558 = vpack.c.b16 %v3542, %v3541
    %v3559 = vpack.c.b16 %v3544, %v3543
    %v3560 = vpack.c.b16 %v3546, %v3545
    %v3561 = vpack.c.b16 %v3548, %v3547
    %v3562 = vpack.c.b16 %v3550, %v3549
    %v3563 = vpack.c.b16 %v3552, %v3551
    %v3564 = vpack.c.b16 %v3553, %v3553
    %v3576 = vsel %vm3341, %v3564, 0
    %3578 = vmatprep.subr.bf16.mxu0 0
    %3579 = vmatpush1.bf16.msra.mxu0 %v3554
    %3580 = vmatprep.subr.bf16.mxu0 0
    %3581 = vmatpush1.bf16.msra.mxu0 %v3555
    %3582 = vmatprep.subr.bf16.mxu0 0
    %3583 = vmatpush1.bf16.msra.mxu0 %v3556
    %3584 = vmatprep.subr.bf16.mxu0 0
    %3585 = vmatpush1.bf16.msra.mxu0 %v3557
    %3586 = vmatprep.subr.bf16.mxu0 0
    %3587 = vmatpush1.bf16.msra.mxu0 %v3558
    %3588 = vmatprep.subr.bf16.mxu0 0
    %3589 = vmatpush1.bf16.msra.mxu0 %v3559
    %3590 = vmatprep.subr.bf16.mxu0 0
    %3591 = vmatpush1.bf16.msra.mxu0 %v3560
    %3592 = vmatprep.subr.bf16.mxu0 0
    %3593 = vmatpush1.bf16.msra.mxu0 %v3561
    %3594 = vmatprep.subr.bf16.mxu0 0
    %3595 = vmatpush1.bf16.msra.mxu0 %v3562
    %3596 = vmatprep.subr.bf16.mxu0 0
    %3597 = vmatpush1.bf16.msra.mxu0 %v3563
    %3598 = vmatprep.subr.bf16.mxu0 0
    %3599 = vmatpush1.bf16.msra.mxu0 %v3576
    %3600 = vmatprep.subr.bf16.mxu0 0
    %3601 = vmatpush1.bf16.msra.mxu0 0
    %3602 = vmatprep.subr.bf16.mxu0 0
    %3603 = vmatpush1.bf16.msra.mxu0 0
    %3604 = vmatprep.subr.bf16.mxu0 0
    %3605 = vmatpush1.bf16.msra.mxu0 0
    %3606 = vmatprep.subr.bf16.mxu0 0
    %3607 = vmatpush1.bf16.msra.mxu0 0
    %3608 = vmatprep.subr.bf16.mxu0 0
    %3609 = vmatpush1.bf16.msra.mxu0 0
    %3610 = vmatprep.mubr.bf16.mxu0 %v3300
    %3611 = vmatmul.mubr.bf16.gmra.mrb[0].mxu0 %v3186
    %v3612 = vpop.f32.mrb[0].mxu0
    %v3613 = vadd.f32 0.0, %v3612
    %v3614 = vpop.f32.mrb[0].mxu0
    %v3615 = vpop.f32.mrb[0].mxu0
    %v3616 = vadd.f32 0.0, %v3615
    %v3617 = vpop.f32.mrb[0].mxu0
    %3618 = vmatprep.mubr.bf16.mxu0 %v3303
    %3619 = vmatmul.mubr.bf16.gmra.mrb[0].mxu0 %v3188
    %v3620 = vpop.f32.mrb[0].mxu0
    %v3621 = vadd.f32 0.0, %v3620
    %v3622 = vpop.f32.mrb[0].mxu0
    %v3623 = vpop.f32.mrb[0].mxu0
    %v3624 = vadd.f32 0.0, %v3623
    %v3625 = vpop.f32.mrb[0].mxu0
    %3626 = vmatprep.mubr.bf16.mxu0 %v3306
    %3627 = vmatmul.mubr.bf16.gmra.mrb[0].mxu0 %v3190
    %v3628 = vpop.f32.mrb[0].mxu0
    %v3629 = vadd.f32 0.0, %v3628
    %v3630 = vpop.f32.mrb[0].mxu0
    %v3631 = vpop.f32.mrb[0].mxu0
    %v3632 = vadd.f32 0.0, %v3631
    %v3633 = vpop.f32.mrb[0].mxu0
    %3634 = vmatprep.mubr.bf16.mxu0 %v3309
    %3635 = vmatmul.mubr.bf16.gmra.mrb[0].mxu0 %v3192
    %v3636 = vpop.f32.mrb[0].mxu0
    %v3637 = vadd.f32 0.0, %v3636
    %v3638 = vpop.f32.mrb[0].mxu0
    %v3639 = vpop.f32.mrb[0].mxu0
    %v3640 = vadd.f32 0.0, %v3639
    %v3641 = vpop.f32.mrb[0].mxu0
    %3642 = vmatprep.mubr.bf16.mxu0 %v3312
    %3643 = vmatmul.mubr.bf16.gmra.mrb[0].mxu0 %v3194
    %v3644 = vpop.f32.mrb[0].mxu0
    %v3645 = vadd.f32 0.0, %v3644
    %v3646 = vpop.f32.mrb[0].mxu0
    %v3647 = vpop.f32.mrb[0].mxu0
    %v3648 = vadd.f32 0.0, %v3647
    %v3649 = vpop.f32.mrb[0].mxu0
    %3650 = vmatprep.mubr.bf16.mxu0 %v3315
    %3651 = vmatmul.mubr.bf16.gmra.mrb[0].mxu0 %v3196
    %v3652 = vpop.f32.mrb[0].mxu0
    %v3653 = vadd.f32 0.0, %v3652
    %v3654 = vpop.f32.mrb[0].mxu0
    %v3655 = vpop.f32.mrb[0].mxu0
    %v3656 = vadd.f32 0.0, %v3655
    %v3657 = vpop.f32.mrb[0].mxu0
    %3658 = vmatprep.mubr.bf16.mxu0 %v3318
    %3659 = vmatmul.mubr.bf16.gmra.mrb[0].mxu0 %v3198
    %v3660 = vpop.f32.mrb[0].mxu0
    %v3661 = vadd.f32 0.0, %v3660
    %v3662 = vpop.f32.mrb[0].mxu0
    %v3663 = vpop.f32.mrb[0].mxu0
    %v3664 = vadd.f32 0.0, %v3663
    %v3665 = vpop.f32.mrb[0].mxu0
    %3666 = vmatprep.mubr.bf16.mxu0 %v3321
    %3667 = vmatmul.mubr.bf16.gmra.mrb[0].mxu0 %v3200
    %v3668 = vpop.f32.mrb[0].mxu0
    %v3669 = vadd.f32 0.0, %v3668
    %v3670 = vpop.f32.mrb[0].mxu0
    %v3671 = vpop.f32.mrb[0].mxu0
    %v3672 = vadd.f32 0.0, %v3671
    %v3673 = vpop.f32.mrb[0].mxu0
    %3674 = vmatprep.mubr.bf16.mxu0 %v3324
    %3675 = vmatmul.mubr.bf16.gmra.mrb[0].mxu0 %v3202
    %v3676 = vpop.f32.mrb[0].mxu0
    %v3677 = vadd.f32 0.0, %v3676
    %v3678 = vpop.f32.mrb[0].mxu0
    %v3679 = vpop.f32.mrb[0].mxu0
    %v3680 = vadd.f32 0.0, %v3679
    %v3681 = vpop.f32.mrb[0].mxu0
    %3682 = vmatprep.mubr.bf16.mxu0 %v3327
    %3683 = vmatmul.mubr.bf16.gmra.mrb[0].mxu0 %v3204
    %v3684 = vpop.f32.mrb[0].mxu0
    %v3685 = vadd.f32 0.0, %v3684
    %v3686 = vpop.f32.mrb[0].mxu0
    %v3687 = vpop.f32.mrb[0].mxu0
    %v3688 = vadd.f32 0.0, %v3687
    %v3689 = vpop.f32.mrb[0].mxu0
    %3690 = vmatprep.mubr.bf16.mxu0 %v3330
    %3691 = vmatmul.mubr.bf16.gmra.mrb[0].mxu0 %v3206
    %v3692 = vpop.f32.mrb[0].mxu0
    %v3693 = vadd.f32 0.0, %v3692
    %v3694 = vpop.f32.mrb[0].mxu0
    %v3695 = vpop.f32.mrb[0].mxu0
    %v3696 = vadd.f32 0.0, %v3695
    %v3697 = vpop.f32.mrb[0].mxu0
    %3698 = vmatprep.mubr.bf16.mxu0 %v3333
    %3699 = vmatmul.mubr.bf16.gmra.mrb[0].mxu0 %v3208
    %v3700 = vpop.f32.mrb[0].mxu0
    %v3701 = vadd.f32 0.0, %v3700
    %v3702 = vpop.f32.mrb[0].mxu0
    %v3703 = vpop.f32.mrb[0].mxu0
    %v3704 = vadd.f32 0.0, %v3703
    %v3705 = vpop.f32.mrb[0].mxu0
    %3706 = vmatprep.mubr.bf16.mxu0 %v3336
    %3707 = vmatmul.mubr.bf16.gmra.mrb[0].mxu0 %v3210
    %v3708 = vpop.f32.mrb[0].mxu0
    %v3709 = vadd.f32 0.0, %v3708
    %v3710 = vpop.f32.mrb[0].mxu0
    %v3711 = vpop.f32.mrb[0].mxu0
    %v3712 = vadd.f32 0.0, %v3711
    %v3713 = vpop.f32.mrb[0].mxu0
    %3714 = vmatprep.mubr.bf16.mxu0 %v3339
    %3715 = vmatmul.mubr.bf16.gmra.mrb[0].mxu0 %v3212
    %v3716 = vpop.f32.mrb[0].mxu0
    %v3717 = vadd.f32 0.0, %v3716
    %v3718 = vpop.f32.mrb[0].mxu0
    %v3719 = vpop.f32.mrb[0].mxu0
    %v3720 = vadd.f32 0.0, %v3719
    %v3721 = vpop.f32.mrb[0].mxu0
    %3722 = vdwg.mxu0
    %v3723 = vmax.f32 %v3380, %v3613
    %v3724 = vmax.f32 %v3383, %v3616
    %v3725 = vmax.f32 %v3388, %v3621
    %v3726 = vmax.f32 %v3391, %v3624
    %v3727 = vmax.f32 %v3396, %v3629
    %v3728 = vmax.f32 %v3399, %v3632
    %v3729 = vmax.f32 %v3404, %v3637
    %v3730 = vmax.f32 %v3407, %v3640
    %v3731 = vmax.f32 %v3412, %v3645
    %v3732 = vmax.f32 %v3415, %v3648
    %v3733 = vmax.f32 %v3420, %v3653
    %v3734 = vmax.f32 %v3423, %v3656
    %v3735 = vmax.f32 %v3428, %v3661
    %v3736 = vmax.f32 %v3431, %v3664
    %v3737 = vmax.f32 %v3436, %v3669
    %v3738 = vmax.f32 %v3439, %v3672
    %v3739 = vmax.f32 %v3444, %v3677
    %v3740 = vmax.f32 %v3447, %v3680
    %v3741 = vmax.f32 %v3452, %v3685
    %v3742 = vmax.f32 %v3455, %v3688
    %v3743 = vmax.f32 %v3460, %v3693
    %v3744 = vmax.f32 %v3463, %v3696
    %v3745 = vmax.f32 %v3468, %v3701
    %v3746 = vmax.f32 %v3471, %v3704
    %v3747 = vmax.f32 %v3476, %v3709
    %v3748 = vmax.f32 %v3479, %v3712
    %v3749 = vmax.f32 %v3484, %v3717
    %v3750 = vmax.f32 %v3487, %v3720
    %v3751 = vpack.c.bf16 %v3724, %v3723
    %v3752 = vpack.c.bf16 %v3726, %v3725
    %v3753 = vpack.c.bf16 %v3728, %v3727
    %v3754 = vpack.c.bf16 %v3730, %v3729
    %v3755 = vpack.c.bf16 %v3732, %v3731
    %v3756 = vpack.c.bf16 %v3734, %v3733
    %v3757 = vpack.c.bf16 %v3736, %v3735
    %v3758 = vpack.c.bf16 %v3738, %v3737
    %v3759 = vpack.c.bf16 %v3740, %v3739
    %v3760 = vpack.c.bf16 %v3742, %v3741
    %v3761 = vpack.c.bf16 %v3744, %v3743
    %v3762 = vpack.c.bf16 %v3746, %v3745
    %v3763 = vpack.c.bf16 %v3748, %v3747
    %v3764 = vpack.c.bf16 %v3750, %v3749
    %3765 = vst.msk [vmem:[#allocation3 + $0x10] sm:$0xff] %vm139, %v3751
    %3766 = vst.msk [vmem:[#allocation3 + $0x18] sm:$0xff] %vm139, %v3752
    %3767 = vst.msk [vmem:[#allocation3 + $0x20] sm:$0xff] %vm139, %v3753
    %3768 = vst.msk [vmem:[#allocation3 + $0x28] sm:$0xff] %vm139, %v3754
    %3769 = vst.msk [vmem:[#allocation3 + $0x30] sm:$0xff] %vm139, %v3755
    %3770 = vst.msk [vmem:[#allocation3 + $0x38] sm:$0xff] %vm139, %v3756
    %3771 = vst.msk [vmem:[#allocation3 + $0x40] sm:$0xff] %vm139, %v3757
    %3772 = vst.msk [vmem:[#allocation3 + $0x48] sm:$0xff] %vm139, %v3758
    %3773 = vst.msk [vmem:[#allocation3 + $0x50] sm:$0xff] %vm139, %v3759
    %3774 = vst.msk [vmem:[#allocation3 + $0x58] sm:$0xff] %vm139, %v3760
    %3775 = vst.msk [vmem:[#allocation3 + $0x60] sm:$0xff] %vm139, %v3761
    %3776 = vst.msk [vmem:[#allocation3 + $0x68] sm:$0xff] %vm139, %v3762
    %3777 = vst.msk [vmem:[#allocation3 + $0x70] sm:$0xff] %vm139, %v3763
    %3778 = vst.msk [vmem:[#allocation3 + $0x78] sm:$0xff] %vm139, %v3764
    %v3779 = vld [vmem:[#allocation3] sm:$0xff]
    %v3780 = vld [vmem:[#allocation3 + $0x8] sm:$0xff]
    %v3781 = vld [vmem:[#allocation3 + $0x10] sm:$0xff]
    %v3782 = vld [vmem:[#allocation3 + $0x18] sm:$0xff]
    %v3783 = vld [vmem:[#allocation3 + $0x20] sm:$0xff]
    %v3784 = vld [vmem:[#allocation3 + $0x28] sm:$0xff]
    %v3785 = vld [vmem:[#allocation3 + $0x30] sm:$0xff]
    %v3786 = vld [vmem:[#allocation3 + $0x38] sm:$0xff]
    %v3787 = vld [vmem:[#allocation3 + $0x40] sm:$0xff]
    %v3788 = vld [vmem:[#allocation3 + $0x48] sm:$0xff]
    %v3789 = vld [vmem:[#allocation3 + $0x50] sm:$0xff]
    %v3790 = vld [vmem:[#allocation3 + $0x58] sm:$0xff]
    %v3791 = vld [vmem:[#allocation3 + $0x60] sm:$0xff]
    %v3792 = vld [vmem:[#allocation3 + $0x68] sm:$0xff]
    %v3793 = vld [vmem:[#allocation9] sm:$0xff]
    %v3794 = vld [vmem:[#allocation9 + $0x8] sm:$0xff]
    %v3795 = vld [vmem:[#allocation9 + $0x10] sm:$0xff]
    %v3796 = vld [vmem:[#allocation9 + $0x18] sm:$0xff]
    %v3797 = vld [vmem:[#allocation9 + $0x20] sm:$0xff]
    %v3798 = vld [vmem:[#allocation9 + $0x28] sm:$0xff]
    %v3799 = vld [vmem:[#allocation9 + $0x30] sm:$0xff]
    %v3800 = vld [vmem:[#allocation9 + $0x38] sm:$0xff]
    %v3801 = vld [vmem:[#allocation9 + $0x40] sm:$0xff]
    %v3802 = vld [vmem:[#allocation9 + $0x48] sm:$0xff]
    %v3803 = vld [vmem:[#allocation9 + $0x50] sm:$0x33]
    %v3804 = vld [vmem:[#allocation3 + $0x70] sm:$0xff]
    %s3805 = scalar_lea.vmem [#allocation9], 88
    %v3806 = vld [vmem:[%s3805] sm:$0xff]
    %v3807 = vld [vmem:[%s3805 + $0x8] sm:$0xff]
    %v3808 = vld [vmem:[%s3805 + $0x10] sm:$0xff]
    %v3809 = vld [vmem:[%s3805 + $0x18] sm:$0xff]
    %v3810 = vld [vmem:[%s3805 + $0x20] sm:$0xff]
    %v3811 = vld [vmem:[%s3805 + $0x28] sm:$0xff]
    %v3812 = vld [vmem:[%s3805 + $0x30] sm:$0xff]
    %v3813 = vld [vmem:[%s3805 + $0x38] sm:$0xff]
    %v3814 = vld [vmem:[%s3805 + $0x40] sm:$0xff]
    %v3815 = vld [vmem:[%s3805 + $0x48] sm:$0xff]
    %v3816 = vld [vmem:[%s3805 + $0x50] sm:$0x33]
    %v3828 = vunpack.c.l.b16 %v3806
    %v3829 = vunpack.c.h.b16 %v3806
    %v3830 = vunpack.c.l.b16 %v3807
    %v3831 = vunpack.c.h.b16 %v3807
    %v3832 = vunpack.c.l.b16 %v3808
    %v3833 = vunpack.c.h.b16 %v3808
    %v3834 = vunpack.c.l.b16 %v3809
    %v3835 = vunpack.c.h.b16 %v3809
    %v3836 = vunpack.c.l.b16 %v3810
    %v3837 = vunpack.c.h.b16 %v3810
    %v3838 = vunpack.c.l.b16 %v3811
    %v3839 = vunpack.c.h.b16 %v3811
    %v3840 = vunpack.c.l.b16 %v3812
    %v3841 = vunpack.c.h.b16 %v3812
    %v3842 = vunpack.c.l.b16 %v3813
    %v3843 = vunpack.c.h.b16 %v3813
    %v3844 = vunpack.c.l.b16 %v3814
    %v3845 = vunpack.c.h.b16 %v3814
    %v3846 = vunpack.c.l.b16 %v3815
    %v3847 = vunpack.c.h.b16 %v3815
    %v3848 = vunpack.c.l.b16 %v3816
    %v3849 = vunpack.c.h.b16 %v3816
    %v3850 = vpack.c.b16 %v3830, %v3828
    %v3851 = vpack.c.b16 %v3831, %v3829
    %v3852 = vpack.c.b16 %v3834, %v3832
    %v3853 = vpack.c.b16 %v3835, %v3833
    %v3854 = vpack.c.b16 %v3838, %v3836
    %v3855 = vpack.c.b16 %v3839, %v3837
    %v3856 = vpack.c.b16 %v3842, %v3840
    %v3857 = vpack.c.b16 %v3843, %v3841
    %v3858 = vpack.c.b16 %v3846, %v3844
    %v3859 = vpack.c.b16 %v3847, %v3845
    %v3860 = vpack.c.b16 %v3848, %v3848
    %v3861 = vpack.c.b16 %v3849, %v3849
    %v3873 = vsel %vm139, %v3780, 0
    %v3876 = vsel %vm139, %v3781, 0
    %v3879 = vsel %vm139, %v3782, 0
    %v3882 = vsel %vm139, %v3783, 0
    %v3885 = vsel %vm139, %v3784, 0
    %v3888 = vsel %vm139, %v3785, 0
    %v3891 = vsel %vm139, %v3786, 0
    %v3894 = vsel %vm139, %v3787, 0
    %v3897 = vsel %vm139, %v3788, 0
    %v3900 = vsel %vm139, %v3789, 0
    %v3903 = vsel %vm139, %v3790, 0
    %v3906 = vsel %vm139, %v3791, 0
    %v3909 = vsel %vm139, %v3792, 0
    %v3912 = vsel %vm139, %v3804, 0
    %vm3914 = vcmask 1041408
    %v3916 = vsel %vm3914, %v3860, 0
    %v3919 = vsel %vm3914, %v3861, 0
    %3921 = vmatprep.subr.bf16.mxu0 %v3851
    %3922 = vmatpush1.bf16.msra.mxu0 %v3850
    %3923 = vmatprep.subr.bf16.mxu0 %v3853
    %3924 = vmatpush1.bf16.msra.mxu0 %v3852
    %3925 = vmatprep.subr.bf16.mxu0 %v3855
    %3926 = vmatpush1.bf16.msra.mxu0 %v3854
    %3927 = vmatprep.subr.bf16.mxu0 %v3857
    %3928 = vmatpush1.bf16.msra.mxu0 %v3856
    %3929 = vmatprep.subr.bf16.mxu0 %v3859
    %3930 = vmatpush1.bf16.msra.mxu0 %v3858
    %3931 = vmatprep.subr.bf16.mxu0 %v3919
    %3932 = vmatpush1.bf16.msra.mxu0 %v3916
    %3933 = vmatprep.subr.bf16.mxu0 0
    %3934 = vmatpush1.bf16.msra.mxu0 0
    %3935 = vmatprep.subr.bf16.mxu0 0
    %3936 = vmatpush1.bf16.msra.mxu0 0
    %3937 = vmatprep.subr.bf16.mxu0 0
    %3938 = vmatpush1.bf16.msra.mxu0 0
    %3939 = vmatprep.subr.bf16.mxu0 0
    %3940 = vmatpush1.bf16.msra.mxu0 0
    %3941 = vmatprep.subr.bf16.mxu0 0
    %3942 = vmatpush1.bf16.msra.mxu0 0
    %3943 = vmatprep.subr.bf16.mxu0 0
    %3944 = vmatpush1.bf16.msra.mxu0 0
    %3945 = vmatprep.subr.bf16.mxu0 0
    %3946 = vmatpush1.bf16.msra.mxu0 0
    %3947 = vmatprep.subr.bf16.mxu0 0
    %3948 = vmatpush1.bf16.msra.mxu0 0
    %3949 = vmatprep.subr.bf16.mxu0 0
    %3950 = vmatpush1.bf16.msra.mxu0 0
    %3951 = vmatprep.subr.bf16.mxu0 0
    %3952 = vmatpush1.bf16.msra.mxu0 0
    %3953 = vmatprep.mubr.bf16.mxu0 0
    %3954 = vmatmul.mubr.bf16.gmra.mrb[0].mxu0 %v3873
    %v3955 = vpop.f32.mrb[0].mxu0
    %v3956 = vadd.f32 0.0, %v3955
    %v3957 = vpop.f32.mrb[0].mxu0
    %v3958 = vadd.f32 0.0, %v3957
    %v3959 = vpop.f32.mrb[0].mxu0
    %v3960 = vadd.f32 0.0, %v3959
    %v3961 = vpop.f32.mrb[0].mxu0
    %v3962 = vadd.f32 0.0, %v3961
    %3963 = vmatprep.mubr.bf16.mxu0 0
    %3964 = vmatmul.mubr.bf16.gmra.mrb[0].mxu0 %v3876
    %v3965 = vpop.f32.mrb[0].mxu0
    %v3966 = vadd.f32 0.0, %v3965
    %v3967 = vpop.f32.mrb[0].mxu0
    %v3968 = vadd.f32 0.0, %v3967
    %v3969 = vpop.f32.mrb[0].mxu0
    %v3970 = vadd.f32 0.0, %v3969
    %v3971 = vpop.f32.mrb[0].mxu0
    %v3972 = vadd.f32 0.0, %v3971
    %3973 = vmatprep.mubr.bf16.mxu0 0
    %3974 = vmatmul.mubr.bf16.gmra.mrb[0].mxu0 %v3879
    %v3975 = vpop.f32.mrb[0].mxu0
    %v3976 = vadd.f32 0.0, %v3975
    %v3977 = vpop.f32.mrb[0].mxu0
    %v3978 = vadd.f32 0.0, %v3977
    %v3979 = vpop.f32.mrb[0].mxu0
    %v3980 = vadd.f32 0.0, %v3979
    %v3981 = vpop.f32.mrb[0].mxu0
    %v3982 = vadd.f32 0.0, %v3981
    %3983 = vmatprep.mubr.bf16.mxu0 0
    %3984 = vmatmul.mubr.bf16.gmra.mrb[0].mxu0 %v3882
    %v3985 = vpop.f32.mrb[0].mxu0
    %v3986 = vadd.f32 0.0, %v3985
    %v3987 = vpop.f32.mrb[0].mxu0
    %v3988 = vadd.f32 0.0, %v3987
    %v3989 = vpop.f32.mrb[0].mxu0
    %v3990 = vadd.f32 0.0, %v3989
    %v3991 = vpop.f32.mrb[0].mxu0
    %v3992 = vadd.f32 0.0, %v3991
    %3993 = vmatprep.mubr.bf16.mxu0 0
    %3994 = vmatmul.mubr.bf16.gmra.mrb[0].mxu0 %v3885
    %v3995 = vpop.f32.mrb[0].mxu0
    %v3996 = vadd.f32 0.0, %v3995
    %v3997 = vpop.f32.mrb[0].mxu0
    %v3998 = vadd.f32 0.0, %v3997
    %v3999 = vpop.f32.mrb[0].mxu0
    %v4000 = vadd.f32 0.0, %v3999
    %v4001 = vpop.f32.mrb[0].mxu0
    %v4002 = vadd.f32 0.0, %v4001
    %4003 = vmatprep.mubr.bf16.mxu0 0
    %4004 = vmatmul.mubr.bf16.gmra.mrb[0].mxu0 %v3888
    %v4005 = vpop.f32.mrb[0].mxu0
    %v4006 = vadd.f32 0.0, %v4005
    %v4007 = vpop.f32.mrb[0].mxu0
    %v4008 = vadd.f32 0.0, %v4007
    %v4009 = vpop.f32.mrb[0].mxu0
    %v4010 = vadd.f32 0.0, %v4009
    %v4011 = vpop.f32.mrb[0].mxu0
    %v4012 = vadd.f32 0.0, %v4011
    %4013 = vmatprep.mubr.bf16.mxu0 0
    %4014 = vmatmul.mubr.bf16.gmra.mrb[0].mxu0 %v3891
    %v4015 = vpop.f32.mrb[0].mxu0
    %v4016 = vadd.f32 0.0, %v4015
    %v4017 = vpop.f32.mrb[0].mxu0
    %v4018 = vadd.f32 0.0, %v4017
    %v4019 = vpop.f32.mrb[0].mxu0
    %v4020 = vadd.f32 0.0, %v4019
    %v4021 = vpop.f32.mrb[0].mxu0
    %v4022 = vadd.f32 0.0, %v4021
    %4023 = vmatprep.mubr.bf16.mxu0 0
    %4024 = vmatmul.mubr.bf16.gmra.mrb[0].mxu0 %v3894
    %v4025 = vpop.f32.mrb[0].mxu0
    %v4026 = vadd.f32 0.0, %v4025
    %v4027 = vpop.f32.mrb[0].mxu0
    %v4028 = vadd.f32 0.0, %v4027
    %v4029 = vpop.f32.mrb[0].mxu0
    %v4030 = vadd.f32 0.0, %v4029
    %v4031 = vpop.f32.mrb[0].mxu0
    %v4032 = vadd.f32 0.0, %v4031
    %4033 = vmatprep.mubr.bf16.mxu0 0
    %4034 = vmatmul.mubr.bf16.gmra.mrb[0].mxu0 %v3897
    %v4035 = vpop.f32.mrb[0].mxu0
    %v4036 = vadd.f32 0.0, %v4035
    %v4037 = vpop.f32.mrb[0].mxu0
    %v4038 = vadd.f32 0.0, %v4037
    %v4039 = vpop.f32.mrb[0].mxu0
    %v4040 = vadd.f32 0.0, %v4039
    %v4041 = vpop.f32.mrb[0].mxu0
    %v4042 = vadd.f32 0.0, %v4041
    %4043 = vmatprep.mubr.bf16.mxu0 0
    %4044 = vmatmul.mubr.bf16.gmra.mrb[0].mxu0 %v3900
    %v4045 = vpop.f32.mrb[0].mxu0
    %v4046 = vadd.f32 0.0, %v4045
    %v4047 = vpop.f32.mrb[0].mxu0
    %v4048 = vadd.f32 0.0, %v4047
    %v4049 = vpop.f32.mrb[0].mxu0
    %v4050 = vadd.f32 0.0, %v4049
    %v4051 = vpop.f32.mrb[0].mxu0
    %v4052 = vadd.f32 0.0, %v4051
    %4053 = vmatprep.mubr.bf16.mxu0 0
    %4054 = vmatmul.mubr.bf16.gmra.mrb[0].mxu0 %v3903
    %v4055 = vpop.f32.mrb[0].mxu0
    %v4056 = vadd.f32 0.0, %v4055
    %v4057 = vpop.f32.mrb[0].mxu0
    %v4058 = vadd.f32 0.0, %v4057
    %v4059 = vpop.f32.mrb[0].mxu0
    %v4060 = vadd.f32 0.0, %v4059
    %v4061 = vpop.f32.mrb[0].mxu0
    %v4062 = vadd.f32 0.0, %v4061
    %4063 = vmatprep.mubr.bf16.mxu0 0
    %4064 = vmatmul.mubr.bf16.gmra.mrb[0].mxu0 %v3906
    %v4065 = vpop.f32.mrb[0].mxu0
    %v4066 = vadd.f32 0.0, %v4065
    %v4067 = vpop.f32.mrb[0].mxu0
    %v4068 = vadd.f32 0.0, %v4067
    %v4069 = vpop.f32.mrb[0].mxu0
    %v4070 = vadd.f32 0.0, %v4069
    %v4071 = vpop.f32.mrb[0].mxu0
    %v4072 = vadd.f32 0.0, %v4071
    %4073 = vmatprep.mubr.bf16.mxu0 0
    %4074 = vmatmul.mubr.bf16.gmra.mrb[0].mxu0 %v3909
    %v4075 = vpop.f32.mrb[0].mxu0
    %v4076 = vadd.f32 0.0, %v4075
    %v4077 = vpop.f32.mrb[0].mxu0
    %v4078 = vadd.f32 0.0, %v4077
    %v4079 = vpop.f32.mrb[0].mxu0
    %v4080 = vadd.f32 0.0, %v4079
    %v4081 = vpop.f32.mrb[0].mxu0
    %v4082 = vadd.f32 0.0, %v4081
    %4083 = vmatprep.mubr.bf16.mxu0 0
    %4084 = vmatmul.mubr.bf16.gmra.mrb[0].mxu0 %v3912
    %v4085 = vpop.f32.mrb[0].mxu0
    %v4086 = vadd.f32 0.0, %v4085
    %v4087 = vpop.f32.mrb[0].mxu0
    %v4088 = vadd.f32 0.0, %v4087
    %v4089 = vpop.f32.mrb[0].mxu0
    %v4090 = vadd.f32 0.0, %v4089
    %v4091 = vpop.f32.mrb[0].mxu0
    %v4092 = vadd.f32 0.0, %v4091
    %4093 = vdwg.mxu0
    %v4105 = vunpack.c.l.b16 %v3793
    %v4106 = vunpack.c.h.b16 %v3793
    %v4107 = vunpack.c.l.b16 %v3794
    %v4108 = vunpack.c.h.b16 %v3794
    %v4109 = vunpack.c.l.b16 %v3795
    %v4110 = vunpack.c.h.b16 %v3795
    %v4111 = vunpack.c.l.b16 %v3796
    %v4112 = vunpack.c.h.b16 %v3796
    %v4113 = vunpack.c.l.b16 %v3797
    %v4114 = vunpack.c.h.b16 %v3797
    %v4115 = vunpack.c.l.b16 %v3798
    %v4116 = vunpack.c.h.b16 %v3798
    %v4117 = vunpack.c.l.b16 %v3799
    %v4118 = vunpack.c.h.b16 %v3799
    %v4119 = vunpack.c.l.b16 %v3800
    %v4120 = vunpack.c.h.b16 %v3800
    %v4121 = vunpack.c.l.b16 %v3801
    %v4122 = vunpack.c.h.b16 %v3801
    %v4123 = vunpack.c.l.b16 %v3802
    %v4124 = vunpack.c.h.b16 %v3802
    %v4125 = vunpack.c.l.b16 %v3803
    %v4126 = vunpack.c.h.b16 %v3803
    %v4127 = vpack.c.b16 %v4107, %v4105
    %v4128 = vpack.c.b16 %v4108, %v4106
    %v4129 = vpack.c.b16 %v4111, %v4109
    %v4130 = vpack.c.b16 %v4112, %v4110
    %v4131 = vpack.c.b16 %v4115, %v4113
    %v4132 = vpack.c.b16 %v4116, %v4114
    %v4133 = vpack.c.b16 %v4119, %v4117
    %v4134 = vpack.c.b16 %v4120, %v4118
    %v4135 = vpack.c.b16 %v4123, %v4121
    %v4136 = vpack.c.b16 %v4124, %v4122
    %v4137 = vpack.c.b16 %v4125, %v4125
    %v4138 = vpack.c.b16 %v4126, %v4126
    %v4150 = vsel %vm139, %v3779, 0
    %v4153 = vsel %vm3914, %v4137, 0
    %v4156 = vsel %vm3914, %v4138, 0
    %4158 = vmatprep.subr.bf16.mxu0 %v4128
    %4159 = vmatpush1.bf16.msra.mxu0 %v4127
    %4160 = vmatprep.subr.bf16.mxu0 %v4130
    %4161 = vmatpush1.bf16.msra.mxu0 %v4129
    %4162 = vmatprep.subr.bf16.mxu0 %v4132
    %4163 = vmatpush1.bf16.msra.mxu0 %v4131
    %4164 = vmatprep.subr.bf16.mxu0 %v4134
    %4165 = vmatpush1.bf16.msra.mxu0 %v4133
    %4166 = vmatprep.subr.bf16.mxu0 %v4136
    %4167 = vmatpush1.bf16.msra.mxu0 %v4135
    %4168 = vmatprep.subr.bf16.mxu0 %v4156
    %4169 = vmatpush1.bf16.msra.mxu0 %v4153
    %4170 = vmatprep.subr.bf16.mxu0 0
    %4171 = vmatpush1.bf16.msra.mxu0 0
    %4172 = vmatprep.subr.bf16.mxu0 0
    %4173 = vmatpush1.bf16.msra.mxu0 0
    %4174 = vmatprep.subr.bf16.mxu0 0
    %4175 = vmatpush1.bf16.msra.mxu0 0
    %4176 = vmatprep.subr.bf16.mxu0 0
    %4177 = vmatpush1.bf16.msra.mxu0 0
    %4178 = vmatprep.subr.bf16.mxu0 0
    %4179 = vmatpush1.bf16.msra.mxu0 0
    %4180 = vmatprep.subr.bf16.mxu0 0
    %4181 = vmatpush1.bf16.msra.mxu0 0
    %4182 = vmatprep.subr.bf16.mxu0 0
    %4183 = vmatpush1.bf16.msra.mxu0 0
    %4184 = vmatprep.subr.bf16.mxu0 0
    %4185 = vmatpush1.bf16.msra.mxu0 0
    %4186 = vmatprep.subr.bf16.mxu0 0
    %4187 = vmatpush1.bf16.msra.mxu0 0
    %4188 = vmatprep.subr.bf16.mxu0 0
    %4189 = vmatpush1.bf16.msra.mxu0 0
    %4190 = vmatprep.mubr.bf16.mxu0 0
    %4191 = vmatmul.mubr.bf16.gmra.mrb[0].mxu0 %v4150
    %v4192 = vpop.f32.mrb[0].mxu0
    %v4193 = vadd.f32 %v3956, %v4192
    %v4194 = vpop.f32.mrb[0].mxu0
    %v4195 = vadd.f32 %v3958, %v4194
    %v4196 = vpop.f32.mrb[0].mxu0
    %v4197 = vadd.f32 %v3960, %v4196
    %v4198 = vpop.f32.mrb[0].mxu0
    %v4199 = vadd.f32 %v3962, %v4198
    %4200 = vmatprep.mubr.bf16.mxu0 0
    %4201 = vmatmul.mubr.bf16.gmra.mrb[0].mxu0 %v3873
    %v4202 = vpop.f32.mrb[0].mxu0
    %v4203 = vadd.f32 %v3966, %v4202
    %v4204 = vpop.f32.mrb[0].mxu0
    %v4205 = vadd.f32 %v3968, %v4204
    %v4206 = vpop.f32.mrb[0].mxu0
    %v4207 = vadd.f32 %v3970, %v4206
    %v4208 = vpop.f32.mrb[0].mxu0
    %v4209 = vadd.f32 %v3972, %v4208
    %4210 = vmatprep.mubr.bf16.mxu0 0
    %4211 = vmatmul.mubr.bf16.gmra.mrb[0].mxu0 %v3876
    %v4212 = vpop.f32.mrb[0].mxu0
    %v4213 = vadd.f32 %v3976, %v4212
    %v4214 = vpop.f32.mrb[0].mxu0
    %v4215 = vadd.f32 %v3978, %v4214
    %v4216 = vpop.f32.mrb[0].mxu0
    %v4217 = vadd.f32 %v3980, %v4216
    %v4218 = vpop.f32.mrb[0].mxu0
    %v4219 = vadd.f32 %v3982, %v4218
    %4220 = vmatprep.mubr.bf16.mxu0 0
    %4221 = vmatmul.mubr.bf16.gmra.mrb[0].mxu0 %v3879
    %v4222 = vpop.f32.mrb[0].mxu0
    %v4223 = vadd.f32 %v3986, %v4222
    %v4224 = vpop.f32.mrb[0].mxu0
    %v4225 = vadd.f32 %v3988, %v4224
    %v4226 = vpop.f32.mrb[0].mxu0
    %v4227 = vadd.f32 %v3990, %v4226
    %v4228 = vpop.f32.mrb[0].mxu0
    %v4229 = vadd.f32 %v3992, %v4228
    %4230 = vmatprep.mubr.bf16.mxu0 0
    %4231 = vmatmul.mubr.bf16.gmra.mrb[0].mxu0 %v3882
    %v4232 = vpop.f32.mrb[0].mxu0
    %v4233 = vadd.f32 %v3996, %v4232
    %v4234 = vpop.f32.mrb[0].mxu0
    %v4235 = vadd.f32 %v3998, %v4234
    %v4236 = vpop.f32.mrb[0].mxu0
    %v4237 = vadd.f32 %v4000, %v4236
    %v4238 = vpop.f32.mrb[0].mxu0
    %v4239 = vadd.f32 %v4002, %v4238
    %4240 = vmatprep.mubr.bf16.mxu0 0
    %4241 = vmatmul.mubr.bf16.gmra.mrb[0].mxu0 %v3885
    %v4242 = vpop.f32.mrb[0].mxu0
    %v4243 = vadd.f32 %v4006, %v4242
    %v4244 = vpop.f32.mrb[0].mxu0
    %v4245 = vadd.f32 %v4008, %v4244
    %v4246 = vpop.f32.mrb[0].mxu0
    %v4247 = vadd.f32 %v4010, %v4246
    %v4248 = vpop.f32.mrb[0].mxu0
    %v4249 = vadd.f32 %v4012, %v4248
    %4250 = vmatprep.mubr.bf16.mxu0 0
    %4251 = vmatmul.mubr.bf16.gmra.mrb[0].mxu0 %v3888
    %v4252 = vpop.f32.mrb[0].mxu0
    %v4253 = vadd.f32 %v4016, %v4252
    %v4254 = vpop.f32.mrb[0].mxu0
    %v4255 = vadd.f32 %v4018, %v4254
    %v4256 = vpop.f32.mrb[0].mxu0
    %v4257 = vadd.f32 %v4020, %v4256
    %v4258 = vpop.f32.mrb[0].mxu0
    %v4259 = vadd.f32 %v4022, %v4258
    %4260 = vmatprep.mubr.bf16.mxu0 0
    %4261 = vmatmul.mubr.bf16.gmra.mrb[0].mxu0 %v3891
    %v4262 = vpop.f32.mrb[0].mxu0
    %v4263 = vadd.f32 %v4026, %v4262
    %v4264 = vpop.f32.mrb[0].mxu0
    %v4265 = vadd.f32 %v4028, %v4264
    %v4266 = vpop.f32.mrb[0].mxu0
    %v4267 = vadd.f32 %v4030, %v4266
    %v4268 = vpop.f32.mrb[0].mxu0
    %v4269 = vadd.f32 %v4032, %v4268
    %4270 = vmatprep.mubr.bf16.mxu0 0
    %4271 = vmatmul.mubr.bf16.gmra.mrb[0].mxu0 %v3894
    %v4272 = vpop.f32.mrb[0].mxu0
    %v4273 = vadd.f32 %v4036, %v4272
    %v4274 = vpop.f32.mrb[0].mxu0
    %v4275 = vadd.f32 %v4038, %v4274
    %v4276 = vpop.f32.mrb[0].mxu0
    %v4277 = vadd.f32 %v4040, %v4276
    %v4278 = vpop.f32.mrb[0].mxu0
    %v4279 = vadd.f32 %v4042, %v4278
    %4280 = vmatprep.mubr.bf16.mxu0 0
    %4281 = vmatmul.mubr.bf16.gmra.mrb[0].mxu0 %v3897
    %v4282 = vpop.f32.mrb[0].mxu0
    %v4283 = vadd.f32 %v4046, %v4282
    %v4284 = vpop.f32.mrb[0].mxu0
    %v4285 = vadd.f32 %v4048, %v4284
    %v4286 = vpop.f32.mrb[0].mxu0
    %v4287 = vadd.f32 %v4050, %v4286
    %v4288 = vpop.f32.mrb[0].mxu0
    %v4289 = vadd.f32 %v4052, %v4288
    %4290 = vmatprep.mubr.bf16.mxu0 0
    %4291 = vmatmul.mubr.bf16.gmra.mrb[0].mxu0 %v3900
    %v4292 = vpop.f32.mrb[0].mxu0
    %v4293 = vadd.f32 %v4056, %v4292
    %v4294 = vpop.f32.mrb[0].mxu0
    %v4295 = vadd.f32 %v4058, %v4294
    %v4296 = vpop.f32.mrb[0].mxu0
    %v4297 = vadd.f32 %v4060, %v4296
    %v4298 = vpop.f32.mrb[0].mxu0
    %v4299 = vadd.f32 %v4062, %v4298
    %4300 = vmatprep.mubr.bf16.mxu0 0
    %4301 = vmatmul.mubr.bf16.gmra.mrb[0].mxu0 %v3903
    %v4302 = vpop.f32.mrb[0].mxu0
    %v4303 = vadd.f32 %v4066, %v4302
    %v4304 = vpop.f32.mrb[0].mxu0
    %v4305 = vadd.f32 %v4068, %v4304
    %v4306 = vpop.f32.mrb[0].mxu0
    %v4307 = vadd.f32 %v4070, %v4306
    %v4308 = vpop.f32.mrb[0].mxu0
    %v4309 = vadd.f32 %v4072, %v4308
    %4310 = vmatprep.mubr.bf16.mxu0 0
    %4311 = vmatmul.mubr.bf16.gmra.mrb[0].mxu0 %v3906
    %v4312 = vpop.f32.mrb[0].mxu0
    %v4313 = vadd.f32 %v4076, %v4312
    %v4314 = vpop.f32.mrb[0].mxu0
    %v4315 = vadd.f32 %v4078, %v4314
    %v4316 = vpop.f32.mrb[0].mxu0
    %v4317 = vadd.f32 %v4080, %v4316
    %v4318 = vpop.f32.mrb[0].mxu0
    %v4319 = vadd.f32 %v4082, %v4318
    %4320 = vmatprep.mubr.bf16.mxu0 0
    %4321 = vmatmul.mubr.bf16.gmra.mrb[0].mxu0 %v3909
    %v4322 = vpop.f32.mrb[0].mxu0
    %v4323 = vadd.f32 %v4086, %v4322
    %v4324 = vpop.f32.mrb[0].mxu0
    %v4325 = vadd.f32 %v4088, %v4324
    %v4326 = vpop.f32.mrb[0].mxu0
    %v4327 = vadd.f32 %v4090, %v4326
    %v4328 = vpop.f32.mrb[0].mxu0
    %v4329 = vadd.f32 %v4092, %v4328
    %4330 = vdwg.mxu0
    %v4331 = vld [vmem:[#allocation3 + $0x10] sm:$0xff]
    %v4332 = vld [vmem:[#allocation3 + $0x18] sm:$0xff]
    %v4333 = vld [vmem:[#allocation3 + $0x20] sm:$0xff]
    %v4334 = vld [vmem:[#allocation3 + $0x28] sm:$0xff]
    %v4335 = vld [vmem:[#allocation3 + $0x30] sm:$0xff]
    %v4336 = vld [vmem:[#allocation3 + $0x38] sm:$0xff]
    %v4337 = vld [vmem:[#allocation3 + $0x40] sm:$0xff]
    %v4338 = vld [vmem:[#allocation3 + $0x48] sm:$0xff]
    %v4339 = vld [vmem:[#allocation3 + $0x50] sm:$0xff]
    %v4340 = vld [vmem:[#allocation3 + $0x58] sm:$0xff]
    %v4341 = vld [vmem:[#allocation3 + $0x60] sm:$0xff]
    %v4342 = vld [vmem:[#allocation3 + $0x68] sm:$0xff]
    %v4343 = vld [vmem:[#allocation3 + $0x70] sm:$0xff]
    %v4344 = vld [vmem:[#allocation3 + $0x78] sm:$0xff]
    %s4345 = scalar_lea.vmem [#allocation9], 176
    %v4346 = vld [vmem:[%s4345] sm:$0xff]
    %v4347 = vld [vmem:[%s4345 + $0x8] sm:$0xff]
    %v4348 = vld [vmem:[%s4345 + $0x10] sm:$0xff]
    %v4349 = vld [vmem:[%s4345 + $0x18] sm:$0xff]
    %v4350 = vld [vmem:[%s4345 + $0x20] sm:$0xff]
    %v4351 = vld [vmem:[%s4345 + $0x28] sm:$0xff]
    %v4352 = vld [vmem:[%s4345 + $0x30] sm:$0xff]
    %v4353 = vld [vmem:[%s4345 + $0x38] sm:$0xff]
    %v4354 = vld [vmem:[%s4345 + $0x40] sm:$0xff]
    %v4355 = vld [vmem:[%s4345 + $0x48] sm:$0xff]
    %v4356 = vld [vmem:[%s4345 + $0x50] sm:$0x33]
    %v4368 = vunpack.c.l.b16 %v4346
    %v4369 = vunpack.c.h.b16 %v4346
    %v4370 = vunpack.c.l.b16 %v4347
    %v4371 = vunpack.c.h.b16 %v4347
    %v4372 = vunpack.c.l.b16 %v4348
    %v4373 = vunpack.c.h.b16 %v4348
    %v4374 = vunpack.c.l.b16 %v4349
    %v4375 = vunpack.c.h.b16 %v4349
    %v4376 = vunpack.c.l.b16 %v4350
    %v4377 = vunpack.c.h.b16 %v4350
    %v4378 = vunpack.c.l.b16 %v4351
    %v4379 = vunpack.c.h.b16 %v4351
    %v4380 = vunpack.c.l.b16 %v4352
    %v4381 = vunpack.c.h.b16 %v4352
    %v4382 = vunpack.c.l.b16 %v4353
    %v4383 = vunpack.c.h.b16 %v4353
    %v4384 = vunpack.c.l.b16 %v4354
    %v4385 = vunpack.c.h.b16 %v4354
    %v4386 = vunpack.c.l.b16 %v4355
    %v4387 = vunpack.c.h.b16 %v4355
    %v4388 = vunpack.c.l.b16 %v4356
    %v4389 = vunpack.c.h.b16 %v4356
    %v4390 = vpack.c.b16 %v4370, %v4368
    %v4391 = vpack.c.b16 %v4371, %v4369
    %v4392 = vpack.c.b16 %v4374, %v4372
    %v4393 = vpack.c.b16 %v4375, %v4373
    %v4394 = vpack.c.b16 %v4378, %v4376
    %v4395 = vpack.c.b16 %v4379, %v4377
    %v4396 = vpack.c.b16 %v4382, %v4380
    %v4397 = vpack.c.b16 %v4383, %v4381
    %v4398 = vpack.c.b16 %v4386, %v4384
    %v4399 = vpack.c.b16 %v4387, %v4385
    %v4400 = vpack.c.b16 %v4388, %v4388
    %v4401 = vpack.c.b16 %v4389, %v4389
    %v4413 = vsel %vm139, %v4331, 0
    %v4416 = vsel %vm139, %v4332, 0
    %v4419 = vsel %vm139, %v4333, 0
    %v4422 = vsel %vm139, %v4334, 0
    %v4425 = vsel %vm139, %v4335, 0
    %v4428 = vsel %vm139, %v4336, 0
    %v4431 = vsel %vm139, %v4337, 0
    %v4434 = vsel %vm139, %v4338, 0
    %v4437 = vsel %vm139, %v4339, 0
    %v4440 = vsel %vm139, %v4340, 0
    %v4443 = vsel %vm139, %v4341, 0
    %v4446 = vsel %vm139, %v4342, 0
    %v4449 = vsel %vm139, %v4343, 0
    %v4452 = vsel %vm139, %v4344, 0
    %v4455 = vsel %vm3914, %v4400, 0
    %v4458 = vsel %vm3914, %v4401, 0
    %4460 = vmatprep.subr.bf16.mxu0 %v4391
    %4461 = vmatpush1.bf16.msra.mxu0 %v4390
    %4462 = vmatprep.subr.bf16.mxu0 %v4393
    %4463 = vmatpush1.bf16.msra.mxu0 %v4392
    %4464 = vmatprep.subr.bf16.mxu0 %v4395
    %4465 = vmatpush1.bf16.msra.mxu0 %v4394
    %4466 = vmatprep.subr.bf16.mxu0 %v4397
    %4467 = vmatpush1.bf16.msra.mxu0 %v4396
    %4468 = vmatprep.subr.bf16.mxu0 %v4399
    %4469 = vmatpush1.bf16.msra.mxu0 %v4398
    %4470 = vmatprep.subr.bf16.mxu0 %v4458
    %4471 = vmatpush1.bf16.msra.mxu0 %v4455
    %4472 = vmatprep.subr.bf16.mxu0 0
    %4473 = vmatpush1.bf16.msra.mxu0 0
    %4474 = vmatprep.subr.bf16.mxu0 0
    %4475 = vmatpush1.bf16.msra.mxu0 0
    %4476 = vmatprep.subr.bf16.mxu0 0
    %4477 = vmatpush1.bf16.msra.mxu0 0
    %4478 = vmatprep.subr.bf16.mxu0 0
    %4479 = vmatpush1.bf16.msra.mxu0 0
    %4480 = vmatprep.subr.bf16.mxu0 0
    %4481 = vmatpush1.bf16.msra.mxu0 0
    %4482 = vmatprep.subr.bf16.mxu0 0
    %4483 = vmatpush1.bf16.msra.mxu0 0
    %4484 = vmatprep.subr.bf16.mxu0 0
    %4485 = vmatpush1.bf16.msra.mxu0 0
    %4486 = vmatprep.subr.bf16.mxu0 0
    %4487 = vmatpush1.bf16.msra.mxu0 0
    %4488 = vmatprep.subr.bf16.mxu0 0
    %4489 = vmatpush1.bf16.msra.mxu0 0
    %4490 = vmatprep.subr.bf16.mxu0 0
    %4491 = vmatpush1.bf16.msra.mxu0 0
    %4492 = vmatprep.mubr.bf16.mxu0 0
    %4493 = vmatmul.mubr.bf16.gmra.mrb[0].mxu0 %v4413
    %v4494 = vpop.f32.mrb[0].mxu0
    %v4495 = vadd.f32 0.0, %v4494
    %v4496 = vpop.f32.mrb[0].mxu0
    %v4497 = vadd.f32 0.0, %v4496
    %v4498 = vpop.f32.mrb[0].mxu0
    %v4499 = vadd.f32 0.0, %v4498
    %v4500 = vpop.f32.mrb[0].mxu0
    %v4501 = vadd.f32 0.0, %v4500
    %4502 = vmatprep.mubr.bf16.mxu0 0
    %4503 = vmatmul.mubr.bf16.gmra.mrb[0].mxu0 %v4416
    %v4504 = vpop.f32.mrb[0].mxu0
    %v4505 = vadd.f32 0.0, %v4504
    %v4506 = vpop.f32.mrb[0].mxu0
    %v4507 = vadd.f32 0.0, %v4506
    %v4508 = vpop.f32.mrb[0].mxu0
    %v4509 = vadd.f32 0.0, %v4508
    %v4510 = vpop.f32.mrb[0].mxu0
    %v4511 = vadd.f32 0.0, %v4510
    %4512 = vmatprep.mubr.bf16.mxu0 0
    %4513 = vmatmul.mubr.bf16.gmra.mrb[0].mxu0 %v4419
    %v4514 = vpop.f32.mrb[0].mxu0
    %v4515 = vadd.f32 0.0, %v4514
    %v4516 = vpop.f32.mrb[0].mxu0
    %v4517 = vadd.f32 0.0, %v4516
    %v4518 = vpop.f32.mrb[0].mxu0
    %v4519 = vadd.f32 0.0, %v4518
    %v4520 = vpop.f32.mrb[0].mxu0
    %v4521 = vadd.f32 0.0, %v4520
    %4522 = vmatprep.mubr.bf16.mxu0 0
    %4523 = vmatmul.mubr.bf16.gmra.mrb[0].mxu0 %v4422
    %v4524 = vpop.f32.mrb[0].mxu0
    %v4525 = vadd.f32 0.0, %v4524
    %v4526 = vpop.f32.mrb[0].mxu0
    %v4527 = vadd.f32 0.0, %v4526
    %v4528 = vpop.f32.mrb[0].mxu0
    %v4529 = vadd.f32 0.0, %v4528
    %v4530 = vpop.f32.mrb[0].mxu0
    %v4531 = vadd.f32 0.0, %v4530
    %4532 = vmatprep.mubr.bf16.mxu0 0
    %4533 = vmatmul.mubr.bf16.gmra.mrb[0].mxu0 %v4425
    %v4534 = vpop.f32.mrb[0].mxu0
    %v4535 = vadd.f32 0.0, %v4534
    %v4536 = vpop.f32.mrb[0].mxu0
    %v4537 = vadd.f32 0.0, %v4536
    %v4538 = vpop.f32.mrb[0].mxu0
    %v4539 = vadd.f32 0.0, %v4538
    %v4540 = vpop.f32.mrb[0].mxu0
    %v4541 = vadd.f32 0.0, %v4540
    %4542 = vmatprep.mubr.bf16.mxu0 0
    %4543 = vmatmul.mubr.bf16.gmra.mrb[0].mxu0 %v4428
    %v4544 = vpop.f32.mrb[0].mxu0
    %v4545 = vadd.f32 0.0, %v4544
    %v4546 = vpop.f32.mrb[0].mxu0
    %v4547 = vadd.f32 0.0, %v4546
    %v4548 = vpop.f32.mrb[0].mxu0
    %v4549 = vadd.f32 0.0, %v4548
    %v4550 = vpop.f32.mrb[0].mxu0
    %v4551 = vadd.f32 0.0, %v4550
    %4552 = vmatprep.mubr.bf16.mxu0 0
    %4553 = vmatmul.mubr.bf16.gmra.mrb[0].mxu0 %v4431
    %v4554 = vpop.f32.mrb[0].mxu0
    %v4555 = vadd.f32 0.0, %v4554
    %v4556 = vpop.f32.mrb[0].mxu0
    %v4557 = vadd.f32 0.0, %v4556
    %v4558 = vpop.f32.mrb[0].mxu0
    %v4559 = vadd.f32 0.0, %v4558
    %v4560 = vpop.f32.mrb[0].mxu0
    %v4561 = vadd.f32 0.0, %v4560
    %4562 = vmatprep.mubr.bf16.mxu0 0
    %4563 = vmatmul.mubr.bf16.gmra.mrb[0].mxu0 %v4434
    %v4564 = vpop.f32.mrb[0].mxu0
    %v4565 = vadd.f32 0.0, %v4564
    %v4566 = vpop.f32.mrb[0].mxu0
    %v4567 = vadd.f32 0.0, %v4566
    %v4568 = vpop.f32.mrb[0].mxu0
    %v4569 = vadd.f32 0.0, %v4568
    %v4570 = vpop.f32.mrb[0].mxu0
    %v4571 = vadd.f32 0.0, %v4570
    %4572 = vmatprep.mubr.bf16.mxu0 0
    %4573 = vmatmul.mubr.bf16.gmra.mrb[0].mxu0 %v4437
    %v4574 = vpop.f32.mrb[0].mxu0
    %v4575 = vadd.f32 0.0, %v4574
    %v4576 = vpop.f32.mrb[0].mxu0
    %v4577 = vadd.f32 0.0, %v4576
    %v4578 = vpop.f32.mrb[0].mxu0
    %v4579 = vadd.f32 0.0, %v4578
    %v4580 = vpop.f32.mrb[0].mxu0
    %v4581 = vadd.f32 0.0, %v4580
    %4582 = vmatprep.mubr.bf16.mxu0 0
    %4583 = vmatmul.mubr.bf16.gmra.mrb[0].mxu0 %v4440
    %v4584 = vpop.f32.mrb[0].mxu0
    %v4585 = vadd.f32 0.0, %v4584
    %v4586 = vpop.f32.mrb[0].mxu0
    %v4587 = vadd.f32 0.0, %v4586
    %v4588 = vpop.f32.mrb[0].mxu0
    %v4589 = vadd.f32 0.0, %v4588
    %v4590 = vpop.f32.mrb[0].mxu0
    %v4591 = vadd.f32 0.0, %v4590
    %4592 = vmatprep.mubr.bf16.mxu0 0
    %4593 = vmatmul.mubr.bf16.gmra.mrb[0].mxu0 %v4443
    %v4594 = vpop.f32.mrb[0].mxu0
    %v4595 = vadd.f32 0.0, %v4594
    %v4596 = vpop.f32.mrb[0].mxu0
    %v4597 = vadd.f32 0.0, %v4596
    %v4598 = vpop.f32.mrb[0].mxu0
    %v4599 = vadd.f32 0.0, %v4598
    %v4600 = vpop.f32.mrb[0].mxu0
    %v4601 = vadd.f32 0.0, %v4600
    %4602 = vmatprep.mubr.bf16.mxu0 0
    %4603 = vmatmul.mubr.bf16.gmra.mrb[0].mxu0 %v4446
    %v4604 = vpop.f32.mrb[0].mxu0
    %v4605 = vadd.f32 0.0, %v4604
    %v4606 = vpop.f32.mrb[0].mxu0
    %v4607 = vadd.f32 0.0, %v4606
    %v4608 = vpop.f32.mrb[0].mxu0
    %v4609 = vadd.f32 0.0, %v4608
    %v4610 = vpop.f32.mrb[0].mxu0
    %v4611 = vadd.f32 0.0, %v4610
    %4612 = vmatprep.mubr.bf16.mxu0 0
    %4613 = vmatmul.mubr.bf16.gmra.mrb[0].mxu0 %v4449
    %v4614 = vpop.f32.mrb[0].mxu0
    %v4615 = vadd.f32 0.0, %v4614
    %v4616 = vpop.f32.mrb[0].mxu0
    %v4617 = vadd.f32 0.0, %v4616
    %v4618 = vpop.f32.mrb[0].mxu0
    %v4619 = vadd.f32 0.0, %v4618
    %v4620 = vpop.f32.mrb[0].mxu0
    %v4621 = vadd.f32 0.0, %v4620
    %4622 = vmatprep.mubr.bf16.mxu0 0
    %4623 = vmatmul.mubr.bf16.gmra.mrb[0].mxu0 %v4452
    %v4624 = vpop.f32.mrb[0].mxu0
    %v4625 = vadd.f32 0.0, %v4624
    %v4626 = vpop.f32.mrb[0].mxu0
    %v4627 = vadd.f32 0.0, %v4626
    %v4628 = vpop.f32.mrb[0].mxu0
    %v4629 = vadd.f32 0.0, %v4628
    %v4630 = vpop.f32.mrb[0].mxu0
    %v4631 = vadd.f32 0.0, %v4630
    %4632 = vdwg.mxu0
    %v4633 = vadd.f32 %v4193, %v4495
    %v4634 = vadd.f32 %v4195, %v4497
    %v4635 = vadd.f32 %v4197, %v4499
    %v4636 = vadd.f32 %v4199, %v4501
    %v4637 = vadd.f32 %v4203, %v4505
    %v4638 = vadd.f32 %v4205, %v4507
    %v4639 = vadd.f32 %v4207, %v4509
    %v4640 = vadd.f32 %v4209, %v4511
    %v4641 = vadd.f32 %v4213, %v4515
    %v4642 = vadd.f32 %v4215, %v4517
    %v4643 = vadd.f32 %v4217, %v4519
    %v4644 = vadd.f32 %v4219, %v4521
    %v4645 = vadd.f32 %v4223, %v4525
    %v4646 = vadd.f32 %v4225, %v4527
    %v4647 = vadd.f32 %v4227, %v4529
    %v4648 = vadd.f32 %v4229, %v4531
    %v4649 = vadd.f32 %v4233, %v4535
    %v4650 = vadd.f32 %v4235, %v4537
    %v4651 = vadd.f32 %v4237, %v4539
    %v4652 = vadd.f32 %v4239, %v4541
    %v4653 = vadd.f32 %v4243, %v4545
    %v4654 = vadd.f32 %v4245, %v4547
    %v4655 = vadd.f32 %v4247, %v4549
    %v4656 = vadd.f32 %v4249, %v4551
    %v4657 = vadd.f32 %v4253, %v4555
    %v4658 = vadd.f32 %v4255, %v4557
    %v4659 = vadd.f32 %v4257, %v4559
    %v4660 = vadd.f32 %v4259, %v4561
    %v4661 = vadd.f32 %v4263, %v4565
    %v4662 = vadd.f32 %v4265, %v4567
    %v4663 = vadd.f32 %v4267, %v4569
    %v4664 = vadd.f32 %v4269, %v4571
    %v4665 = vadd.f32 %v4273, %v4575
    %v4666 = vadd.f32 %v4275, %v4577
    %v4667 = vadd.f32 %v4277, %v4579
    %v4668 = vadd.f32 %v4279, %v4581
    %v4669 = vadd.f32 %v4283, %v4585
    %v4670 = vadd.f32 %v4285, %v4587
    %v4671 = vadd.f32 %v4287, %v4589
    %v4672 = vadd.f32 %v4289, %v4591
    %v4673 = vadd.f32 %v4293, %v4595
    %v4674 = vadd.f32 %v4295, %v4597
    %v4675 = vadd.f32 %v4297, %v4599
    %v4676 = vadd.f32 %v4299, %v4601
    %v4677 = vadd.f32 %v4303, %v4605
    %v4678 = vadd.f32 %v4305, %v4607
    %v4679 = vadd.f32 %v4307, %v4609
    %v4680 = vadd.f32 %v4309, %v4611
    %v4681 = vadd.f32 %v4313, %v4615
    %v4682 = vadd.f32 %v4315, %v4617
    %v4683 = vadd.f32 %v4317, %v4619
    %v4684 = vadd.f32 %v4319, %v4621
    %v4685 = vadd.f32 %v4323, %v4625
    %v4686 = vadd.f32 %v4325, %v4627
    %v4687 = vadd.f32 %v4327, %v4629
    %v4688 = vadd.f32 %v4329, %v4631
    %v4689 = vld [vmem:[#allocation3 + $0x18] sm:$0xff]
    %v4690 = vld [vmem:[#allocation3 + $0x20] sm:$0xff]
    %v4691 = vld [vmem:[#allocation3 + $0x28] sm:$0xff]
    %v4692 = vld [vmem:[#allocation3 + $0x30] sm:$0xff]
    %v4693 = vld [vmem:[#allocation3 + $0x38] sm:$0xff]
    %v4694 = vld [vmem:[#allocation3 + $0x40] sm:$0xff]
    %v4695 = vld [vmem:[#allocation3 + $0x48] sm:$0xff]
    %v4696 = vld [vmem:[#allocation3 + $0x50] sm:$0xff]
    %v4697 = vld [vmem:[#allocation3 + $0x58] sm:$0xff]
    %v4698 = vld [vmem:[#allocation3 + $0x60] sm:$0xff]
    %v4699 = vld [vmem:[#allocation3 + $0x68] sm:$0xff]
    %v4700 = vld [vmem:[#allocation3 + $0x70] sm:$0xff]
    %v4701 = vld [vmem:[#allocation3 + $0x78] sm:$0xff]
    %v4702 = vld [vmem:[#allocation3 + $0x80] sm:$0xff]
    %s4703 = scalar_lea.vmem [#allocation9], 264
    %v4704 = vld [vmem:[%s4703] sm:$0xff]
    %v4705 = vld [vmem:[%s4703 + $0x8] sm:$0xff]
    %v4706 = vld [vmem:[%s4703 + $0x10] sm:$0xff]
    %v4707 = vld [vmem:[%s4703 + $0x18] sm:$0xff]
    %v4708 = vld [vmem:[%s4703 + $0x20] sm:$0xff]
    %v4709 = vld [vmem:[%s4703 + $0x28] sm:$0xff]
    %v4710 = vld [vmem:[%s4703 + $0x30] sm:$0xff]
    %v4711 = vld [vmem:[%s4703 + $0x38] sm:$0xff]
    %v4712 = vld [vmem:[%s4703 + $0x40] sm:$0xff]
    %v4713 = vld [vmem:[%s4703 + $0x48] sm:$0xff]
    %v4714 = vld [vmem:[%s4703 + $0x50] sm:$0x33]
    %v4726 = vunpack.c.l.b16 %v4704
    %v4727 = vunpack.c.h.b16 %v4704
    %v4728 = vunpack.c.l.b16 %v4705
    %v4729 = vunpack.c.h.b16 %v4705
    %v4730 = vunpack.c.l.b16 %v4706
    %v4731 = vunpack.c.h.b16 %v4706
    %v4732 = vunpack.c.l.b16 %v4707
    %v4733 = vunpack.c.h.b16 %v4707
    %v4734 = vunpack.c.l.b16 %v4708
    %v4735 = vunpack.c.h.b16 %v4708
    %v4736 = vunpack.c.l.b16 %v4709
    %v4737 = vunpack.c.h.b16 %v4709
    %v4738 = vunpack.c.l.b16 %v4710
    %v4739 = vunpack.c.h.b16 %v4710
    %v4740 = vunpack.c.l.b16 %v4711
    %v4741 = vunpack.c.h.b16 %v4711
    %v4742 = vunpack.c.l.b16 %v4712
    %v4743 = vunpack.c.h.b16 %v4712
    %v4744 = vunpack.c.l.b16 %v4713
    %v4745 = vunpack.c.h.b16 %v4713
    %v4746 = vunpack.c.l.b16 %v4714
    %v4747 = vunpack.c.h.b16 %v4714
    %v4748 = vpack.c.b16 %v4728, %v4726
    %v4749 = vpack.c.b16 %v4729, %v4727
    %v4750 = vpack.c.b16 %v4732, %v4730
    %v4751 = vpack.c.b16 %v4733, %v4731
    %v4752 = vpack.c.b16 %v4736, %v4734
    %v4753 = vpack.c.b16 %v4737, %v4735
    %v4754 = vpack.c.b16 %v4740, %v4738
    %v4755 = vpack.c.b16 %v4741, %v4739
    %v4756 = vpack.c.b16 %v4744, %v4742
    %v4757 = vpack.c.b16 %v4745, %v4743
    %v4758 = vpack.c.b16 %v4746, %v4746
    %v4759 = vpack.c.b16 %v4747, %v4747
    %v4771 = vsel %vm139, %v4689, 0
    %v4774 = vsel %vm139, %v4690, 0
    %v4777 = vsel %vm139, %v4691, 0
    %v4780 = vsel %vm139, %v4692, 0
    %v4783 = vsel %vm139, %v4693, 0
    %v4786 = vsel %vm139, %v4694, 0
    %v4789 = vsel %vm139, %v4695, 0
    %v4792 = vsel %vm139, %v4696, 0
    %v4795 = vsel %vm139, %v4697, 0
    %v4798 = vsel %vm139, %v4698, 0
    %v4801 = vsel %vm139, %v4699, 0
    %v4804 = vsel %vm139, %v4700, 0
    %v4807 = vsel %vm139, %v4701, 0
    %v4810 = vsel %vm139, %v4702, 0
    %v4813 = vsel %vm3914, %v4758, 0
    %v4816 = vsel %vm3914, %v4759, 0
    %4818 = vmatprep.subr.bf16.mxu0 %v4749
    %4819 = vmatpush1.bf16.msra.mxu0 %v4748
    %4820 = vmatprep.subr.bf16.mxu0 %v4751
    %4821 = vmatpush1.bf16.msra.mxu0 %v4750
    %4822 = vmatprep.subr.bf16.mxu0 %v4753
    %4823 = vmatpush1.bf16.msra.mxu0 %v4752
    %4824 = vmatprep.subr.bf16.mxu0 %v4755
    %4825 = vmatpush1.bf16.msra.mxu0 %v4754
    %4826 = vmatprep.subr.bf16.mxu0 %v4757
    %4827 = vmatpush1.bf16.msra.mxu0 %v4756
    %4828 = vmatprep.subr.bf16.mxu0 %v4816
    %4829 = vmatpush1.bf16.msra.mxu0 %v4813
    %4830 = vmatprep.subr.bf16.mxu0 0
    %4831 = vmatpush1.bf16.msra.mxu0 0
    %4832 = vmatprep.subr.bf16.mxu0 0
    %4833 = vmatpush1.bf16.msra.mxu0 0
    %4834 = vmatprep.subr.bf16.mxu0 0
    %4835 = vmatpush1.bf16.msra.mxu0 0
    %4836 = vmatprep.subr.bf16.mxu0 0
    %4837 = vmatpush1.bf16.msra.mxu0 0
    %4838 = vmatprep.subr.bf16.mxu0 0
    %4839 = vmatpush1.bf16.msra.mxu0 0
    %4840 = vmatprep.subr.bf16.mxu0 0
    %4841 = vmatpush1.bf16.msra.mxu0 0
    %4842 = vmatprep.subr.bf16.mxu0 0
    %4843 = vmatpush1.bf16.msra.mxu0 0
    %4844 = vmatprep.subr.bf16.mxu0 0
    %4845 = vmatpush1.bf16.msra.mxu0 0
    %4846 = vmatprep.subr.bf16.mxu0 0
    %4847 = vmatpush1.bf16.msra.mxu0 0
    %4848 = vmatprep.subr.bf16.mxu0 0
    %4849 = vmatpush1.bf16.msra.mxu0 0
    %4850 = vmatprep.mubr.bf16.mxu0 0
    %4851 = vmatmul.mubr.bf16.gmra.mrb[0].mxu0 %v4771
    %v4852 = vpop.f32.mrb[0].mxu0
    %v4853 = vadd.f32 0.0, %v4852
    %v4854 = vpop.f32.mrb[0].mxu0
    %v4855 = vadd.f32 0.0, %v4854
    %v4856 = vpop.f32.mrb[0].mxu0
    %v4857 = vadd.f32 0.0, %v4856
    %v4858 = vpop.f32.mrb[0].mxu0
    %v4859 = vadd.f32 0.0, %v4858
    %4860 = vmatprep.mubr.bf16.mxu0 0
    %4861 = vmatmul.mubr.bf16.gmra.mrb[0].mxu0 %v4774
    %v4862 = vpop.f32.mrb[0].mxu0
    %v4863 = vadd.f32 0.0, %v4862
    %v4864 = vpop.f32.mrb[0].mxu0
    %v4865 = vadd.f32 0.0, %v4864
    %v4866 = vpop.f32.mrb[0].mxu0
    %v4867 = vadd.f32 0.0, %v4866
    %v4868 = vpop.f32.mrb[0].mxu0
    %v4869 = vadd.f32 0.0, %v4868
    %4870 = vmatprep.mubr.bf16.mxu0 0
    %4871 = vmatmul.mubr.bf16.gmra.mrb[0].mxu0 %v4777
    %v4872 = vpop.f32.mrb[0].mxu0
    %v4873 = vadd.f32 0.0, %v4872
    %v4874 = vpop.f32.mrb[0].mxu0
    %v4875 = vadd.f32 0.0, %v4874
    %v4876 = vpop.f32.mrb[0].mxu0
    %v4877 = vadd.f32 0.0, %v4876
    %v4878 = vpop.f32.mrb[0].mxu0
    %v4879 = vadd.f32 0.0, %v4878
    %4880 = vmatprep.mubr.bf16.mxu0 0
    %4881 = vmatmul.mubr.bf16.gmra.mrb[0].mxu0 %v4780
    %v4882 = vpop.f32.mrb[0].mxu0
    %v4883 = vadd.f32 0.0, %v4882
    %v4884 = vpop.f32.mrb[0].mxu0
    %v4885 = vadd.f32 0.0, %v4884
    %v4886 = vpop.f32.mrb[0].mxu0
    %v4887 = vadd.f32 0.0, %v4886
    %v4888 = vpop.f32.mrb[0].mxu0
    %v4889 = vadd.f32 0.0, %v4888
    %4890 = vmatprep.mubr.bf16.mxu0 0
    %4891 = vmatmul.mubr.bf16.gmra.mrb[0].mxu0 %v4783
    %v4892 = vpop.f32.mrb[0].mxu0
    %v4893 = vadd.f32 0.0, %v4892
    %v4894 = vpop.f32.mrb[0].mxu0
    %v4895 = vadd.f32 0.0, %v4894
    %v4896 = vpop.f32.mrb[0].mxu0
    %v4897 = vadd.f32 0.0, %v4896
    %v4898 = vpop.f32.mrb[0].mxu0
    %v4899 = vadd.f32 0.0, %v4898
    %4900 = vmatprep.mubr.bf16.mxu0 0
    %4901 = vmatmul.mubr.bf16.gmra.mrb[0].mxu0 %v4786
    %v4902 = vpop.f32.mrb[0].mxu0
    %v4903 = vadd.f32 0.0, %v4902
    %v4904 = vpop.f32.mrb[0].mxu0
    %v4905 = vadd.f32 0.0, %v4904
    %v4906 = vpop.f32.mrb[0].mxu0
    %v4907 = vadd.f32 0.0, %v4906
    %v4908 = vpop.f32.mrb[0].mxu0
    %v4909 = vadd.f32 0.0, %v4908
    %4910 = vmatprep.mubr.bf16.mxu0 0
    %4911 = vmatmul.mubr.bf16.gmra.mrb[0].mxu0 %v4789
    %v4912 = vpop.f32.mrb[0].mxu0
    %v4913 = vadd.f32 0.0, %v4912
    %v4914 = vpop.f32.mrb[0].mxu0
    %v4915 = vadd.f32 0.0, %v4914
    %v4916 = vpop.f32.mrb[0].mxu0
    %v4917 = vadd.f32 0.0, %v4916
    %v4918 = vpop.f32.mrb[0].mxu0
    %v4919 = vadd.f32 0.0, %v4918
    %4920 = vmatprep.mubr.bf16.mxu0 0
    %4921 = vmatmul.mubr.bf16.gmra.mrb[0].mxu0 %v4792
    %v4922 = vpop.f32.mrb[0].mxu0
    %v4923 = vadd.f32 0.0, %v4922
    %v4924 = vpop.f32.mrb[0].mxu0
    %v4925 = vadd.f32 0.0, %v4924
    %v4926 = vpop.f32.mrb[0].mxu0
    %v4927 = vadd.f32 0.0, %v4926
    %v4928 = vpop.f32.mrb[0].mxu0
    %v4929 = vadd.f32 0.0, %v4928
    %4930 = vmatprep.mubr.bf16.mxu0 0
    %4931 = vmatmul.mubr.bf16.gmra.mrb[0].mxu0 %v4795
    %v4932 = vpop.f32.mrb[0].mxu0
    %v4933 = vadd.f32 0.0, %v4932
    %v4934 = vpop.f32.mrb[0].mxu0
    %v4935 = vadd.f32 0.0, %v4934
    %v4936 = vpop.f32.mrb[0].mxu0
    %v4937 = vadd.f32 0.0, %v4936
    %v4938 = vpop.f32.mrb[0].mxu0
    %v4939 = vadd.f32 0.0, %v4938
    %4940 = vmatprep.mubr.bf16.mxu0 0
    %4941 = vmatmul.mubr.bf16.gmra.mrb[0].mxu0 %v4798
    %v4942 = vpop.f32.mrb[0].mxu0
    %v4943 = vadd.f32 0.0, %v4942
    %v4944 = vpop.f32.mrb[0].mxu0
    %v4945 = vadd.f32 0.0, %v4944
    %v4946 = vpop.f32.mrb[0].mxu0
    %v4947 = vadd.f32 0.0, %v4946
    %v4948 = vpop.f32.mrb[0].mxu0
    %v4949 = vadd.f32 0.0, %v4948
    %4950 = vmatprep.mubr.bf16.mxu0 0
    %4951 = vmatmul.mubr.bf16.gmra.mrb[0].mxu0 %v4801
    %v4952 = vpop.f32.mrb[0].mxu0
    %v4953 = vadd.f32 0.0, %v4952
    %v4954 = vpop.f32.mrb[0].mxu0
    %v4955 = vadd.f32 0.0, %v4954
    %v4956 = vpop.f32.mrb[0].mxu0
    %v4957 = vadd.f32 0.0, %v4956
    %v4958 = vpop.f32.mrb[0].mxu0
    %v4959 = vadd.f32 0.0, %v4958
    %4960 = vmatprep.mubr.bf16.mxu0 0
    %4961 = vmatmul.mubr.bf16.gmra.mrb[0].mxu0 %v4804
    %v4962 = vpop.f32.mrb[0].mxu0
    %v4963 = vadd.f32 0.0, %v4962
    %v4964 = vpop.f32.mrb[0].mxu0
    %v4965 = vadd.f32 0.0, %v4964
    %v4966 = vpop.f32.mrb[0].mxu0
    %v4967 = vadd.f32 0.0, %v4966
    %v4968 = vpop.f32.mrb[0].mxu0
    %v4969 = vadd.f32 0.0, %v4968
    %4970 = vmatprep.mubr.bf16.mxu0 0
    %4971 = vmatmul.mubr.bf16.gmra.mrb[0].mxu0 %v4807
    %v4972 = vpop.f32.mrb[0].mxu0
    %v4973 = vadd.f32 0.0, %v4972
    %v4974 = vpop.f32.mrb[0].mxu0
    %v4975 = vadd.f32 0.0, %v4974
    %v4976 = vpop.f32.mrb[0].mxu0
    %v4977 = vadd.f32 0.0, %v4976
    %v4978 = vpop.f32.mrb[0].mxu0
    %v4979 = vadd.f32 0.0, %v4978
    %4980 = vmatprep.mubr.bf16.mxu0 0
    %4981 = vmatmul.mubr.bf16.gmra.mrb[0].mxu0 %v4810
    %v4982 = vpop.f32.mrb[0].mxu0
    %v4983 = vadd.f32 0.0, %v4982
    %v4984 = vpop.f32.mrb[0].mxu0
    %v4985 = vadd.f32 0.0, %v4984
    %v4986 = vpop.f32.mrb[0].mxu0
    %v4987 = vadd.f32 0.0, %v4986
    %v4988 = vpop.f32.mrb[0].mxu0
    %v4989 = vadd.f32 0.0, %v4988
    %4990 = vdwg.mxu0
    %v4991 = vadd.f32 %v4633, %v4853
    %v4992 = vadd.f32 %v4634, %v4855
    %v4993 = vadd.f32 %v4635, %v4857
    %v4994 = vadd.f32 %v4636, %v4859
    %v4995 = vadd.f32 %v4637, %v4863
    %v4996 = vadd.f32 %v4638, %v4865
    %v4997 = vadd.f32 %v4639, %v4867
    %v4998 = vadd.f32 %v4640, %v4869
    %v4999 = vadd.f32 %v4641, %v4873
    %v5000 = vadd.f32 %v4642, %v4875
    %v5001 = vadd.f32 %v4643, %v4877
    %v5002 = vadd.f32 %v4644, %v4879
    %v5003 = vadd.f32 %v4645, %v4883
    %v5004 = vadd.f32 %v4646, %v4885
    %v5005 = vadd.f32 %v4647, %v4887
    %v5006 = vadd.f32 %v4648, %v4889
    %v5007 = vadd.f32 %v4649, %v4893
    %v5008 = vadd.f32 %v4650, %v4895
    %v5009 = vadd.f32 %v4651, %v4897
    %v5010 = vadd.f32 %v4652, %v4899
    %v5011 = vadd.f32 %v4653, %v4903
    %v5012 = vadd.f32 %v4654, %v4905
    %v5013 = vadd.f32 %v4655, %v4907
    %v5014 = vadd.f32 %v4656, %v4909
    %v5015 = vadd.f32 %v4657, %v4913
    %v5016 = vadd.f32 %v4658, %v4915
    %v5017 = vadd.f32 %v4659, %v4917
    %v5018 = vadd.f32 %v4660, %v4919
    %v5019 = vadd.f32 %v4661, %v4923
    %v5020 = vadd.f32 %v4662, %v4925
    %v5021 = vadd.f32 %v4663, %v4927
    %v5022 = vadd.f32 %v4664, %v4929
    %v5023 = vadd.f32 %v4665, %v4933
    %v5024 = vadd.f32 %v4666, %v4935
    %v5025 = vadd.f32 %v4667, %v4937
    %v5026 = vadd.f32 %v4668, %v4939
    %v5027 = vadd.f32 %v4669, %v4943
    %v5028 = vadd.f32 %v4670, %v4945
    %v5029 = vadd.f32 %v4671, %v4947
    %v5030 = vadd.f32 %v4672, %v4949
    %v5031 = vadd.f32 %v4673, %v4953
    %v5032 = vadd.f32 %v4674, %v4955
    %v5033 = vadd.f32 %v4675, %v4957
    %v5034 = vadd.f32 %v4676, %v4959
    %v5035 = vadd.f32 %v4677, %v4963
    %v5036 = vadd.f32 %v4678, %v4965
    %v5037 = vadd.f32 %v4679, %v4967
    %v5038 = vadd.f32 %v4680, %v4969
    %v5039 = vadd.f32 %v4681, %v4973
    %v5040 = vadd.f32 %v4682, %v4975
    %v5041 = vadd.f32 %v4683, %v4977
    %v5042 = vadd.f32 %v4684, %v4979
    %v5043 = vadd.f32 %v4685, %v4983
    %v5044 = vadd.f32 %v4686, %v4985
    %v5045 = vadd.f32 %v4687, %v4987
    %v5046 = vadd.f32 %v4688, %v4989
    %v5047 = vld [vmem:[#allocation3 + $0x20] sm:$0xff]
    %v5048 = vld [vmem:[#allocation3 + $0x28] sm:$0xff]
    %v5049 = vld [vmem:[#allocation3 + $0x30] sm:$0xff]
    %v5050 = vld [vmem:[#allocation3 + $0x38] sm:$0xff]
    %v5051 = vld [vmem:[#allocation3 + $0x40] sm:$0xff]
    %v5052 = vld [vmem:[#allocation3 + $0x48] sm:$0xff]
    %v5053 = vld [vmem:[#allocation3 + $0x50] sm:$0xff]
    %v5054 = vld [vmem:[#allocation3 + $0x58] sm:$0xff]
    %v5055 = vld [vmem:[#allocation3 + $0x60] sm:$0xff]
    %v5056 = vld [vmem:[#allocation3 + $0x68] sm:$0xff]
    %v5057 = vld [vmem:[#allocation3 + $0x70] sm:$0xff]
    %v5058 = vld [vmem:[#allocation3 + $0x78] sm:$0xff]
    %v5059 = vld [vmem:[#allocation3 + $0x80] sm:$0xff]
    %v5060 = vld [vmem:[#allocation3 + $0x88] sm:$0xff]
    %s5061 = scalar_lea.vmem [#allocation9], 352
    %v5062 = vld [vmem:[%s5061] sm:$0xff]
    %v5063 = vld [vmem:[%s5061 + $0x8] sm:$0xff]
    %v5064 = vld [vmem:[%s5061 + $0x10] sm:$0xff]
    %v5065 = vld [vmem:[%s5061 + $0x18] sm:$0xff]
    %v5066 = vld [vmem:[%s5061 + $0x20] sm:$0xff]
    %v5067 = vld [vmem:[%s5061 + $0x28] sm:$0xff]
    %v5068 = vld [vmem:[%s5061 + $0x30] sm:$0xff]
    %v5069 = vld [vmem:[%s5061 + $0x38] sm:$0xff]
    %v5070 = vld [vmem:[%s5061 + $0x40] sm:$0xff]
    %v5071 = vld [vmem:[%s5061 + $0x48] sm:$0xff]
    %v5072 = vld [vmem:[%s5061 + $0x50] sm:$0x33]
    %v5084 = vunpack.c.l.b16 %v5062
    %v5085 = vunpack.c.h.b16 %v5062
    %v5086 = vunpack.c.l.b16 %v5063
    %v5087 = vunpack.c.h.b16 %v5063
    %v5088 = vunpack.c.l.b16 %v5064
    %v5089 = vunpack.c.h.b16 %v5064
    %v5090 = vunpack.c.l.b16 %v5065
    %v5091 = vunpack.c.h.b16 %v5065
    %v5092 = vunpack.c.l.b16 %v5066
    %v5093 = vunpack.c.h.b16 %v5066
    %v5094 = vunpack.c.l.b16 %v5067
    %v5095 = vunpack.c.h.b16 %v5067
    %v5096 = vunpack.c.l.b16 %v5068
    %v5097 = vunpack.c.h.b16 %v5068
    %v5098 = vunpack.c.l.b16 %v5069
    %v5099 = vunpack.c.h.b16 %v5069
    %v5100 = vunpack.c.l.b16 %v5070
    %v5101 = vunpack.c.h.b16 %v5070
    %v5102 = vunpack.c.l.b16 %v5071
    %v5103 = vunpack.c.h.b16 %v5071
    %v5104 = vunpack.c.l.b16 %v5072
    %v5105 = vunpack.c.h.b16 %v5072
    %v5106 = vpack.c.b16 %v5086, %v5084
    %v5107 = vpack.c.b16 %v5087, %v5085
    %v5108 = vpack.c.b16 %v5090, %v5088
    %v5109 = vpack.c.b16 %v5091, %v5089
    %v5110 = vpack.c.b16 %v5094, %v5092
    %v5111 = vpack.c.b16 %v5095, %v5093
    %v5112 = vpack.c.b16 %v5098, %v5096
    %v5113 = vpack.c.b16 %v5099, %v5097
    %v5114 = vpack.c.b16 %v5102, %v5100
    %v5115 = vpack.c.b16 %v5103, %v5101
    %v5116 = vpack.c.b16 %v5104, %v5104
    %v5117 = vpack.c.b16 %v5105, %v5105
    %v5129 = vsel %vm139, %v5047, 0
    %v5132 = vsel %vm139, %v5048, 0
    %v5135 = vsel %vm139, %v5049, 0
    %v5138 = vsel %vm139, %v5050, 0
    %v5141 = vsel %vm139, %v5051, 0
    %v5144 = vsel %vm139, %v5052, 0
    %v5147 = vsel %vm139, %v5053, 0
    %v5150 = vsel %vm139, %v5054, 0
    %v5153 = vsel %vm139, %v5055, 0
    %v5156 = vsel %vm139, %v5056, 0
    %v5159 = vsel %vm139, %v5057, 0
    %v5162 = vsel %vm139, %v5058, 0
    %v5165 = vsel %vm139, %v5059, 0
    %v5168 = vsel %vm139, %v5060, 0
    %v5171 = vsel %vm3914, %v5116, 0
    %v5174 = vsel %vm3914, %v5117, 0
    %5176 = vmatprep.subr.bf16.mxu0 %v5107
    %5177 = vmatpush1.bf16.msra.mxu0 %v5106
    %5178 = vmatprep.subr.bf16.mxu0 %v5109
    %5179 = vmatpush1.bf16.msra.mxu0 %v5108
    %5180 = vmatprep.subr.bf16.mxu0 %v5111
    %5181 = vmatpush1.bf16.msra.mxu0 %v5110
    %5182 = vmatprep.subr.bf16.mxu0 %v5113
    %5183 = vmatpush1.bf16.msra.mxu0 %v5112
    %5184 = vmatprep.subr.bf16.mxu0 %v5115
    %5185 = vmatpush1.bf16.msra.mxu0 %v5114
    %5186 = vmatprep.subr.bf16.mxu0 %v5174
    %5187 = vmatpush1.bf16.msra.mxu0 %v5171
    %5188 = vmatprep.subr.bf16.mxu0 0
    %5189 = vmatpush1.bf16.msra.mxu0 0
    %5190 = vmatprep.subr.bf16.mxu0 0
    %5191 = vmatpush1.bf16.msra.mxu0 0
    %5192 = vmatprep.subr.bf16.mxu0 0
    %5193 = vmatpush1.bf16.msra.mxu0 0
    %5194 = vmatprep.subr.bf16.mxu0 0
    %5195 = vmatpush1.bf16.msra.mxu0 0
    %5196 = vmatprep.subr.bf16.mxu0 0
    %5197 = vmatpush1.bf16.msra.mxu0 0
    %5198 = vmatprep.subr.bf16.mxu0 0
    %5199 = vmatpush1.bf16.msra.mxu0 0
    %5200 = vmatprep.subr.bf16.mxu0 0
    %5201 = vmatpush1.bf16.msra.mxu0 0
    %5202 = vmatprep.subr.bf16.mxu0 0
    %5203 = vmatpush1.bf16.msra.mxu0 0
    %5204 = vmatprep.subr.bf16.mxu0 0
    %5205 = vmatpush1.bf16.msra.mxu0 0
    %5206 = vmatprep.subr.bf16.mxu0 0
    %5207 = vmatpush1.bf16.msra.mxu0 0
    %5208 = vmatprep.mubr.bf16.mxu0 0
    %5209 = vmatmul.mubr.bf16.gmra.mrb[0].mxu0 %v5129
    %v5210 = vpop.f32.mrb[0].mxu0
    %v5211 = vadd.f32 0.0, %v5210
    %v5212 = vpop.f32.mrb[0].mxu0
    %v5213 = vadd.f32 0.0, %v5212
    %v5214 = vpop.f32.mrb[0].mxu0
    %v5215 = vadd.f32 0.0, %v5214
    %v5216 = vpop.f32.mrb[0].mxu0
    %v5217 = vadd.f32 0.0, %v5216
    %5218 = vmatprep.mubr.bf16.mxu0 0
    %5219 = vmatmul.mubr.bf16.gmra.mrb[0].mxu0 %v5132
    %v5220 = vpop.f32.mrb[0].mxu0
    %v5221 = vadd.f32 0.0, %v5220
    %v5222 = vpop.f32.mrb[0].mxu0
    %v5223 = vadd.f32 0.0, %v5222
    %v5224 = vpop.f32.mrb[0].mxu0
    %v5225 = vadd.f32 0.0, %v5224
    %v5226 = vpop.f32.mrb[0].mxu0
    %v5227 = vadd.f32 0.0, %v5226
    %5228 = vmatprep.mubr.bf16.mxu0 0
    %5229 = vmatmul.mubr.bf16.gmra.mrb[0].mxu0 %v5135
    %v5230 = vpop.f32.mrb[0].mxu0
    %v5231 = vadd.f32 0.0, %v5230
    %v5232 = vpop.f32.mrb[0].mxu0
    %v5233 = vadd.f32 0.0, %v5232
    %v5234 = vpop.f32.mrb[0].mxu0
    %v5235 = vadd.f32 0.0, %v5234
    %v5236 = vpop.f32.mrb[0].mxu0
    %v5237 = vadd.f32 0.0, %v5236
    %5238 = vmatprep.mubr.bf16.mxu0 0
    %5239 = vmatmul.mubr.bf16.gmra.mrb[0].mxu0 %v5138
    %v5240 = vpop.f32.mrb[0].mxu0
    %v5241 = vadd.f32 0.0, %v5240
    %v5242 = vpop.f32.mrb[0].mxu0
    %v5243 = vadd.f32 0.0, %v5242
    %v5244 = vpop.f32.mrb[0].mxu0
    %v5245 = vadd.f32 0.0, %v5244
    %v5246 = vpop.f32.mrb[0].mxu0
    %v5247 = vadd.f32 0.0, %v5246
    %5248 = vmatprep.mubr.bf16.mxu0 0
    %5249 = vmatmul.mubr.bf16.gmra.mrb[0].mxu0 %v5141
    %v5250 = vpop.f32.mrb[0].mxu0
    %v5251 = vadd.f32 0.0, %v5250
    %v5252 = vpop.f32.mrb[0].mxu0
    %v5253 = vadd.f32 0.0, %v5252
    %v5254 = vpop.f32.mrb[0].mxu0
    %v5255 = vadd.f32 0.0, %v5254
    %v5256 = vpop.f32.mrb[0].mxu0
    %v5257 = vadd.f32 0.0, %v5256
    %5258 = vmatprep.mubr.bf16.mxu0 0
    %5259 = vmatmul.mubr.bf16.gmra.mrb[0].mxu0 %v5144
    %v5260 = vpop.f32.mrb[0].mxu0
    %v5261 = vadd.f32 0.0, %v5260
    %v5262 = vpop.f32.mrb[0].mxu0
    %v5263 = vadd.f32 0.0, %v5262
    %v5264 = vpop.f32.mrb[0].mxu0
    %v5265 = vadd.f32 0.0, %v5264
    %v5266 = vpop.f32.mrb[0].mxu0
    %v5267 = vadd.f32 0.0, %v5266
    %5268 = vmatprep.mubr.bf16.mxu0 0
    %5269 = vmatmul.mubr.bf16.gmra.mrb[0].mxu0 %v5147
    %v5270 = vpop.f32.mrb[0].mxu0
    %v5271 = vadd.f32 0.0, %v5270
    %v5272 = vpop.f32.mrb[0].mxu0
    %v5273 = vadd.f32 0.0, %v5272
    %v5274 = vpop.f32.mrb[0].mxu0
    %v5275 = vadd.f32 0.0, %v5274
    %v5276 = vpop.f32.mrb[0].mxu0
    %v5277 = vadd.f32 0.0, %v5276
    %5278 = vmatprep.mubr.bf16.mxu0 0
    %5279 = vmatmul.mubr.bf16.gmra.mrb[0].mxu0 %v5150
    %v5280 = vpop.f32.mrb[0].mxu0
    %v5281 = vadd.f32 0.0, %v5280
    %v5282 = vpop.f32.mrb[0].mxu0
    %v5283 = vadd.f32 0.0, %v5282
    %v5284 = vpop.f32.mrb[0].mxu0
    %v5285 = vadd.f32 0.0, %v5284
    %v5286 = vpop.f32.mrb[0].mxu0
    %v5287 = vadd.f32 0.0, %v5286
    %5288 = vmatprep.mubr.bf16.mxu0 0
    %5289 = vmatmul.mubr.bf16.gmra.mrb[0].mxu0 %v5153
    %v5290 = vpop.f32.mrb[0].mxu0
    %v5291 = vadd.f32 0.0, %v5290
    %v5292 = vpop.f32.mrb[0].mxu0
    %v5293 = vadd.f32 0.0, %v5292
    %v5294 = vpop.f32.mrb[0].mxu0
    %v5295 = vadd.f32 0.0, %v5294
    %v5296 = vpop.f32.mrb[0].mxu0
    %v5297 = vadd.f32 0.0, %v5296
    %5298 = vmatprep.mubr.bf16.mxu0 0
    %5299 = vmatmul.mubr.bf16.gmra.mrb[0].mxu0 %v5156
    %v5300 = vpop.f32.mrb[0].mxu0
    %v5301 = vadd.f32 0.0, %v5300
    %v5302 = vpop.f32.mrb[0].mxu0
    %v5303 = vadd.f32 0.0, %v5302
    %v5304 = vpop.f32.mrb[0].mxu0
    %v5305 = vadd.f32 0.0, %v5304
    %v5306 = vpop.f32.mrb[0].mxu0
    %v5307 = vadd.f32 0.0, %v5306
    %5308 = vmatprep.mubr.bf16.mxu0 0
    %5309 = vmatmul.mubr.bf16.gmra.mrb[0].mxu0 %v5159
    %v5310 = vpop.f32.mrb[0].mxu0
    %v5311 = vadd.f32 0.0, %v5310
    %v5312 = vpop.f32.mrb[0].mxu0
    %v5313 = vadd.f32 0.0, %v5312
    %v5314 = vpop.f32.mrb[0].mxu0
    %v5315 = vadd.f32 0.0, %v5314
    %v5316 = vpop.f32.mrb[0].mxu0
    %v5317 = vadd.f32 0.0, %v5316
    %5318 = vmatprep.mubr.bf16.mxu0 0
    %5319 = vmatmul.mubr.bf16.gmra.mrb[0].mxu0 %v5162
    %v5320 = vpop.f32.mrb[0].mxu0
    %v5321 = vadd.f32 0.0, %v5320
    %v5322 = vpop.f32.mrb[0].mxu0
    %v5323 = vadd.f32 0.0, %v5322
    %v5324 = vpop.f32.mrb[0].mxu0
    %v5325 = vadd.f32 0.0, %v5324
    %v5326 = vpop.f32.mrb[0].mxu0
    %v5327 = vadd.f32 0.0, %v5326
    %5328 = vmatprep.mubr.bf16.mxu0 0
    %5329 = vmatmul.mubr.bf16.gmra.mrb[0].mxu0 %v5165
    %v5330 = vpop.f32.mrb[0].mxu0
    %v5331 = vadd.f32 0.0, %v5330
    %v5332 = vpop.f32.mrb[0].mxu0
    %v5333 = vadd.f32 0.0, %v5332
    %v5334 = vpop.f32.mrb[0].mxu0
    %v5335 = vadd.f32 0.0, %v5334
    %v5336 = vpop.f32.mrb[0].mxu0
    %v5337 = vadd.f32 0.0, %v5336
    %5338 = vmatprep.mubr.bf16.mxu0 0
    %5339 = vmatmul.mubr.bf16.gmra.mrb[0].mxu0 %v5168
    %v5340 = vpop.f32.mrb[0].mxu0
    %v5341 = vadd.f32 0.0, %v5340
    %v5342 = vpop.f32.mrb[0].mxu0
    %v5343 = vadd.f32 0.0, %v5342
    %v5344 = vpop.f32.mrb[0].mxu0
    %v5345 = vadd.f32 0.0, %v5344
    %v5346 = vpop.f32.mrb[0].mxu0
    %v5347 = vadd.f32 0.0, %v5346
    %5348 = vdwg.mxu0
    %v5349 = vadd.f32 %v4991, %v5211
    %v5350 = vadd.f32 %v4992, %v5213
    %v5351 = vadd.f32 %v4993, %v5215
    %v5352 = vadd.f32 %v4994, %v5217
    %v5353 = vadd.f32 %v4995, %v5221
    %v5354 = vadd.f32 %v4996, %v5223
    %v5355 = vadd.f32 %v4997, %v5225
    %v5356 = vadd.f32 %v4998, %v5227
    %v5357 = vadd.f32 %v4999, %v5231
    %v5358 = vadd.f32 %v5000, %v5233
    %v5359 = vadd.f32 %v5001, %v5235
    %v5360 = vadd.f32 %v5002, %v5237
    %v5361 = vadd.f32 %v5003, %v5241
    %v5362 = vadd.f32 %v5004, %v5243
    %v5363 = vadd.f32 %v5005, %v5245
    %v5364 = vadd.f32 %v5006, %v5247
    %v5365 = vadd.f32 %v5007, %v5251
    %v5366 = vadd.f32 %v5008, %v5253
    %v5367 = vadd.f32 %v5009, %v5255
    %v5368 = vadd.f32 %v5010, %v5257
    %v5369 = vadd.f32 %v5011, %v5261
    %v5370 = vadd.f32 %v5012, %v5263
    %v5371 = vadd.f32 %v5013, %v5265
    %v5372 = vadd.f32 %v5014, %v5267
    %v5373 = vadd.f32 %v5015, %v5271
    %v5374 = vadd.f32 %v5016, %v5273
    %v5375 = vadd.f32 %v5017, %v5275
    %v5376 = vadd.f32 %v5018, %v5277
    %v5377 = vadd.f32 %v5019, %v5281
    %v5378 = vadd.f32 %v5020, %v5283
    %v5379 = vadd.f32 %v5021, %v5285
    %v5380 = vadd.f32 %v5022, %v5287
    %v5381 = vadd.f32 %v5023, %v5291
    %v5382 = vadd.f32 %v5024, %v5293
    %v5383 = vadd.f32 %v5025, %v5295
    %v5384 = vadd.f32 %v5026, %v5297
    %v5385 = vadd.f32 %v5027, %v5301
    %v5386 = vadd.f32 %v5028, %v5303
    %v5387 = vadd.f32 %v5029, %v5305
    %v5388 = vadd.f32 %v5030, %v5307
    %v5389 = vadd.f32 %v5031, %v5311
    %v5390 = vadd.f32 %v5032, %v5313
    %v5391 = vadd.f32 %v5033, %v5315
    %v5392 = vadd.f32 %v5034, %v5317
    %v5393 = vadd.f32 %v5035, %v5321
    %v5394 = vadd.f32 %v5036, %v5323
    %v5395 = vadd.f32 %v5037, %v5325
    %v5396 = vadd.f32 %v5038, %v5327
    %v5397 = vadd.f32 %v5039, %v5331
    %v5398 = vadd.f32 %v5040, %v5333
    %v5399 = vadd.f32 %v5041, %v5335
    %v5400 = vadd.f32 %v5042, %v5337
    %v5401 = vadd.f32 %v5043, %v5341
    %v5402 = vadd.f32 %v5044, %v5343
    %v5403 = vadd.f32 %v5045, %v5345
    %v5404 = vadd.f32 %v5046, %v5347
    %v5405 = vld [vmem:[#allocation11] sm:$0x3]
    %v5407 = vlaneseq
    %v5408 = vshrl.u32 %v5407, 7
    %v5409 = vsub.s32 0, %v5408
    %v5410 = vrot.slane %v5405, %v5409
    %v5411 = vlaneseq
    %v5412 = vshrl.u32 %v5411, 7
    %v5413 = vsub.s32 1, %v5412
    %v5414 = vrot.slane %v5405, %v5413
    %v5417 = vadd.f32 %v5349, %v5410
    %v5418 = vadd.f32 %v5350, %v5414
    %v5419 = vadd.f32 %v5351, %v5410
    %v5420 = vadd.f32 %v5352, %v5414
    %v5421 = vadd.f32 %v5353, %v5410
    %v5422 = vadd.f32 %v5354, %v5414
    %v5423 = vadd.f32 %v5355, %v5410
    %v5424 = vadd.f32 %v5356, %v5414
    %v5425 = vadd.f32 %v5357, %v5410
    %v5426 = vadd.f32 %v5358, %v5414
    %v5427 = vadd.f32 %v5359, %v5410
    %v5428 = vadd.f32 %v5360, %v5414
    %v5429 = vadd.f32 %v5361, %v5410
    %v5430 = vadd.f32 %v5362, %v5414
    %v5431 = vadd.f32 %v5363, %v5410
    %v5432 = vadd.f32 %v5364, %v5414
    %v5433 = vadd.f32 %v5365, %v5410
    %v5434 = vadd.f32 %v5366, %v5414
    %v5435 = vadd.f32 %v5367, %v5410
    %v5436 = vadd.f32 %v5368, %v5414
    %v5437 = vadd.f32 %v5369, %v5410
    %v5438 = vadd.f32 %v5370, %v5414
    %v5439 = vadd.f32 %v5371, %v5410
    %v5440 = vadd.f32 %v5372, %v5414
    %v5441 = vadd.f32 %v5373, %v5410
    %v5442 = vadd.f32 %v5374, %v5414
    %v5443 = vadd.f32 %v5375, %v5410
    %v5444 = vadd.f32 %v5376, %v5414
    %v5445 = vadd.f32 %v5377, %v5410
    %v5446 = vadd.f32 %v5378, %v5414
    %v5447 = vadd.f32 %v5379, %v5410
    %v5448 = vadd.f32 %v5380, %v5414
    %v5449 = vadd.f32 %v5381, %v5410
    %v5450 = vadd.f32 %v5382, %v5414
    %v5451 = vadd.f32 %v5383, %v5410
    %v5452 = vadd.f32 %v5384, %v5414
    %v5453 = vadd.f32 %v5385, %v5410
    %v5454 = vadd.f32 %v5386, %v5414
    %v5455 = vadd.f32 %v5387, %v5410
    %v5456 = vadd.f32 %v5388, %v5414
    %v5457 = vadd.f32 %v5389, %v5410
    %v5458 = vadd.f32 %v5390, %v5414
    %v5459 = vadd.f32 %v5391, %v5410
    %v5460 = vadd.f32 %v5392, %v5414
    %v5461 = vadd.f32 %v5393, %v5410
    %v5462 = vadd.f32 %v5394, %v5414
    %v5463 = vadd.f32 %v5395, %v5410
    %v5464 = vadd.f32 %v5396, %v5414
    %v5465 = vadd.f32 %v5397, %v5410
    %v5466 = vadd.f32 %v5398, %v5414
    %v5467 = vadd.f32 %v5399, %v5410
    %v5468 = vadd.f32 %v5400, %v5414
    %v5469 = vadd.f32 %v5401, %v5410
    %v5470 = vadd.f32 %v5402, %v5414
    %v5471 = vadd.f32 %v5403, %v5410
    %v5472 = vadd.f32 %v5404, %v5414
    %v5473 = vmax.f32 %v5417, 0.0
    %v5474 = vmax.f32 %v5418, 0.0
    %v5475 = vmax.f32 %v5419, 0.0
    %v5476 = vmax.f32 %v5420, 0.0
    %v5477 = vmax.f32 %v5421, 0.0
    %v5478 = vmax.f32 %v5422, 0.0
    %v5479 = vmax.f32 %v5423, 0.0
    %v5480 = vmax.f32 %v5424, 0.0
    %v5481 = vmax.f32 %v5425, 0.0
    %v5482 = vmax.f32 %v5426, 0.0
    %v5483 = vmax.f32 %v5427, 0.0
    %v5484 = vmax.f32 %v5428, 0.0
    %v5485 = vmax.f32 %v5429, 0.0
    %v5486 = vmax.f32 %v5430, 0.0
    %v5487 = vmax.f32 %v5431, 0.0
    %v5488 = vmax.f32 %v5432, 0.0
    %v5489 = vmax.f32 %v5433, 0.0
    %v5490 = vmax.f32 %v5434, 0.0
    %v5491 = vmax.f32 %v5435, 0.0
    %v5492 = vmax.f32 %v5436, 0.0
    %v5493 = vmax.f32 %v5437, 0.0
    %v5494 = vmax.f32 %v5438, 0.0
    %v5495 = vmax.f32 %v5439, 0.0
    %v5496 = vmax.f32 %v5440, 0.0
    %v5497 = vmax.f32 %v5441, 0.0
    %v5498 = vmax.f32 %v5442, 0.0
    %v5499 = vmax.f32 %v5443, 0.0
    %v5500 = vmax.f32 %v5444, 0.0
    %v5501 = vmax.f32 %v5445, 0.0
    %v5502 = vmax.f32 %v5446, 0.0
    %v5503 = vmax.f32 %v5447, 0.0
    %v5504 = vmax.f32 %v5448, 0.0
    %v5505 = vmax.f32 %v5449, 0.0
    %v5506 = vmax.f32 %v5450, 0.0
    %v5507 = vmax.f32 %v5451, 0.0
    %v5508 = vmax.f32 %v5452, 0.0
    %v5509 = vmax.f32 %v5453, 0.0
    %v5510 = vmax.f32 %v5454, 0.0
    %v5511 = vmax.f32 %v5455, 0.0
    %v5512 = vmax.f32 %v5456, 0.0
    %v5513 = vmax.f32 %v5457, 0.0
    %v5514 = vmax.f32 %v5458, 0.0
    %v5515 = vmax.f32 %v5459, 0.0
    %v5516 = vmax.f32 %v5460, 0.0
    %v5517 = vmax.f32 %v5461, 0.0
    %v5518 = vmax.f32 %v5462, 0.0
    %v5519 = vmax.f32 %v5463, 0.0
    %v5520 = vmax.f32 %v5464, 0.0
    %v5521 = vmax.f32 %v5465, 0.0
    %v5522 = vmax.f32 %v5466, 0.0
    %v5523 = vmax.f32 %v5467, 0.0
    %v5524 = vmax.f32 %v5468, 0.0
    %v5525 = vmax.f32 %v5469, 0.0
    %v5526 = vmax.f32 %v5470, 0.0
    %v5527 = vmax.f32 %v5471, 0.0
    %v5528 = vmax.f32 %v5472, 0.0
    %v5529 = vmax.f32 %v5473, %v5477
    %v5530 = vmax.f32 %v5474, %v5478
    %v5531 = vmax.f32 %v5475, %v5479
    %v5532 = vmax.f32 %v5476, %v5480
    %v5533 = vmax.f32 %v5481, %v5485
    %v5534 = vmax.f32 %v5482, %v5486
    %v5535 = vmax.f32 %v5483, %v5487
    %v5536 = vmax.f32 %v5484, %v5488
    %v5537 = vmax.f32 %v5489, %v5493
    %v5538 = vmax.f32 %v5490, %v5494
    %v5539 = vmax.f32 %v5491, %v5495
    %v5540 = vmax.f32 %v5492, %v5496
    %v5541 = vmax.f32 %v5497, %v5501
    %v5542 = vmax.f32 %v5498, %v5502
    %v5543 = vmax.f32 %v5499, %v5503
    %v5544 = vmax.f32 %v5500, %v5504
    %v5545 = vmax.f32 %v5505, %v5509
    %v5546 = vmax.f32 %v5506, %v5510
    %v5547 = vmax.f32 %v5507, %v5511
    %v5548 = vmax.f32 %v5508, %v5512
    %v5549 = vmax.f32 %v5513, %v5517
    %v5550 = vmax.f32 %v5514, %v5518
    %v5551 = vmax.f32 %v5515, %v5519
    %v5552 = vmax.f32 %v5516, %v5520
    %v5553 = vmax.f32 %v5521, %v5525
    %v5554 = vmax.f32 %v5522, %v5526
    %v5555 = vmax.f32 %v5523, %v5527
    %v5556 = vmax.f32 %v5524, %v5528
    %v5557 = vpack.c.bf16 %v5531, %v5529
    %v5558 = vpack.c.bf16 %v5532, %v5530
    %v5559 = vpack.c.bf16 %v5535, %v5533
    %v5560 = vpack.c.bf16 %v5536, %v5534
    %v5561 = vpack.c.bf16 %v5539, %v5537
    %v5562 = vpack.c.bf16 %v5540, %v5538
    %v5563 = vpack.c.bf16 %v5543, %v5541
    %v5564 = vpack.c.bf16 %v5544, %v5542
    %v5565 = vpack.c.bf16 %v5547, %v5545
    %v5566 = vpack.c.bf16 %v5548, %v5546
    %v5567 = vpack.c.bf16 %v5551, %v5549
    %v5568 = vpack.c.bf16 %v5552, %v5550
    %v5569 = vpack.c.bf16 %v5555, %v5553
    %v5570 = vpack.c.bf16 %v5556, %v5554
    %v5571 = vld [vmem:[%s6] sm:$0xf]
    %v5572 = vld [vmem:[%s6 + $0x4] sm:$0xf]
    %v5573 = vld [vmem:[%s6 + $0x8] sm:$0xf]
    %v5574 = vld [vmem:[%s6 + $0xc] sm:$0xf]
    %v5575 = vld [vmem:[%s6 + $0x10] sm:$0xf]
    %v5576 = vld [vmem:[%s6 + $0x14] sm:$0xf]
    %v5577 = vld [vmem:[%s6 + $0x18] sm:$0xf]
    %v5578 = vld [vmem:[%s6 + $0x1c] sm:$0xf]
    %v5579 = vld [vmem:[%s6 + $0x20] sm:$0xf]
    %v5580 = vld [vmem:[%s6 + $0x24] sm:$0xf]
    %v5581 = vld [vmem:[%s6 + $0x28] sm:$0xf]
    %v5582 = vld [vmem:[%s6 + $0x2c] sm:$0xf]
    %v5583 = vld [vmem:[%s6 + $0x30] sm:$0xf]
    %v5584 = vld [vmem:[%s6 + $0x34] sm:$0xf]
    %v5585 = vld [vmem:[%s6 + $0x38] sm:$0xf]
    %v5586 = vld [vmem:[%s6 + $0x3c] sm:$0xf]
    %v5587 = vld [vmem:[%s6 + $0x40] sm:$0xf]
    %v5588 = vld [vmem:[%s6 + $0x44] sm:$0xf]
    %v5589 = vld [vmem:[%s6 + $0x48] sm:$0xf]
    %v5590 = vld [vmem:[%s6 + $0x4c] sm:$0xf]
    %v5591 = vld [vmem:[%s6 + $0x50] sm:$0xf]
    %v5592 = vld [vmem:[%s6 + $0x54] sm:$0xf]
    %v5593 = vld [vmem:[%s6 + $0x58] sm:$0xf]
    %v5594 = vld [vmem:[%s6 + $0x5c] sm:$0xf]
    %v5595 = vld [vmem:[%s6 + $0x60] sm:$0xf]
    %v5596 = vld [vmem:[%s6 + $0x64] sm:$0xf]
    %v5597 = vld [vmem:[%s6 + $0x68] sm:$0xf]
    %v5598 = vld [vmem:[%s6 + $0x6c] sm:$0xf]
    %v5627 = vunpack.c.l.b16 %v5571
    %v5628 = vunpack.c.l.b16 %v5572
    %v5629 = vunpack.c.l.b16 %v5573
    %v5630 = vunpack.c.l.b16 %v5574
    %v5631 = vunpack.c.l.b16 %v5575
    %v5632 = vunpack.c.l.b16 %v5576
    %v5633 = vunpack.c.l.b16 %v5577
    %v5634 = vunpack.c.l.b16 %v5578
    %v5635 = vunpack.c.l.b16 %v5579
    %v5636 = vunpack.c.l.b16 %v5580
    %v5637 = vunpack.c.l.b16 %v5581
    %v5638 = vunpack.c.l.b16 %v5582
    %v5639 = vunpack.c.l.b16 %v5583
    %v5640 = vunpack.c.l.b16 %v5584
    %v5641 = vunpack.c.l.b16 %v5585
    %v5642 = vunpack.c.l.b16 %v5586
    %v5643 = vunpack.c.l.b16 %v5587
    %v5644 = vunpack.c.l.b16 %v5588
    %v5645 = vunpack.c.l.b16 %v5589
    %v5646 = vunpack.c.l.b16 %v5590
    %v5647 = vunpack.c.l.b16 %v5591
    %v5648 = vunpack.c.l.b16 %v5592
    %v5649 = vunpack.c.l.b16 %v5593
    %v5650 = vunpack.c.l.b16 %v5594
    %v5651 = vunpack.c.l.b16 %v5595
    %v5652 = vunpack.c.l.b16 %v5596
    %v5653 = vunpack.c.l.b16 %v5597
    %v5654 = vunpack.c.l.b16 %v5598
    %v5655 = vpack.c.b16 %v5628, %v5627
    %v5656 = vpack.c.b16 %v5630, %v5629
    %v5657 = vpack.c.b16 %v5632, %v5631
    %v5658 = vpack.c.b16 %v5634, %v5633
    %v5659 = vpack.c.b16 %v5636, %v5635
    %v5660 = vpack.c.b16 %v5638, %v5637
    %v5661 = vpack.c.b16 %v5640, %v5639
    %v5662 = vpack.c.b16 %v5642, %v5641
    %v5663 = vpack.c.b16 %v5644, %v5643
    %v5664 = vpack.c.b16 %v5646, %v5645
    %v5665 = vpack.c.b16 %v5648, %v5647
    %v5666 = vpack.c.b16 %v5650, %v5649
    %v5667 = vpack.c.b16 %v5652, %v5651
    %v5668 = vpack.c.b16 %v5654, %v5653
    %vm5683 = vcmask 785408
    %v5685 = vsel %vm5683, %v5558, 0
    %v5688 = vsel %vm5683, %v5560, 0
    %v5691 = vsel %vm5683, %v5562, 0
    %v5694 = vsel %vm5683, %v5564, 0
    %v5697 = vsel %vm5683, %v5566, 0
    %v5700 = vsel %vm5683, %v5568, 0
    %v5703 = vsel %vm5683, %v5570, 0
    %5705 = vmatprep.subr.bf16.mxu0 0
    %5706 = vmatpush1.bf16.msra.mxu0 %v5655
    %5707 = vmatprep.subr.bf16.mxu0 0
    %5708 = vmatpush1.bf16.msra.mxu0 %v5656
    %5709 = vmatprep.subr.bf16.mxu0 0
    %5710 = vmatpush1.bf16.msra.mxu0 %v5657
    %5711 = vmatprep.subr.bf16.mxu0 0
    %5712 = vmatpush1.bf16.msra.mxu0 %v5658
    %5713 = vmatprep.subr.bf16.mxu0 0
    %5714 = vmatpush1.bf16.msra.mxu0 %v5659
    %5715 = vmatprep.subr.bf16.mxu0 0
    %5716 = vmatpush1.bf16.msra.mxu0 %v5660
    %5717 = vmatprep.subr.bf16.mxu0 0
    %5718 = vmatpush1.bf16.msra.mxu0 %v5661
    %5719 = vmatprep.subr.bf16.mxu0 0
    %5720 = vmatpush1.bf16.msra.mxu0 %v5662
    %5721 = vmatprep.subr.bf16.mxu0 0
    %5722 = vmatpush1.bf16.msra.mxu0 %v5663
    %5723 = vmatprep.subr.bf16.mxu0 0
    %5724 = vmatpush1.bf16.msra.mxu0 %v5664
    %5725 = vmatprep.subr.bf16.mxu0 0
    %5726 = vmatpush1.bf16.msra.mxu0 %v5665
    %5727 = vmatprep.subr.bf16.mxu0 0
    %5728 = vmatpush1.bf16.msra.mxu0 %v5666
    %5729 = vmatprep.subr.bf16.mxu0 0
    %5730 = vmatpush1.bf16.msra.mxu0 %v5667
    %5731 = vmatprep.subr.bf16.mxu0 0
    %5732 = vmatpush1.bf16.msra.mxu0 %v5668
    %5733 = vmatprep.subr.bf16.mxu0 0
    %5734 = vmatpush1.bf16.msra.mxu0 0
    %5735 = vmatprep.subr.bf16.mxu0 0
    %5736 = vmatpush1.bf16.msra.mxu0 0
    %5737 = vmatprep.mubr.bf16.mxu0 %v5685
    %5738 = vmatmul.mubr.bf16.gmra.mrb[0].mxu0 %v5557
    %v5739 = vpop.f32.mrb[0].mxu0
    %v5740 = vadd.f32 0.0, %v5739
    %v5741 = vpop.f32.mrb[0].mxu0
    %v5742 = vpop.f32.mrb[0].mxu0
    %v5743 = vadd.f32 0.0, %v5742
    %v5744 = vpop.f32.mrb[0].mxu0
    %5745 = vmatprep.mubr.bf16.mxu0 %v5688
    %5746 = vmatmul.mubr.bf16.gmra.mrb[0].mxu0 %v5559
    %v5747 = vpop.f32.mrb[0].mxu0
    %v5748 = vadd.f32 0.0, %v5747
    %v5749 = vpop.f32.mrb[0].mxu0
    %v5750 = vpop.f32.mrb[0].mxu0
    %v5751 = vadd.f32 0.0, %v5750
    %v5752 = vpop.f32.mrb[0].mxu0
    %5753 = vmatprep.mubr.bf16.mxu0 %v5691
    %5754 = vmatmul.mubr.bf16.gmra.mrb[0].mxu0 %v5561
    %v5755 = vpop.f32.mrb[0].mxu0
    %v5756 = vadd.f32 0.0, %v5755
    %v5757 = vpop.f32.mrb[0].mxu0
    %v5758 = vpop.f32.mrb[0].mxu0
    %v5759 = vadd.f32 0.0, %v5758
    %v5760 = vpop.f32.mrb[0].mxu0
    %5761 = vmatprep.mubr.bf16.mxu0 %v5694
    %5762 = vmatmul.mubr.bf16.gmra.mrb[0].mxu0 %v5563
    %v5763 = vpop.f32.mrb[0].mxu0
    %v5764 = vadd.f32 0.0, %v5763
    %v5765 = vpop.f32.mrb[0].mxu0
    %v5766 = vpop.f32.mrb[0].mxu0
    %v5767 = vadd.f32 0.0, %v5766
    %v5768 = vpop.f32.mrb[0].mxu0
    %5769 = vmatprep.mubr.bf16.mxu0 %v5697
    %5770 = vmatmul.mubr.bf16.gmra.mrb[0].mxu0 %v5565
    %v5771 = vpop.f32.mrb[0].mxu0
    %v5772 = vadd.f32 0.0, %v5771
    %v5773 = vpop.f32.mrb[0].mxu0
    %v5774 = vpop.f32.mrb[0].mxu0
    %v5775 = vadd.f32 0.0, %v5774
    %v5776 = vpop.f32.mrb[0].mxu0
    %5777 = vmatprep.mubr.bf16.mxu0 %v5700
    %5778 = vmatmul.mubr.bf16.gmra.mrb[0].mxu0 %v5567
    %v5779 = vpop.f32.mrb[0].mxu0
    %v5780 = vadd.f32 0.0, %v5779
    %v5781 = vpop.f32.mrb[0].mxu0
    %v5782 = vpop.f32.mrb[0].mxu0
    %v5783 = vadd.f32 0.0, %v5782
    %v5784 = vpop.f32.mrb[0].mxu0
    %5785 = vmatprep.mubr.bf16.mxu0 %v5703
    %5786 = vmatmul.mubr.bf16.gmra.mrb[0].mxu0 %v5569
    %v5787 = vpop.f32.mrb[0].mxu0
    %v5788 = vadd.f32 0.0, %v5787
    %v5789 = vpop.f32.mrb[0].mxu0
    %v5790 = vpop.f32.mrb[0].mxu0
    %v5791 = vadd.f32 0.0, %v5790
    %v5792 = vpop.f32.mrb[0].mxu0
    %5793 = vdwg.mxu0
    %s5794 = scalar_lea.vmem %s6, 112
    %v5795 = vld [vmem:[%s5794] sm:$0xf]
    %v5796 = vld [vmem:[%s5794 + $0x4] sm:$0xf]
    %v5797 = vld [vmem:[%s5794 + $0x8] sm:$0xf]
    %v5798 = vld [vmem:[%s5794 + $0xc] sm:$0xf]
    %v5799 = vld [vmem:[%s5794 + $0x10] sm:$0xf]
    %v5800 = vld [vmem:[%s5794 + $0x14] sm:$0xf]
    %v5801 = vld [vmem:[%s5794 + $0x18] sm:$0xf]
    %v5802 = vld [vmem:[%s5794 + $0x1c] sm:$0xf]
    %v5803 = vld [vmem:[%s5794 + $0x20] sm:$0xf]
    %v5804 = vld [vmem:[%s5794 + $0x24] sm:$0xf]
    %v5805 = vld [vmem:[%s5794 + $0x28] sm:$0xf]
    %v5806 = vld [vmem:[%s5794 + $0x2c] sm:$0xf]
    %v5807 = vld [vmem:[%s5794 + $0x30] sm:$0xf]
    %v5808 = vld [vmem:[%s5794 + $0x34] sm:$0xf]
    %v5809 = vld [vmem:[%s5794 + $0x38] sm:$0xf]
    %v5810 = vld [vmem:[%s5794 + $0x3c] sm:$0xf]
    %v5811 = vld [vmem:[%s5794 + $0x40] sm:$0xf]
    %v5812 = vld [vmem:[%s5794 + $0x44] sm:$0xf]
    %v5813 = vld [vmem:[%s5794 + $0x48] sm:$0xf]
    %v5814 = vld [vmem:[%s5794 + $0x4c] sm:$0xf]
    %v5815 = vld [vmem:[%s5794 + $0x50] sm:$0xf]
    %v5816 = vld [vmem:[%s5794 + $0x54] sm:$0xf]
    %v5817 = vld [vmem:[%s5794 + $0x58] sm:$0xf]
    %v5818 = vld [vmem:[%s5794 + $0x5c] sm:$0xf]
    %v5819 = vld [vmem:[%s5794 + $0x60] sm:$0xf]
    %v5820 = vld [vmem:[%s5794 + $0x64] sm:$0xf]
    %v5821 = vld [vmem:[%s5794 + $0x68] sm:$0xf]
    %v5822 = vld [vmem:[%s5794 + $0x6c] sm:$0xf]
    %v5851 = vunpack.c.l.b16 %v5795
    %v5852 = vunpack.c.l.b16 %v5796
    %v5853 = vunpack.c.l.b16 %v5797
    %v5854 = vunpack.c.l.b16 %v5798
    %v5855 = vunpack.c.l.b16 %v5799
    %v5856 = vunpack.c.l.b16 %v5800
    %v5857 = vunpack.c.l.b16 %v5801
    %v5858 = vunpack.c.l.b16 %v5802
    %v5859 = vunpack.c.l.b16 %v5803
    %v5860 = vunpack.c.l.b16 %v5804
    %v5861 = vunpack.c.l.b16 %v5805
    %v5862 = vunpack.c.l.b16 %v5806
    %v5863 = vunpack.c.l.b16 %v5807
    %v5864 = vunpack.c.l.b16 %v5808
    %v5865 = vunpack.c.l.b16 %v5809
    %v5866 = vunpack.c.l.b16 %v5810
    %v5867 = vunpack.c.l.b16 %v5811
    %v5868 = vunpack.c.l.b16 %v5812
    %v5869 = vunpack.c.l.b16 %v5813
    %v5870 = vunpack.c.l.b16 %v5814
    %v5871 = vunpack.c.l.b16 %v5815
    %v5872 = vunpack.c.l.b16 %v5816
    %v5873 = vunpack.c.l.b16 %v5817
    %v5874 = vunpack.c.l.b16 %v5818
    %v5875 = vunpack.c.l.b16 %v5819
    %v5876 = vunpack.c.l.b16 %v5820
    %v5877 = vunpack.c.l.b16 %v5821
    %v5878 = vunpack.c.l.b16 %v5822
    %v5879 = vpack.c.b16 %v5852, %v5851
    %v5880 = vpack.c.b16 %v5854, %v5853
    %v5881 = vpack.c.b16 %v5856, %v5855
    %v5882 = vpack.c.b16 %v5858, %v5857
    %v5883 = vpack.c.b16 %v5860, %v5859
    %v5884 = vpack.c.b16 %v5862, %v5861
    %v5885 = vpack.c.b16 %v5864, %v5863
    %v5886 = vpack.c.b16 %v5866, %v5865
    %v5887 = vpack.c.b16 %v5868, %v5867
    %v5888 = vpack.c.b16 %v5870, %v5869
    %v5889 = vpack.c.b16 %v5872, %v5871
    %v5890 = vpack.c.b16 %v5874, %v5873
    %v5891 = vpack.c.b16 %v5876, %v5875
    %v5892 = vpack.c.b16 %v5878, %v5877
    %5907 = vmatprep.subr.bf16.mxu0 0
    %5908 = vmatpush1.bf16.msra.mxu0 %v5879
    %5909 = vmatprep.subr.bf16.mxu0 0
    %5910 = vmatpush1.bf16.msra.mxu0 %v5880
    %5911 = vmatprep.subr.bf16.mxu0 0
    %5912 = vmatpush1.bf16.msra.mxu0 %v5881
    %5913 = vmatprep.subr.bf16.mxu0 0
    %5914 = vmatpush1.bf16.msra.mxu0 %v5882
    %5915 = vmatprep.subr.bf16.mxu0 0
    %5916 = vmatpush1.bf16.msra.mxu0 %v5883
    %5917 = vmatprep.subr.bf16.mxu0 0
    %5918 = vmatpush1.bf16.msra.mxu0 %v5884
    %5919 = vmatprep.subr.bf16.mxu0 0
    %5920 = vmatpush1.bf16.msra.mxu0 %v5885
    %5921 = vmatprep.subr.bf16.mxu0 0
    %5922 = vmatpush1.bf16.msra.mxu0 %v5886
    %5923 = vmatprep.subr.bf16.mxu0 0
    %5924 = vmatpush1.bf16.msra.mxu0 %v5887
    %5925 = vmatprep.subr.bf16.mxu0 0
    %5926 = vmatpush1.bf16.msra.mxu0 %v5888
    %5927 = vmatprep.subr.bf16.mxu0 0
    %5928 = vmatpush1.bf16.msra.mxu0 %v5889
    %5929 = vmatprep.subr.bf16.mxu0 0
    %5930 = vmatpush1.bf16.msra.mxu0 %v5890
    %5931 = vmatprep.subr.bf16.mxu0 0
    %5932 = vmatpush1.bf16.msra.mxu0 %v5891
    %5933 = vmatprep.subr.bf16.mxu0 0
    %5934 = vmatpush1.bf16.msra.mxu0 %v5892
    %5935 = vmatprep.subr.bf16.mxu0 0
    %5936 = vmatpush1.bf16.msra.mxu0 0
    %5937 = vmatprep.subr.bf16.mxu0 0
    %5938 = vmatpush1.bf16.msra.mxu0 0
    %5939 = vmatprep.mubr.bf16.mxu0 %v5685
    %5940 = vmatmul.mubr.bf16.gmra.mrb[0].mxu0 %v5557
    %v5941 = vpop.f32.mrb[0].mxu0
    %v5942 = vadd.f32 0.0, %v5941
    %v5943 = vpop.f32.mrb[0].mxu0
    %v5944 = vpop.f32.mrb[0].mxu0
    %v5945 = vadd.f32 0.0, %v5944
    %v5946 = vpop.f32.mrb[0].mxu0
    %5947 = vmatprep.mubr.bf16.mxu0 %v5688
    %5948 = vmatmul.mubr.bf16.gmra.mrb[0].mxu0 %v5559
    %v5949 = vpop.f32.mrb[0].mxu0
    %v5950 = vadd.f32 0.0, %v5949
    %v5951 = vpop.f32.mrb[0].mxu0
    %v5952 = vpop.f32.mrb[0].mxu0
    %v5953 = vadd.f32 0.0, %v5952
    %v5954 = vpop.f32.mrb[0].mxu0
    %5955 = vmatprep.mubr.bf16.mxu0 %v5691
    %5956 = vmatmul.mubr.bf16.gmra.mrb[0].mxu0 %v5561
    %v5957 = vpop.f32.mrb[0].mxu0
    %v5958 = vadd.f32 0.0, %v5957
    %v5959 = vpop.f32.mrb[0].mxu0
    %v5960 = vpop.f32.mrb[0].mxu0
    %v5961 = vadd.f32 0.0, %v5960
    %v5962 = vpop.f32.mrb[0].mxu0
    %5963 = vmatprep.mubr.bf16.mxu0 %v5694
    %5964 = vmatmul.mubr.bf16.gmra.mrb[0].mxu0 %v5563
    %v5965 = vpop.f32.mrb[0].mxu0
    %v5966 = vadd.f32 0.0, %v5965
    %v5967 = vpop.f32.mrb[0].mxu0
    %v5968 = vpop.f32.mrb[0].mxu0
    %v5969 = vadd.f32 0.0, %v5968
    %v5970 = vpop.f32.mrb[0].mxu0
    %5971 = vmatprep.mubr.bf16.mxu0 %v5697
    %5972 = vmatmul.mubr.bf16.gmra.mrb[0].mxu0 %v5565
    %v5973 = vpop.f32.mrb[0].mxu0
    %v5974 = vadd.f32 0.0, %v5973
    %v5975 = vpop.f32.mrb[0].mxu0
    %v5976 = vpop.f32.mrb[0].mxu0
    %v5977 = vadd.f32 0.0, %v5976
    %v5978 = vpop.f32.mrb[0].mxu0
    %5979 = vmatprep.mubr.bf16.mxu0 %v5700
    %5980 = vmatmul.mubr.bf16.gmra.mrb[0].mxu0 %v5567
    %v5981 = vpop.f32.mrb[0].mxu0
    %v5982 = vadd.f32 0.0, %v5981
    %v5983 = vpop.f32.mrb[0].mxu0
    %v5984 = vpop.f32.mrb[0].mxu0
    %v5985 = vadd.f32 0.0, %v5984
    %v5986 = vpop.f32.mrb[0].mxu0
    %5987 = vmatprep.mubr.bf16.mxu0 %v5703
    %5988 = vmatmul.mubr.bf16.gmra.mrb[0].mxu0 %v5569
    %v5989 = vpop.f32.mrb[0].mxu0
    %v5990 = vadd.f32 0.0, %v5989
    %v5991 = vpop.f32.mrb[0].mxu0
    %v5992 = vpop.f32.mrb[0].mxu0
    %v5993 = vadd.f32 0.0, %v5992
    %v5994 = vpop.f32.mrb[0].mxu0
    %5995 = vdwg.mxu0
    %v5996 = vmax.f32 %v5740, %v5942
    %v5997 = vmax.f32 %v5743, %v5945
    %v5998 = vmax.f32 %v5748, %v5950
    %v5999 = vmax.f32 %v5751, %v5953
    %v6000 = vmax.f32 %v5756, %v5958
    %v6001 = vmax.f32 %v5759, %v5961
    %v6002 = vmax.f32 %v5764, %v5966
    %v6003 = vmax.f32 %v5767, %v5969
    %v6004 = vmax.f32 %v5772, %v5974
    %v6005 = vmax.f32 %v5775, %v5977
    %v6006 = vmax.f32 %v5780, %v5982
    %v6007 = vmax.f32 %v5783, %v5985
    %v6008 = vmax.f32 %v5788, %v5990
    %v6009 = vmax.f32 %v5791, %v5993
    %v6010 = vpack.c.bf16 %v5997, %v5996
    %v6011 = vpack.c.bf16 %v5999, %v5998
    %v6012 = vpack.c.bf16 %v6001, %v6000
    %v6013 = vpack.c.bf16 %v6003, %v6002
    %v6014 = vpack.c.bf16 %v6005, %v6004
    %v6015 = vpack.c.bf16 %v6007, %v6006
    %v6016 = vpack.c.bf16 %v6009, %v6008
    %v6017 = vld [vmem:[#allocation12] sm:$0xf]
    %v6018 = vld [vmem:[#allocation12 + $0x4] sm:$0xf]
    %v6019 = vld [vmem:[#allocation12 + $0x8] sm:$0xf]
    %v6020 = vld [vmem:[#allocation12 + $0xc] sm:$0xf]
    %v6021 = vld [vmem:[#allocation12 + $0x10] sm:$0xf]
    %v6022 = vld [vmem:[#allocation12 + $0x14] sm:$0xf]
    %v6023 = vld [vmem:[#allocation12 + $0x18] sm:$0xf]
    %v6024 = vld [vmem:[#allocation12 + $0x1c] sm:$0xf]
    %v6025 = vld [vmem:[#allocation12 + $0x20] sm:$0xf]
    %v6026 = vld [vmem:[#allocation12 + $0x24] sm:$0xf]
    %v6027 = vld [vmem:[#allocation12 + $0x28] sm:$0xf]
    %v6028 = vld [vmem:[#allocation12 + $0x2c] sm:$0xf]
    %v6029 = vld [vmem:[#allocation12 + $0x30] sm:$0xf]
    %v6030 = vld [vmem:[#allocation12 + $0x34] sm:$0xf]
    %s6031 = scalar_lea.vmem [#allocation12], 56
    %v6032 = vld [vmem:[%s6031] sm:$0xf]
    %v6033 = vld [vmem:[%s6031 + $0x4] sm:$0xf]
    %v6034 = vld [vmem:[%s6031 + $0x8] sm:$0xf]
    %v6035 = vld [vmem:[%s6031 + $0xc] sm:$0xf]
    %v6036 = vld [vmem:[%s6031 + $0x10] sm:$0xf]
    %v6037 = vld [vmem:[%s6031 + $0x14] sm:$0xf]
    %v6038 = vld [vmem:[%s6031 + $0x18] sm:$0xf]
    %v6039 = vld [vmem:[%s6031 + $0x1c] sm:$0xf]
    %v6040 = vld [vmem:[%s6031 + $0x20] sm:$0xf]
    %v6041 = vld [vmem:[%s6031 + $0x24] sm:$0xf]
    %v6042 = vld [vmem:[%s6031 + $0x28] sm:$0xf]
    %v6043 = vld [vmem:[%s6031 + $0x2c] sm:$0xf]
    %v6044 = vld [vmem:[%s6031 + $0x30] sm:$0xf]
    %v6045 = vld [vmem:[%s6031 + $0x34] sm:$0xf]
    %v6060 = vunpack.c.l.b16 %v6032
    %v6061 = vunpack.c.l.b16 %v6033
    %v6062 = vunpack.c.l.b16 %v6034
    %v6063 = vunpack.c.l.b16 %v6035
    %v6064 = vunpack.c.l.b16 %v6036
    %v6065 = vunpack.c.l.b16 %v6037
    %v6066 = vunpack.c.l.b16 %v6038
    %v6067 = vunpack.c.l.b16 %v6039
    %v6068 = vunpack.c.l.b16 %v6040
    %v6069 = vunpack.c.l.b16 %v6041
    %v6070 = vunpack.c.l.b16 %v6042
    %v6071 = vunpack.c.l.b16 %v6043
    %v6072 = vunpack.c.l.b16 %v6044
    %v6073 = vunpack.c.l.b16 %v6045
    %v6074 = vpack.c.b16 %v6061, %v6060
    %v6075 = vpack.c.b16 %v6063, %v6062
    %v6076 = vpack.c.b16 %v6065, %v6064
    %v6077 = vpack.c.b16 %v6067, %v6066
    %v6078 = vpack.c.b16 %v6069, %v6068
    %v6079 = vpack.c.b16 %v6071, %v6070
    %v6080 = vpack.c.b16 %v6073, %v6072
    %vm6088 = vcmask 916480
    %v6090 = vsel %vm6088, %v6011, 0
    %6092 = vmatprep.subr.bf16.mxu0 0
    %6093 = vmatpush1.bf16.msra.mxu0 %v6074
    %6094 = vmatprep.subr.bf16.mxu0 0
    %6095 = vmatpush1.bf16.msra.mxu0 %v6075
    %6096 = vmatprep.subr.bf16.mxu0 0
    %6097 = vmatpush1.bf16.msra.mxu0 %v6076
    %6098 = vmatprep.subr.bf16.mxu0 0
    %6099 = vmatpush1.bf16.msra.mxu0 %v6077
    %6100 = vmatprep.subr.bf16.mxu0 0
    %6101 = vmatpush1.bf16.msra.mxu0 %v6078
    %6102 = vmatprep.subr.bf16.mxu0 0
    %6103 = vmatpush1.bf16.msra.mxu0 %v6079
    %6104 = vmatprep.subr.bf16.mxu0 0
    %6105 = vmatpush1.bf16.msra.mxu0 %v6080
    %6106 = vmatprep.subr.bf16.mxu0 0
    %6107 = vmatpush1.bf16.msra.mxu0 0
    %6108 = vmatprep.subr.bf16.mxu0 0
    %6109 = vmatpush1.bf16.msra.mxu0 0
    %6110 = vmatprep.subr.bf16.mxu0 0
    %6111 = vmatpush1.bf16.msra.mxu0 0
    %6112 = vmatprep.subr.bf16.mxu0 0
    %6113 = vmatpush1.bf16.msra.mxu0 0
    %6114 = vmatprep.subr.bf16.mxu0 0
    %6115 = vmatpush1.bf16.msra.mxu0 0
    %6116 = vmatprep.subr.bf16.mxu0 0
    %6117 = vmatpush1.bf16.msra.mxu0 0
    %6118 = vmatprep.subr.bf16.mxu0 0
    %6119 = vmatpush1.bf16.msra.mxu0 0
    %6120 = vmatprep.subr.bf16.mxu0 0
    %6121 = vmatpush1.bf16.msra.mxu0 0
    %6122 = vmatprep.subr.bf16.mxu0 0
    %6123 = vmatpush1.bf16.msra.mxu0 0
    %6124 = vmatprep.mubr.bf16.mxu0 0
    %6125 = vmatmul.mubr.bf16.gmra.mrb[0].mxu0 %v6090
    %v6126 = vpop.f32.mrb[0].mxu0
    %v6127 = vadd.f32 0.0, %v6126
    %v6128 = vpop.f32.mrb[0].mxu0
    %v6129 = vpop.f32.mrb[0].mxu0
    %v6130 = vadd.f32 0.0, %v6129
    %v6131 = vpop.f32.mrb[0].mxu0
    %6132 = vdwg.mxu0
    %v6147 = vunpack.c.l.b16 %v6017
    %v6148 = vunpack.c.l.b16 %v6018
    %v6149 = vunpack.c.l.b16 %v6019
    %v6150 = vunpack.c.l.b16 %v6020
    %v6151 = vunpack.c.l.b16 %v6021
    %v6152 = vunpack.c.l.b16 %v6022
    %v6153 = vunpack.c.l.b16 %v6023
    %v6154 = vunpack.c.l.b16 %v6024
    %v6155 = vunpack.c.l.b16 %v6025
    %v6156 = vunpack.c.l.b16 %v6026
    %v6157 = vunpack.c.l.b16 %v6027
    %v6158 = vunpack.c.l.b16 %v6028
    %v6159 = vunpack.c.l.b16 %v6029
    %v6160 = vunpack.c.l.b16 %v6030
    %v6161 = vpack.c.b16 %v6148, %v6147
    %v6162 = vpack.c.b16 %v6150, %v6149
    %v6163 = vpack.c.b16 %v6152, %v6151
    %v6164 = vpack.c.b16 %v6154, %v6153
    %v6165 = vpack.c.b16 %v6156, %v6155
    %v6166 = vpack.c.b16 %v6158, %v6157
    %v6167 = vpack.c.b16 %v6160, %v6159
    %v6176 = vsel %vm6088, %v6010, 0
    %6178 = vmatprep.subr.bf16.mxu0 0
    %6179 = vmatpush1.bf16.msra.mxu0 %v6161
    %6180 = vmatprep.subr.bf16.mxu0 0
    %6181 = vmatpush1.bf16.msra.mxu0 %v6162
    %6182 = vmatprep.subr.bf16.mxu0 0
    %6183 = vmatpush1.bf16.msra.mxu0 %v6163
    %6184 = vmatprep.subr.bf16.mxu0 0
    %6185 = vmatpush1.bf16.msra.mxu0 %v6164
    %6186 = vmatprep.subr.bf16.mxu0 0
    %6187 = vmatpush1.bf16.msra.mxu0 %v6165
    %6188 = vmatprep.subr.bf16.mxu0 0
    %6189 = vmatpush1.bf16.msra.mxu0 %v6166
    %6190 = vmatprep.subr.bf16.mxu0 0
    %6191 = vmatpush1.bf16.msra.mxu0 %v6167
    %6192 = vmatprep.subr.bf16.mxu0 0
    %6193 = vmatpush1.bf16.msra.mxu0 0
    %6194 = vmatprep.subr.bf16.mxu0 0
    %6195 = vmatpush1.bf16.msra.mxu0 0
    %6196 = vmatprep.subr.bf16.mxu0 0
    %6197 = vmatpush1.bf16.msra.mxu0 0
    %6198 = vmatprep.subr.bf16.mxu0 0
    %6199 = vmatpush1.bf16.msra.mxu0 0
    %6200 = vmatprep.subr.bf16.mxu0 0
    %6201 = vmatpush1.bf16.msra.mxu0 0
    %6202 = vmatprep.subr.bf16.mxu0 0
    %6203 = vmatpush1.bf16.msra.mxu0 0
    %6204 = vmatprep.subr.bf16.mxu0 0
    %6205 = vmatpush1.bf16.msra.mxu0 0
    %6206 = vmatprep.subr.bf16.mxu0 0
    %6207 = vmatpush1.bf16.msra.mxu0 0
    %6208 = vmatprep.subr.bf16.mxu0 0
    %6209 = vmatpush1.bf16.msra.mxu0 0
    %6210 = vmatprep.mubr.bf16.mxu0 0
    %6211 = vmatmul.mubr.bf16.gmra.mrb[0].mxu0 %v6176
    %v6212 = vpop.f32.mrb[0].mxu0
    %v6213 = vadd.f32 %v6127, %v6212
    %v6214 = vpop.f32.mrb[0].mxu0
    %v6215 = vpop.f32.mrb[0].mxu0
    %v6216 = vadd.f32 %v6130, %v6215
    %v6217 = vpop.f32.mrb[0].mxu0
    %6218 = vdwg.mxu0
    %s6219 = scalar_lea.vmem [#allocation12], 112
    %v6220 = vld [vmem:[%s6219] sm:$0xf]
    %v6221 = vld [vmem:[%s6219 + $0x4] sm:$0xf]
    %v6222 = vld [vmem:[%s6219 + $0x8] sm:$0xf]
    %v6223 = vld [vmem:[%s6219 + $0xc] sm:$0xf]
    %v6224 = vld [vmem:[%s6219 + $0x10] sm:$0xf]
    %v6225 = vld [vmem:[%s6219 + $0x14] sm:$0xf]
    %v6226 = vld [vmem:[%s6219 + $0x18] sm:$0xf]
    %v6227 = vld [vmem:[%s6219 + $0x1c] sm:$0xf]
    %v6228 = vld [vmem:[%s6219 + $0x20] sm:$0xf]
    %v6229 = vld [vmem:[%s6219 + $0x24] sm:$0xf]
    %v6230 = vld [vmem:[%s6219 + $0x28] sm:$0xf]
    %v6231 = vld [vmem:[%s6219 + $0x2c] sm:$0xf]
    %v6232 = vld [vmem:[%s6219 + $0x30] sm:$0xf]
    %v6233 = vld [vmem:[%s6219 + $0x34] sm:$0xf]
    %v6248 = vunpack.c.l.b16 %v6220
    %v6249 = vunpack.c.l.b16 %v6221
    %v6250 = vunpack.c.l.b16 %v6222
    %v6251 = vunpack.c.l.b16 %v6223
    %v6252 = vunpack.c.l.b16 %v6224
    %v6253 = vunpack.c.l.b16 %v6225
    %v6254 = vunpack.c.l.b16 %v6226
    %v6255 = vunpack.c.l.b16 %v6227
    %v6256 = vunpack.c.l.b16 %v6228
    %v6257 = vunpack.c.l.b16 %v6229
    %v6258 = vunpack.c.l.b16 %v6230
    %v6259 = vunpack.c.l.b16 %v6231
    %v6260 = vunpack.c.l.b16 %v6232
    %v6261 = vunpack.c.l.b16 %v6233
    %v6262 = vpack.c.b16 %v6249, %v6248
    %v6263 = vpack.c.b16 %v6251, %v6250
    %v6264 = vpack.c.b16 %v6253, %v6252
    %v6265 = vpack.c.b16 %v6255, %v6254
    %v6266 = vpack.c.b16 %v6257, %v6256
    %v6267 = vpack.c.b16 %v6259, %v6258
    %v6268 = vpack.c.b16 %v6261, %v6260
    %v6277 = vsel %vm6088, %v6012, 0
    %6279 = vmatprep.subr.bf16.mxu0 0
    %6280 = vmatpush1.bf16.msra.mxu0 %v6262
    %6281 = vmatprep.subr.bf16.mxu0 0
    %6282 = vmatpush1.bf16.msra.mxu0 %v6263
    %6283 = vmatprep.subr.bf16.mxu0 0
    %6284 = vmatpush1.bf16.msra.mxu0 %v6264
    %6285 = vmatprep.subr.bf16.mxu0 0
    %6286 = vmatpush1.bf16.msra.mxu0 %v6265
    %6287 = vmatprep.subr.bf16.mxu0 0
    %6288 = vmatpush1.bf16.msra.mxu0 %v6266
    %6289 = vmatprep.subr.bf16.mxu0 0
    %6290 = vmatpush1.bf16.msra.mxu0 %v6267
    %6291 = vmatprep.subr.bf16.mxu0 0
    %6292 = vmatpush1.bf16.msra.mxu0 %v6268
    %6293 = vmatprep.subr.bf16.mxu0 0
    %6294 = vmatpush1.bf16.msra.mxu0 0
    %6295 = vmatprep.subr.bf16.mxu0 0
    %6296 = vmatpush1.bf16.msra.mxu0 0
    %6297 = vmatprep.subr.bf16.mxu0 0
    %6298 = vmatpush1.bf16.msra.mxu0 0
    %6299 = vmatprep.subr.bf16.mxu0 0
    %6300 = vmatpush1.bf16.msra.mxu0 0
    %6301 = vmatprep.subr.bf16.mxu0 0
    %6302 = vmatpush1.bf16.msra.mxu0 0
    %6303 = vmatprep.subr.bf16.mxu0 0
    %6304 = vmatpush1.bf16.msra.mxu0 0
    %6305 = vmatprep.subr.bf16.mxu0 0
    %6306 = vmatpush1.bf16.msra.mxu0 0
    %6307 = vmatprep.subr.bf16.mxu0 0
    %6308 = vmatpush1.bf16.msra.mxu0 0
    %6309 = vmatprep.subr.bf16.mxu0 0
    %6310 = vmatpush1.bf16.msra.mxu0 0
    %6311 = vmatprep.mubr.bf16.mxu0 0
    %6312 = vmatmul.mubr.bf16.gmra.mrb[0].mxu0 %v6277
    %v6313 = vpop.f32.mrb[0].mxu0
    %v6314 = vadd.f32 0.0, %v6313
    %v6315 = vpop.f32.mrb[0].mxu0
    %v6316 = vpop.f32.mrb[0].mxu0
    %v6317 = vadd.f32 0.0, %v6316
    %v6318 = vpop.f32.mrb[0].mxu0
    %6319 = vdwg.mxu0
    %v6320 = vadd.f32 %v6213, %v6314
    %v6321 = vadd.f32 %v6216, %v6317
    %s6322 = scalar_lea.vmem [#allocation12], 168
    %v6323 = vld [vmem:[%s6322] sm:$0xf]
    %v6324 = vld [vmem:[%s6322 + $0x4] sm:$0xf]
    %v6325 = vld [vmem:[%s6322 + $0x8] sm:$0xf]
    %v6326 = vld [vmem:[%s6322 + $0xc] sm:$0xf]
    %v6327 = vld [vmem:[%s6322 + $0x10] sm:$0xf]
    %v6328 = vld [vmem:[%s6322 + $0x14] sm:$0xf]
    %v6329 = vld [vmem:[%s6322 + $0x18] sm:$0xf]
    %v6330 = vld [vmem:[%s6322 + $0x1c] sm:$0xf]
    %v6331 = vld [vmem:[%s6322 + $0x20] sm:$0xf]
    %v6332 = vld [vmem:[%s6322 + $0x24] sm:$0xf]
    %v6333 = vld [vmem:[%s6322 + $0x28] sm:$0xf]
    %v6334 = vld [vmem:[%s6322 + $0x2c] sm:$0xf]
    %v6335 = vld [vmem:[%s6322 + $0x30] sm:$0xf]
    %v6336 = vld [vmem:[%s6322 + $0x34] sm:$0xf]
    %v6351 = vunpack.c.l.b16 %v6323
    %v6352 = vunpack.c.l.b16 %v6324
    %v6353 = vunpack.c.l.b16 %v6325
    %v6354 = vunpack.c.l.b16 %v6326
    %v6355 = vunpack.c.l.b16 %v6327
    %v6356 = vunpack.c.l.b16 %v6328
    %v6357 = vunpack.c.l.b16 %v6329
    %v6358 = vunpack.c.l.b16 %v6330
    %v6359 = vunpack.c.l.b16 %v6331
    %v6360 = vunpack.c.l.b16 %v6332
    %v6361 = vunpack.c.l.b16 %v6333
    %v6362 = vunpack.c.l.b16 %v6334
    %v6363 = vunpack.c.l.b16 %v6335
    %v6364 = vunpack.c.l.b16 %v6336
    %v6365 = vpack.c.b16 %v6352, %v6351
    %v6366 = vpack.c.b16 %v6354, %v6353
    %v6367 = vpack.c.b16 %v6356, %v6355
    %v6368 = vpack.c.b16 %v6358, %v6357
    %v6369 = vpack.c.b16 %v6360, %v6359
    %v6370 = vpack.c.b16 %v6362, %v6361
    %v6371 = vpack.c.b16 %v6364, %v6363
    %v6380 = vsel %vm6088, %v6013, 0
    %6382 = vmatprep.subr.bf16.mxu0 0
    %6383 = vmatpush1.bf16.msra.mxu0 %v6365
    %6384 = vmatprep.subr.bf16.mxu0 0
    %6385 = vmatpush1.bf16.msra.mxu0 %v6366
    %6386 = vmatprep.subr.bf16.mxu0 0
    %6387 = vmatpush1.bf16.msra.mxu0 %v6367
    %6388 = vmatprep.subr.bf16.mxu0 0
    %6389 = vmatpush1.bf16.msra.mxu0 %v6368
    %6390 = vmatprep.subr.bf16.mxu0 0
    %6391 = vmatpush1.bf16.msra.mxu0 %v6369
    %6392 = vmatprep.subr.bf16.mxu0 0
    %6393 = vmatpush1.bf16.msra.mxu0 %v6370
    %6394 = vmatprep.subr.bf16.mxu0 0
    %6395 = vmatpush1.bf16.msra.mxu0 %v6371
    %6396 = vmatprep.subr.bf16.mxu0 0
    %6397 = vmatpush1.bf16.msra.mxu0 0
    %6398 = vmatprep.subr.bf16.mxu0 0
    %6399 = vmatpush1.bf16.msra.mxu0 0
    %6400 = vmatprep.subr.bf16.mxu0 0
    %6401 = vmatpush1.bf16.msra.mxu0 0
    %6402 = vmatprep.subr.bf16.mxu0 0
    %6403 = vmatpush1.bf16.msra.mxu0 0
    %6404 = vmatprep.subr.bf16.mxu0 0
    %6405 = vmatpush1.bf16.msra.mxu0 0
    %6406 = vmatprep.subr.bf16.mxu0 0
    %6407 = vmatpush1.bf16.msra.mxu0 0
    %6408 = vmatprep.subr.bf16.mxu0 0
    %6409 = vmatpush1.bf16.msra.mxu0 0
    %6410 = vmatprep.subr.bf16.mxu0 0
    %6411 = vmatpush1.bf16.msra.mxu0 0
    %6412 = vmatprep.subr.bf16.mxu0 0
    %6413 = vmatpush1.bf16.msra.mxu0 0
    %6414 = vmatprep.mubr.bf16.mxu0 0
    %6415 = vmatmul.mubr.bf16.gmra.mrb[0].mxu0 %v6380
    %v6416 = vpop.f32.mrb[0].mxu0
    %v6417 = vadd.f32 0.0, %v6416
    %v6418 = vpop.f32.mrb[0].mxu0
    %v6419 = vpop.f32.mrb[0].mxu0
    %v6420 = vadd.f32 0.0, %v6419
    %v6421 = vpop.f32.mrb[0].mxu0
    %6422 = vdwg.mxu0
    %v6423 = vadd.f32 %v6320, %v6417
    %v6424 = vadd.f32 %v6321, %v6420
    %s6425 = scalar_lea.vmem [#allocation12], 224
    %v6426 = vld [vmem:[%s6425] sm:$0xf]
    %v6427 = vld [vmem:[%s6425 + $0x4] sm:$0xf]
    %v6428 = vld [vmem:[%s6425 + $0x8] sm:$0xf]
    %v6429 = vld [vmem:[%s6425 + $0xc] sm:$0xf]
    %v6430 = vld [vmem:[%s6425 + $0x10] sm:$0xf]
    %v6431 = vld [vmem:[%s6425 + $0x14] sm:$0xf]
    %v6432 = vld [vmem:[%s6425 + $0x18] sm:$0xf]
    %v6433 = vld [vmem:[%s6425 + $0x1c] sm:$0xf]
    %v6434 = vld [vmem:[%s6425 + $0x20] sm:$0xf]
    %v6435 = vld [vmem:[%s6425 + $0x24] sm:$0xf]
    %v6436 = vld [vmem:[%s6425 + $0x28] sm:$0xf]
    %v6437 = vld [vmem:[%s6425 + $0x2c] sm:$0xf]
    %v6438 = vld [vmem:[%s6425 + $0x30] sm:$0xf]
    %v6439 = vld [vmem:[%s6425 + $0x34] sm:$0xf]
    %v6454 = vunpack.c.l.b16 %v6426
    %v6455 = vunpack.c.l.b16 %v6427
    %v6456 = vunpack.c.l.b16 %v6428
    %v6457 = vunpack.c.l.b16 %v6429
    %v6458 = vunpack.c.l.b16 %v6430
    %v6459 = vunpack.c.l.b16 %v6431
    %v6460 = vunpack.c.l.b16 %v6432
    %v6461 = vunpack.c.l.b16 %v6433
    %v6462 = vunpack.c.l.b16 %v6434
    %v6463 = vunpack.c.l.b16 %v6435
    %v6464 = vunpack.c.l.b16 %v6436
    %v6465 = vunpack.c.l.b16 %v6437
    %v6466 = vunpack.c.l.b16 %v6438
    %v6467 = vunpack.c.l.b16 %v6439
    %v6468 = vpack.c.b16 %v6455, %v6454
    %v6469 = vpack.c.b16 %v6457, %v6456
    %v6470 = vpack.c.b16 %v6459, %v6458
    %v6471 = vpack.c.b16 %v6461, %v6460
    %v6472 = vpack.c.b16 %v6463, %v6462
    %v6473 = vpack.c.b16 %v6465, %v6464
    %v6474 = vpack.c.b16 %v6467, %v6466
    %v6483 = vsel %vm6088, %v6014, 0
    %6485 = vmatprep.subr.bf16.mxu0 0
    %6486 = vmatpush1.bf16.msra.mxu0 %v6468
    %6487 = vmatprep.subr.bf16.mxu0 0
    %6488 = vmatpush1.bf16.msra.mxu0 %v6469
    %6489 = vmatprep.subr.bf16.mxu0 0
    %6490 = vmatpush1.bf16.msra.mxu0 %v6470
    %6491 = vmatprep.subr.bf16.mxu0 0
    %6492 = vmatpush1.bf16.msra.mxu0 %v6471
    %6493 = vmatprep.subr.bf16.mxu0 0
    %6494 = vmatpush1.bf16.msra.mxu0 %v6472
    %6495 = vmatprep.subr.bf16.mxu0 0
    %6496 = vmatpush1.bf16.msra.mxu0 %v6473
    %6497 = vmatprep.subr.bf16.mxu0 0
    %6498 = vmatpush1.bf16.msra.mxu0 %v6474
    %6499 = vmatprep.subr.bf16.mxu0 0
    %6500 = vmatpush1.bf16.msra.mxu0 0
    %6501 = vmatprep.subr.bf16.mxu0 0
    %6502 = vmatpush1.bf16.msra.mxu0 0
    %6503 = vmatprep.subr.bf16.mxu0 0
    %6504 = vmatpush1.bf16.msra.mxu0 0
    %6505 = vmatprep.subr.bf16.mxu0 0
    %6506 = vmatpush1.bf16.msra.mxu0 0
    %6507 = vmatprep.subr.bf16.mxu0 0
    %6508 = vmatpush1.bf16.msra.mxu0 0
    %6509 = vmatprep.subr.bf16.mxu0 0
    %6510 = vmatpush1.bf16.msra.mxu0 0
    %6511 = vmatprep.subr.bf16.mxu0 0
    %6512 = vmatpush1.bf16.msra.mxu0 0
    %6513 = vmatprep.subr.bf16.mxu0 0
    %6514 = vmatpush1.bf16.msra.mxu0 0
    %6515 = vmatprep.subr.bf16.mxu0 0
    %6516 = vmatpush1.bf16.msra.mxu0 0
    %6517 = vmatprep.mubr.bf16.mxu0 0
    %6518 = vmatmul.mubr.bf16.gmra.mrb[0].mxu0 %v6483
    %v6519 = vpop.f32.mrb[0].mxu0
    %v6520 = vadd.f32 0.0, %v6519
    %v6521 = vpop.f32.mrb[0].mxu0
    %v6522 = vpop.f32.mrb[0].mxu0
    %v6523 = vadd.f32 0.0, %v6522
    %v6524 = vpop.f32.mrb[0].mxu0
    %6525 = vdwg.mxu0
    %v6526 = vadd.f32 %v6423, %v6520
    %v6527 = vadd.f32 %v6424, %v6523
    %s6528 = scalar_lea.vmem [#allocation12], 280
    %v6529 = vld [vmem:[%s6528] sm:$0xf]
    %v6530 = vld [vmem:[%s6528 + $0x4] sm:$0xf]
    %v6531 = vld [vmem:[%s6528 + $0x8] sm:$0xf]
    %v6532 = vld [vmem:[%s6528 + $0xc] sm:$0xf]
    %v6533 = vld [vmem:[%s6528 + $0x10] sm:$0xf]
    %v6534 = vld [vmem:[%s6528 + $0x14] sm:$0xf]
    %v6535 = vld [vmem:[%s6528 + $0x18] sm:$0xf]
    %v6536 = vld [vmem:[%s6528 + $0x1c] sm:$0xf]
    %v6537 = vld [vmem:[%s6528 + $0x20] sm:$0xf]
    %v6538 = vld [vmem:[%s6528 + $0x24] sm:$0xf]
    %v6539 = vld [vmem:[%s6528 + $0x28] sm:$0xf]
    %v6540 = vld [vmem:[%s6528 + $0x2c] sm:$0xf]
    %v6541 = vld [vmem:[%s6528 + $0x30] sm:$0xf]
    %v6542 = vld [vmem:[%s6528 + $0x34] sm:$0xf]
    %v6557 = vunpack.c.l.b16 %v6529
    %v6558 = vunpack.c.l.b16 %v6530
    %v6559 = vunpack.c.l.b16 %v6531
    %v6560 = vunpack.c.l.b16 %v6532
    %v6561 = vunpack.c.l.b16 %v6533
    %v6562 = vunpack.c.l.b16 %v6534
    %v6563 = vunpack.c.l.b16 %v6535
    %v6564 = vunpack.c.l.b16 %v6536
    %v6565 = vunpack.c.l.b16 %v6537
    %v6566 = vunpack.c.l.b16 %v6538
    %v6567 = vunpack.c.l.b16 %v6539
    %v6568 = vunpack.c.l.b16 %v6540
    %v6569 = vunpack.c.l.b16 %v6541
    %v6570 = vunpack.c.l.b16 %v6542
    %v6571 = vpack.c.b16 %v6558, %v6557
    %v6572 = vpack.c.b16 %v6560, %v6559
    %v6573 = vpack.c.b16 %v6562, %v6561
    %v6574 = vpack.c.b16 %v6564, %v6563
    %v6575 = vpack.c.b16 %v6566, %v6565
    %v6576 = vpack.c.b16 %v6568, %v6567
    %v6577 = vpack.c.b16 %v6570, %v6569
    %v6586 = vsel %vm6088, %v6015, 0
    %6588 = vmatprep.subr.bf16.mxu0 0
    %6589 = vmatpush1.bf16.msra.mxu0 %v6571
    %6590 = vmatprep.subr.bf16.mxu0 0
    %6591 = vmatpush1.bf16.msra.mxu0 %v6572
    %6592 = vmatprep.subr.bf16.mxu0 0
    %6593 = vmatpush1.bf16.msra.mxu0 %v6573
    %6594 = vmatprep.subr.bf16.mxu0 0
    %6595 = vmatpush1.bf16.msra.mxu0 %v6574
    %6596 = vmatprep.subr.bf16.mxu0 0
    %6597 = vmatpush1.bf16.msra.mxu0 %v6575
    %6598 = vmatprep.subr.bf16.mxu0 0
    %6599 = vmatpush1.bf16.msra.mxu0 %v6576
    %6600 = vmatprep.subr.bf16.mxu0 0
    %6601 = vmatpush1.bf16.msra.mxu0 %v6577
    %6602 = vmatprep.subr.bf16.mxu0 0
    %6603 = vmatpush1.bf16.msra.mxu0 0
    %6604 = vmatprep.subr.bf16.mxu0 0
    %6605 = vmatpush1.bf16.msra.mxu0 0
    %6606 = vmatprep.subr.bf16.mxu0 0
    %6607 = vmatpush1.bf16.msra.mxu0 0
    %6608 = vmatprep.subr.bf16.mxu0 0
    %6609 = vmatpush1.bf16.msra.mxu0 0
    %6610 = vmatprep.subr.bf16.mxu0 0
    %6611 = vmatpush1.bf16.msra.mxu0 0
    %6612 = vmatprep.subr.bf16.mxu0 0
    %6613 = vmatpush1.bf16.msra.mxu0 0
    %6614 = vmatprep.subr.bf16.mxu0 0
    %6615 = vmatpush1.bf16.msra.mxu0 0
    %6616 = vmatprep.subr.bf16.mxu0 0
    %6617 = vmatpush1.bf16.msra.mxu0 0
    %6618 = vmatprep.subr.bf16.mxu0 0
    %6619 = vmatpush1.bf16.msra.mxu0 0
    %6620 = vmatprep.mubr.bf16.mxu0 0
    %6621 = vmatmul.mubr.bf16.gmra.mrb[0].mxu0 %v6586
    %v6622 = vpop.f32.mrb[0].mxu0
    %v6623 = vadd.f32 0.0, %v6622
    %v6624 = vpop.f32.mrb[0].mxu0
    %v6625 = vpop.f32.mrb[0].mxu0
    %v6626 = vadd.f32 0.0, %v6625
    %v6627 = vpop.f32.mrb[0].mxu0
    %6628 = vdwg.mxu0
    %v6629 = vadd.f32 %v6526, %v6623
    %v6630 = vadd.f32 %v6527, %v6626
    %s6631 = scalar_lea.vmem [#allocation12], 336
    %v6632 = vld [vmem:[%s6631] sm:$0xf]
    %v6633 = vld [vmem:[%s6631 + $0x4] sm:$0xf]
    %v6634 = vld [vmem:[%s6631 + $0x8] sm:$0xf]
    %v6635 = vld [vmem:[%s6631 + $0xc] sm:$0xf]
    %v6636 = vld [vmem:[%s6631 + $0x10] sm:$0xf]
    %v6637 = vld [vmem:[%s6631 + $0x14] sm:$0xf]
    %v6638 = vld [vmem:[%s6631 + $0x18] sm:$0xf]
    %v6639 = vld [vmem:[%s6631 + $0x1c] sm:$0xf]
    %v6640 = vld [vmem:[%s6631 + $0x20] sm:$0xf]
    %v6641 = vld [vmem:[%s6631 + $0x24] sm:$0xf]
    %v6642 = vld [vmem:[%s6631 + $0x28] sm:$0xf]
    %v6643 = vld [vmem:[%s6631 + $0x2c] sm:$0xf]
    %v6644 = vld [vmem:[%s6631 + $0x30] sm:$0xf]
    %v6645 = vld [vmem:[%s6631 + $0x34] sm:$0xf]
    %v6660 = vunpack.c.l.b16 %v6632
    %v6661 = vunpack.c.l.b16 %v6633
    %v6662 = vunpack.c.l.b16 %v6634
    %v6663 = vunpack.c.l.b16 %v6635
    %v6664 = vunpack.c.l.b16 %v6636
    %v6665 = vunpack.c.l.b16 %v6637
    %v6666 = vunpack.c.l.b16 %v6638
    %v6667 = vunpack.c.l.b16 %v6639
    %v6668 = vunpack.c.l.b16 %v6640
    %v6669 = vunpack.c.l.b16 %v6641
    %v6670 = vunpack.c.l.b16 %v6642
    %v6671 = vunpack.c.l.b16 %v6643
    %v6672 = vunpack.c.l.b16 %v6644
    %v6673 = vunpack.c.l.b16 %v6645
    %v6674 = vpack.c.b16 %v6661, %v6660
    %v6675 = vpack.c.b16 %v6663, %v6662
    %v6676 = vpack.c.b16 %v6665, %v6664
    %v6677 = vpack.c.b16 %v6667, %v6666
    %v6678 = vpack.c.b16 %v6669, %v6668
    %v6679 = vpack.c.b16 %v6671, %v6670
    %v6680 = vpack.c.b16 %v6673, %v6672
    %v6689 = vsel %vm6088, %v6016, 0
    %6691 = vmatprep.subr.bf16.mxu0 0
    %6692 = vmatpush1.bf16.msra.mxu0 %v6674
    %6693 = vmatprep.subr.bf16.mxu0 0
    %6694 = vmatpush1.bf16.msra.mxu0 %v6675
    %6695 = vmatprep.subr.bf16.mxu0 0
    %6696 = vmatpush1.bf16.msra.mxu0 %v6676
    %6697 = vmatprep.subr.bf16.mxu0 0
    %6698 = vmatpush1.bf16.msra.mxu0 %v6677
    %6699 = vmatprep.subr.bf16.mxu0 0
    %6700 = vmatpush1.bf16.msra.mxu0 %v6678
    %6701 = vmatprep.subr.bf16.mxu0 0
    %6702 = vmatpush1.bf16.msra.mxu0 %v6679
    %6703 = vmatprep.subr.bf16.mxu0 0
    %6704 = vmatpush1.bf16.msra.mxu0 %v6680
    %6705 = vmatprep.subr.bf16.mxu0 0
    %6706 = vmatpush1.bf16.msra.mxu0 0
    %6707 = vmatprep.subr.bf16.mxu0 0
    %6708 = vmatpush1.bf16.msra.mxu0 0
    %6709 = vmatprep.subr.bf16.mxu0 0
    %6710 = vmatpush1.bf16.msra.mxu0 0
    %6711 = vmatprep.subr.bf16.mxu0 0
    %6712 = vmatpush1.bf16.msra.mxu0 0
    %6713 = vmatprep.subr.bf16.mxu0 0
    %6714 = vmatpush1.bf16.msra.mxu0 0
    %6715 = vmatprep.subr.bf16.mxu0 0
    %6716 = vmatpush1.bf16.msra.mxu0 0
    %6717 = vmatprep.subr.bf16.mxu0 0
    %6718 = vmatpush1.bf16.msra.mxu0 0
    %6719 = vmatprep.subr.bf16.mxu0 0
    %6720 = vmatpush1.bf16.msra.mxu0 0
    %6721 = vmatprep.subr.bf16.mxu0 0
    %6722 = vmatpush1.bf16.msra.mxu0 0
    %6723 = vmatprep.mubr.bf16.mxu0 0
    %6724 = vmatmul.mubr.bf16.gmra.mrb[0].mxu0 %v6689
    %v6725 = vpop.f32.mrb[0].mxu0
    %v6726 = vadd.f32 0.0, %v6725
    %v6727 = vpop.f32.mrb[0].mxu0
    %v6728 = vpop.f32.mrb[0].mxu0
    %v6729 = vadd.f32 0.0, %v6728
    %v6730 = vpop.f32.mrb[0].mxu0
    %6731 = vdwg.mxu0
    %v6732 = vadd.f32 %v6629, %v6726
    %v6733 = vadd.f32 %v6630, %v6729
    %v6734 = vld [vmem:[#allocation14] sm:$0x1]
    %v6736 = vlaneseq
    %v6737 = vshrl.u32 %v6736, 7
    %v6738 = vsub.s32 0, %v6737
    %v6739 = vrot.slane %v6734, %v6738
    %v6741 = vadd.f32 %v6732, %v6739
    %v6742 = vadd.f32 %v6733, %v6739
    %v6743 = vmax.f32 %v6741, 0.0
    %v6744 = vmax.f32 %v6742, 0.0
    %v6745 = vpack.c.bf16 %v6744, %v6743
    %v6746 = vld [vmem:[%s9] sm:$0xf]
    %v6747 = vld [vmem:[%s9 + $0x4] sm:$0xf]
    %v6748 = vld [vmem:[%s9 + $0x8] sm:$0xf]
    %v6749 = vld [vmem:[%s9 + $0xc] sm:$0xf]
    %v6750 = vld [vmem:[%s9 + $0x10] sm:$0xf]
    %v6751 = vld [vmem:[%s9 + $0x14] sm:$0xf]
    %v6752 = vld [vmem:[%s9 + $0x18] sm:$0xf]
    %v6753 = vld [vmem:[%s9 + $0x1c] sm:$0xf]
    %v6754 = vld [vmem:[%s9 + $0x20] sm:$0xf]
    %v6755 = vld [vmem:[%s9 + $0x24] sm:$0xf]
    %v6756 = vld [vmem:[%s9 + $0x28] sm:$0xf]
    %v6757 = vld [vmem:[%s9 + $0x2c] sm:$0xf]
    %v6758 = vld [vmem:[%s9 + $0x30] sm:$0xf]
    %v6759 = vld [vmem:[%s9 + $0x34] sm:$0xf]
    %v6760 = vld [vmem:[%s9 + $0x38] sm:$0xf]
    %v6761 = vld [vmem:[%s9 + $0x3c] sm:$0xf]
    %v6762 = vld [vmem:[%s10] sm:$0x1]
    %v6764 = vlaneseq
    %v6765 = vshrl.u32 %v6764, 7
    %v6766 = vsub.s32 0, %v6765
    %v6767 = vrot.slane %v6762, %v6766
    %v6785 = vunpack.c.l.b16 %v6746
    %v6786 = vunpack.c.l.b16 %v6747
    %v6787 = vunpack.c.l.b16 %v6748
    %v6788 = vunpack.c.l.b16 %v6749
    %v6789 = vunpack.c.l.b16 %v6750
    %v6790 = vunpack.c.l.b16 %v6751
    %v6791 = vunpack.c.l.b16 %v6752
    %v6792 = vunpack.c.l.b16 %v6753
    %v6793 = vunpack.c.l.b16 %v6754
    %v6794 = vunpack.c.l.b16 %v6755
    %v6795 = vunpack.c.l.b16 %v6756
    %v6796 = vunpack.c.l.b16 %v6757
    %v6797 = vunpack.c.l.b16 %v6758
    %v6798 = vunpack.c.l.b16 %v6759
    %v6799 = vunpack.c.l.b16 %v6760
    %v6800 = vunpack.c.l.b16 %v6761
    %v6801 = vpack.c.b16 %v6786, %v6785
    %v6802 = vpack.c.b16 %v6788, %v6787
    %v6803 = vpack.c.b16 %v6790, %v6789
    %v6804 = vpack.c.b16 %v6792, %v6791
    %v6805 = vpack.c.b16 %v6794, %v6793
    %v6806 = vpack.c.b16 %v6796, %v6795
    %v6807 = vpack.c.b16 %v6798, %v6797
    %v6808 = vpack.c.b16 %v6800, %v6799
    %6817 = vmatprep.subr.bf16.mxu0 0
    %6818 = vmatpush1.bf16.msra.mxu0 %v6801
    %6819 = vmatprep.subr.bf16.mxu0 0
    %6820 = vmatpush1.bf16.msra.mxu0 %v6802
    %6821 = vmatprep.subr.bf16.mxu0 0
    %6822 = vmatpush1.bf16.msra.mxu0 %v6803
    %6823 = vmatprep.subr.bf16.mxu0 0
    %6824 = vmatpush1.bf16.msra.mxu0 %v6804
    %6825 = vmatprep.subr.bf16.mxu0 0
    %6826 = vmatpush1.bf16.msra.mxu0 %v6805
    %6827 = vmatprep.subr.bf16.mxu0 0
    %6828 = vmatpush1.bf16.msra.mxu0 %v6806
    %6829 = vmatprep.subr.bf16.mxu0 0
    %6830 = vmatpush1.bf16.msra.mxu0 %v6807
    %6831 = vmatprep.subr.bf16.mxu0 0
    %6832 = vmatpush1.bf16.msra.mxu0 %v6808
    %6833 = vmatprep.subr.bf16.mxu0 0
    %6834 = vmatpush1.bf16.msra.mxu0 0
    %6835 = vmatprep.subr.bf16.mxu0 0
    %6836 = vmatpush1.bf16.msra.mxu0 0
    %6837 = vmatprep.subr.bf16.mxu0 0
    %6838 = vmatpush1.bf16.msra.mxu0 0
    %6839 = vmatprep.subr.bf16.mxu0 0
    %6840 = vmatpush1.bf16.msra.mxu0 0
    %6841 = vmatprep.subr.bf16.mxu0 0
    %6842 = vmatpush1.bf16.msra.mxu0 0
    %6843 = vmatprep.subr.bf16.mxu0 0
    %6844 = vmatpush1.bf16.msra.mxu0 0
    %6845 = vmatprep.subr.bf16.mxu0 0
    %6846 = vmatpush1.bf16.msra.mxu0 0
    %6847 = vmatprep.subr.bf16.mxu0 0
    %6848 = vmatpush1.bf16.msra.mxu0 0
    %6849 = vmatprep.mubr.bf16.mxu0 0
    %6850 = vmatmul.mubr.bf16.gmra.mrb[0].mxu0 %v6745
    %v6851 = vpop.f32.mrb[0].mxu0
    %v6852 = vadd.f32 %v6767, %v6851
    %v6853 = vpop.f32.mrb[0].mxu0
    %v6854 = vpop.f32.mrb[0].mxu0
    %v6855 = vadd.f32 %v6767, %v6854
    %v6856 = vpop.f32.mrb[0].mxu0
    %6857 = vdwg.mxu0
    %v6858 = vmax.f32 %v6852, 0.0
    %v6859 = vmax.f32 %v6855, 0.0
    %v6860 = vpack.c.bf16 %v6859, %v6858
    %v6861 = vld [vmem:[%s11] sm:$0xf]
    %v6862 = vld [vmem:[%s11 + $0x4] sm:$0xf]
    %v6863 = vld [vmem:[%s11 + $0x8] sm:$0xf]
    %v6864 = vld [vmem:[%s11 + $0xc] sm:$0xf]
    %v6865 = vld [vmem:[%s11 + $0x10] sm:$0xf]
    %v6866 = vld [vmem:[%s11 + $0x14] sm:$0xf]
    %v6867 = vld [vmem:[%s11 + $0x18] sm:$0xf]
    %v6868 = vld [vmem:[%s11 + $0x1c] sm:$0xf]
    %v6869 = vld [vmem:[%s11 + $0x20] sm:$0xf]
    %v6870 = vld [vmem:[%s11 + $0x24] sm:$0xf]
    %v6871 = vld [vmem:[%s11 + $0x28] sm:$0xf]
    %v6872 = vld [vmem:[%s11 + $0x2c] sm:$0xf]
    %v6873 = vld [vmem:[%s11 + $0x30] sm:$0xf]
    %v6874 = vld [vmem:[%s11 + $0x34] sm:$0xf]
    %v6875 = vld [vmem:[%s11 + $0x38] sm:$0xf]
    %v6876 = vld [vmem:[%s11 + $0x3c] sm:$0xf]
    %v6877 = vld [vmem:[%s12] sm:$0x1]
    %v6879 = vlaneseq
    %v6880 = vshrl.u32 %v6879, 7
    %v6881 = vsub.s32 0, %v6880
    %v6882 = vrot.slane %v6877, %v6881
    %v6900 = vunpack.c.l.b16 %v6861
    %v6901 = vunpack.c.l.b16 %v6862
    %v6902 = vunpack.c.l.b16 %v6863
    %v6903 = vunpack.c.l.b16 %v6864
    %v6904 = vunpack.c.l.b16 %v6865
    %v6905 = vunpack.c.l.b16 %v6866
    %v6906 = vunpack.c.l.b16 %v6867
    %v6907 = vunpack.c.l.b16 %v6868
    %v6908 = vunpack.c.l.b16 %v6869
    %v6909 = vunpack.c.l.b16 %v6870
    %v6910 = vunpack.c.l.b16 %v6871
    %v6911 = vunpack.c.l.b16 %v6872
    %v6912 = vunpack.c.l.b16 %v6873
    %v6913 = vunpack.c.l.b16 %v6874
    %v6914 = vunpack.c.l.b16 %v6875
    %v6915 = vunpack.c.l.b16 %v6876
    %v6916 = vpack.c.b16 %v6901, %v6900
    %v6917 = vpack.c.b16 %v6903, %v6902
    %v6918 = vpack.c.b16 %v6905, %v6904
    %v6919 = vpack.c.b16 %v6907, %v6906
    %v6920 = vpack.c.b16 %v6909, %v6908
    %v6921 = vpack.c.b16 %v6911, %v6910
    %v6922 = vpack.c.b16 %v6913, %v6912
    %v6923 = vpack.c.b16 %v6915, %v6914
    %6932 = vmatprep.subr.bf16.mxu0 0
    %6933 = vmatpush1.bf16.msra.mxu0 %v6916
    %6934 = vmatprep.subr.bf16.mxu0 0
    %6935 = vmatpush1.bf16.msra.mxu0 %v6917
    %6936 = vmatprep.subr.bf16.mxu0 0
    %6937 = vmatpush1.bf16.msra.mxu0 %v6918
    %6938 = vmatprep.subr.bf16.mxu0 0
    %6939 = vmatpush1.bf16.msra.mxu0 %v6919
    %6940 = vmatprep.subr.bf16.mxu0 0
    %6941 = vmatpush1.bf16.msra.mxu0 %v6920
    %6942 = vmatprep.subr.bf16.mxu0 0
    %6943 = vmatpush1.bf16.msra.mxu0 %v6921
    %6944 = vmatprep.subr.bf16.mxu0 0
    %6945 = vmatpush1.bf16.msra.mxu0 %v6922
    %6946 = vmatprep.subr.bf16.mxu0 0
    %6947 = vmatpush1.bf16.msra.mxu0 %v6923
    %6948 = vmatprep.subr.bf16.mxu0 0
    %6949 = vmatpush1.bf16.msra.mxu0 0
    %6950 = vmatprep.subr.bf16.mxu0 0
    %6951 = vmatpush1.bf16.msra.mxu0 0
    %6952 = vmatprep.subr.bf16.mxu0 0
    %6953 = vmatpush1.bf16.msra.mxu0 0
    %6954 = vmatprep.subr.bf16.mxu0 0
    %6955 = vmatpush1.bf16.msra.mxu0 0
    %6956 = vmatprep.subr.bf16.mxu0 0
    %6957 = vmatpush1.bf16.msra.mxu0 0
    %6958 = vmatprep.subr.bf16.mxu0 0
    %6959 = vmatpush1.bf16.msra.mxu0 0
    %6960 = vmatprep.subr.bf16.mxu0 0
    %6961 = vmatpush1.bf16.msra.mxu0 0
    %6962 = vmatprep.subr.bf16.mxu0 0
    %6963 = vmatpush1.bf16.msra.mxu0 0
    %6964 = vmatprep.mubr.bf16.mxu0 0
    %6965 = vmatmul.mubr.bf16.gmra.mrb[0].mxu0 %v6860
    %v6966 = vpop.f32.mrb[0].mxu0
    %v6967 = vadd.f32 %v6882, %v6966
    %v6968 = vpop.f32.mrb[0].mxu0
    %v6969 = vpop.f32.mrb[0].mxu0
    %v6970 = vadd.f32 %v6882, %v6969
    %v6971 = vpop.f32.mrb[0].mxu0
    %6972 = vdwg.mxu0
    %v6973 = vlaneseq
    %v6974 = vand.u32 %v6973, 127
    %vm6975 = vcmp.lt.s32.totalorder %v6974, 10
    %v6976 = vsel %vm6975, %v6967, -1e+30
    %v6977 = vsel %vm6975, %v6970, -1e+30
    %6978 = vmax.xlane.f32.xlu0 %v6976
    %v6979 = vpop.xlane.xlu0 %6978
    %6980 = vmax.xlane.f32.xlu0 %v6977
    %v6981 = vpop.xlane.xlu0 %6980
    %v6982 = vsub.f32 %v6976, %v6979
    %v6983 = vsub.f32 %v6977, %v6981
    %v6984 = vmul.f32 %v6982, 1.442695
    %v6985 = vpow.pop %v6984
    %v6986 = vmul.f32 %v6983, 1.442695
    %v6987 = vpow.pop %v6986
    %6988 = vadd.xlane.f32.xlu0 %v6985
    %v6989 = vpop.xlane.xlu0 %6988
    %6990 = vadd.xlane.f32.xlu0 %v6987
    %v6991 = vpop.xlane.xlu0 %6990
    %v6992 = vlog2.pop %v6989
    %v6993 = vmul.f32 %v6992, 0.6931472
    %v6994 = vlog2.pop %v6991
    %v6995 = vmul.f32 %v6994, 0.6931472
    %v6996 = vsub.f32 %v6982, %v6993
    %v6997 = vsub.f32 %v6983, %v6995
    %6998 = vst [vmem:[%s13] sm:$0xff] %v6996
    %6999 = vst [vmem:[%s13 + $0x8] sm:$0xff] %v6997
    // Predicated region
    $region82: #{lenet_forward.1} parent=1 // pred_check
      _
    $region83: #{lenet_forward.1} parent=1 // pred_check_branch
      %7001 = sbr.rel (0) target = $region85
    $region84: #{lenet_forward.1} parent=1 // pred_region
      _
    $region85: #{lenet_forward.1} parent=1 // pred_fallthru
      _
    // Predicated region
    $region86: #{lenet_forward.1} parent=1 // pred_check
      _
    $region87: #{lenet_forward.1} parent=1 // pred_check_branch
      %7003 = sbr.rel (0) target = $region89
    $region88: #{lenet_forward.1} parent=1 // pred_region
      _
    $region89: #{lenet_forward.1} parent=1 // pred_fallthru
      _
    %7004 = vsyncpa [#allocation5], 1
    %7005 = vsyncpa [#allocation7], 1
    %7006 = vsyncpa [#allocation10], 1
    %7007 = vsyncpa [#allocation13], 1

</llo_original>
